<compile_context>
chip_gen: v7x
topology: tpu7x:2x2x1
jax: 0.10.0
libtpu: 0.0.40
codegen_flags: <defaults>
</compile_context>

<pallas_src>
import functools

import jax
import jax.numpy as jnp
from jax.experimental import pallas as pl
from jax.experimental.pallas import tpu as pltpu

BN_EPS = 1e-5
PAD = 128        # halo margin (flattened pixels) of the depthwise-conv scratch line
LEVELS = 4       # pooling levels above the innermost DULink (transform=None)
OUTC = 8         # out channels of every seperable_conv
IMG_C = 3        # DULink always concatenates a 3-channel residual image


# ---------------------------------------------------------------------------
# In-kernel helpers (trace-time Python; all data stays in vregs / VMEM)
# ---------------------------------------------------------------------------

def _cell_index(i, w):
    """Low-res (2x2-pooled) flat cell index of full-res flat pixel index i (w = power of 2)."""
    shift_w = w.bit_length() - 1
    y = jnp.right_shift(i, shift_w)
    x = jnp.bitwise_and(i, w - 1)
    return jnp.left_shift(jnp.right_shift(y, 1), shift_w - 1) + jnp.right_shift(x, 1)


def _pool_matrix(h, w):
    """(HW, HW/4) f32 selection matrix: avgpool2x2(x) == x_flat @ P (entries 0 / 0.25)."""
    hw, low = h * w, (h * w) // 4
    i = jax.lax.broadcasted_iota(jnp.int32, (hw, low), 0)
    j = jax.lax.broadcasted_iota(jnp.int32, (hw, low), 1)
    return jnp.where(_cell_index(i, w) == j, 0.25, 0.0).astype(jnp.float32)


def _up_matrix(h, w):
    """(HW/4, HW) f32 selection matrix: nearest_upsample_x2(d) == d_flat @ G (entries 0 / 1)."""
    hw, low = h * w, (h * w) // 4
    j = jax.lax.broadcasted_iota(jnp.int32, (low, hw), 0)
    i = jax.lax.broadcasted_iota(jnp.int32, (low, hw), 1)
    return jnp.where(_cell_index(i, w) == j, 1.0, 0.0).astype(jnp.float32)


def _depthwise_bn_relu(hidden, lvl, h, w, w9_ref, bdw_ref, pad_ref):
    """Depthwise 3x3 conv (padding=1) + folded-BN bias + ReLU on a lane-dense (C, H*W) value.

    Vertical halos come from the zero-filled VMEM scratch line; the horizontal wrap-around of
    the flattened layout is removed with column-boundary masks.  Tap k = (dy+1)*3 + (dx+1)
    matches the row-major PyTorch (C, 1, 3, 3) depthwise weight.
    """
    hw = h * w
    pad_ref[...] = jnp.zeros_like(pad_ref)
    pad_ref[:, PAD:PAD + hw] = hidden
    col = jnp.bitwise_and(jax.lax.broadcasted_iota(jnp.int32, (1, hw), 1), w - 1)
    ok_left = col > 0           # neighbour at dx == -1 exists
    ok_right = col < (w - 1)    # neighbour at dx == +1 exists

    acc = hidden * w9_ref[lvl, 4]                      # centre tap (no shift / mask)
    for dy in (-1, 0, 1):
        for dx in (-1, 0, 1):
            if dy == 0 and dx == 0:
                continue
            k = (dy + 1) * 3 + (dx + 1)
            off = dy * w + dx
            tap = pad_ref[:, PAD + off:PAD + off + hw]
            if dx == -1:
                tap = jnp.where(ok_left, tap, 0.0)
            elif dx == 1:
                tap = jnp.where(ok_right, tap, 0.0)
            acc = acc + tap * w9_ref[lvl, k]
    return jnp.maximum(acc + bdw_ref[lvl], 0.0)


# ---------------------------------------------------------------------------
# The fused DUnet kernel (one grid step == one batch element)
# ---------------------------------------------------------------------------

def _dunet_kernel(x_ref, wd_ref, wu_ref, bpw_ref, w9_ref, bdw_ref, o_ref, pad_ref,
                  *, height, width, levels):
    # x_ref:   (1, 3, H*W)              lane-dense input image
    # wd_ref:  (levels+1, 8, 3)         1x1-conv weights for the image/residual channels
    # wu_ref:  (levels+1, 8, 8)         1x1-conv weights for the upsampled-feature channels
    # bpw_ref: (levels+1, 8, 1)         pointwise folded-BN bias
    # w9_ref:  (levels+1, 9, 8, 1)      depthwise 3x3 weights (BN folded), k = ky*3 + kx
    # bdw_ref: (levels+1, 8, 1)         depthwise folded-BN bias
    # o_ref:   (1, 8, H*W)
    # pad_ref: VMEM (8, PAD + H*W + PAD) scratch line for the depthwise halos
    x = x_ref[0].astype(jnp.float32)                     # (3, H*W)

    # ---- downward pass: avg-pool pyramid + residual images (all kept as VMEM values) ----
    residuals = []                                       # (level, h, w, image - up(pool(image)))
    h, w = height, width
    for lvl in range(levels, 0, -1):
        pool = jnp.dot(x, _pool_matrix(h, w), preferred_element_type=jnp.float32)   # (3, hw/4)
        up = jnp.dot(pool, _up_matrix(h, w), preferred_element_type=jnp.float32)    # (3, hw)
        residuals.append((lvl, h, w, x - up))
        x = pool
        h //= 2
        w //= 2

    # ---- level 0 (transform is None): seperable_conv on the innermost pooled image ----
    hidden = jnp.maximum(
        jnp.dot(wd_ref[0].astype(jnp.float32), x, preferred_element_type=jnp.float32)
        + bpw_ref[0], 0.0)
    feat = _depthwise_bn_relu(hidden, 0, h, w, w9_ref, bdw_ref, pad_ref)

    # ---- upward pass: fused [nearest-upsample + channel-concat + 1x1 conv] + depthwise ----
    for lvl, h, w, res in reversed(residuals):
        wd = wd_ref[lvl].astype(jnp.float32)             # (8, 3)  -> cat slot [:3]  (dimage)
        wu = wu_ref[lvl].astype(jnp.float32)             # (8, 8)  -> cat slot [3:]  (up_feature)
        # W[:, 3:] @ upsample(feat) == upsample(W[:, 3:] @ feat): mix channels at low res.
        z = jnp.dot(wu, feat, preferred_element_type=jnp.float32)                   # (8, hw/4)
        up_z = jnp.dot(z, _up_matrix(h, w), preferred_element_type=jnp.float32)     # (8, hw)
        y = jnp.dot(wd, res, preferred_element_type=jnp.float32) + up_z + bpw_ref[lvl]
        hidden = jnp.maximum(y, 0.0)
        feat = _depthwise_bn_relu(hidden, lvl, h, w, w9_ref, bdw_ref, pad_ref)

    o_ref[0] = feat.astype(o_ref.dtype)


# ---------------------------------------------------------------------------
# Host wrapper
# ---------------------------------------------------------------------------

def dunet_forward(params, x):
    """Forward pass of the 5-level DULink stack as a single fused pallas_call."""
    n, c, height, width = x.shape
    assert c == IMG_C
    assert height & (height - 1) == 0 and width & (width - 1) == 0, "power-of-two H, W"
    assert height % (1 << LEVELS) == 0 and width % (1 << LEVELS) == 0
    hw = height * width

    kernel = functools.partial(_dunet_kernel, height=height, width=width, levels=LEVELS)
    out = pl.pallas_call(
        kernel,
        out_shape=jax.ShapeDtypeStruct((n, OUTC, hw), jnp.float32),
        grid=(n,),
        in_specs=[
            pl.BlockSpec((1, IMG_C, hw), lambda b: (b, 0, 0)),
            pl.BlockSpec((LEVELS + 1, OUTC, IMG_C), lambda b: (0, 0, 0)),
            pl.BlockSpec((LEVELS + 1, OUTC, OUTC), lambda b: (0, 0, 0)),
            pl.BlockSpec((LEVELS + 1, OUTC, 1), lambda b: (0, 0, 0)),
            pl.BlockSpec((LEVELS + 1, 9, OUTC, 1), lambda b: (0, 0, 0, 0)),
            pl.BlockSpec((LEVELS + 1, OUTC, 1), lambda b: (0, 0, 0)),
        ],
        out_specs=pl.BlockSpec((1, OUTC, hw), lambda b: (b, 0, 0)),
        scratch_shapes=[pltpu.VMEM((OUTC, PAD + hw + PAD), jnp.float32)],
        # "parallel" batch axis: both TensorCores busy on v7x; near-zero cost on v5e/v6e.
        compiler_params=pltpu.CompilerParams(dimension_semantics=("parallel",)),
    )(x.reshape(n, c, hw), params["pw_wd"], params["pw_wu"], params["pw_b"],
      params["dw_w"], params["dw_b"])
    return out.reshape(n, OUTC, height, width)


# ---------------------------------------------------------------------------
# Parameters (Conv weights + eval-mode BatchNorm folded in)
# ---------------------------------------------------------------------------

def _fold_bn(weight, gamma, beta, mean, var):
    scale = gamma / jnp.sqrt(var + BN_EPS)
    return weight * scale[:, None], (beta - mean * scale)[:, None]


def init_params(key, levels=LEVELS, outc=OUTC):
    wd, wu, bpw, w9, bdw = [], [], [], [], []
    for lvl in range(levels + 1):
        cin = IMG_C if lvl == 0 else IMG_C + outc
        key, k1, k2 = jax.random.split(key, 3)
        pw = 0.1 * jax.random.normal(k1, (outc, cin), jnp.float32)    # Conv2d(cin, outc, 1)
        dw = 0.1 * jax.random.normal(k2, (outc, 9), jnp.float32)      # Conv2d(outc, outc, 3, groups=outc)
        gamma = jnp.ones((outc,), jnp.float32)
        beta = jnp.zeros((outc,), jnp.float32)
        mean = jnp.zeros((outc,), jnp.float32)
        var = jnp.ones((outc,), jnp.float32)
        pw_f, bpw_f = _fold_bn(pw, gamma, beta, mean, var)
        dw_f, bdw_f = _fold_bn(dw, gamma, beta, mean, var)
        if lvl == 0:
            wd.append(pw_f)                                           # (8, 3)
            wu.append(jnp.zeros((outc, outc), jnp.float32))           # unused at level 0
        else:
            wd.append(pw_f[:, :IMG_C])                                # cat slot [:3]  = dimage
            wu.append(pw_f[:, IMG_C:])                                # cat slot [3:]  = up_feature
        bpw.append(bpw_f)
        w9.append(jnp.transpose(dw_f)[:, :, None])                    # (9, 8, 1)
        bdw.append(bdw_f)
    return dict(pw_wd=jnp.stack(wd), pw_wu=jnp.stack(wu), pw_b=jnp.stack(bpw),
                dw_w=jnp.stack(w9), dw_b=jnp.stack(bdw))


# ---------------------------------------------------------------------------
# Pure-JAX reference of the same forward pass (documentation / testing; not executed).
# ---------------------------------------------------------------------------

def reference_forward(params, x, levels=LEVELS):
    def sep_conv(lvl, f):
        w = jnp.concatenate([params["pw_wd"][lvl], params["pw_wu"][lvl]], axis=1)
        w = w[:, :f.shape[1]]
        h = jnp.maximum(jnp.einsum("oc,nchw->nohw", w, f)
                        + params["pw_b"][lvl][None, :, :, None], 0.0)
        hp = jnp.pad(h, ((0, 0), (0, 0), (1, 1), (1, 1)))
        acc = sum(params["dw_w"][lvl][ky * 3 + kx][None, :, :, None]
                  * hp[:, :, ky:ky + h.shape[2], kx:kx + h.shape[3]]
                  for ky in range(3) for kx in range(3))
        return jnp.maximum(acc + params["dw_b"][lvl][None, :, :, None], 0.0)

    def link(lvl, image):
        if lvl == 0:
            return sep_conv(0, image)
        n, c, hh, ww = image.shape
        down = image.reshape(n, c, hh // 2, 2, ww // 2, 2).mean(axis=(3, 5))
        feat = link(lvl - 1, down)
        up_img = jnp.repeat(jnp.repeat(down, 2, axis=2), 2, axis=3)
        up_feat = jnp.repeat(jnp.repeat(feat, 2, axis=2), 2, axis=3)
        return sep_conv(lvl, jnp.concatenate([image - up_img, up_feat], axis=1))

    return link(levels, x)


# ---------------------------------------------------------------------------
# Main
# ---------------------------------------------------------------------------

if __name__ == "__main__":
    key = jax.random.PRNGKey(0)
    kx, kp = jax.random.split(key)
    # DUnet expects a 3-channel image; 4 pooling levels -> H, W divisible by 16 (32x32 here).
    x = jax.random.normal(kx, (2, IMG_C, 32, 32), jnp.float32)
    params = init_params(kp)

    fwd = jax.jit(dunet_forward)
    out = jax.block_until_ready(fwd(params, x))
    assert out.shape == (2, OUTC, 32, 32), out.shape
    print("KERNEL_OK")
</pallas_src>

<mosaic_0001>
module attributes {stable_mosaic.version = 11 : i64} {
  func.func @_dunet_kernel(%arg0: i32, %arg1: memref<1x3x1024xf32, #tpu.memory_space<vmem>>, %arg2: memref<5x8x3xf32, #tpu.memory_space<vmem>>, %arg3: memref<5x8x8xf32, #tpu.memory_space<vmem>>, %arg4: memref<5x8x1xf32, #tpu.memory_space<vmem>>, %arg5: memref<5x9x8x1xf32, #tpu.memory_space<vmem>>, %arg6: memref<5x8x1xf32, #tpu.memory_space<vmem>>, %arg7: memref<1x8x1024xf32, #tpu.memory_space<vmem>>, %arg8: memref<8x1280xf32, #tpu.memory_space<vmem>>) attributes {dimension_semantics = [#tpu.dimension_semantics<parallel>], iteration_bounds = array<i64: 2>, scalar_prefetch = 0 : i64, scratch_operands = 1 : i64, tpu.core_type = #tpu.core_type<tc>, window_params = [{transform_indices = @transform_0, window_bounds = array<i64: 1, 3, 1024>}, {pipeline_mode = #tpu.pipeline_mode<synchronous>, transform_indices = @transform_1, window_bounds = array<i64: 5, 8, 3>}, {pipeline_mode = #tpu.pipeline_mode<synchronous>, transform_indices = @transform_2, window_bounds = array<i64: 5, 8, 8>}, {pipeline_mode = #tpu.pipeline_mode<synchronous>, transform_indices = @transform_3, window_bounds = array<i64: 5, 8, 1>}, {pipeline_mode = #tpu.pipeline_mode<synchronous>, transform_indices = @transform_4, window_bounds = array<i64: 5, 9, 8, 1>}, {pipeline_mode = #tpu.pipeline_mode<synchronous>, transform_indices = @transform_5, window_bounds = array<i64: 5, 8, 1>}, {transform_indices = @transform_6, window_bounds = array<i64: 1, 8, 1024>}]} {
    %c0 = arith.constant 0 : index
    %c0_0 = arith.constant 0 : index
    %c0_1 = arith.constant 0 : index
    %0 = vector.load %arg1[%c0, %c0_0, %c0_1] : memref<1x3x1024xf32, #tpu.memory_space<vmem>>, vector<1x3x1024xf32>
    %1 = vector.shape_cast %0 : vector<1x3x1024xf32> to vector<3x1024xf32>
    %2 = tpu.iota {dimensions = array<i32: 0>} : vector<1024x256xi32>
    %3 = tpu.iota {dimensions = array<i32: 1>} : vector<1024x256xi32>
    %c5_i32 = arith.constant 5 : i32
    %4 = vector.broadcast %c5_i32 : i32 to vector<1024x256xi32>
    %5 = arith.shrsi %2, %4 : vector<1024x256xi32>
    %c31_i32 = arith.constant 31 : i32
    %6 = vector.broadcast %c31_i32 : i32 to vector<1024x256xi32>
    %7 = arith.andi %2, %6 : vector<1024x256xi32>
    %c1_i32 = arith.constant 1 : i32
    %8 = vector.broadcast %c1_i32 : i32 to vector<1024x256xi32>
    %9 = arith.shrsi %5, %8 : vector<1024x256xi32>
    %c4_i32 = arith.constant 4 : i32
    %10 = vector.broadcast %c4_i32 : i32 to vector<1024x256xi32>
    %11 = arith.shli %9, %10 : vector<1024x256xi32>
    %c1_i32_2 = arith.constant 1 : i32
    %12 = vector.broadcast %c1_i32_2 : i32 to vector<1024x256xi32>
    %13 = arith.shrsi %7, %12 : vector<1024x256xi32>
    %14 = arith.addi %11, %13 : vector<1024x256xi32>
    %15 = arith.cmpi eq, %14, %3 : vector<1024x256xi32>
    %cst = arith.constant 2.500000e-01 : f32
    %cst_3 = arith.constant 0.000000e+00 : f32
    %16 = vector.broadcast %cst : f32 to vector<1024x256xf32>
    %17 = vector.broadcast %cst_3 : f32 to vector<1024x256xf32>
    %18 = arith.select %15, %16, %17 : vector<1024x256xi1>, vector<1024x256xf32>
    %cst_4 = arith.constant dense<0.000000e+00> : vector<3x256xf32>
    %19 = tpu.matmul %1, %18, %cst_4 {dimension_numbers = #tpu.dot_dimension_numbers<[1], [0], [0], [1], [0, 0, 1, 1], [], []>} : vector<3x1024xf32>, vector<1024x256xf32>, vector<3x256xf32> -> vector<3x256xf32>
    %20 = tpu.iota {dimensions = array<i32: 0>} : vector<256x1024xi32>
    %21 = tpu.iota {dimensions = array<i32: 1>} : vector<256x1024xi32>
    %c5_i32_5 = arith.constant 5 : i32
    %22 = vector.broadcast %c5_i32_5 : i32 to vector<256x1024xi32>
    %23 = arith.shrsi %21, %22 : vector<256x1024xi32>
    %c31_i32_6 = arith.constant 31 : i32
    %24 = vector.broadcast %c31_i32_6 : i32 to vector<256x1024xi32>
    %25 = arith.andi %21, %24 : vector<256x1024xi32>
    %c1_i32_7 = arith.constant 1 : i32
    %26 = vector.broadcast %c1_i32_7 : i32 to vector<256x1024xi32>
    %27 = arith.shrsi %23, %26 : vector<256x1024xi32>
    %c4_i32_8 = arith.constant 4 : i32
    %28 = vector.broadcast %c4_i32_8 : i32 to vector<256x1024xi32>
    %29 = arith.shli %27, %28 : vector<256x1024xi32>
    %c1_i32_9 = arith.constant 1 : i32
    %30 = vector.broadcast %c1_i32_9 : i32 to vector<256x1024xi32>
    %31 = arith.shrsi %25, %30 : vector<256x1024xi32>
    %32 = arith.addi %29, %31 : vector<256x1024xi32>
    %33 = arith.cmpi eq, %32, %20 : vector<256x1024xi32>
    %cst_10 = arith.constant 1.000000e+00 : f32
    %cst_11 = arith.constant 0.000000e+00 : f32
    %34 = vector.broadcast %cst_10 : f32 to vector<256x1024xf32>
    %35 = vector.broadcast %cst_11 : f32 to vector<256x1024xf32>
    %36 = arith.select %33, %34, %35 : vector<256x1024xi1>, vector<256x1024xf32>
    %cst_12 = arith.constant dense<0.000000e+00> : vector<3x1024xf32>
    %37 = tpu.matmul %19, %36, %cst_12 {dimension_numbers = #tpu.dot_dimension_numbers<[1], [0], [0], [1], [0, 0, 1, 1], [], []>} : vector<3x256xf32>, vector<256x1024xf32>, vector<3x1024xf32> -> vector<3x1024xf32>
    %38 = arith.subf %1, %37 : vector<3x1024xf32>
    %39 = tpu.iota {dimensions = array<i32: 0>} : vector<256x64xi32>
    %40 = tpu.iota {dimensions = array<i32: 1>} : vector<256x64xi32>
    %c4_i32_13 = arith.constant 4 : i32
    %41 = vector.broadcast %c4_i32_13 : i32 to vector<256x64xi32>
    %42 = arith.shrsi %39, %41 : vector<256x64xi32>
    %c15_i32 = arith.constant 15 : i32
    %43 = vector.broadcast %c15_i32 : i32 to vector<256x64xi32>
    %44 = arith.andi %39, %43 : vector<256x64xi32>
    %c1_i32_14 = arith.constant 1 : i32
    %45 = vector.broadcast %c1_i32_14 : i32 to vector<256x64xi32>
    %46 = arith.shrsi %42, %45 : vector<256x64xi32>
    %c3_i32 = arith.constant 3 : i32
    %47 = vector.broadcast %c3_i32 : i32 to vector<256x64xi32>
    %48 = arith.shli %46, %47 : vector<256x64xi32>
    %c1_i32_15 = arith.constant 1 : i32
    %49 = vector.broadcast %c1_i32_15 : i32 to vector<256x64xi32>
    %50 = arith.shrsi %44, %49 : vector<256x64xi32>
    %51 = arith.addi %48, %50 : vector<256x64xi32>
    %52 = arith.cmpi eq, %51, %40 : vector<256x64xi32>
    %cst_16 = arith.constant 2.500000e-01 : f32
    %cst_17 = arith.constant 0.000000e+00 : f32
    %53 = vector.broadcast %cst_16 : f32 to vector<256x64xf32>
    %54 = vector.broadcast %cst_17 : f32 to vector<256x64xf32>
    %55 = arith.select %52, %53, %54 : vector<256x64xi1>, vector<256x64xf32>
    %cst_18 = arith.constant dense<0.000000e+00> : vector<3x64xf32>
    %56 = tpu.matmul %19, %55, %cst_18 {dimension_numbers = #tpu.dot_dimension_numbers<[1], [0], [0], [1], [0, 0, 1, 1], [], []>} : vector<3x256xf32>, vector<256x64xf32>, vector<3x64xf32> -> vector<3x64xf32>
    %57 = tpu.iota {dimensions = array<i32: 0>} : vector<64x256xi32>
    %58 = tpu.iota {dimensions = array<i32: 1>} : vector<64x256xi32>
    %c4_i32_19 = arith.constant 4 : i32
    %59 = vector.broadcast %c4_i32_19 : i32 to vector<64x256xi32>
    %60 = arith.shrsi %58, %59 : vector<64x256xi32>
    %c15_i32_20 = arith.constant 15 : i32
    %61 = vector.broadcast %c15_i32_20 : i32 to vector<64x256xi32>
    %62 = arith.andi %58, %61 : vector<64x256xi32>
    %c1_i32_21 = arith.constant 1 : i32
    %63 = vector.broadcast %c1_i32_21 : i32 to vector<64x256xi32>
    %64 = arith.shrsi %60, %63 : vector<64x256xi32>
    %c3_i32_22 = arith.constant 3 : i32
    %65 = vector.broadcast %c3_i32_22 : i32 to vector<64x256xi32>
    %66 = arith.shli %64, %65 : vector<64x256xi32>
    %c1_i32_23 = arith.constant 1 : i32
    %67 = vector.broadcast %c1_i32_23 : i32 to vector<64x256xi32>
    %68 = arith.shrsi %62, %67 : vector<64x256xi32>
    %69 = arith.addi %66, %68 : vector<64x256xi32>
    %70 = arith.cmpi eq, %69, %57 : vector<64x256xi32>
    %cst_24 = arith.constant 1.000000e+00 : f32
    %cst_25 = arith.constant 0.000000e+00 : f32
    %71 = vector.broadcast %cst_24 : f32 to vector<64x256xf32>
    %72 = vector.broadcast %cst_25 : f32 to vector<64x256xf32>
    %73 = arith.select %70, %71, %72 : vector<64x256xi1>, vector<64x256xf32>
    %cst_26 = arith.constant dense<0.000000e+00> : vector<3x256xf32>
    %74 = tpu.matmul %56, %73, %cst_26 {dimension_numbers = #tpu.dot_dimension_numbers<[1], [0], [0], [1], [0, 0, 1, 1], [], []>} : vector<3x64xf32>, vector<64x256xf32>, vector<3x256xf32> -> vector<3x256xf32>
    %75 = arith.subf %19, %74 : vector<3x256xf32>
    %76 = tpu.iota {dimensions = array<i32: 0>} : vector<64x16xi32>
    %77 = tpu.iota {dimensions = array<i32: 1>} : vector<64x16xi32>
    %c3_i32_27 = arith.constant 3 : i32
    %78 = vector.broadcast %c3_i32_27 : i32 to vector<64x16xi32>
    %79 = arith.shrsi %76, %78 : vector<64x16xi32>
    %c7_i32 = arith.constant 7 : i32
    %80 = vector.broadcast %c7_i32 : i32 to vector<64x16xi32>
    %81 = arith.andi %76, %80 : vector<64x16xi32>
    %c1_i32_28 = arith.constant 1 : i32
    %82 = vector.broadcast %c1_i32_28 : i32 to vector<64x16xi32>
    %83 = arith.shrsi %79, %82 : vector<64x16xi32>
    %c2_i32 = arith.constant 2 : i32
    %84 = vector.broadcast %c2_i32 : i32 to vector<64x16xi32>
    %85 = arith.shli %83, %84 : vector<64x16xi32>
    %c1_i32_29 = arith.constant 1 : i32
    %86 = vector.broadcast %c1_i32_29 : i32 to vector<64x16xi32>
    %87 = arith.shrsi %81, %86 : vector<64x16xi32>
    %88 = arith.addi %85, %87 : vector<64x16xi32>
    %89 = arith.cmpi eq, %88, %77 : vector<64x16xi32>
    %cst_30 = arith.constant 2.500000e-01 : f32
    %cst_31 = arith.constant 0.000000e+00 : f32
    %90 = vector.broadcast %cst_30 : f32 to vector<64x16xf32>
    %91 = vector.broadcast %cst_31 : f32 to vector<64x16xf32>
    %92 = arith.select %89, %90, %91 : vector<64x16xi1>, vector<64x16xf32>
    %cst_32 = arith.constant dense<0.000000e+00> : vector<3x16xf32>
    %93 = tpu.matmul %56, %92, %cst_32 {dimension_numbers = #tpu.dot_dimension_numbers<[1], [0], [0], [1], [0, 0, 1, 1], [], []>} : vector<3x64xf32>, vector<64x16xf32>, vector<3x16xf32> -> vector<3x16xf32>
    %94 = tpu.iota {dimensions = array<i32: 0>} : vector<16x64xi32>
    %95 = tpu.iota {dimensions = array<i32: 1>} : vector<16x64xi32>
    %c3_i32_33 = arith.constant 3 : i32
    %96 = vector.broadcast %c3_i32_33 : i32 to vector<16x64xi32>
    %97 = arith.shrsi %95, %96 : vector<16x64xi32>
    %c7_i32_34 = arith.constant 7 : i32
    %98 = vector.broadcast %c7_i32_34 : i32 to vector<16x64xi32>
    %99 = arith.andi %95, %98 : vector<16x64xi32>
    %c1_i32_35 = arith.constant 1 : i32
    %100 = vector.broadcast %c1_i32_35 : i32 to vector<16x64xi32>
    %101 = arith.shrsi %97, %100 : vector<16x64xi32>
    %c2_i32_36 = arith.constant 2 : i32
    %102 = vector.broadcast %c2_i32_36 : i32 to vector<16x64xi32>
    %103 = arith.shli %101, %102 : vector<16x64xi32>
    %c1_i32_37 = arith.constant 1 : i32
    %104 = vector.broadcast %c1_i32_37 : i32 to vector<16x64xi32>
    %105 = arith.shrsi %99, %104 : vector<16x64xi32>
    %106 = arith.addi %103, %105 : vector<16x64xi32>
    %107 = arith.cmpi eq, %106, %94 : vector<16x64xi32>
    %cst_38 = arith.constant 1.000000e+00 : f32
    %cst_39 = arith.constant 0.000000e+00 : f32
    %108 = vector.broadcast %cst_38 : f32 to vector<16x64xf32>
    %109 = vector.broadcast %cst_39 : f32 to vector<16x64xf32>
    %110 = arith.select %107, %108, %109 : vector<16x64xi1>, vector<16x64xf32>
    %cst_40 = arith.constant dense<0.000000e+00> : vector<3x64xf32>
    %111 = tpu.matmul %93, %110, %cst_40 {dimension_numbers = #tpu.dot_dimension_numbers<[1], [0], [0], [1], [0, 0, 1, 1], [], []>} : vector<3x16xf32>, vector<16x64xf32>, vector<3x64xf32> -> vector<3x64xf32>
    %112 = arith.subf %56, %111 : vector<3x64xf32>
    %113 = tpu.iota {dimensions = array<i32: 0>} : vector<16x4xi32>
    %114 = tpu.iota {dimensions = array<i32: 1>} : vector<16x4xi32>
    %c2_i32_41 = arith.constant 2 : i32
    %115 = vector.broadcast %c2_i32_41 : i32 to vector<16x4xi32>
    %116 = arith.shrsi %113, %115 : vector<16x4xi32>
    %c3_i32_42 = arith.constant 3 : i32
    %117 = vector.broadcast %c3_i32_42 : i32 to vector<16x4xi32>
    %118 = arith.andi %113, %117 : vector<16x4xi32>
    %c1_i32_43 = arith.constant 1 : i32
    %119 = vector.broadcast %c1_i32_43 : i32 to vector<16x4xi32>
    %120 = arith.shrsi %116, %119 : vector<16x4xi32>
    %c1_i32_44 = arith.constant 1 : i32
    %121 = vector.broadcast %c1_i32_44 : i32 to vector<16x4xi32>
    %122 = arith.shli %120, %121 : vector<16x4xi32>
    %c1_i32_45 = arith.constant 1 : i32
    %123 = vector.broadcast %c1_i32_45 : i32 to vector<16x4xi32>
    %124 = arith.shrsi %118, %123 : vector<16x4xi32>
    %125 = arith.addi %122, %124 : vector<16x4xi32>
    %126 = arith.cmpi eq, %125, %114 : vector<16x4xi32>
    %cst_46 = arith.constant 2.500000e-01 : f32
    %cst_47 = arith.constant 0.000000e+00 : f32
    %127 = vector.broadcast %cst_46 : f32 to vector<16x4xf32>
    %128 = vector.broadcast %cst_47 : f32 to vector<16x4xf32>
    %129 = arith.select %126, %127, %128 : vector<16x4xi1>, vector<16x4xf32>
    %cst_48 = arith.constant dense<0.000000e+00> : vector<3x4xf32>
    %130 = tpu.matmul %93, %129, %cst_48 {dimension_numbers = #tpu.dot_dimension_numbers<[1], [0], [0], [1], [0, 0, 1, 1], [], []>} : vector<3x16xf32>, vector<16x4xf32>, vector<3x4xf32> -> vector<3x4xf32>
    %131 = tpu.iota {dimensions = array<i32: 0>} : vector<4x16xi32>
    %132 = tpu.iota {dimensions = array<i32: 1>} : vector<4x16xi32>
    %c2_i32_49 = arith.constant 2 : i32
    %133 = vector.broadcast %c2_i32_49 : i32 to vector<4x16xi32>
    %134 = arith.shrsi %132, %133 : vector<4x16xi32>
    %c3_i32_50 = arith.constant 3 : i32
    %135 = vector.broadcast %c3_i32_50 : i32 to vector<4x16xi32>
    %136 = arith.andi %132, %135 : vector<4x16xi32>
    %c1_i32_51 = arith.constant 1 : i32
    %137 = vector.broadcast %c1_i32_51 : i32 to vector<4x16xi32>
    %138 = arith.shrsi %134, %137 : vector<4x16xi32>
    %c1_i32_52 = arith.constant 1 : i32
    %139 = vector.broadcast %c1_i32_52 : i32 to vector<4x16xi32>
    %140 = arith.shli %138, %139 : vector<4x16xi32>
    %c1_i32_53 = arith.constant 1 : i32
    %141 = vector.broadcast %c1_i32_53 : i32 to vector<4x16xi32>
    %142 = arith.shrsi %136, %141 : vector<4x16xi32>
    %143 = arith.addi %140, %142 : vector<4x16xi32>
    %144 = arith.cmpi eq, %143, %131 : vector<4x16xi32>
    %cst_54 = arith.constant 1.000000e+00 : f32
    %cst_55 = arith.constant 0.000000e+00 : f32
    %145 = vector.broadcast %cst_54 : f32 to vector<4x16xf32>
    %146 = vector.broadcast %cst_55 : f32 to vector<4x16xf32>
    %147 = arith.select %144, %145, %146 : vector<4x16xi1>, vector<4x16xf32>
    %cst_56 = arith.constant dense<0.000000e+00> : vector<3x16xf32>
    %148 = tpu.matmul %130, %147, %cst_56 {dimension_numbers = #tpu.dot_dimension_numbers<[1], [0], [0], [1], [0, 0, 1, 1], [], []>} : vector<3x4xf32>, vector<4x16xf32>, vector<3x16xf32> -> vector<3x16xf32>
    %149 = arith.subf %93, %148 : vector<3x16xf32>
    %c0_57 = arith.constant 0 : index
    %c0_58 = arith.constant 0 : index
    %c0_59 = arith.constant 0 : index
    %150 = vector.load %arg2[%c0_57, %c0_58, %c0_59] : memref<5x8x3xf32, #tpu.memory_space<vmem>>, vector<1x8x3xf32>
    %151 = vector.shape_cast %150 : vector<1x8x3xf32> to vector<8x3xf32>
    %cst_60 = arith.constant dense<0.000000e+00> : vector<8x4xf32>
    %152 = tpu.matmul %151, %130, %cst_60 {dimension_numbers = #tpu.dot_dimension_numbers<[1], [0], [0], [1], [0, 0, 1, 1], [], []>} : vector<8x3xf32>, vector<3x4xf32>, vector<8x4xf32> -> vector<8x4xf32>
    %c0_61 = arith.constant 0 : index
    %c0_62 = arith.constant 0 : index
    %c0_63 = arith.constant 0 : index
    %153 = vector.load %arg4[%c0_61, %c0_62, %c0_63] : memref<5x8x1xf32, #tpu.memory_space<vmem>>, vector<1x8x1xf32>
    %154 = vector.shape_cast %153 : vector<1x8x1xf32> to vector<8x1xf32>
    %155 = vector.broadcast %154 : vector<8x1xf32> to vector<8x4xf32>
    %156 = arith.addf %152, %155 : vector<8x4xf32>
    %cst_64 = arith.constant 0.000000e+00 : f32
    %157 = vector.broadcast %cst_64 : f32 to vector<8x4xf32>
    %158 = arith.maximumf %156, %157 : vector<8x4xf32>
    %cst_65 = arith.constant 0.000000e+00 : f32
    %159 = vector.broadcast %cst_65 : f32 to vector<8x1280xf32>
    %c0_66 = arith.constant 0 : index
    %c0_67 = arith.constant 0 : index
    %160 = vector.load %arg8[%c0_66, %c0_67] : memref<8x1280xf32, #tpu.memory_space<vmem>>, vector<8x1280xf32>
    tpu.vector_store %arg8[%c0_66, %c0_67], %159 {strides = array<i32>} : memref<8x1280xf32, #tpu.memory_space<vmem>>, vector<8x1280xf32>,
    %c0_68 = arith.constant 0 : index
    %c128 = arith.constant 128 : index
    %161 = vector.load %arg8[%c0_68, %c128] : memref<8x1280xf32, #tpu.memory_space<vmem>>, vector<8x4xf32>
    tpu.vector_store %arg8[%c0_68, %c128], %158 {strides = array<i32>} : memref<8x1280xf32, #tpu.memory_space<vmem>>, vector<8x4xf32>,
    %162 = tpu.iota {dimensions = array<i32: 1>} : vector<1x4xi32>
    %c1_i32_69 = arith.constant 1 : i32
    %163 = vector.broadcast %c1_i32_69 : i32 to vector<1x4xi32>
    %164 = arith.andi %162, %163 : vector<1x4xi32>
    %c0_i32 = arith.constant 0 : i32
    %165 = vector.broadcast %c0_i32 : i32 to vector<1x4xi32>
    %166 = arith.cmpi sgt, %164, %165 : vector<1x4xi32>
    %c1_i32_70 = arith.constant 1 : i32
    %167 = vector.broadcast %c1_i32_70 : i32 to vector<1x4xi32>
    %168 = arith.cmpi slt, %164, %167 : vector<1x4xi32>
    %c0_71 = arith.constant 0 : index
    %c4 = arith.constant 4 : index
    %c0_72 = arith.constant 0 : index
    %c0_73 = arith.constant 0 : index
    %169 = vector.load %arg5[%c0_71, %c4, %c0_72, %c0_73] : memref<5x9x8x1xf32, #tpu.memory_space<vmem>>, vector<1x1x8x1xf32>
    %170 = vector.shape_cast %169 : vector<1x1x8x1xf32> to vector<8x1xf32>
    %171 = vector.broadcast %170 : vector<8x1xf32> to vector<8x4xf32>
    %172 = arith.mulf %158, %171 : vector<8x4xf32>
    %c0_74 = arith.constant 0 : index
    %c125 = arith.constant 125 : index
    %173 = vector.load %arg8[%c0_74, %c125] : memref<8x1280xf32, #tpu.memory_space<vmem>>, vector<8x4xf32>
    %cst_75 = arith.constant 0.000000e+00 : f32
    %174 = vector.shape_cast %166 : vector<1x4xi1> to vector<1x4xi1>
    %175 = vector.broadcast %174 : vector<1x4xi1> to vector<8x4xi1>
    %176 = vector.broadcast %cst_75 : f32 to vector<8x4xf32>
    %177 = arith.select %175, %173, %176 : vector<8x4xi1>, vector<8x4xf32>
    %c0_76 = arith.constant 0 : index
    %c0_77 = arith.constant 0 : index
    %c0_78 = arith.constant 0 : index
    %c0_79 = arith.constant 0 : index
    %178 = vector.load %arg5[%c0_76, %c0_77, %c0_78, %c0_79] : memref<5x9x8x1xf32, #tpu.memory_space<vmem>>, vector<1x1x8x1xf32>
    %179 = vector.shape_cast %178 : vector<1x1x8x1xf32> to vector<8x1xf32>
    %180 = vector.broadcast %179 : vector<8x1xf32> to vector<8x4xf32>
    %181 = arith.mulf %177, %180 : vector<8x4xf32>
    %182 = arith.addf %172, %181 : vector<8x4xf32>
    %c0_80 = arith.constant 0 : index
    %c126 = arith.constant 126 : index
    %183 = vector.load %arg8[%c0_80, %c126] : memref<8x1280xf32, #tpu.memory_space<vmem>>, vector<8x4xf32>
    %c0_81 = arith.constant 0 : index
    %c1 = arith.constant 1 : index
    %c0_82 = arith.constant 0 : index
    %c0_83 = arith.constant 0 : index
    %184 = vector.load %arg5[%c0_81, %c1, %c0_82, %c0_83] : memref<5x9x8x1xf32, #tpu.memory_space<vmem>>, vector<1x1x8x1xf32>
    %185 = vector.shape_cast %184 : vector<1x1x8x1xf32> to vector<8x1xf32>
    %186 = vector.broadcast %185 : vector<8x1xf32> to vector<8x4xf32>
    %187 = arith.mulf %183, %186 : vector<8x4xf32>
    %188 = arith.addf %182, %187 : vector<8x4xf32>
    %c0_84 = arith.constant 0 : index
    %c127 = arith.constant 127 : index
    %189 = vector.load %arg8[%c0_84, %c127] : memref<8x1280xf32, #tpu.memory_space<vmem>>, vector<8x4xf32>
    %cst_85 = arith.constant 0.000000e+00 : f32
    %190 = vector.shape_cast %168 : vector<1x4xi1> to vector<1x4xi1>
    %191 = vector.broadcast %190 : vector<1x4xi1> to vector<8x4xi1>
    %192 = vector.broadcast %cst_85 : f32 to vector<8x4xf32>
    %193 = arith.select %191, %189, %192 : vector<8x4xi1>, vector<8x4xf32>
    %c0_86 = arith.constant 0 : index
    %c2 = arith.constant 2 : index
    %c0_87 = arith.constant 0 : index
    %c0_88 = arith.constant 0 : index
    %194 = vector.load %arg5[%c0_86, %c2, %c0_87, %c0_88] : memref<5x9x8x1xf32, #tpu.memory_space<vmem>>, vector<1x1x8x1xf32>
    %195 = vector.shape_cast %194 : vector<1x1x8x1xf32> to vector<8x1xf32>
    %196 = vector.broadcast %195 : vector<8x1xf32> to vector<8x4xf32>
    %197 = arith.mulf %193, %196 : vector<8x4xf32>
    %198 = arith.addf %188, %197 : vector<8x4xf32>
    %c0_89 = arith.constant 0 : index
    %c127_90 = arith.constant 127 : index
    %199 = vector.load %arg8[%c0_89, %c127_90] : memref<8x1280xf32, #tpu.memory_space<vmem>>, vector<8x4xf32>
    %cst_91 = arith.constant 0.000000e+00 : f32
    %200 = vector.shape_cast %166 : vector<1x4xi1> to vector<1x4xi1>
    %201 = vector.broadcast %200 : vector<1x4xi1> to vector<8x4xi1>
    %202 = vector.broadcast %cst_91 : f32 to vector<8x4xf32>
    %203 = arith.select %201, %199, %202 : vector<8x4xi1>, vector<8x4xf32>
    %c0_92 = arith.constant 0 : index
    %c3 = arith.constant 3 : index
    %c0_93 = arith.constant 0 : index
    %c0_94 = arith.constant 0 : index
    %204 = vector.load %arg5[%c0_92, %c3, %c0_93, %c0_94] : memref<5x9x8x1xf32, #tpu.memory_space<vmem>>, vector<1x1x8x1xf32>
    %205 = vector.shape_cast %204 : vector<1x1x8x1xf32> to vector<8x1xf32>
    %206 = vector.broadcast %205 : vector<8x1xf32> to vector<8x4xf32>
    %207 = arith.mulf %203, %206 : vector<8x4xf32>
    %208 = arith.addf %198, %207 : vector<8x4xf32>
    %c0_95 = arith.constant 0 : index
    %c129 = arith.constant 129 : index
    %209 = vector.load %arg8[%c0_95, %c129] : memref<8x1280xf32, #tpu.memory_space<vmem>>, vector<8x4xf32>
    %cst_96 = arith.constant 0.000000e+00 : f32
    %210 = vector.shape_cast %168 : vector<1x4xi1> to vector<1x4xi1>
    %211 = vector.broadcast %210 : vector<1x4xi1> to vector<8x4xi1>
    %212 = vector.broadcast %cst_96 : f32 to vector<8x4xf32>
    %213 = arith.select %211, %209, %212 : vector<8x4xi1>, vector<8x4xf32>
    %c0_97 = arith.constant 0 : index
    %c5 = arith.constant 5 : index
    %c0_98 = arith.constant 0 : index
    %c0_99 = arith.constant 0 : index
    %214 = vector.load %arg5[%c0_97, %c5, %c0_98, %c0_99] : memref<5x9x8x1xf32, #tpu.memory_space<vmem>>, vector<1x1x8x1xf32>
    %215 = vector.shape_cast %214 : vector<1x1x8x1xf32> to vector<8x1xf32>
    %216 = vector.broadcast %215 : vector<8x1xf32> to vector<8x4xf32>
    %217 = arith.mulf %213, %216 : vector<8x4xf32>
    %218 = arith.addf %208, %217 : vector<8x4xf32>
    %c0_100 = arith.constant 0 : index
    %c129_101 = arith.constant 129 : index
    %219 = vector.load %arg8[%c0_100, %c129_101] : memref<8x1280xf32, #tpu.memory_space<vmem>>, vector<8x4xf32>
    %cst_102 = arith.constant 0.000000e+00 : f32
    %220 = vector.shape_cast %166 : vector<1x4xi1> to vector<1x4xi1>
    %221 = vector.broadcast %220 : vector<1x4xi1> to vector<8x4xi1>
    %222 = vector.broadcast %cst_102 : f32 to vector<8x4xf32>
    %223 = arith.select %221, %219, %222 : vector<8x4xi1>, vector<8x4xf32>
    %c0_103 = arith.constant 0 : index
    %c6 = arith.constant 6 : index
    %c0_104 = arith.constant 0 : index
    %c0_105 = arith.constant 0 : index
    %224 = vector.load %arg5[%c0_103, %c6, %c0_104, %c0_105] : memref<5x9x8x1xf32, #tpu.memory_space<vmem>>, vector<1x1x8x1xf32>
    %225 = vector.shape_cast %224 : vector<1x1x8x1xf32> to vector<8x1xf32>
    %226 = vector.broadcast %225 : vector<8x1xf32> to vector<8x4xf32>
    %227 = arith.mulf %223, %226 : vector<8x4xf32>
    %228 = arith.addf %218, %227 : vector<8x4xf32>
    %c0_106 = arith.constant 0 : index
    %c130 = arith.constant 130 : index
    %229 = vector.load %arg8[%c0_106, %c130] : memref<8x1280xf32, #tpu.memory_space<vmem>>, vector<8x4xf32>
    %c0_107 = arith.constant 0 : index
    %c7 = arith.constant 7 : index
    %c0_108 = arith.constant 0 : index
    %c0_109 = arith.constant 0 : index
    %230 = vector.load %arg5[%c0_107, %c7, %c0_108, %c0_109] : memref<5x9x8x1xf32, #tpu.memory_space<vmem>>, vector<1x1x8x1xf32>
    %231 = vector.shape_cast %230 : vector<1x1x8x1xf32> to vector<8x1xf32>
    %232 = vector.broadcast %231 : vector<8x1xf32> to vector<8x4xf32>
    %233 = arith.mulf %229, %232 : vector<8x4xf32>
    %234 = arith.addf %228, %233 : vector<8x4xf32>
    %c0_110 = arith.constant 0 : index
    %c131 = arith.constant 131 : index
    %235 = vector.load %arg8[%c0_110, %c131] : memref<8x1280xf32, #tpu.memory_space<vmem>>, vector<8x4xf32>
    %cst_111 = arith.constant 0.000000e+00 : f32
    %236 = vector.shape_cast %168 : vector<1x4xi1> to vector<1x4xi1>
    %237 = vector.broadcast %236 : vector<1x4xi1> to vector<8x4xi1>
    %238 = vector.broadcast %cst_111 : f32 to vector<8x4xf32>
    %239 = arith.select %237, %235, %238 : vector<8x4xi1>, vector<8x4xf32>
    %c0_112 = arith.constant 0 : index
    %c8 = arith.constant 8 : index
    %c0_113 = arith.constant 0 : index
    %c0_114 = arith.constant 0 : index
    %240 = vector.load %arg5[%c0_112, %c8, %c0_113, %c0_114] : memref<5x9x8x1xf32, #tpu.memory_space<vmem>>, vector<1x1x8x1xf32>
    %241 = vector.shape_cast %240 : vector<1x1x8x1xf32> to vector<8x1xf32>
    %242 = vector.broadcast %241 : vector<8x1xf32> to vector<8x4xf32>
    %243 = arith.mulf %239, %242 : vector<8x4xf32>
    %244 = arith.addf %234, %243 : vector<8x4xf32>
    %c0_115 = arith.constant 0 : index
    %c0_116 = arith.constant 0 : index
    %c0_117 = arith.constant 0 : index
    %245 = vector.load %arg6[%c0_115, %c0_116, %c0_117] : memref<5x8x1xf32, #tpu.memory_space<vmem>>, vector<1x8x1xf32>
    %246 = vector.shape_cast %245 : vector<1x8x1xf32> to vector<8x1xf32>
    %247 = vector.broadcast %246 : vector<8x1xf32> to vector<8x4xf32>
    %248 = arith.addf %244, %247 : vector<8x4xf32>
    %cst_118 = arith.constant 0.000000e+00 : f32
    %249 = vector.broadcast %cst_118 : f32 to vector<8x4xf32>
    %250 = arith.maximumf %248, %249 : vector<8x4xf32>
    %c1_119 = arith.constant 1 : index
    %c0_120 = arith.constant 0 : index
    %c0_121 = arith.constant 0 : index
    %251 = vector.load %arg2[%c1_119, %c0_120, %c0_121] : memref<5x8x3xf32, #tpu.memory_space<vmem>>, vector<1x8x3xf32>
    %252 = vector.shape_cast %251 : vector<1x8x3xf32> to vector<8x3xf32>
    %c1_122 = arith.constant 1 : index
    %c0_123 = arith.constant 0 : index
    %c0_124 = arith.constant 0 : index
    %253 = vector.load %arg3[%c1_122, %c0_123, %c0_124] : memref<5x8x8xf32, #tpu.memory_space<vmem>>, vector<1x8x8xf32>
    %254 = vector.shape_cast %253 : vector<1x8x8xf32> to vector<8x8xf32>
    %cst_125 = arith.constant dense<0.000000e+00> : vector<8x4xf32>
    %255 = tpu.matmul %254, %250, %cst_125 {dimension_numbers = #tpu.dot_dimension_numbers<[1], [0], [0], [1], [0, 0, 1, 1], [], []>} : vector<8x8xf32>, vector<8x4xf32>, vector<8x4xf32> -> vector<8x4xf32>
    %256 = tpu.iota {dimensions = array<i32: 0>} : vector<4x16xi32>
    %257 = tpu.iota {dimensions = array<i32: 1>} : vector<4x16xi32>
    %c2_i32_126 = arith.constant 2 : i32
    %258 = vector.broadcast %c2_i32_126 : i32 to vector<4x16xi32>
    %259 = arith.shrsi %257, %258 : vector<4x16xi32>
    %c3_i32_127 = arith.constant 3 : i32
    %260 = vector.broadcast %c3_i32_127 : i32 to vector<4x16xi32>
    %261 = arith.andi %257, %260 : vector<4x16xi32>
    %c1_i32_128 = arith.constant 1 : i32
    %262 = vector.broadcast %c1_i32_128 : i32 to vector<4x16xi32>
    %263 = arith.shrsi %259, %262 : vector<4x16xi32>
    %c1_i32_129 = arith.constant 1 : i32
    %264 = vector.broadcast %c1_i32_129 : i32 to vector<4x16xi32>
    %265 = arith.shli %263, %264 : vector<4x16xi32>
    %c1_i32_130 = arith.constant 1 : i32
    %266 = vector.broadcast %c1_i32_130 : i32 to vector<4x16xi32>
    %267 = arith.shrsi %261, %266 : vector<4x16xi32>
    %268 = arith.addi %265, %267 : vector<4x16xi32>
    %269 = arith.cmpi eq, %268, %256 : vector<4x16xi32>
    %cst_131 = arith.constant 1.000000e+00 : f32
    %cst_132 = arith.constant 0.000000e+00 : f32
    %270 = vector.broadcast %cst_131 : f32 to vector<4x16xf32>
    %271 = vector.broadcast %cst_132 : f32 to vector<4x16xf32>
    %272 = arith.select %269, %270, %271 : vector<4x16xi1>, vector<4x16xf32>
    %cst_133 = arith.constant dense<0.000000e+00> : vector<8x16xf32>
    %273 = tpu.matmul %255, %272, %cst_133 {dimension_numbers = #tpu.dot_dimension_numbers<[1], [0], [0], [1], [0, 0, 1, 1], [], []>} : vector<8x4xf32>, vector<4x16xf32>, vector<8x16xf32> -> vector<8x16xf32>
    %cst_134 = arith.constant dense<0.000000e+00> : vector<8x16xf32>
    %274 = tpu.matmul %252, %149, %cst_134 {dimension_numbers = #tpu.dot_dimension_numbers<[1], [0], [0], [1], [0, 0, 1, 1], [], []>} : vector<8x3xf32>, vector<3x16xf32>, vector<8x16xf32> -> vector<8x16xf32>
    %275 = arith.addf %274, %273 : vector<8x16xf32>
    %c1_135 = arith.constant 1 : index
    %c0_136 = arith.constant 0 : index
    %c0_137 = arith.constant 0 : index
    %276 = vector.load %arg4[%c1_135, %c0_136, %c0_137] : memref<5x8x1xf32, #tpu.memory_space<vmem>>, vector<1x8x1xf32>
    %277 = vector.shape_cast %276 : vector<1x8x1xf32> to vector<8x1xf32>
    %278 = vector.broadcast %277 : vector<8x1xf32> to vector<8x16xf32>
    %279 = arith.addf %275, %278 : vector<8x16xf32>
    %cst_138 = arith.constant 0.000000e+00 : f32
    %280 = vector.broadcast %cst_138 : f32 to vector<8x16xf32>
    %281 = arith.maximumf %279, %280 : vector<8x16xf32>
    %cst_139 = arith.constant 0.000000e+00 : f32
    %282 = vector.broadcast %cst_139 : f32 to vector<8x1280xf32>
    %c0_140 = arith.constant 0 : index
    %c0_141 = arith.constant 0 : index
    %283 = vector.load %arg8[%c0_140, %c0_141] : memref<8x1280xf32, #tpu.memory_space<vmem>>, vector<8x1280xf32>
    tpu.vector_store %arg8[%c0_140, %c0_141], %282 {strides = array<i32>} : memref<8x1280xf32, #tpu.memory_space<vmem>>, vector<8x1280xf32>,
    %c0_142 = arith.constant 0 : index
    %c128_143 = arith.constant 128 : index
    %284 = vector.load %arg8[%c0_142, %c128_143] : memref<8x1280xf32, #tpu.memory_space<vmem>>, vector<8x16xf32>
    tpu.vector_store %arg8[%c0_142, %c128_143], %281 {strides = array<i32>} : memref<8x1280xf32, #tpu.memory_space<vmem>>, vector<8x16xf32>,
    %285 = tpu.iota {dimensions = array<i32: 1>} : vector<1x16xi32>
    %c3_i32_144 = arith.constant 3 : i32
    %286 = vector.broadcast %c3_i32_144 : i32 to vector<1x16xi32>
    %287 = arith.andi %285, %286 : vector<1x16xi32>
    %c0_i32_145 = arith.constant 0 : i32
    %288 = vector.broadcast %c0_i32_145 : i32 to vector<1x16xi32>
    %289 = arith.cmpi sgt, %287, %288 : vector<1x16xi32>
    %c3_i32_146 = arith.constant 3 : i32
    %290 = vector.broadcast %c3_i32_146 : i32 to vector<1x16xi32>
    %291 = arith.cmpi slt, %287, %290 : vector<1x16xi32>
    %c1_147 = arith.constant 1 : index
    %c4_148 = arith.constant 4 : index
    %c0_149 = arith.constant 0 : index
    %c0_150 = arith.constant 0 : index
    %292 = vector.load %arg5[%c1_147, %c4_148, %c0_149, %c0_150] : memref<5x9x8x1xf32, #tpu.memory_space<vmem>>, vector<1x1x8x1xf32>
    %293 = vector.shape_cast %292 : vector<1x1x8x1xf32> to vector<8x1xf32>
    %294 = vector.broadcast %293 : vector<8x1xf32> to vector<8x16xf32>
    %295 = arith.mulf %281, %294 : vector<8x16xf32>
    %c0_151 = arith.constant 0 : index
    %c123 = arith.constant 123 : index
    %296 = vector.load %arg8[%c0_151, %c123] : memref<8x1280xf32, #tpu.memory_space<vmem>>, vector<8x16xf32>
    %cst_152 = arith.constant 0.000000e+00 : f32
    %297 = vector.shape_cast %289 : vector<1x16xi1> to vector<1x16xi1>
    %298 = vector.broadcast %297 : vector<1x16xi1> to vector<8x16xi1>
    %299 = vector.broadcast %cst_152 : f32 to vector<8x16xf32>
    %300 = arith.select %298, %296, %299 : vector<8x16xi1>, vector<8x16xf32>
    %c1_153 = arith.constant 1 : index
    %c0_154 = arith.constant 0 : index
    %c0_155 = arith.constant 0 : index
    %c0_156 = arith.constant 0 : index
    %301 = vector.load %arg5[%c1_153, %c0_154, %c0_155, %c0_156] : memref<5x9x8x1xf32, #tpu.memory_space<vmem>>, vector<1x1x8x1xf32>
    %302 = vector.shape_cast %301 : vector<1x1x8x1xf32> to vector<8x1xf32>
    %303 = vector.broadcast %302 : vector<8x1xf32> to vector<8x16xf32>
    %304 = arith.mulf %300, %303 : vector<8x16xf32>
    %305 = arith.addf %295, %304 : vector<8x16xf32>
    %c0_157 = arith.constant 0 : index
    %c124 = arith.constant 124 : index
    %306 = vector.load %arg8[%c0_157, %c124] : memref<8x1280xf32, #tpu.memory_space<vmem>>, vector<8x16xf32>
    %c1_158 = arith.constant 1 : index
    %c1_159 = arith.constant 1 : index
    %c0_160 = arith.constant 0 : index
    %c0_161 = arith.constant 0 : index
    %307 = vector.load %arg5[%c1_158, %c1_159, %c0_160, %c0_161] : memref<5x9x8x1xf32, #tpu.memory_space<vmem>>, vector<1x1x8x1xf32>
    %308 = vector.shape_cast %307 : vector<1x1x8x1xf32> to vector<8x1xf32>
    %309 = vector.broadcast %308 : vector<8x1xf32> to vector<8x16xf32>
    %310 = arith.mulf %306, %309 : vector<8x16xf32>
    %311 = arith.addf %305, %310 : vector<8x16xf32>
    %c0_162 = arith.constant 0 : index
    %c125_163 = arith.constant 125 : index
    %312 = vector.load %arg8[%c0_162, %c125_163] : memref<8x1280xf32, #tpu.memory_space<vmem>>, vector<8x16xf32>
    %cst_164 = arith.constant 0.000000e+00 : f32
    %313 = vector.shape_cast %291 : vector<1x16xi1> to vector<1x16xi1>
    %314 = vector.broadcast %313 : vector<1x16xi1> to vector<8x16xi1>
    %315 = vector.broadcast %cst_164 : f32 to vector<8x16xf32>
    %316 = arith.select %314, %312, %315 : vector<8x16xi1>, vector<8x16xf32>
    %c1_165 = arith.constant 1 : index
    %c2_166 = arith.constant 2 : index
    %c0_167 = arith.constant 0 : index
    %c0_168 = arith.constant 0 : index
    %317 = vector.load %arg5[%c1_165, %c2_166, %c0_167, %c0_168] : memref<5x9x8x1xf32, #tpu.memory_space<vmem>>, vector<1x1x8x1xf32>
    %318 = vector.shape_cast %317 : vector<1x1x8x1xf32> to vector<8x1xf32>
    %319 = vector.broadcast %318 : vector<8x1xf32> to vector<8x16xf32>
    %320 = arith.mulf %316, %319 : vector<8x16xf32>
    %321 = arith.addf %311, %320 : vector<8x16xf32>
    %c0_169 = arith.constant 0 : index
    %c127_170 = arith.constant 127 : index
    %322 = vector.load %arg8[%c0_169, %c127_170] : memref<8x1280xf32, #tpu.memory_space<vmem>>, vector<8x16xf32>
    %cst_171 = arith.constant 0.000000e+00 : f32
    %323 = vector.shape_cast %289 : vector<1x16xi1> to vector<1x16xi1>
    %324 = vector.broadcast %323 : vector<1x16xi1> to vector<8x16xi1>
    %325 = vector.broadcast %cst_171 : f32 to vector<8x16xf32>
    %326 = arith.select %324, %322, %325 : vector<8x16xi1>, vector<8x16xf32>
    %c1_172 = arith.constant 1 : index
    %c3_173 = arith.constant 3 : index
    %c0_174 = arith.constant 0 : index
    %c0_175 = arith.constant 0 : index
    %327 = vector.load %arg5[%c1_172, %c3_173, %c0_174, %c0_175] : memref<5x9x8x1xf32, #tpu.memory_space<vmem>>, vector<1x1x8x1xf32>
    %328 = vector.shape_cast %327 : vector<1x1x8x1xf32> to vector<8x1xf32>
    %329 = vector.broadcast %328 : vector<8x1xf32> to vector<8x16xf32>
    %330 = arith.mulf %326, %329 : vector<8x16xf32>
    %331 = arith.addf %321, %330 : vector<8x16xf32>
    %c0_176 = arith.constant 0 : index
    %c129_177 = arith.constant 129 : index
    %332 = vector.load %arg8[%c0_176, %c129_177] : memref<8x1280xf32, #tpu.memory_space<vmem>>, vector<8x16xf32>
    %cst_178 = arith.constant 0.000000e+00 : f32
    %333 = vector.shape_cast %291 : vector<1x16xi1> to vector<1x16xi1>
    %334 = vector.broadcast %333 : vector<1x16xi1> to vector<8x16xi1>
    %335 = vector.broadcast %cst_178 : f32 to vector<8x16xf32>
    %336 = arith.select %334, %332, %335 : vector<8x16xi1>, vector<8x16xf32>
    %c1_179 = arith.constant 1 : index
    %c5_180 = arith.constant 5 : index
    %c0_181 = arith.constant 0 : index
    %c0_182 = arith.constant 0 : index
    %337 = vector.load %arg5[%c1_179, %c5_180, %c0_181, %c0_182] : memref<5x9x8x1xf32, #tpu.memory_space<vmem>>, vector<1x1x8x1xf32>
    %338 = vector.shape_cast %337 : vector<1x1x8x1xf32> to vector<8x1xf32>
    %339 = vector.broadcast %338 : vector<8x1xf32> to vector<8x16xf32>
    %340 = arith.mulf %336, %339 : vector<8x16xf32>
    %341 = arith.addf %331, %340 : vector<8x16xf32>
    %c0_183 = arith.constant 0 : index
    %c131_184 = arith.constant 131 : index
    %342 = vector.load %arg8[%c0_183, %c131_184] : memref<8x1280xf32, #tpu.memory_space<vmem>>, vector<8x16xf32>
    %cst_185 = arith.constant 0.000000e+00 : f32
    %343 = vector.shape_cast %289 : vector<1x16xi1> to vector<1x16xi1>
    %344 = vector.broadcast %343 : vector<1x16xi1> to vector<8x16xi1>
    %345 = vector.broadcast %cst_185 : f32 to vector<8x16xf32>
    %346 = arith.select %344, %342, %345 : vector<8x16xi1>, vector<8x16xf32>
    %c1_186 = arith.constant 1 : index
    %c6_187 = arith.constant 6 : index
    %c0_188 = arith.constant 0 : index
    %c0_189 = arith.constant 0 : index
    %347 = vector.load %arg5[%c1_186, %c6_187, %c0_188, %c0_189] : memref<5x9x8x1xf32, #tpu.memory_space<vmem>>, vector<1x1x8x1xf32>
    %348 = vector.shape_cast %347 : vector<1x1x8x1xf32> to vector<8x1xf32>
    %349 = vector.broadcast %348 : vector<8x1xf32> to vector<8x16xf32>
    %350 = arith.mulf %346, %349 : vector<8x16xf32>
    %351 = arith.addf %341, %350 : vector<8x16xf32>
    %c0_190 = arith.constant 0 : index
    %c132 = arith.constant 132 : index
    %352 = vector.load %arg8[%c0_190, %c132] : memref<8x1280xf32, #tpu.memory_space<vmem>>, vector<8x16xf32>
    %c1_191 = arith.constant 1 : index
    %c7_192 = arith.constant 7 : index
    %c0_193 = arith.constant 0 : index
    %c0_194 = arith.constant 0 : index
    %353 = vector.load %arg5[%c1_191, %c7_192, %c0_193, %c0_194] : memref<5x9x8x1xf32, #tpu.memory_space<vmem>>, vector<1x1x8x1xf32>
    %354 = vector.shape_cast %353 : vector<1x1x8x1xf32> to vector<8x1xf32>
    %355 = vector.broadcast %354 : vector<8x1xf32> to vector<8x16xf32>
    %356 = arith.mulf %352, %355 : vector<8x16xf32>
    %357 = arith.addf %351, %356 : vector<8x16xf32>
    %c0_195 = arith.constant 0 : index
    %c133 = arith.constant 133 : index
    %358 = vector.load %arg8[%c0_195, %c133] : memref<8x1280xf32, #tpu.memory_space<vmem>>, vector<8x16xf32>
    %cst_196 = arith.constant 0.000000e+00 : f32
    %359 = vector.shape_cast %291 : vector<1x16xi1> to vector<1x16xi1>
    %360 = vector.broadcast %359 : vector<1x16xi1> to vector<8x16xi1>
    %361 = vector.broadcast %cst_196 : f32 to vector<8x16xf32>
    %362 = arith.select %360, %358, %361 : vector<8x16xi1>, vector<8x16xf32>
    %c1_197 = arith.constant 1 : index
    %c8_198 = arith.constant 8 : index
    %c0_199 = arith.constant 0 : index
    %c0_200 = arith.constant 0 : index
    %363 = vector.load %arg5[%c1_197, %c8_198, %c0_199, %c0_200] : memref<5x9x8x1xf32, #tpu.memory_space<vmem>>, vector<1x1x8x1xf32>
    %364 = vector.shape_cast %363 : vector<1x1x8x1xf32> to vector<8x1xf32>
    %365 = vector.broadcast %364 : vector<8x1xf32> to vector<8x16xf32>
    %366 = arith.mulf %362, %365 : vector<8x16xf32>
    %367 = arith.addf %357, %366 : vector<8x16xf32>
    %c1_201 = arith.constant 1 : index
    %c0_202 = arith.constant 0 : index
    %c0_203 = arith.constant 0 : index
    %368 = vector.load %arg6[%c1_201, %c0_202, %c0_203] : memref<5x8x1xf32, #tpu.memory_space<vmem>>, vector<1x8x1xf32>
    %369 = vector.shape_cast %368 : vector<1x8x1xf32> to vector<8x1xf32>
    %370 = vector.broadcast %369 : vector<8x1xf32> to vector<8x16xf32>
    %371 = arith.addf %367, %370 : vector<8x16xf32>
    %cst_204 = arith.constant 0.000000e+00 : f32
    %372 = vector.broadcast %cst_204 : f32 to vector<8x16xf32>
    %373 = arith.maximumf %371, %372 : vector<8x16xf32>
    %c2_205 = arith.constant 2 : index
    %c0_206 = arith.constant 0 : index
    %c0_207 = arith.constant 0 : index
    %374 = vector.load %arg2[%c2_205, %c0_206, %c0_207] : memref<5x8x3xf32, #tpu.memory_space<vmem>>, vector<1x8x3xf32>
    %375 = vector.shape_cast %374 : vector<1x8x3xf32> to vector<8x3xf32>
    %c2_208 = arith.constant 2 : index
    %c0_209 = arith.constant 0 : index
    %c0_210 = arith.constant 0 : index
    %376 = vector.load %arg3[%c2_208, %c0_209, %c0_210] : memref<5x8x8xf32, #tpu.memory_space<vmem>>, vector<1x8x8xf32>
    %377 = vector.shape_cast %376 : vector<1x8x8xf32> to vector<8x8xf32>
    %cst_211 = arith.constant dense<0.000000e+00> : vector<8x16xf32>
    %378 = tpu.matmul %377, %373, %cst_211 {dimension_numbers = #tpu.dot_dimension_numbers<[1], [0], [0], [1], [0, 0, 1, 1], [], []>} : vector<8x8xf32>, vector<8x16xf32>, vector<8x16xf32> -> vector<8x16xf32>
    %379 = tpu.iota {dimensions = array<i32: 0>} : vector<16x64xi32>
    %380 = tpu.iota {dimensions = array<i32: 1>} : vector<16x64xi32>
    %c3_i32_212 = arith.constant 3 : i32
    %381 = vector.broadcast %c3_i32_212 : i32 to vector<16x64xi32>
    %382 = arith.shrsi %380, %381 : vector<16x64xi32>
    %c7_i32_213 = arith.constant 7 : i32
    %383 = vector.broadcast %c7_i32_213 : i32 to vector<16x64xi32>
    %384 = arith.andi %380, %383 : vector<16x64xi32>
    %c1_i32_214 = arith.constant 1 : i32
    %385 = vector.broadcast %c1_i32_214 : i32 to vector<16x64xi32>
    %386 = arith.shrsi %382, %385 : vector<16x64xi32>
    %c2_i32_215 = arith.constant 2 : i32
    %387 = vector.broadcast %c2_i32_215 : i32 to vector<16x64xi32>
    %388 = arith.shli %386, %387 : vector<16x64xi32>
    %c1_i32_216 = arith.constant 1 : i32
    %389 = vector.broadcast %c1_i32_216 : i32 to vector<16x64xi32>
    %390 = arith.shrsi %384, %389 : vector<16x64xi32>
    %391 = arith.addi %388, %390 : vector<16x64xi32>
    %392 = arith.cmpi eq, %391, %379 : vector<16x64xi32>
    %cst_217 = arith.constant 1.000000e+00 : f32
    %cst_218 = arith.constant 0.000000e+00 : f32
    %393 = vector.broadcast %cst_217 : f32 to vector<16x64xf32>
    %394 = vector.broadcast %cst_218 : f32 to vector<16x64xf32>
    %395 = arith.select %392, %393, %394 : vector<16x64xi1>, vector<16x64xf32>
    %cst_219 = arith.constant dense<0.000000e+00> : vector<8x64xf32>
    %396 = tpu.matmul %378, %395, %cst_219 {dimension_numbers = #tpu.dot_dimension_numbers<[1], [0], [0], [1], [0, 0, 1, 1], [], []>} : vector<8x16xf32>, vector<16x64xf32>, vector<8x64xf32> -> vector<8x64xf32>
    %cst_220 = arith.constant dense<0.000000e+00> : vector<8x64xf32>
    %397 = tpu.matmul %375, %112, %cst_220 {dimension_numbers = #tpu.dot_dimension_numbers<[1], [0], [0], [1], [0, 0, 1, 1], [], []>} : vector<8x3xf32>, vector<3x64xf32>, vector<8x64xf32> -> vector<8x64xf32>
    %398 = arith.addf %397, %396 : vector<8x64xf32>
    %c2_221 = arith.constant 2 : index
    %c0_222 = arith.constant 0 : index
    %c0_223 = arith.constant 0 : index
    %399 = vector.load %arg4[%c2_221, %c0_222, %c0_223] : memref<5x8x1xf32, #tpu.memory_space<vmem>>, vector<1x8x1xf32>
    %400 = vector.shape_cast %399 : vector<1x8x1xf32> to vector<8x1xf32>
    %401 = vector.broadcast %400 : vector<8x1xf32> to vector<8x64xf32>
    %402 = arith.addf %398, %401 : vector<8x64xf32>
    %cst_224 = arith.constant 0.000000e+00 : f32
    %403 = vector.broadcast %cst_224 : f32 to vector<8x64xf32>
    %404 = arith.maximumf %402, %403 : vector<8x64xf32>
    %cst_225 = arith.constant 0.000000e+00 : f32
    %405 = vector.broadcast %cst_225 : f32 to vector<8x1280xf32>
    %c0_226 = arith.constant 0 : index
    %c0_227 = arith.constant 0 : index
    %406 = vector.load %arg8[%c0_226, %c0_227] : memref<8x1280xf32, #tpu.memory_space<vmem>>, vector<8x1280xf32>
    tpu.vector_store %arg8[%c0_226, %c0_227], %405 {strides = array<i32>} : memref<8x1280xf32, #tpu.memory_space<vmem>>, vector<8x1280xf32>,
    %c0_228 = arith.constant 0 : index
    %c128_229 = arith.constant 128 : index
    %407 = vector.load %arg8[%c0_228, %c128_229] : memref<8x1280xf32, #tpu.memory_space<vmem>>, vector<8x64xf32>
    tpu.vector_store %arg8[%c0_228, %c128_229], %404 {strides = array<i32>} : memref<8x1280xf32, #tpu.memory_space<vmem>>, vector<8x64xf32>,
    %408 = tpu.iota {dimensions = array<i32: 1>} : vector<1x64xi32>
    %c7_i32_230 = arith.constant 7 : i32
    %409 = vector.broadcast %c7_i32_230 : i32 to vector<1x64xi32>
    %410 = arith.andi %408, %409 : vector<1x64xi32>
    %c0_i32_231 = arith.constant 0 : i32
    %411 = vector.broadcast %c0_i32_231 : i32 to vector<1x64xi32>
    %412 = arith.cmpi sgt, %410, %411 : vector<1x64xi32>
    %c7_i32_232 = arith.constant 7 : i32
    %413 = vector.broadcast %c7_i32_232 : i32 to vector<1x64xi32>
    %414 = arith.cmpi slt, %410, %413 : vector<1x64xi32>
    %c2_233 = arith.constant 2 : index
    %c4_234 = arith.constant 4 : index
    %c0_235 = arith.constant 0 : index
    %c0_236 = arith.constant 0 : index
    %415 = vector.load %arg5[%c2_233, %c4_234, %c0_235, %c0_236] : memref<5x9x8x1xf32, #tpu.memory_space<vmem>>, vector<1x1x8x1xf32>
    %416 = vector.shape_cast %415 : vector<1x1x8x1xf32> to vector<8x1xf32>
    %417 = vector.broadcast %416 : vector<8x1xf32> to vector<8x64xf32>
    %418 = arith.mulf %404, %417 : vector<8x64xf32>
    %c0_237 = arith.constant 0 : index
    %c119 = arith.constant 119 : index
    %419 = vector.load %arg8[%c0_237, %c119] : memref<8x1280xf32, #tpu.memory_space<vmem>>, vector<8x64xf32>
    %cst_238 = arith.constant 0.000000e+00 : f32
    %420 = vector.shape_cast %412 : vector<1x64xi1> to vector<1x64xi1>
    %421 = vector.broadcast %420 : vector<1x64xi1> to vector<8x64xi1>
    %422 = vector.broadcast %cst_238 : f32 to vector<8x64xf32>
    %423 = arith.select %421, %419, %422 : vector<8x64xi1>, vector<8x64xf32>
    %c2_239 = arith.constant 2 : index
    %c0_240 = arith.constant 0 : index
    %c0_241 = arith.constant 0 : index
    %c0_242 = arith.constant 0 : index
    %424 = vector.load %arg5[%c2_239, %c0_240, %c0_241, %c0_242] : memref<5x9x8x1xf32, #tpu.memory_space<vmem>>, vector<1x1x8x1xf32>
    %425 = vector.shape_cast %424 : vector<1x1x8x1xf32> to vector<8x1xf32>
    %426 = vector.broadcast %425 : vector<8x1xf32> to vector<8x64xf32>
    %427 = arith.mulf %423, %426 : vector<8x64xf32>
    %428 = arith.addf %418, %427 : vector<8x64xf32>
    %c0_243 = arith.constant 0 : index
    %c120 = arith.constant 120 : index
    %429 = vector.load %arg8[%c0_243, %c120] : memref<8x1280xf32, #tpu.memory_space<vmem>>, vector<8x64xf32>
    %c2_244 = arith.constant 2 : index
    %c1_245 = arith.constant 1 : index
    %c0_246 = arith.constant 0 : index
    %c0_247 = arith.constant 0 : index
    %430 = vector.load %arg5[%c2_244, %c1_245, %c0_246, %c0_247] : memref<5x9x8x1xf32, #tpu.memory_space<vmem>>, vector<1x1x8x1xf32>
    %431 = vector.shape_cast %430 : vector<1x1x8x1xf32> to vector<8x1xf32>
    %432 = vector.broadcast %431 : vector<8x1xf32> to vector<8x64xf32>
    %433 = arith.mulf %429, %432 : vector<8x64xf32>
    %434 = arith.addf %428, %433 : vector<8x64xf32>
    %c0_248 = arith.constant 0 : index
    %c121 = arith.constant 121 : index
    %435 = vector.load %arg8[%c0_248, %c121] : memref<8x1280xf32, #tpu.memory_space<vmem>>, vector<8x64xf32>
    %cst_249 = arith.constant 0.000000e+00 : f32
    %436 = vector.shape_cast %414 : vector<1x64xi1> to vector<1x64xi1>
    %437 = vector.broadcast %436 : vector<1x64xi1> to vector<8x64xi1>
    %438 = vector.broadcast %cst_249 : f32 to vector<8x64xf32>
    %439 = arith.select %437, %435, %438 : vector<8x64xi1>, vector<8x64xf32>
    %c2_250 = arith.constant 2 : index
    %c2_251 = arith.constant 2 : index
    %c0_252 = arith.constant 0 : index
    %c0_253 = arith.constant 0 : index
    %440 = vector.load %arg5[%c2_250, %c2_251, %c0_252, %c0_253] : memref<5x9x8x1xf32, #tpu.memory_space<vmem>>, vector<1x1x8x1xf32>
    %441 = vector.shape_cast %440 : vector<1x1x8x1xf32> to vector<8x1xf32>
    %442 = vector.broadcast %441 : vector<8x1xf32> to vector<8x64xf32>
    %443 = arith.mulf %439, %442 : vector<8x64xf32>
    %444 = arith.addf %434, %443 : vector<8x64xf32>
    %c0_254 = arith.constant 0 : index
    %c127_255 = arith.constant 127 : index
    %445 = vector.load %arg8[%c0_254, %c127_255] : memref<8x1280xf32, #tpu.memory_space<vmem>>, vector<8x64xf32>
    %cst_256 = arith.constant 0.000000e+00 : f32
    %446 = vector.shape_cast %412 : vector<1x64xi1> to vector<1x64xi1>
    %447 = vector.broadcast %446 : vector<1x64xi1> to vector<8x64xi1>
    %448 = vector.broadcast %cst_256 : f32 to vector<8x64xf32>
    %449 = arith.select %447, %445, %448 : vector<8x64xi1>, vector<8x64xf32>
    %c2_257 = arith.constant 2 : index
    %c3_258 = arith.constant 3 : index
    %c0_259 = arith.constant 0 : index
    %c0_260 = arith.constant 0 : index
    %450 = vector.load %arg5[%c2_257, %c3_258, %c0_259, %c0_260] : memref<5x9x8x1xf32, #tpu.memory_space<vmem>>, vector<1x1x8x1xf32>
    %451 = vector.shape_cast %450 : vector<1x1x8x1xf32> to vector<8x1xf32>
    %452 = vector.broadcast %451 : vector<8x1xf32> to vector<8x64xf32>
    %453 = arith.mulf %449, %452 : vector<8x64xf32>
    %454 = arith.addf %444, %453 : vector<8x64xf32>
    %c0_261 = arith.constant 0 : index
    %c129_262 = arith.constant 129 : index
    %455 = vector.load %arg8[%c0_261, %c129_262] : memref<8x1280xf32, #tpu.memory_space<vmem>>, vector<8x64xf32>
    %cst_263 = arith.constant 0.000000e+00 : f32
    %456 = vector.shape_cast %414 : vector<1x64xi1> to vector<1x64xi1>
    %457 = vector.broadcast %456 : vector<1x64xi1> to vector<8x64xi1>
    %458 = vector.broadcast %cst_263 : f32 to vector<8x64xf32>
    %459 = arith.select %457, %455, %458 : vector<8x64xi1>, vector<8x64xf32>
    %c2_264 = arith.constant 2 : index
    %c5_265 = arith.constant 5 : index
    %c0_266 = arith.constant 0 : index
    %c0_267 = arith.constant 0 : index
    %460 = vector.load %arg5[%c2_264, %c5_265, %c0_266, %c0_267] : memref<5x9x8x1xf32, #tpu.memory_space<vmem>>, vector<1x1x8x1xf32>
    %461 = vector.shape_cast %460 : vector<1x1x8x1xf32> to vector<8x1xf32>
    %462 = vector.broadcast %461 : vector<8x1xf32> to vector<8x64xf32>
    %463 = arith.mulf %459, %462 : vector<8x64xf32>
    %464 = arith.addf %454, %463 : vector<8x64xf32>
    %c0_268 = arith.constant 0 : index
    %c135 = arith.constant 135 : index
    %465 = vector.load %arg8[%c0_268, %c135] : memref<8x1280xf32, #tpu.memory_space<vmem>>, vector<8x64xf32>
    %cst_269 = arith.constant 0.000000e+00 : f32
    %466 = vector.shape_cast %412 : vector<1x64xi1> to vector<1x64xi1>
    %467 = vector.broadcast %466 : vector<1x64xi1> to vector<8x64xi1>
    %468 = vector.broadcast %cst_269 : f32 to vector<8x64xf32>
    %469 = arith.select %467, %465, %468 : vector<8x64xi1>, vector<8x64xf32>
    %c2_270 = arith.constant 2 : index
    %c6_271 = arith.constant 6 : index
    %c0_272 = arith.constant 0 : index
    %c0_273 = arith.constant 0 : index
    %470 = vector.load %arg5[%c2_270, %c6_271, %c0_272, %c0_273] : memref<5x9x8x1xf32, #tpu.memory_space<vmem>>, vector<1x1x8x1xf32>
    %471 = vector.shape_cast %470 : vector<1x1x8x1xf32> to vector<8x1xf32>
    %472 = vector.broadcast %471 : vector<8x1xf32> to vector<8x64xf32>
    %473 = arith.mulf %469, %472 : vector<8x64xf32>
    %474 = arith.addf %464, %473 : vector<8x64xf32>
    %c0_274 = arith.constant 0 : index
    %c136 = arith.constant 136 : index
    %475 = vector.load %arg8[%c0_274, %c136] : memref<8x1280xf32, #tpu.memory_space<vmem>>, vector<8x64xf32>
    %c2_275 = arith.constant 2 : index
    %c7_276 = arith.constant 7 : index
    %c0_277 = arith.constant 0 : index
    %c0_278 = arith.constant 0 : index
    %476 = vector.load %arg5[%c2_275, %c7_276, %c0_277, %c0_278] : memref<5x9x8x1xf32, #tpu.memory_space<vmem>>, vector<1x1x8x1xf32>
    %477 = vector.shape_cast %476 : vector<1x1x8x1xf32> to vector<8x1xf32>
    %478 = vector.broadcast %477 : vector<8x1xf32> to vector<8x64xf32>
    %479 = arith.mulf %475, %478 : vector<8x64xf32>
    %480 = arith.addf %474, %479 : vector<8x64xf32>
    %c0_279 = arith.constant 0 : index
    %c137 = arith.constant 137 : index
    %481 = vector.load %arg8[%c0_279, %c137] : memref<8x1280xf32, #tpu.memory_space<vmem>>, vector<8x64xf32>
    %cst_280 = arith.constant 0.000000e+00 : f32
    %482 = vector.shape_cast %414 : vector<1x64xi1> to vector<1x64xi1>
    %483 = vector.broadcast %482 : vector<1x64xi1> to vector<8x64xi1>
    %484 = vector.broadcast %cst_280 : f32 to vector<8x64xf32>
    %485 = arith.select %483, %481, %484 : vector<8x64xi1>, vector<8x64xf32>
    %c2_281 = arith.constant 2 : index
    %c8_282 = arith.constant 8 : index
    %c0_283 = arith.constant 0 : index
    %c0_284 = arith.constant 0 : index
    %486 = vector.load %arg5[%c2_281, %c8_282, %c0_283, %c0_284] : memref<5x9x8x1xf32, #tpu.memory_space<vmem>>, vector<1x1x8x1xf32>
    %487 = vector.shape_cast %486 : vector<1x1x8x1xf32> to vector<8x1xf32>
    %488 = vector.broadcast %487 : vector<8x1xf32> to vector<8x64xf32>
    %489 = arith.mulf %485, %488 : vector<8x64xf32>
    %490 = arith.addf %480, %489 : vector<8x64xf32>
    %c2_285 = arith.constant 2 : index
    %c0_286 = arith.constant 0 : index
    %c0_287 = arith.constant 0 : index
    %491 = vector.load %arg6[%c2_285, %c0_286, %c0_287] : memref<5x8x1xf32, #tpu.memory_space<vmem>>, vector<1x8x1xf32>
    %492 = vector.shape_cast %491 : vector<1x8x1xf32> to vector<8x1xf32>
    %493 = vector.broadcast %492 : vector<8x1xf32> to vector<8x64xf32>
    %494 = arith.addf %490, %493 : vector<8x64xf32>
    %cst_288 = arith.constant 0.000000e+00 : f32
    %495 = vector.broadcast %cst_288 : f32 to vector<8x64xf32>
    %496 = arith.maximumf %494, %495 : vector<8x64xf32>
    %c3_289 = arith.constant 3 : index
    %c0_290 = arith.constant 0 : index
    %c0_291 = arith.constant 0 : index
    %497 = vector.load %arg2[%c3_289, %c0_290, %c0_291] : memref<5x8x3xf32, #tpu.memory_space<vmem>>, vector<1x8x3xf32>
    %498 = vector.shape_cast %497 : vector<1x8x3xf32> to vector<8x3xf32>
    %c3_292 = arith.constant 3 : index
    %c0_293 = arith.constant 0 : index
    %c0_294 = arith.constant 0 : index
    %499 = vector.load %arg3[%c3_292, %c0_293, %c0_294] : memref<5x8x8xf32, #tpu.memory_space<vmem>>, vector<1x8x8xf32>
    %500 = vector.shape_cast %499 : vector<1x8x8xf32> to vector<8x8xf32>
    %cst_295 = arith.constant dense<0.000000e+00> : vector<8x64xf32>
    %501 = tpu.matmul %500, %496, %cst_295 {dimension_numbers = #tpu.dot_dimension_numbers<[1], [0], [0], [1], [0, 0, 1, 1], [], []>} : vector<8x8xf32>, vector<8x64xf32>, vector<8x64xf32> -> vector<8x64xf32>
    %502 = tpu.iota {dimensions = array<i32: 0>} : vector<64x256xi32>
    %503 = tpu.iota {dimensions = array<i32: 1>} : vector<64x256xi32>
    %c4_i32_296 = arith.constant 4 : i32
    %504 = vector.broadcast %c4_i32_296 : i32 to vector<64x256xi32>
    %505 = arith.shrsi %503, %504 : vector<64x256xi32>
    %c15_i32_297 = arith.constant 15 : i32
    %506 = vector.broadcast %c15_i32_297 : i32 to vector<64x256xi32>
    %507 = arith.andi %503, %506 : vector<64x256xi32>
    %c1_i32_298 = arith.constant 1 : i32
    %508 = vector.broadcast %c1_i32_298 : i32 to vector<64x256xi32>
    %509 = arith.shrsi %505, %508 : vector<64x256xi32>
    %c3_i32_299 = arith.constant 3 : i32
    %510 = vector.broadcast %c3_i32_299 : i32 to vector<64x256xi32>
    %511 = arith.shli %509, %510 : vector<64x256xi32>
    %c1_i32_300 = arith.constant 1 : i32
    %512 = vector.broadcast %c1_i32_300 : i32 to vector<64x256xi32>
    %513 = arith.shrsi %507, %512 : vector<64x256xi32>
    %514 = arith.addi %511, %513 : vector<64x256xi32>
    %515 = arith.cmpi eq, %514, %502 : vector<64x256xi32>
    %cst_301 = arith.constant 1.000000e+00 : f32
    %cst_302 = arith.constant 0.000000e+00 : f32
    %516 = vector.broadcast %cst_301 : f32 to vector<64x256xf32>
    %517 = vector.broadcast %cst_302 : f32 to vector<64x256xf32>
    %518 = arith.select %515, %516, %517 : vector<64x256xi1>, vector<64x256xf32>
    %cst_303 = arith.constant dense<0.000000e+00> : vector<8x256xf32>
    %519 = tpu.matmul %501, %518, %cst_303 {dimension_numbers = #tpu.dot_dimension_numbers<[1], [0], [0], [1], [0, 0, 1, 1], [], []>} : vector<8x64xf32>, vector<64x256xf32>, vector<8x256xf32> -> vector<8x256xf32>
    %cst_304 = arith.constant dense<0.000000e+00> : vector<8x256xf32>
    %520 = tpu.matmul %498, %75, %cst_304 {dimension_numbers = #tpu.dot_dimension_numbers<[1], [0], [0], [1], [0, 0, 1, 1], [], []>} : vector<8x3xf32>, vector<3x256xf32>, vector<8x256xf32> -> vector<8x256xf32>
    %521 = arith.addf %520, %519 : vector<8x256xf32>
    %c3_305 = arith.constant 3 : index
    %c0_306 = arith.constant 0 : index
    %c0_307 = arith.constant 0 : index
    %522 = vector.load %arg4[%c3_305, %c0_306, %c0_307] : memref<5x8x1xf32, #tpu.memory_space<vmem>>, vector<1x8x1xf32>
    %523 = vector.shape_cast %522 : vector<1x8x1xf32> to vector<8x1xf32>
    %524 = vector.broadcast %523 : vector<8x1xf32> to vector<8x256xf32>
    %525 = arith.addf %521, %524 : vector<8x256xf32>
    %cst_308 = arith.constant 0.000000e+00 : f32
    %526 = vector.broadcast %cst_308 : f32 to vector<8x256xf32>
    %527 = arith.maximumf %525, %526 : vector<8x256xf32>
    %cst_309 = arith.constant 0.000000e+00 : f32
    %528 = vector.broadcast %cst_309 : f32 to vector<8x1280xf32>
    %c0_310 = arith.constant 0 : index
    %c0_311 = arith.constant 0 : index
    %529 = vector.load %arg8[%c0_310, %c0_311] : memref<8x1280xf32, #tpu.memory_space<vmem>>, vector<8x1280xf32>
    tpu.vector_store %arg8[%c0_310, %c0_311], %528 {strides = array<i32>} : memref<8x1280xf32, #tpu.memory_space<vmem>>, vector<8x1280xf32>,
    %c0_312 = arith.constant 0 : index
    %c128_313 = arith.constant 128 : index
    %530 = vector.load %arg8[%c0_312, %c128_313] : memref<8x1280xf32, #tpu.memory_space<vmem>>, vector<8x256xf32>
    tpu.vector_store %arg8[%c0_312, %c128_313], %527 {strides = array<i32>} : memref<8x1280xf32, #tpu.memory_space<vmem>>, vector<8x256xf32>,
    %531 = tpu.iota {dimensions = array<i32: 1>} : vector<1x256xi32>
    %c15_i32_314 = arith.constant 15 : i32
    %532 = vector.broadcast %c15_i32_314 : i32 to vector<1x256xi32>
    %533 = arith.andi %531, %532 : vector<1x256xi32>
    %c0_i32_315 = arith.constant 0 : i32
    %534 = vector.broadcast %c0_i32_315 : i32 to vector<1x256xi32>
    %535 = arith.cmpi sgt, %533, %534 : vector<1x256xi32>
    %c15_i32_316 = arith.constant 15 : i32
    %536 = vector.broadcast %c15_i32_316 : i32 to vector<1x256xi32>
    %537 = arith.cmpi slt, %533, %536 : vector<1x256xi32>
    %c3_317 = arith.constant 3 : index
    %c4_318 = arith.constant 4 : index
    %c0_319 = arith.constant 0 : index
    %c0_320 = arith.constant 0 : index
    %538 = vector.load %arg5[%c3_317, %c4_318, %c0_319, %c0_320] : memref<5x9x8x1xf32, #tpu.memory_space<vmem>>, vector<1x1x8x1xf32>
    %539 = vector.shape_cast %538 : vector<1x1x8x1xf32> to vector<8x1xf32>
    %540 = vector.broadcast %539 : vector<8x1xf32> to vector<8x256xf32>
    %541 = arith.mulf %527, %540 : vector<8x256xf32>
    %c0_321 = arith.constant 0 : index
    %c111 = arith.constant 111 : index
    %542 = vector.load %arg8[%c0_321, %c111] : memref<8x1280xf32, #tpu.memory_space<vmem>>, vector<8x256xf32>
    %cst_322 = arith.constant 0.000000e+00 : f32
    %543 = vector.shape_cast %535 : vector<1x256xi1> to vector<1x256xi1>
    %544 = vector.broadcast %543 : vector<1x256xi1> to vector<8x256xi1>
    %545 = vector.broadcast %cst_322 : f32 to vector<8x256xf32>
    %546 = arith.select %544, %542, %545 : vector<8x256xi1>, vector<8x256xf32>
    %c3_323 = arith.constant 3 : index
    %c0_324 = arith.constant 0 : index
    %c0_325 = arith.constant 0 : index
    %c0_326 = arith.constant 0 : index
    %547 = vector.load %arg5[%c3_323, %c0_324, %c0_325, %c0_326] : memref<5x9x8x1xf32, #tpu.memory_space<vmem>>, vector<1x1x8x1xf32>
    %548 = vector.shape_cast %547 : vector<1x1x8x1xf32> to vector<8x1xf32>
    %549 = vector.broadcast %548 : vector<8x1xf32> to vector<8x256xf32>
    %550 = arith.mulf %546, %549 : vector<8x256xf32>
    %551 = arith.addf %541, %550 : vector<8x256xf32>
    %c0_327 = arith.constant 0 : index
    %c112 = arith.constant 112 : index
    %552 = vector.load %arg8[%c0_327, %c112] : memref<8x1280xf32, #tpu.memory_space<vmem>>, vector<8x256xf32>
    %c3_328 = arith.constant 3 : index
    %c1_329 = arith.constant 1 : index
    %c0_330 = arith.constant 0 : index
    %c0_331 = arith.constant 0 : index
    %553 = vector.load %arg5[%c3_328, %c1_329, %c0_330, %c0_331] : memref<5x9x8x1xf32, #tpu.memory_space<vmem>>, vector<1x1x8x1xf32>
    %554 = vector.shape_cast %553 : vector<1x1x8x1xf32> to vector<8x1xf32>
    %555 = vector.broadcast %554 : vector<8x1xf32> to vector<8x256xf32>
    %556 = arith.mulf %552, %555 : vector<8x256xf32>
    %557 = arith.addf %551, %556 : vector<8x256xf32>
    %c0_332 = arith.constant 0 : index
    %c113 = arith.constant 113 : index
    %558 = vector.load %arg8[%c0_332, %c113] : memref<8x1280xf32, #tpu.memory_space<vmem>>, vector<8x256xf32>
    %cst_333 = arith.constant 0.000000e+00 : f32
    %559 = vector.shape_cast %537 : vector<1x256xi1> to vector<1x256xi1>
    %560 = vector.broadcast %559 : vector<1x256xi1> to vector<8x256xi1>
    %561 = vector.broadcast %cst_333 : f32 to vector<8x256xf32>
    %562 = arith.select %560, %558, %561 : vector<8x256xi1>, vector<8x256xf32>
    %c3_334 = arith.constant 3 : index
    %c2_335 = arith.constant 2 : index
    %c0_336 = arith.constant 0 : index
    %c0_337 = arith.constant 0 : index
    %563 = vector.load %arg5[%c3_334, %c2_335, %c0_336, %c0_337] : memref<5x9x8x1xf32, #tpu.memory_space<vmem>>, vector<1x1x8x1xf32>
    %564 = vector.shape_cast %563 : vector<1x1x8x1xf32> to vector<8x1xf32>
    %565 = vector.broadcast %564 : vector<8x1xf32> to vector<8x256xf32>
    %566 = arith.mulf %562, %565 : vector<8x256xf32>
    %567 = arith.addf %557, %566 : vector<8x256xf32>
    %c0_338 = arith.constant 0 : index
    %c127_339 = arith.constant 127 : index
    %568 = vector.load %arg8[%c0_338, %c127_339] : memref<8x1280xf32, #tpu.memory_space<vmem>>, vector<8x256xf32>
    %cst_340 = arith.constant 0.000000e+00 : f32
    %569 = vector.shape_cast %535 : vector<1x256xi1> to vector<1x256xi1>
    %570 = vector.broadcast %569 : vector<1x256xi1> to vector<8x256xi1>
    %571 = vector.broadcast %cst_340 : f32 to vector<8x256xf32>
    %572 = arith.select %570, %568, %571 : vector<8x256xi1>, vector<8x256xf32>
    %c3_341 = arith.constant 3 : index
    %c3_342 = arith.constant 3 : index
    %c0_343 = arith.constant 0 : index
    %c0_344 = arith.constant 0 : index
    %573 = vector.load %arg5[%c3_341, %c3_342, %c0_343, %c0_344] : memref<5x9x8x1xf32, #tpu.memory_space<vmem>>, vector<1x1x8x1xf32>
    %574 = vector.shape_cast %573 : vector<1x1x8x1xf32> to vector<8x1xf32>
    %575 = vector.broadcast %574 : vector<8x1xf32> to vector<8x256xf32>
    %576 = arith.mulf %572, %575 : vector<8x256xf32>
    %577 = arith.addf %567, %576 : vector<8x256xf32>
    %c0_345 = arith.constant 0 : index
    %c129_346 = arith.constant 129 : index
    %578 = vector.load %arg8[%c0_345, %c129_346] : memref<8x1280xf32, #tpu.memory_space<vmem>>, vector<8x256xf32>
    %cst_347 = arith.constant 0.000000e+00 : f32
    %579 = vector.shape_cast %537 : vector<1x256xi1> to vector<1x256xi1>
    %580 = vector.broadcast %579 : vector<1x256xi1> to vector<8x256xi1>
    %581 = vector.broadcast %cst_347 : f32 to vector<8x256xf32>
    %582 = arith.select %580, %578, %581 : vector<8x256xi1>, vector<8x256xf32>
    %c3_348 = arith.constant 3 : index
    %c5_349 = arith.constant 5 : index
    %c0_350 = arith.constant 0 : index
    %c0_351 = arith.constant 0 : index
    %583 = vector.load %arg5[%c3_348, %c5_349, %c0_350, %c0_351] : memref<5x9x8x1xf32, #tpu.memory_space<vmem>>, vector<1x1x8x1xf32>
    %584 = vector.shape_cast %583 : vector<1x1x8x1xf32> to vector<8x1xf32>
    %585 = vector.broadcast %584 : vector<8x1xf32> to vector<8x256xf32>
    %586 = arith.mulf %582, %585 : vector<8x256xf32>
    %587 = arith.addf %577, %586 : vector<8x256xf32>
    %c0_352 = arith.constant 0 : index
    %c143 = arith.constant 143 : index
    %588 = vector.load %arg8[%c0_352, %c143] : memref<8x1280xf32, #tpu.memory_space<vmem>>, vector<8x256xf32>
    %cst_353 = arith.constant 0.000000e+00 : f32
    %589 = vector.shape_cast %535 : vector<1x256xi1> to vector<1x256xi1>
    %590 = vector.broadcast %589 : vector<1x256xi1> to vector<8x256xi1>
    %591 = vector.broadcast %cst_353 : f32 to vector<8x256xf32>
    %592 = arith.select %590, %588, %591 : vector<8x256xi1>, vector<8x256xf32>
    %c3_354 = arith.constant 3 : index
    %c6_355 = arith.constant 6 : index
    %c0_356 = arith.constant 0 : index
    %c0_357 = arith.constant 0 : index
    %593 = vector.load %arg5[%c3_354, %c6_355, %c0_356, %c0_357] : memref<5x9x8x1xf32, #tpu.memory_space<vmem>>, vector<1x1x8x1xf32>
    %594 = vector.shape_cast %593 : vector<1x1x8x1xf32> to vector<8x1xf32>
    %595 = vector.broadcast %594 : vector<8x1xf32> to vector<8x256xf32>
    %596 = arith.mulf %592, %595 : vector<8x256xf32>
    %597 = arith.addf %587, %596 : vector<8x256xf32>
    %c0_358 = arith.constant 0 : index
    %c144 = arith.constant 144 : index
    %598 = vector.load %arg8[%c0_358, %c144] : memref<8x1280xf32, #tpu.memory_space<vmem>>, vector<8x256xf32>
    %c3_359 = arith.constant 3 : index
    %c7_360 = arith.constant 7 : index
    %c0_361 = arith.constant 0 : index
    %c0_362 = arith.constant 0 : index
    %599 = vector.load %arg5[%c3_359, %c7_360, %c0_361, %c0_362] : memref<5x9x8x1xf32, #tpu.memory_space<vmem>>, vector<1x1x8x1xf32>
    %600 = vector.shape_cast %599 : vector<1x1x8x1xf32> to vector<8x1xf32>
    %601 = vector.broadcast %600 : vector<8x1xf32> to vector<8x256xf32>
    %602 = arith.mulf %598, %601 : vector<8x256xf32>
    %603 = arith.addf %597, %602 : vector<8x256xf32>
    %c0_363 = arith.constant 0 : index
    %c145 = arith.constant 145 : index
    %604 = vector.load %arg8[%c0_363, %c145] : memref<8x1280xf32, #tpu.memory_space<vmem>>, vector<8x256xf32>
    %cst_364 = arith.constant 0.000000e+00 : f32
    %605 = vector.shape_cast %537 : vector<1x256xi1> to vector<1x256xi1>
    %606 = vector.broadcast %605 : vector<1x256xi1> to vector<8x256xi1>
    %607 = vector.broadcast %cst_364 : f32 to vector<8x256xf32>
    %608 = arith.select %606, %604, %607 : vector<8x256xi1>, vector<8x256xf32>
    %c3_365 = arith.constant 3 : index
    %c8_366 = arith.constant 8 : index
    %c0_367 = arith.constant 0 : index
    %c0_368 = arith.constant 0 : index
    %609 = vector.load %arg5[%c3_365, %c8_366, %c0_367, %c0_368] : memref<5x9x8x1xf32, #tpu.memory_space<vmem>>, vector<1x1x8x1xf32>
    %610 = vector.shape_cast %609 : vector<1x1x8x1xf32> to vector<8x1xf32>
    %611 = vector.broadcast %610 : vector<8x1xf32> to vector<8x256xf32>
    %612 = arith.mulf %608, %611 : vector<8x256xf32>
    %613 = arith.addf %603, %612 : vector<8x256xf32>
    %c3_369 = arith.constant 3 : index
    %c0_370 = arith.constant 0 : index
    %c0_371 = arith.constant 0 : index
    %614 = vector.load %arg6[%c3_369, %c0_370, %c0_371] : memref<5x8x1xf32, #tpu.memory_space<vmem>>, vector<1x8x1xf32>
    %615 = vector.shape_cast %614 : vector<1x8x1xf32> to vector<8x1xf32>
    %616 = vector.broadcast %615 : vector<8x1xf32> to vector<8x256xf32>
    %617 = arith.addf %613, %616 : vector<8x256xf32>
    %cst_372 = arith.constant 0.000000e+00 : f32
    %618 = vector.broadcast %cst_372 : f32 to vector<8x256xf32>
    %619 = arith.maximumf %617, %618 : vector<8x256xf32>
    %c4_373 = arith.constant 4 : index
    %c0_374 = arith.constant 0 : index
    %c0_375 = arith.constant 0 : index
    %620 = vector.load %arg2[%c4_373, %c0_374, %c0_375] : memref<5x8x3xf32, #tpu.memory_space<vmem>>, vector<1x8x3xf32>
    %621 = vector.shape_cast %620 : vector<1x8x3xf32> to vector<8x3xf32>
    %c4_376 = arith.constant 4 : index
    %c0_377 = arith.constant 0 : index
    %c0_378 = arith.constant 0 : index
    %622 = vector.load %arg3[%c4_376, %c0_377, %c0_378] : memref<5x8x8xf32, #tpu.memory_space<vmem>>, vector<1x8x8xf32>
    %623 = vector.shape_cast %622 : vector<1x8x8xf32> to vector<8x8xf32>
    %cst_379 = arith.constant dense<0.000000e+00> : vector<8x256xf32>
    %624 = tpu.matmul %623, %619, %cst_379 {dimension_numbers = #tpu.dot_dimension_numbers<[1], [0], [0], [1], [0, 0, 1, 1], [], []>} : vector<8x8xf32>, vector<8x256xf32>, vector<8x256xf32> -> vector<8x256xf32>
    %625 = tpu.iota {dimensions = array<i32: 0>} : vector<256x1024xi32>
    %626 = tpu.iota {dimensions = array<i32: 1>} : vector<256x1024xi32>
    %c5_i32_380 = arith.constant 5 : i32
    %627 = vector.broadcast %c5_i32_380 : i32 to vector<256x1024xi32>
    %628 = arith.shrsi %626, %627 : vector<256x1024xi32>
    %c31_i32_381 = arith.constant 31 : i32
    %629 = vector.broadcast %c31_i32_381 : i32 to vector<256x1024xi32>
    %630 = arith.andi %626, %629 : vector<256x1024xi32>
    %c1_i32_382 = arith.constant 1 : i32
    %631 = vector.broadcast %c1_i32_382 : i32 to vector<256x1024xi32>
    %632 = arith.shrsi %628, %631 : vector<256x1024xi32>
    %c4_i32_383 = arith.constant 4 : i32
    %633 = vector.broadcast %c4_i32_383 : i32 to vector<256x1024xi32>
    %634 = arith.shli %632, %633 : vector<256x1024xi32>
    %c1_i32_384 = arith.constant 1 : i32
    %635 = vector.broadcast %c1_i32_384 : i32 to vector<256x1024xi32>
    %636 = arith.shrsi %630, %635 : vector<256x1024xi32>
    %637 = arith.addi %634, %636 : vector<256x1024xi32>
    %638 = arith.cmpi eq, %637, %625 : vector<256x1024xi32>
    %cst_385 = arith.constant 1.000000e+00 : f32
    %cst_386 = arith.constant 0.000000e+00 : f32
    %639 = vector.broadcast %cst_385 : f32 to vector<256x1024xf32>
    %640 = vector.broadcast %cst_386 : f32 to vector<256x1024xf32>
    %641 = arith.select %638, %639, %640 : vector<256x1024xi1>, vector<256x1024xf32>
    %cst_387 = arith.constant dense<0.000000e+00> : vector<8x1024xf32>
    %642 = tpu.matmul %624, %641, %cst_387 {dimension_numbers = #tpu.dot_dimension_numbers<[1], [0], [0], [1], [0, 0, 1, 1], [], []>} : vector<8x256xf32>, vector<256x1024xf32>, vector<8x1024xf32> -> vector<8x1024xf32>
    %cst_388 = arith.constant dense<0.000000e+00> : vector<8x1024xf32>
    %643 = tpu.matmul %621, %38, %cst_388 {dimension_numbers = #tpu.dot_dimension_numbers<[1], [0], [0], [1], [0, 0, 1, 1], [], []>} : vector<8x3xf32>, vector<3x1024xf32>, vector<8x1024xf32> -> vector<8x1024xf32>
    %644 = arith.addf %643, %642 : vector<8x1024xf32>
    %c4_389 = arith.constant 4 : index
    %c0_390 = arith.constant 0 : index
    %c0_391 = arith.constant 0 : index
    %645 = vector.load %arg4[%c4_389, %c0_390, %c0_391] : memref<5x8x1xf32, #tpu.memory_space<vmem>>, vector<1x8x1xf32>
    %646 = vector.shape_cast %645 : vector<1x8x1xf32> to vector<8x1xf32>
    %647 = vector.broadcast %646 : vector<8x1xf32> to vector<8x1024xf32>
    %648 = arith.addf %644, %647 : vector<8x1024xf32>
    %cst_392 = arith.constant 0.000000e+00 : f32
    %649 = vector.broadcast %cst_392 : f32 to vector<8x1024xf32>
    %650 = arith.maximumf %648, %649 : vector<8x1024xf32>
    %cst_393 = arith.constant 0.000000e+00 : f32
    %651 = vector.broadcast %cst_393 : f32 to vector<8x1280xf32>
    %c0_394 = arith.constant 0 : index
    %c0_395 = arith.constant 0 : index
    %652 = vector.load %arg8[%c0_394, %c0_395] : memref<8x1280xf32, #tpu.memory_space<vmem>>, vector<8x1280xf32>
    tpu.vector_store %arg8[%c0_394, %c0_395], %651 {strides = array<i32>} : memref<8x1280xf32, #tpu.memory_space<vmem>>, vector<8x1280xf32>,
    %c0_396 = arith.constant 0 : index
    %c128_397 = arith.constant 128 : index
    %653 = vector.load %arg8[%c0_396, %c128_397] : memref<8x1280xf32, #tpu.memory_space<vmem>>, vector<8x1024xf32>
    tpu.vector_store %arg8[%c0_396, %c128_397], %650 {strides = array<i32>} : memref<8x1280xf32, #tpu.memory_space<vmem>>, vector<8x1024xf32>,
    %654 = tpu.iota {dimensions = array<i32: 1>} : vector<1x1024xi32>
    %c31_i32_398 = arith.constant 31 : i32
    %655 = vector.broadcast %c31_i32_398 : i32 to vector<1x1024xi32>
    %656 = arith.andi %654, %655 : vector<1x1024xi32>
    %c0_i32_399 = arith.constant 0 : i32
    %657 = vector.broadcast %c0_i32_399 : i32 to vector<1x1024xi32>
    %658 = arith.cmpi sgt, %656, %657 : vector<1x1024xi32>
    %c31_i32_400 = arith.constant 31 : i32
    %659 = vector.broadcast %c31_i32_400 : i32 to vector<1x1024xi32>
    %660 = arith.cmpi slt, %656, %659 : vector<1x1024xi32>
    %c4_401 = arith.constant 4 : index
    %c4_402 = arith.constant 4 : index
    %c0_403 = arith.constant 0 : index
    %c0_404 = arith.constant 0 : index
    %661 = vector.load %arg5[%c4_401, %c4_402, %c0_403, %c0_404] : memref<5x9x8x1xf32, #tpu.memory_space<vmem>>, vector<1x1x8x1xf32>
    %662 = vector.shape_cast %661 : vector<1x1x8x1xf32> to vector<8x1xf32>
    %663 = vector.broadcast %662 : vector<8x1xf32> to vector<8x1024xf32>
    %664 = arith.mulf %650, %663 : vector<8x1024xf32>
    %c0_405 = arith.constant 0 : index
    %c95 = arith.constant 95 : index
    %665 = vector.load %arg8[%c0_405, %c95] : memref<8x1280xf32, #tpu.memory_space<vmem>>, vector<8x1024xf32>
    %cst_406 = arith.constant 0.000000e+00 : f32
    %666 = vector.shape_cast %658 : vector<1x1024xi1> to vector<1x1024xi1>
    %667 = vector.broadcast %666 : vector<1x1024xi1> to vector<8x1024xi1>
    %668 = vector.broadcast %cst_406 : f32 to vector<8x1024xf32>
    %669 = arith.select %667, %665, %668 : vector<8x1024xi1>, vector<8x1024xf32>
    %c4_407 = arith.constant 4 : index
    %c0_408 = arith.constant 0 : index
    %c0_409 = arith.constant 0 : index
    %c0_410 = arith.constant 0 : index
    %670 = vector.load %arg5[%c4_407, %c0_408, %c0_409, %c0_410] : memref<5x9x8x1xf32, #tpu.memory_space<vmem>>, vector<1x1x8x1xf32>
    %671 = vector.shape_cast %670 : vector<1x1x8x1xf32> to vector<8x1xf32>
    %672 = vector.broadcast %671 : vector<8x1xf32> to vector<8x1024xf32>
    %673 = arith.mulf %669, %672 : vector<8x1024xf32>
    %674 = arith.addf %664, %673 : vector<8x1024xf32>
    %c0_411 = arith.constant 0 : index
    %c96 = arith.constant 96 : index
    %675 = vector.load %arg8[%c0_411, %c96] : memref<8x1280xf32, #tpu.memory_space<vmem>>, vector<8x1024xf32>
    %c4_412 = arith.constant 4 : index
    %c1_413 = arith.constant 1 : index
    %c0_414 = arith.constant 0 : index
    %c0_415 = arith.constant 0 : index
    %676 = vector.load %arg5[%c4_412, %c1_413, %c0_414, %c0_415] : memref<5x9x8x1xf32, #tpu.memory_space<vmem>>, vector<1x1x8x1xf32>
    %677 = vector.shape_cast %676 : vector<1x1x8x1xf32> to vector<8x1xf32>
    %678 = vector.broadcast %677 : vector<8x1xf32> to vector<8x1024xf32>
    %679 = arith.mulf %675, %678 : vector<8x1024xf32>
    %680 = arith.addf %674, %679 : vector<8x1024xf32>
    %c0_416 = arith.constant 0 : index
    %c97 = arith.constant 97 : index
    %681 = vector.load %arg8[%c0_416, %c97] : memref<8x1280xf32, #tpu.memory_space<vmem>>, vector<8x1024xf32>
    %cst_417 = arith.constant 0.000000e+00 : f32
    %682 = vector.shape_cast %660 : vector<1x1024xi1> to vector<1x1024xi1>
    %683 = vector.broadcast %682 : vector<1x1024xi1> to vector<8x1024xi1>
    %684 = vector.broadcast %cst_417 : f32 to vector<8x1024xf32>
    %685 = arith.select %683, %681, %684 : vector<8x1024xi1>, vector<8x1024xf32>
    %c4_418 = arith.constant 4 : index
    %c2_419 = arith.constant 2 : index
    %c0_420 = arith.constant 0 : index
    %c0_421 = arith.constant 0 : index
    %686 = vector.load %arg5[%c4_418, %c2_419, %c0_420, %c0_421] : memref<5x9x8x1xf32, #tpu.memory_space<vmem>>, vector<1x1x8x1xf32>
    %687 = vector.shape_cast %686 : vector<1x1x8x1xf32> to vector<8x1xf32>
    %688 = vector.broadcast %687 : vector<8x1xf32> to vector<8x1024xf32>
    %689 = arith.mulf %685, %688 : vector<8x1024xf32>
    %690 = arith.addf %680, %689 : vector<8x1024xf32>
    %c0_422 = arith.constant 0 : index
    %c127_423 = arith.constant 127 : index
    %691 = vector.load %arg8[%c0_422, %c127_423] : memref<8x1280xf32, #tpu.memory_space<vmem>>, vector<8x1024xf32>
    %cst_424 = arith.constant 0.000000e+00 : f32
    %692 = vector.shape_cast %658 : vector<1x1024xi1> to vector<1x1024xi1>
    %693 = vector.broadcast %692 : vector<1x1024xi1> to vector<8x1024xi1>
    %694 = vector.broadcast %cst_424 : f32 to vector<8x1024xf32>
    %695 = arith.select %693, %691, %694 : vector<8x1024xi1>, vector<8x1024xf32>
    %c4_425 = arith.constant 4 : index
    %c3_426 = arith.constant 3 : index
    %c0_427 = arith.constant 0 : index
    %c0_428 = arith.constant 0 : index
    %696 = vector.load %arg5[%c4_425, %c3_426, %c0_427, %c0_428] : memref<5x9x8x1xf32, #tpu.memory_space<vmem>>, vector<1x1x8x1xf32>
    %697 = vector.shape_cast %696 : vector<1x1x8x1xf32> to vector<8x1xf32>
    %698 = vector.broadcast %697 : vector<8x1xf32> to vector<8x1024xf32>
    %699 = arith.mulf %695, %698 : vector<8x1024xf32>
    %700 = arith.addf %690, %699 : vector<8x1024xf32>
    %c0_429 = arith.constant 0 : index
    %c129_430 = arith.constant 129 : index
    %701 = vector.load %arg8[%c0_429, %c129_430] : memref<8x1280xf32, #tpu.memory_space<vmem>>, vector<8x1024xf32>
    %cst_431 = arith.constant 0.000000e+00 : f32
    %702 = vector.shape_cast %660 : vector<1x1024xi1> to vector<1x1024xi1>
    %703 = vector.broadcast %702 : vector<1x1024xi1> to vector<8x1024xi1>
    %704 = vector.broadcast %cst_431 : f32 to vector<8x1024xf32>
    %705 = arith.select %703, %701, %704 : vector<8x1024xi1>, vector<8x1024xf32>
    %c4_432 = arith.constant 4 : index
    %c5_433 = arith.constant 5 : index
    %c0_434 = arith.constant 0 : index
    %c0_435 = arith.constant 0 : index
    %706 = vector.load %arg5[%c4_432, %c5_433, %c0_434, %c0_435] : memref<5x9x8x1xf32, #tpu.memory_space<vmem>>, vector<1x1x8x1xf32>
    %707 = vector.shape_cast %706 : vector<1x1x8x1xf32> to vector<8x1xf32>
    %708 = vector.broadcast %707 : vector<8x1xf32> to vector<8x1024xf32>
    %709 = arith.mulf %705, %708 : vector<8x1024xf32>
    %710 = arith.addf %700, %709 : vector<8x1024xf32>
    %c0_436 = arith.constant 0 : index
    %c159 = arith.constant 159 : index
    %711 = vector.load %arg8[%c0_436, %c159] : memref<8x1280xf32, #tpu.memory_space<vmem>>, vector<8x1024xf32>
    %cst_437 = arith.constant 0.000000e+00 : f32
    %712 = vector.shape_cast %658 : vector<1x1024xi1> to vector<1x1024xi1>
    %713 = vector.broadcast %712 : vector<1x1024xi1> to vector<8x1024xi1>
    %714 = vector.broadcast %cst_437 : f32 to vector<8x1024xf32>
    %715 = arith.select %713, %711, %714 : vector<8x1024xi1>, vector<8x1024xf32>
    %c4_438 = arith.constant 4 : index
    %c6_439 = arith.constant 6 : index
    %c0_440 = arith.constant 0 : index
    %c0_441 = arith.constant 0 : index
    %716 = vector.load %arg5[%c4_438, %c6_439, %c0_440, %c0_441] : memref<5x9x8x1xf32, #tpu.memory_space<vmem>>, vector<1x1x8x1xf32>
    %717 = vector.shape_cast %716 : vector<1x1x8x1xf32> to vector<8x1xf32>
    %718 = vector.broadcast %717 : vector<8x1xf32> to vector<8x1024xf32>
    %719 = arith.mulf %715, %718 : vector<8x1024xf32>
    %720 = arith.addf %710, %719 : vector<8x1024xf32>
    %c0_442 = arith.constant 0 : index
    %c160 = arith.constant 160 : index
    %721 = vector.load %arg8[%c0_442, %c160] : memref<8x1280xf32, #tpu.memory_space<vmem>>, vector<8x1024xf32>
    %c4_443 = arith.constant 4 : index
    %c7_444 = arith.constant 7 : index
    %c0_445 = arith.constant 0 : index
    %c0_446 = arith.constant 0 : index
    %722 = vector.load %arg5[%c4_443, %c7_444, %c0_445, %c0_446] : memref<5x9x8x1xf32, #tpu.memory_space<vmem>>, vector<1x1x8x1xf32>
    %723 = vector.shape_cast %722 : vector<1x1x8x1xf32> to vector<8x1xf32>
    %724 = vector.broadcast %723 : vector<8x1xf32> to vector<8x1024xf32>
    %725 = arith.mulf %721, %724 : vector<8x1024xf32>
    %726 = arith.addf %720, %725 : vector<8x1024xf32>
    %c0_447 = arith.constant 0 : index
    %c161 = arith.constant 161 : index
    %727 = vector.load %arg8[%c0_447, %c161] : memref<8x1280xf32, #tpu.memory_space<vmem>>, vector<8x1024xf32>
    %cst_448 = arith.constant 0.000000e+00 : f32
    %728 = vector.shape_cast %660 : vector<1x1024xi1> to vector<1x1024xi1>
    %729 = vector.broadcast %728 : vector<1x1024xi1> to vector<8x1024xi1>
    %730 = vector.broadcast %cst_448 : f32 to vector<8x1024xf32>
    %731 = arith.select %729, %727, %730 : vector<8x1024xi1>, vector<8x1024xf32>
    %c4_449 = arith.constant 4 : index
    %c8_450 = arith.constant 8 : index
    %c0_451 = arith.constant 0 : index
    %c0_452 = arith.constant 0 : index
    %732 = vector.load %arg5[%c4_449, %c8_450, %c0_451, %c0_452] : memref<5x9x8x1xf32, #tpu.memory_space<vmem>>, vector<1x1x8x1xf32>
    %733 = vector.shape_cast %732 : vector<1x1x8x1xf32> to vector<8x1xf32>
    %734 = vector.broadcast %733 : vector<8x1xf32> to vector<8x1024xf32>
    %735 = arith.mulf %731, %734 : vector<8x1024xf32>
    %736 = arith.addf %726, %735 : vector<8x1024xf32>
    %c4_453 = arith.constant 4 : index
    %c0_454 = arith.constant 0 : index
    %c0_455 = arith.constant 0 : index
    %737 = vector.load %arg6[%c4_453, %c0_454, %c0_455] : memref<5x8x1xf32, #tpu.memory_space<vmem>>, vector<1x8x1xf32>
    %738 = vector.shape_cast %737 : vector<1x8x1xf32> to vector<8x1xf32>
    %739 = vector.broadcast %738 : vector<8x1xf32> to vector<8x1024xf32>
    %740 = arith.addf %736, %739 : vector<8x1024xf32>
    %cst_456 = arith.constant 0.000000e+00 : f32
    %741 = vector.broadcast %cst_456 : f32 to vector<8x1024xf32>
    %742 = arith.maximumf %740, %741 : vector<8x1024xf32>
    %c0_457 = arith.constant 0 : index
    %c0_458 = arith.constant 0 : index
    %c0_459 = arith.constant 0 : index
    %743 = vector.load %arg7[%c0_457, %c0_458, %c0_459] : memref<1x8x1024xf32, #tpu.memory_space<vmem>>, vector<1x8x1024xf32>
    %744 = vector.shape_cast %743 : vector<1x8x1024xf32> to vector<8x1024xf32>
    %745 = vector.shape_cast %742 : vector<8x1024xf32> to vector<1x8x1024xf32>
    tpu.vector_store %arg7[%c0_457, %c0_458, %c0_459], %745 {strides = array<i32>} : memref<1x8x1024xf32, #tpu.memory_space<vmem>>, vector<1x8x1024xf32>,
    return
  }
  func.func @transform_0(%arg0: i32) -> (i32, i32, i32) {
    %c0_i32 = arith.constant 0 : i32
    %c0_i32_0 = arith.constant 0 : i32
    %c0_i32_1 = arith.constant 0 : i32
    return %arg0, %c0_i32, %c0_i32_0 : i32, i32, i32
  }
  func.func @transform_1(%arg0: i32) -> (i32, i32, i32) {
    %c0_i32 = arith.constant 0 : i32
    %c0_i32_0 = arith.constant 0 : i32
    %c0_i32_1 = arith.constant 0 : i32
    %c0_i32_2 = arith.constant 0 : i32
    return %c0_i32, %c0_i32_0, %c0_i32_1 : i32, i32, i32
  }
  func.func @transform_2(%arg0: i32) -> (i32, i32, i32) {
    %c0_i32 = arith.constant 0 : i32
    %c0_i32_0 = arith.constant 0 : i32
    %c0_i32_1 = arith.constant 0 : i32
    %c0_i32_2 = arith.constant 0 : i32
    return %c0_i32, %c0_i32_0, %c0_i32_1 : i32, i32, i32
  }
  func.func @transform_3(%arg0: i32) -> (i32, i32, i32) {
    %c0_i32 = arith.constant 0 : i32
    %c0_i32_0 = arith.constant 0 : i32
    %c0_i32_1 = arith.constant 0 : i32
    %c0_i32_2 = arith.constant 0 : i32
    return %c0_i32, %c0_i32_0, %c0_i32_1 : i32, i32, i32
  }
  func.func @transform_4(%arg0: i32) -> (i32, i32, i32, i32) {
    %c0_i32 = arith.constant 0 : i32
    %c0_i32_0 = arith.constant 0 : i32
    %c0_i32_1 = arith.constant 0 : i32
    %c0_i32_2 = arith.constant 0 : i32
    %c0_i32_3 = arith.constant 0 : i32
    return %c0_i32, %c0_i32_0, %c0_i32_1, %c0_i32_2 : i32, i32, i32, i32
  }
  func.func @transform_5(%arg0: i32) -> (i32, i32, i32) {
    %c0_i32 = arith.constant 0 : i32
    %c0_i32_0 = arith.constant 0 : i32
    %c0_i32_1 = arith.constant 0 : i32
    %c0_i32_2 = arith.constant 0 : i32
    return %c0_i32, %c0_i32_0, %c0_i32_1 : i32, i32, i32
  }
  func.func @transform_6(%arg0: i32) -> (i32, i32, i32) {
    %c0_i32 = arith.constant 0 : i32
    %c0_i32_0 = arith.constant 0 : i32
    %c0_i32_1 = arith.constant 0 : i32
    return %arg0, %c0_i32, %c0_i32_0 : i32, i32, i32
  }
}

</mosaic_0001>

<llo_original>
// kernel: dunet_forward.1
$region0: #{dunet_forward.1}
  #allocation0 [shape = 'u32[]', space=smem, size = 0x4, offset = 0x4, fixed_abs, tag = 'smem constant byte address 0x4 - core index']
  #allocation1 [shape = 'u32[144,128]{1,0:T(1,128)}', space=vmem, size = 0x12000, scoped, tag = 'internal scratch']
  #allocation2 [shape = 'f32[8,1280]{1,0:T(8,128)}', space=vmem, size = 0xa000, scoped, tag = 'scratch operand']
  %s0 = inlined_call_operand.vmem [shape: f32[2,3,1024], index: 0, kind: input, shape index: {}]
  %s1 = inlined_call_operand.vmem [shape: f32[5,8,3], index: 1, kind: input, shape index: {}]
  %s2 = inlined_call_operand.vmem [shape: f32[5,8,8], index: 2, kind: input, shape index: {}]
  %s3 = inlined_call_operand.vmem [shape: f32[5,8,1], index: 3, kind: input, shape index: {}]
  %s4 = inlined_call_operand.vmem [shape: f32[5,9,8,1], index: 4, kind: input, shape index: {}]
  %s5 = inlined_call_operand.vmem [shape: f32[5,8,1], index: 5, kind: input, shape index: {}]
  %s6 = inlined_call_operand.vmem [shape: f32[2,8,1024], index: 6, kind: output, shape index: {}]
  %s7 = sld [smem:[#allocation0]]
  $region57: #{dunet_forward.1} parent=0
    _
  %s9 = ssub.s32 1, %s7
  %s10 = scalar_select 0, %s9, %s7
  loop: start=0, step=1, limit=4
  $region2: #{dunet_forward.1} parent=0 // loop_pre_header
    _
  $region3: #{dunet_forward.1} parent=0 // loop_header
    %s12 = sphi 0, %s16
    %p13 = scmp.ge.s32.totalorder %s12, 4
    %s22 = sphi 0, %s24
    %s25 = sphi 0, %s22
    %s26 = sphi 0, %s25
    %s42 = sphi 0, %s26
    %s46 = sphi 0, %s46
    %s48 = sphi 0, %s46
    %s49 = sphi 0, %s48
    %s63 = sphi 0, %s49
    %s67 = sphi 0, %s67
    %s69 = sphi 0, %s67
    %s70 = sphi 0, %s69
    %s84 = sphi 0, %s70
    %s88 = sphi 0, %s88
    %s90 = sphi 0, %s88
    %s91 = sphi 0, %s90
    %s105 = sphi 0, %s91
    %s109 = sphi 0, %s109
    %s111 = sphi 0, %s109
    %s112 = sphi 0, %s111
    %s126 = sphi 0, %s112
    %s130 = sphi 0, %s130
    %s132 = sphi 0, %s130
    %s133 = sphi 0, %s132
    %s147 = sphi 0, %s133
    %s153 = sphi 0, %s155
    %s156 = sphi 0, %s153
    %s157 = sphi 0, %s156
    %s173 = sphi 0, %s157
  $region4: #{dunet_forward.1} parent=0 // loop_header_branch
    %15 = sbr.rel (%p13) target = $region8
  $region5: #{dunet_forward.1} parent=0 // loop_body
    %s17 = ssub.s32 %s12, 1
    %s18 = ssub.s32 %s12, 2
    %s19 = sadd.s32 %s12, 1
    %s20 = ssub.s32 %s12, %s19
    %p21 = scmp.eq.s32.totalorder %s20, 0
    %s23 = sadd.s32 %s22, 1
    %s24 = scalar_select %p21, %s22, %s23
    %p27 = pneg %p21
    %p28 = scmp.eq.s32.totalorder %s12, 1
    %p29 = por %p27, %p28
    %p30 = scmp.ne.s32.totalorder %s22, %s25
    %p31 = scmp.eq.s32.totalorder %s12, 0
    %p32 = por %p30, %p31
    %p33 = scmp.ne.s32.totalorder %s22, %s25
    %p34 = scmp.eq.s32.totalorder %s17, 1
    %p35 = por %p33, %p34
    %p36 = scmp.ne.s32.totalorder %s25, %s26
    %p37 = scmp.eq.s32.totalorder %s17, 0
    %p38 = por %p36, %p37
    %p39 = scmp.ne.s32.totalorder %s25, %s26
    %p40 = scmp.eq.s32.totalorder %s18, 1
    %p41 = por %p39, %p40
    %p43 = scmp.ne.s32.totalorder %s26, %s42
    %p44 = scmp.eq.s32.totalorder %s18, 0
    %p45 = por %p43, %p44
    %s47 = sadd.s32 %s46, 1
    %p50 = scmp.eq.s32.totalorder %s12, 1
    %p51 = scmp.ne.s32.totalorder %s46, %s48
    %p52 = scmp.eq.s32.totalorder %s12, 0
    %p53 = por %p51, %p52
    %p54 = scmp.ne.s32.totalorder %s46, %s48
    %p55 = scmp.eq.s32.totalorder %s17, 1
    %p56 = por %p54, %p55
    %p57 = scmp.ne.s32.totalorder %s48, %s49
    %p58 = scmp.eq.s32.totalorder %s17, 0
    %p59 = por %p57, %p58
    %p60 = scmp.ne.s32.totalorder %s48, %s49
    %p61 = scmp.eq.s32.totalorder %s18, 1
    %p62 = por %p60, %p61
    %p64 = scmp.ne.s32.totalorder %s49, %s63
    %p65 = scmp.eq.s32.totalorder %s18, 0
    %p66 = por %p64, %p65
    %s68 = sadd.s32 %s67, 1
    %p71 = scmp.eq.s32.totalorder %s12, 1
    %p72 = scmp.ne.s32.totalorder %s67, %s69
    %p73 = scmp.eq.s32.totalorder %s12, 0
    %p74 = por %p72, %p73
    %p75 = scmp.ne.s32.totalorder %s67, %s69
    %p76 = scmp.eq.s32.totalorder %s17, 1
    %p77 = por %p75, %p76
    %p78 = scmp.ne.s32.totalorder %s69, %s70
    %p79 = scmp.eq.s32.totalorder %s17, 0
    %p80 = por %p78, %p79
    %p81 = scmp.ne.s32.totalorder %s69, %s70
    %p82 = scmp.eq.s32.totalorder %s18, 1
    %p83 = por %p81, %p82
    %p85 = scmp.ne.s32.totalorder %s70, %s84
    %p86 = scmp.eq.s32.totalorder %s18, 0
    %p87 = por %p85, %p86
    %s89 = sadd.s32 %s88, 1
    %p92 = scmp.eq.s32.totalorder %s12, 1
    %p93 = scmp.ne.s32.totalorder %s88, %s90
    %p94 = scmp.eq.s32.totalorder %s12, 0
    %p95 = por %p93, %p94
    %p96 = scmp.ne.s32.totalorder %s88, %s90
    %p97 = scmp.eq.s32.totalorder %s17, 1
    %p98 = por %p96, %p97
    %p99 = scmp.ne.s32.totalorder %s90, %s91
    %p100 = scmp.eq.s32.totalorder %s17, 0
    %p101 = por %p99, %p100
    %p102 = scmp.ne.s32.totalorder %s90, %s91
    %p103 = scmp.eq.s32.totalorder %s18, 1
    %p104 = por %p102, %p103
    %p106 = scmp.ne.s32.totalorder %s91, %s105
    %p107 = scmp.eq.s32.totalorder %s18, 0
    %p108 = por %p106, %p107
    %s110 = sadd.s32 %s109, 1
    %p113 = scmp.eq.s32.totalorder %s12, 1
    %p114 = scmp.ne.s32.totalorder %s109, %s111
    %p115 = scmp.eq.s32.totalorder %s12, 0
    %p116 = por %p114, %p115
    %p117 = scmp.ne.s32.totalorder %s109, %s111
    %p118 = scmp.eq.s32.totalorder %s17, 1
    %p119 = por %p117, %p118
    %p120 = scmp.ne.s32.totalorder %s111, %s112
    %p121 = scmp.eq.s32.totalorder %s17, 0
    %p122 = por %p120, %p121
    %p123 = scmp.ne.s32.totalorder %s111, %s112
    %p124 = scmp.eq.s32.totalorder %s18, 1
    %p125 = por %p123, %p124
    %p127 = scmp.ne.s32.totalorder %s112, %s126
    %p128 = scmp.eq.s32.totalorder %s18, 0
    %p129 = por %p127, %p128
    %s131 = sadd.s32 %s130, 1
    %p134 = scmp.eq.s32.totalorder %s12, 1
    %p135 = scmp.ne.s32.totalorder %s130, %s132
    %p136 = scmp.eq.s32.totalorder %s12, 0
    %p137 = por %p135, %p136
    %p138 = scmp.ne.s32.totalorder %s130, %s132
    %p139 = scmp.eq.s32.totalorder %s17, 1
    %p140 = por %p138, %p139
    %p141 = scmp.ne.s32.totalorder %s132, %s133
    %p142 = scmp.eq.s32.totalorder %s17, 0
    %p143 = por %p141, %p142
    %p144 = scmp.ne.s32.totalorder %s132, %s133
    %p145 = scmp.eq.s32.totalorder %s18, 1
    %p146 = por %p144, %p145
    %p148 = scmp.ne.s32.totalorder %s133, %s147
    %p149 = scmp.eq.s32.totalorder %s18, 0
    %p150 = por %p148, %p149
    %s151 = ssub.s32 %s12, %s19
    %p152 = scmp.eq.s32.totalorder %s151, 0
    %s154 = sadd.s32 %s153, 1
    %s155 = scalar_select %p152, %s153, %s154
    %p158 = pneg %p152
    %p159 = scmp.eq.s32.totalorder %s12, 1
    %p160 = por %p158, %p159
    %p161 = scmp.ne.s32.totalorder %s153, %s156
    %p162 = scmp.eq.s32.totalorder %s12, 0
    %p163 = por %p161, %p162
    %p164 = scmp.ne.s32.totalorder %s153, %s156
    %p165 = scmp.eq.s32.totalorder %s17, 1
    %p166 = por %p164, %p165
    %p167 = scmp.ne.s32.totalorder %s156, %s157
    %p168 = scmp.eq.s32.totalorder %s17, 0
    %p169 = por %p167, %p168
    %p170 = scmp.ne.s32.totalorder %s156, %s157
    %p171 = scmp.eq.s32.totalorder %s18, 1
    %p172 = por %p170, %p171
    %p174 = scmp.ne.s32.totalorder %s157, %s173
    %p175 = scmp.eq.s32.totalorder %s18, 0
    %p176 = por %p174, %p175
    %p177 = scmp.le.s32.totalorder 1, %s12
    %p178 = scmp.lt.s32.totalorder %s12, 3
    %p179 = pnand %p177, %p178
    %p180 = pneg %p179
    // Predicated region
    $region9: #{dunet_forward.1} parent=5 // pred_check
      _
    $region10: #{dunet_forward.1} parent=5 // pred_check_branch
      %182 = sbr.rel (%p179) target = $region12
    $region11: #{dunet_forward.1} parent=5 // pred_region
      %s183 = ssub.s32 %s12, 1
      // Predicated region
      $region13: #{dunet_forward.1} parent=11 // pred_check
        %p184 = pneg %p59
      $region14: #{dunet_forward.1} parent=11 // pred_check_branch
        %186 = sbr.rel (%p184) target = $region16
      $region15: #{dunet_forward.1} parent=11 // pred_region
        _
      $region16: #{dunet_forward.1} parent=11 // pred_fallthru
        _
      // Predicated region
      $region17: #{dunet_forward.1} parent=11 // pred_check
        %p187 = pneg %p80
      $region18: #{dunet_forward.1} parent=11 // pred_check_branch
        %189 = sbr.rel (%p187) target = $region20
      $region19: #{dunet_forward.1} parent=11 // pred_region
        _
      $region20: #{dunet_forward.1} parent=11 // pred_fallthru
        _
      // Predicated region
      $region21: #{dunet_forward.1} parent=11 // pred_check
        %p190 = pneg %p101
      $region22: #{dunet_forward.1} parent=11 // pred_check_branch
        %192 = sbr.rel (%p190) target = $region24
      $region23: #{dunet_forward.1} parent=11 // pred_region
        _
      $region24: #{dunet_forward.1} parent=11 // pred_fallthru
        _
      // Predicated region
      $region25: #{dunet_forward.1} parent=11 // pred_check
        %p193 = pneg %p122
      $region26: #{dunet_forward.1} parent=11 // pred_check_branch
        %195 = sbr.rel (%p193) target = $region28
      $region27: #{dunet_forward.1} parent=11 // pred_region
        _
      $region28: #{dunet_forward.1} parent=11 // pred_fallthru
        _
      // Predicated region
      $region29: #{dunet_forward.1} parent=11 // pred_check
        %p196 = pneg %p143
      $region30: #{dunet_forward.1} parent=11 // pred_check_branch
        %198 = sbr.rel (%p196) target = $region32
      $region31: #{dunet_forward.1} parent=11 // pred_region
        _
      $region32: #{dunet_forward.1} parent=11 // pred_fallthru
        _
    $region12: #{dunet_forward.1} parent=5 // pred_fallthru
      _
    %p199 = scmp.lt.s32.totalorder %s12, 2
    // Predicated region
    $region33: #{dunet_forward.1} parent=5 // pred_check
      %p200 = pneg %p199
    $region34: #{dunet_forward.1} parent=5 // pred_check_branch
      %202 = sbr.rel (%p200) target = $region36
    $region35: #{dunet_forward.1} parent=5 // pred_region
      // Predicated region
      $region37: #{dunet_forward.1} parent=35 // pred_check
        %p203 = pneg %p32
      $region38: #{dunet_forward.1} parent=35 // pred_check_branch
        %205 = sbr.rel (%p203) target = $region40
      $region39: #{dunet_forward.1} parent=35 // pred_region
        %p206 = scmp.lt.s32.totalorder %s12, 1
        %s207 = scalar_select %p206, %s12, 1
        %s208 = smul.addr %s207, 8
        %s209 = smul.addr %s208, 4
        %s210 = scalar_lea.vmem %s0, %s209
      $region40: #{dunet_forward.1} parent=35 // pred_fallthru
        _
    $region36: #{dunet_forward.1} parent=5 // pred_fallthru
      _
    %p211 = scmp.le.s32.totalorder 1, %s12
    %p212 = scmp.lt.s32.totalorder %s12, 3
    %p213 = pnand %p211, %p212
    %p214 = pneg %p213
    // Predicated region
    $region41: #{dunet_forward.1} parent=5 // pred_check
      _
    $region42: #{dunet_forward.1} parent=5 // pred_check_branch
      %216 = sbr.rel (%p213) target = $region44
    $region43: #{dunet_forward.1} parent=5 // pred_region
      %s217 = ssub.s32 %s12, 1
      %p218 = scmp.lt.s32.totalorder %s17, 1
      %s219 = scalar_select %p218, %s17, 1
      %s220 = smul.addr %s219, 8
      %s221 = smul.addr %s220, 4
      %s222 = scalar_lea.vmem %s0, %s221
      %p223 = pneg %p38
      %p224 = pneg %p35
      %p225 = pneg %p59
      %p226 = pneg %p56
      %p227 = pneg %p80
      %p228 = pneg %p77
      %p229 = pneg %p101
      %p230 = pneg %p98
      %p231 = pneg %p122
      %p232 = pneg %p119
      %p233 = pneg %p143
      %p234 = pneg %p140
      %p235 = pneg %p169
      %p236 = pneg %p166
      %p237 = scmp.lt.s32.totalorder %s17, 1
      %s238 = scalar_select %p237, %s17, 1
      %s239 = smul.addr %s238, 8
      %s240 = smul.addr %s239, 8
      %s241 = scalar_lea.vmem %s6, %s240
      %p242 = scmp.lt.s32.totalorder %s17, 1
      %s243 = scalar_select %p242, %s17, 1
      %s244 = smul.addr %s243, 8
      %s245 = smul.addr %s244, 4
      %s246 = scalar_lea.vmem %s0, %s245
      %p247 = scmp.lt.s32.totalorder %s17, 1
      %s248 = scalar_select %p247, %s17, 1
      %s249 = smul.addr %s248, 8
      %s250 = smul.addr %s249, 8
      %s251 = scalar_lea.vmem %s6, %s250
      %v252 = vld [vmem:[%s246] sm:$0x77]
      %v253 = vld [vmem:[%s246 + $0x8] sm:$0x77]
      %v254 = vld [vmem:[%s246 + $0x10] sm:$0x77]
      %v255 = vld [vmem:[%s246 + $0x18] sm:$0x77]
      %v256 = vlaneseq
      %v257 = vshrl.u32 %v256, 7
      %v258 = vadd.s32 %v257, 8
      %v259 = vadd.s32 %v257, 16
      %v260 = vadd.s32 %v257, 24
      %v261 = vadd.s32 %v257, 32
      %v262 = vadd.s32 %v257, 40
      %v263 = vadd.s32 %v257, 48
      %v264 = vadd.s32 %v257, 56
      %v265 = vadd.s32 %v257, 64
      %v266 = vadd.s32 %v257, 72
      %v267 = vadd.s32 %v257, 80
      %v268 = vadd.s32 %v257, 88
      %v269 = vadd.s32 %v257, 96
      %v270 = vadd.s32 %v257, 104
      %v271 = vadd.s32 %v257, 112
      %v272 = vadd.s32 %v257, 120
      %v273 = vadd.s32 %v257, 128
      %v274 = vadd.s32 %v257, 136
      %v275 = vadd.s32 %v257, 144
      %v276 = vadd.s32 %v257, 152
      %v277 = vadd.s32 %v257, 160
      %v278 = vadd.s32 %v257, 168
      %v279 = vadd.s32 %v257, 176
      %v280 = vadd.s32 %v257, 184
      %v281 = vadd.s32 %v257, 192
      %v282 = vadd.s32 %v257, 200
      %v283 = vadd.s32 %v257, 208
      %v284 = vadd.s32 %v257, 216
      %v285 = vadd.s32 %v257, 224
      %v286 = vadd.s32 %v257, 232
      %v287 = vadd.s32 %v257, 240
      %v288 = vadd.s32 %v257, 248
      %v289 = vadd.s32 %v257, 256
      %v290 = vadd.s32 %v257, 264
      %v291 = vadd.s32 %v257, 272
      %v292 = vadd.s32 %v257, 280
      %v293 = vadd.s32 %v257, 288
      %v294 = vadd.s32 %v257, 296
      %v295 = vadd.s32 %v257, 304
      %v296 = vadd.s32 %v257, 312
      %v297 = vadd.s32 %v257, 320
      %v298 = vadd.s32 %v257, 328
      %v299 = vadd.s32 %v257, 336
      %v300 = vadd.s32 %v257, 344
      %v301 = vadd.s32 %v257, 352
      %v302 = vadd.s32 %v257, 360
      %v303 = vadd.s32 %v257, 368
      %v304 = vadd.s32 %v257, 376
      %v305 = vadd.s32 %v257, 384
      %v306 = vadd.s32 %v257, 392
      %v307 = vadd.s32 %v257, 400
      %v308 = vadd.s32 %v257, 408
      %v309 = vadd.s32 %v257, 416
      %v310 = vadd.s32 %v257, 424
      %v311 = vadd.s32 %v257, 432
      %v312 = vadd.s32 %v257, 440
      %v313 = vadd.s32 %v257, 448
      %v314 = vadd.s32 %v257, 456
      %v315 = vadd.s32 %v257, 464
      %v316 = vadd.s32 %v257, 472
      %v317 = vadd.s32 %v257, 480
      %v318 = vadd.s32 %v257, 488
      %v319 = vadd.s32 %v257, 496
      %v320 = vadd.s32 %v257, 504
      %v321 = vadd.s32 %v257, 512
      %v322 = vadd.s32 %v257, 520
      %v323 = vadd.s32 %v257, 528
      %v324 = vadd.s32 %v257, 536
      %v325 = vadd.s32 %v257, 544
      %v326 = vadd.s32 %v257, 552
      %v327 = vadd.s32 %v257, 560
      %v328 = vadd.s32 %v257, 568
      %v329 = vadd.s32 %v257, 576
      %v330 = vadd.s32 %v257, 584
      %v331 = vadd.s32 %v257, 592
      %v332 = vadd.s32 %v257, 600
      %v333 = vadd.s32 %v257, 608
      %v334 = vadd.s32 %v257, 616
      %v335 = vadd.s32 %v257, 624
      %v336 = vadd.s32 %v257, 632
      %v337 = vadd.s32 %v257, 640
      %v338 = vadd.s32 %v257, 648
      %v339 = vadd.s32 %v257, 656
      %v340 = vadd.s32 %v257, 664
      %v341 = vadd.s32 %v257, 672
      %v342 = vadd.s32 %v257, 680
      %v343 = vadd.s32 %v257, 688
      %v344 = vadd.s32 %v257, 696
      %v345 = vadd.s32 %v257, 704
      %v346 = vadd.s32 %v257, 712
      %v347 = vadd.s32 %v257, 720
      %v348 = vadd.s32 %v257, 728
      %v349 = vadd.s32 %v257, 736
      %v350 = vadd.s32 %v257, 744
      %v351 = vadd.s32 %v257, 752
      %v352 = vadd.s32 %v257, 760
      %v353 = vadd.s32 %v257, 768
      %v354 = vadd.s32 %v257, 776
      %v355 = vadd.s32 %v257, 784
      %v356 = vadd.s32 %v257, 792
      %v357 = vadd.s32 %v257, 800
      %v358 = vadd.s32 %v257, 808
      %v359 = vadd.s32 %v257, 816
      %v360 = vadd.s32 %v257, 824
      %v361 = vadd.s32 %v257, 832
      %v362 = vadd.s32 %v257, 840
      %v363 = vadd.s32 %v257, 848
      %v364 = vadd.s32 %v257, 856
      %v365 = vadd.s32 %v257, 864
      %v366 = vadd.s32 %v257, 872
      %v367 = vadd.s32 %v257, 880
      %v368 = vadd.s32 %v257, 888
      %v369 = vadd.s32 %v257, 896
      %v370 = vadd.s32 %v257, 904
      %v371 = vadd.s32 %v257, 912
      %v372 = vadd.s32 %v257, 920
      %v373 = vadd.s32 %v257, 928
      %v374 = vadd.s32 %v257, 936
      %v375 = vadd.s32 %v257, 944
      %v376 = vadd.s32 %v257, 952
      %v377 = vadd.s32 %v257, 960
      %v378 = vadd.s32 %v257, 968
      %v379 = vadd.s32 %v257, 976
      %v380 = vadd.s32 %v257, 984
      %v381 = vadd.s32 %v257, 992
      %v382 = vadd.s32 %v257, 1000
      %v383 = vadd.s32 %v257, 1008
      %v384 = vadd.s32 %v257, 1016
      %v385 = vlaneseq
      %v386 = vand.u32 %v385, 127
      %v387 = vadd.s32 %v386, 128
      %v388 = vshra.s32 %v257, 5
      %v389 = vshra.s32 %v258, 5
      %v390 = vshra.s32 %v259, 5
      %v391 = vshra.s32 %v260, 5
      %v392 = vshra.s32 %v261, 5
      %v393 = vshra.s32 %v262, 5
      %v394 = vshra.s32 %v263, 5
      %v395 = vshra.s32 %v264, 5
      %v396 = vshra.s32 %v265, 5
      %v397 = vshra.s32 %v266, 5
      %v398 = vshra.s32 %v267, 5
      %v399 = vshra.s32 %v268, 5
      %v400 = vshra.s32 %v269, 5
      %v401 = vshra.s32 %v270, 5
      %v402 = vshra.s32 %v271, 5
      %v403 = vshra.s32 %v272, 5
      %v404 = vshra.s32 %v273, 5
      %v405 = vshra.s32 %v274, 5
      %v406 = vshra.s32 %v275, 5
      %v407 = vshra.s32 %v276, 5
      %v408 = vshra.s32 %v277, 5
      %v409 = vshra.s32 %v278, 5
      %v410 = vshra.s32 %v279, 5
      %v411 = vshra.s32 %v280, 5
      %v412 = vshra.s32 %v281, 5
      %v413 = vshra.s32 %v282, 5
      %v414 = vshra.s32 %v283, 5
      %v415 = vshra.s32 %v284, 5
      %v416 = vshra.s32 %v285, 5
      %v417 = vshra.s32 %v286, 5
      %v418 = vshra.s32 %v287, 5
      %v419 = vshra.s32 %v288, 5
      %v420 = vshra.s32 %v289, 5
      %v421 = vshra.s32 %v290, 5
      %v422 = vshra.s32 %v291, 5
      %v423 = vshra.s32 %v292, 5
      %v424 = vshra.s32 %v293, 5
      %v425 = vshra.s32 %v294, 5
      %v426 = vshra.s32 %v295, 5
      %v427 = vshra.s32 %v296, 5
      %v428 = vshra.s32 %v297, 5
      %v429 = vshra.s32 %v298, 5
      %v430 = vshra.s32 %v299, 5
      %v431 = vshra.s32 %v300, 5
      %v432 = vshra.s32 %v301, 5
      %v433 = vshra.s32 %v302, 5
      %v434 = vshra.s32 %v303, 5
      %v435 = vshra.s32 %v304, 5
      %v436 = vshra.s32 %v305, 5
      %v437 = vshra.s32 %v306, 5
      %v438 = vshra.s32 %v307, 5
      %v439 = vshra.s32 %v308, 5
      %v440 = vshra.s32 %v309, 5
      %v441 = vshra.s32 %v310, 5
      %v442 = vshra.s32 %v311, 5
      %v443 = vshra.s32 %v312, 5
      %v444 = vshra.s32 %v313, 5
      %v445 = vshra.s32 %v314, 5
      %v446 = vshra.s32 %v315, 5
      %v447 = vshra.s32 %v316, 5
      %v448 = vshra.s32 %v317, 5
      %v449 = vshra.s32 %v318, 5
      %v450 = vshra.s32 %v319, 5
      %v451 = vshra.s32 %v320, 5
      %v452 = vshra.s32 %v321, 5
      %v453 = vshra.s32 %v322, 5
      %v454 = vshra.s32 %v323, 5
      %v455 = vshra.s32 %v324, 5
      %v456 = vshra.s32 %v325, 5
      %v457 = vshra.s32 %v326, 5
      %v458 = vshra.s32 %v327, 5
      %v459 = vshra.s32 %v328, 5
      %v460 = vshra.s32 %v329, 5
      %v461 = vshra.s32 %v330, 5
      %v462 = vshra.s32 %v331, 5
      %v463 = vshra.s32 %v332, 5
      %v464 = vshra.s32 %v333, 5
      %v465 = vshra.s32 %v334, 5
      %v466 = vshra.s32 %v335, 5
      %v467 = vshra.s32 %v336, 5
      %v468 = vshra.s32 %v337, 5
      %v469 = vshra.s32 %v338, 5
      %v470 = vshra.s32 %v339, 5
      %v471 = vshra.s32 %v340, 5
      %v472 = vshra.s32 %v341, 5
      %v473 = vshra.s32 %v342, 5
      %v474 = vshra.s32 %v343, 5
      %v475 = vshra.s32 %v344, 5
      %v476 = vshra.s32 %v345, 5
      %v477 = vshra.s32 %v346, 5
      %v478 = vshra.s32 %v347, 5
      %v479 = vshra.s32 %v348, 5
      %v480 = vshra.s32 %v349, 5
      %v481 = vshra.s32 %v350, 5
      %v482 = vshra.s32 %v351, 5
      %v483 = vshra.s32 %v352, 5
      %v484 = vshra.s32 %v353, 5
      %v485 = vshra.s32 %v354, 5
      %v486 = vshra.s32 %v355, 5
      %v487 = vshra.s32 %v356, 5
      %v488 = vshra.s32 %v357, 5
      %v489 = vshra.s32 %v358, 5
      %v490 = vshra.s32 %v359, 5
      %v491 = vshra.s32 %v360, 5
      %v492 = vshra.s32 %v361, 5
      %v493 = vshra.s32 %v362, 5
      %v494 = vshra.s32 %v363, 5
      %v495 = vshra.s32 %v364, 5
      %v496 = vshra.s32 %v365, 5
      %v497 = vshra.s32 %v366, 5
      %v498 = vshra.s32 %v367, 5
      %v499 = vshra.s32 %v368, 5
      %v500 = vshra.s32 %v369, 5
      %v501 = vshra.s32 %v370, 5
      %v502 = vshra.s32 %v371, 5
      %v503 = vshra.s32 %v372, 5
      %v504 = vshra.s32 %v373, 5
      %v505 = vshra.s32 %v374, 5
      %v506 = vshra.s32 %v375, 5
      %v507 = vshra.s32 %v376, 5
      %v508 = vshra.s32 %v377, 5
      %v509 = vshra.s32 %v378, 5
      %v510 = vshra.s32 %v379, 5
      %v511 = vshra.s32 %v380, 5
      %v512 = vshra.s32 %v381, 5
      %v513 = vshra.s32 %v382, 5
      %v514 = vshra.s32 %v383, 5
      %v515 = vshra.s32 %v384, 5
      %v516 = vand.u32 %v257, 31
      %v517 = vand.u32 %v258, 31
      %v518 = vand.u32 %v259, 31
      %v519 = vand.u32 %v260, 31
      %v520 = vand.u32 %v261, 31
      %v521 = vand.u32 %v262, 31
      %v522 = vand.u32 %v263, 31
      %v523 = vand.u32 %v264, 31
      %v524 = vand.u32 %v265, 31
      %v525 = vand.u32 %v266, 31
      %v526 = vand.u32 %v267, 31
      %v527 = vand.u32 %v268, 31
      %v528 = vand.u32 %v269, 31
      %v529 = vand.u32 %v270, 31
      %v530 = vand.u32 %v271, 31
      %v531 = vand.u32 %v272, 31
      %v532 = vand.u32 %v273, 31
      %v533 = vand.u32 %v274, 31
      %v534 = vand.u32 %v275, 31
      %v535 = vand.u32 %v276, 31
      %v536 = vand.u32 %v277, 31
      %v537 = vand.u32 %v278, 31
      %v538 = vand.u32 %v279, 31
      %v539 = vand.u32 %v280, 31
      %v540 = vand.u32 %v281, 31
      %v541 = vand.u32 %v282, 31
      %v542 = vand.u32 %v283, 31
      %v543 = vand.u32 %v284, 31
      %v544 = vand.u32 %v285, 31
      %v545 = vand.u32 %v286, 31
      %v546 = vand.u32 %v287, 31
      %v547 = vand.u32 %v288, 31
      %v548 = vand.u32 %v289, 31
      %v549 = vand.u32 %v290, 31
      %v550 = vand.u32 %v291, 31
      %v551 = vand.u32 %v292, 31
      %v552 = vand.u32 %v293, 31
      %v553 = vand.u32 %v294, 31
      %v554 = vand.u32 %v295, 31
      %v555 = vand.u32 %v296, 31
      %v556 = vand.u32 %v297, 31
      %v557 = vand.u32 %v298, 31
      %v558 = vand.u32 %v299, 31
      %v559 = vand.u32 %v300, 31
      %v560 = vand.u32 %v301, 31
      %v561 = vand.u32 %v302, 31
      %v562 = vand.u32 %v303, 31
      %v563 = vand.u32 %v304, 31
      %v564 = vand.u32 %v305, 31
      %v565 = vand.u32 %v306, 31
      %v566 = vand.u32 %v307, 31
      %v567 = vand.u32 %v308, 31
      %v568 = vand.u32 %v309, 31
      %v569 = vand.u32 %v310, 31
      %v570 = vand.u32 %v311, 31
      %v571 = vand.u32 %v312, 31
      %v572 = vand.u32 %v313, 31
      %v573 = vand.u32 %v314, 31
      %v574 = vand.u32 %v315, 31
      %v575 = vand.u32 %v316, 31
      %v576 = vand.u32 %v317, 31
      %v577 = vand.u32 %v318, 31
      %v578 = vand.u32 %v319, 31
      %v579 = vand.u32 %v320, 31
      %v580 = vand.u32 %v321, 31
      %v581 = vand.u32 %v322, 31
      %v582 = vand.u32 %v323, 31
      %v583 = vand.u32 %v324, 31
      %v584 = vand.u32 %v325, 31
      %v585 = vand.u32 %v326, 31
      %v586 = vand.u32 %v327, 31
      %v587 = vand.u32 %v328, 31
      %v588 = vand.u32 %v329, 31
      %v589 = vand.u32 %v330, 31
      %v590 = vand.u32 %v331, 31
      %v591 = vand.u32 %v332, 31
      %v592 = vand.u32 %v333, 31
      %v593 = vand.u32 %v334, 31
      %v594 = vand.u32 %v335, 31
      %v595 = vand.u32 %v336, 31
      %v596 = vand.u32 %v337, 31
      %v597 = vand.u32 %v338, 31
      %v598 = vand.u32 %v339, 31
      %v599 = vand.u32 %v340, 31
      %v600 = vand.u32 %v341, 31
      %v601 = vand.u32 %v342, 31
      %v602 = vand.u32 %v343, 31
      %v603 = vand.u32 %v344, 31
      %v604 = vand.u32 %v345, 31
      %v605 = vand.u32 %v346, 31
      %v606 = vand.u32 %v347, 31
      %v607 = vand.u32 %v348, 31
      %v608 = vand.u32 %v349, 31
      %v609 = vand.u32 %v350, 31
      %v610 = vand.u32 %v351, 31
      %v611 = vand.u32 %v352, 31
      %v612 = vand.u32 %v353, 31
      %v613 = vand.u32 %v354, 31
      %v614 = vand.u32 %v355, 31
      %v615 = vand.u32 %v356, 31
      %v616 = vand.u32 %v357, 31
      %v617 = vand.u32 %v358, 31
      %v618 = vand.u32 %v359, 31
      %v619 = vand.u32 %v360, 31
      %v620 = vand.u32 %v361, 31
      %v621 = vand.u32 %v362, 31
      %v622 = vand.u32 %v363, 31
      %v623 = vand.u32 %v364, 31
      %v624 = vand.u32 %v365, 31
      %v625 = vand.u32 %v366, 31
      %v626 = vand.u32 %v367, 31
      %v627 = vand.u32 %v368, 31
      %v628 = vand.u32 %v369, 31
      %v629 = vand.u32 %v370, 31
      %v630 = vand.u32 %v371, 31
      %v631 = vand.u32 %v372, 31
      %v632 = vand.u32 %v373, 31
      %v633 = vand.u32 %v374, 31
      %v634 = vand.u32 %v375, 31
      %v635 = vand.u32 %v376, 31
      %v636 = vand.u32 %v377, 31
      %v637 = vand.u32 %v378, 31
      %v638 = vand.u32 %v379, 31
      %v639 = vand.u32 %v380, 31
      %v640 = vand.u32 %v381, 31
      %v641 = vand.u32 %v382, 31
      %v642 = vand.u32 %v383, 31
      %v643 = vand.u32 %v384, 31
      %v644 = vshra.s32 %v388, 1
      %v645 = vshra.s32 %v389, 1
      %v646 = vshra.s32 %v390, 1
      %v647 = vshra.s32 %v391, 1
      %v648 = vshra.s32 %v392, 1
      %v649 = vshra.s32 %v393, 1
      %v650 = vshra.s32 %v394, 1
      %v651 = vshra.s32 %v395, 1
      %v652 = vshra.s32 %v396, 1
      %v653 = vshra.s32 %v397, 1
      %v654 = vshra.s32 %v398, 1
      %v655 = vshra.s32 %v399, 1
      %v656 = vshra.s32 %v400, 1
      %v657 = vshra.s32 %v401, 1
      %v658 = vshra.s32 %v402, 1
      %v659 = vshra.s32 %v403, 1
      %v660 = vshra.s32 %v404, 1
      %v661 = vshra.s32 %v405, 1
      %v662 = vshra.s32 %v406, 1
      %v663 = vshra.s32 %v407, 1
      %v664 = vshra.s32 %v408, 1
      %v665 = vshra.s32 %v409, 1
      %v666 = vshra.s32 %v410, 1
      %v667 = vshra.s32 %v411, 1
      %v668 = vshra.s32 %v412, 1
      %v669 = vshra.s32 %v413, 1
      %v670 = vshra.s32 %v414, 1
      %v671 = vshra.s32 %v415, 1
      %v672 = vshra.s32 %v416, 1
      %v673 = vshra.s32 %v417, 1
      %v674 = vshra.s32 %v418, 1
      %v675 = vshra.s32 %v419, 1
      %v676 = vshra.s32 %v420, 1
      %v677 = vshra.s32 %v421, 1
      %v678 = vshra.s32 %v422, 1
      %v679 = vshra.s32 %v423, 1
      %v680 = vshra.s32 %v424, 1
      %v681 = vshra.s32 %v425, 1
      %v682 = vshra.s32 %v426, 1
      %v683 = vshra.s32 %v427, 1
      %v684 = vshra.s32 %v428, 1
      %v685 = vshra.s32 %v429, 1
      %v686 = vshra.s32 %v430, 1
      %v687 = vshra.s32 %v431, 1
      %v688 = vshra.s32 %v432, 1
      %v689 = vshra.s32 %v433, 1
      %v690 = vshra.s32 %v434, 1
      %v691 = vshra.s32 %v435, 1
      %v692 = vshra.s32 %v436, 1
      %v693 = vshra.s32 %v437, 1
      %v694 = vshra.s32 %v438, 1
      %v695 = vshra.s32 %v439, 1
      %v696 = vshra.s32 %v440, 1
      %v697 = vshra.s32 %v441, 1
      %v698 = vshra.s32 %v442, 1
      %v699 = vshra.s32 %v443, 1
      %v700 = vshra.s32 %v444, 1
      %v701 = vshra.s32 %v445, 1
      %v702 = vshra.s32 %v446, 1
      %v703 = vshra.s32 %v447, 1
      %v704 = vshra.s32 %v448, 1
      %v705 = vshra.s32 %v449, 1
      %v706 = vshra.s32 %v450, 1
      %v707 = vshra.s32 %v451, 1
      %v708 = vshra.s32 %v452, 1
      %v709 = vshra.s32 %v453, 1
      %v710 = vshra.s32 %v454, 1
      %v711 = vshra.s32 %v455, 1
      %v712 = vshra.s32 %v456, 1
      %v713 = vshra.s32 %v457, 1
      %v714 = vshra.s32 %v458, 1
      %v715 = vshra.s32 %v459, 1
      %v716 = vshra.s32 %v460, 1
      %v717 = vshra.s32 %v461, 1
      %v718 = vshra.s32 %v462, 1
      %v719 = vshra.s32 %v463, 1
      %v720 = vshra.s32 %v464, 1
      %v721 = vshra.s32 %v465, 1
      %v722 = vshra.s32 %v466, 1
      %v723 = vshra.s32 %v467, 1
      %v724 = vshra.s32 %v468, 1
      %v725 = vshra.s32 %v469, 1
      %v726 = vshra.s32 %v470, 1
      %v727 = vshra.s32 %v471, 1
      %v728 = vshra.s32 %v472, 1
      %v729 = vshra.s32 %v473, 1
      %v730 = vshra.s32 %v474, 1
      %v731 = vshra.s32 %v475, 1
      %v732 = vshra.s32 %v476, 1
      %v733 = vshra.s32 %v477, 1
      %v734 = vshra.s32 %v478, 1
      %v735 = vshra.s32 %v479, 1
      %v736 = vshra.s32 %v480, 1
      %v737 = vshra.s32 %v481, 1
      %v738 = vshra.s32 %v482, 1
      %v739 = vshra.s32 %v483, 1
      %v740 = vshra.s32 %v484, 1
      %v741 = vshra.s32 %v485, 1
      %v742 = vshra.s32 %v486, 1
      %v743 = vshra.s32 %v487, 1
      %v744 = vshra.s32 %v488, 1
      %v745 = vshra.s32 %v489, 1
      %v746 = vshra.s32 %v490, 1
      %v747 = vshra.s32 %v491, 1
      %v748 = vshra.s32 %v492, 1
      %v749 = vshra.s32 %v493, 1
      %v750 = vshra.s32 %v494, 1
      %v751 = vshra.s32 %v495, 1
      %v752 = vshra.s32 %v496, 1
      %v753 = vshra.s32 %v497, 1
      %v754 = vshra.s32 %v498, 1
      %v755 = vshra.s32 %v499, 1
      %v756 = vshra.s32 %v500, 1
      %v757 = vshra.s32 %v501, 1
      %v758 = vshra.s32 %v502, 1
      %v759 = vshra.s32 %v503, 1
      %v760 = vshra.s32 %v504, 1
      %v761 = vshra.s32 %v505, 1
      %v762 = vshra.s32 %v506, 1
      %v763 = vshra.s32 %v507, 1
      %v764 = vshra.s32 %v508, 1
      %v765 = vshra.s32 %v509, 1
      %v766 = vshra.s32 %v510, 1
      %v767 = vshra.s32 %v511, 1
      %v768 = vshra.s32 %v512, 1
      %v769 = vshra.s32 %v513, 1
      %v770 = vshra.s32 %v514, 1
      %v771 = vshra.s32 %v515, 1
      %v772 = vshll.u32 %v644, 4
      %v773 = vshll.u32 %v645, 4
      %v774 = vshll.u32 %v646, 4
      %v775 = vshll.u32 %v647, 4
      %v776 = vshll.u32 %v648, 4
      %v777 = vshll.u32 %v649, 4
      %v778 = vshll.u32 %v650, 4
      %v779 = vshll.u32 %v651, 4
      %v780 = vshll.u32 %v652, 4
      %v781 = vshll.u32 %v653, 4
      %v782 = vshll.u32 %v654, 4
      %v783 = vshll.u32 %v655, 4
      %v784 = vshll.u32 %v656, 4
      %v785 = vshll.u32 %v657, 4
      %v786 = vshll.u32 %v658, 4
      %v787 = vshll.u32 %v659, 4
      %v788 = vshll.u32 %v660, 4
      %v789 = vshll.u32 %v661, 4
      %v790 = vshll.u32 %v662, 4
      %v791 = vshll.u32 %v663, 4
      %v792 = vshll.u32 %v664, 4
      %v793 = vshll.u32 %v665, 4
      %v794 = vshll.u32 %v666, 4
      %v795 = vshll.u32 %v667, 4
      %v796 = vshll.u32 %v668, 4
      %v797 = vshll.u32 %v669, 4
      %v798 = vshll.u32 %v670, 4
      %v799 = vshll.u32 %v671, 4
      %v800 = vshll.u32 %v672, 4
      %v801 = vshll.u32 %v673, 4
      %v802 = vshll.u32 %v674, 4
      %v803 = vshll.u32 %v675, 4
      %v804 = vshll.u32 %v676, 4
      %v805 = vshll.u32 %v677, 4
      %v806 = vshll.u32 %v678, 4
      %v807 = vshll.u32 %v679, 4
      %v808 = vshll.u32 %v680, 4
      %v809 = vshll.u32 %v681, 4
      %v810 = vshll.u32 %v682, 4
      %v811 = vshll.u32 %v683, 4
      %v812 = vshll.u32 %v684, 4
      %v813 = vshll.u32 %v685, 4
      %v814 = vshll.u32 %v686, 4
      %v815 = vshll.u32 %v687, 4
      %v816 = vshll.u32 %v688, 4
      %v817 = vshll.u32 %v689, 4
      %v818 = vshll.u32 %v690, 4
      %v819 = vshll.u32 %v691, 4
      %v820 = vshll.u32 %v692, 4
      %v821 = vshll.u32 %v693, 4
      %v822 = vshll.u32 %v694, 4
      %v823 = vshll.u32 %v695, 4
      %v824 = vshll.u32 %v696, 4
      %v825 = vshll.u32 %v697, 4
      %v826 = vshll.u32 %v698, 4
      %v827 = vshll.u32 %v699, 4
      %v828 = vshll.u32 %v700, 4
      %v829 = vshll.u32 %v701, 4
      %v830 = vshll.u32 %v702, 4
      %v831 = vshll.u32 %v703, 4
      %v832 = vshll.u32 %v704, 4
      %v833 = vshll.u32 %v705, 4
      %v834 = vshll.u32 %v706, 4
      %v835 = vshll.u32 %v707, 4
      %v836 = vshll.u32 %v708, 4
      %v837 = vshll.u32 %v709, 4
      %v838 = vshll.u32 %v710, 4
      %v839 = vshll.u32 %v711, 4
      %v840 = vshll.u32 %v712, 4
      %v841 = vshll.u32 %v713, 4
      %v842 = vshll.u32 %v714, 4
      %v843 = vshll.u32 %v715, 4
      %v844 = vshll.u32 %v716, 4
      %v845 = vshll.u32 %v717, 4
      %v846 = vshll.u32 %v718, 4
      %v847 = vshll.u32 %v719, 4
      %v848 = vshll.u32 %v720, 4
      %v849 = vshll.u32 %v721, 4
      %v850 = vshll.u32 %v722, 4
      %v851 = vshll.u32 %v723, 4
      %v852 = vshll.u32 %v724, 4
      %v853 = vshll.u32 %v725, 4
      %v854 = vshll.u32 %v726, 4
      %v855 = vshll.u32 %v727, 4
      %v856 = vshll.u32 %v728, 4
      %v857 = vshll.u32 %v729, 4
      %v858 = vshll.u32 %v730, 4
      %v859 = vshll.u32 %v731, 4
      %v860 = vshll.u32 %v732, 4
      %v861 = vshll.u32 %v733, 4
      %v862 = vshll.u32 %v734, 4
      %v863 = vshll.u32 %v735, 4
      %v864 = vshll.u32 %v736, 4
      %v865 = vshll.u32 %v737, 4
      %v866 = vshll.u32 %v738, 4
      %v867 = vshll.u32 %v739, 4
      %v868 = vshll.u32 %v740, 4
      %v869 = vshll.u32 %v741, 4
      %v870 = vshll.u32 %v742, 4
      %v871 = vshll.u32 %v743, 4
      %v872 = vshll.u32 %v744, 4
      %v873 = vshll.u32 %v745, 4
      %v874 = vshll.u32 %v746, 4
      %v875 = vshll.u32 %v747, 4
      %v876 = vshll.u32 %v748, 4
      %v877 = vshll.u32 %v749, 4
      %v878 = vshll.u32 %v750, 4
      %v879 = vshll.u32 %v751, 4
      %v880 = vshll.u32 %v752, 4
      %v881 = vshll.u32 %v753, 4
      %v882 = vshll.u32 %v754, 4
      %v883 = vshll.u32 %v755, 4
      %v884 = vshll.u32 %v756, 4
      %v885 = vshll.u32 %v757, 4
      %v886 = vshll.u32 %v758, 4
      %v887 = vshll.u32 %v759, 4
      %v888 = vshll.u32 %v760, 4
      %v889 = vshll.u32 %v761, 4
      %v890 = vshll.u32 %v762, 4
      %v891 = vshll.u32 %v763, 4
      %v892 = vshll.u32 %v764, 4
      %v893 = vshll.u32 %v765, 4
      %v894 = vshll.u32 %v766, 4
      %v895 = vshll.u32 %v767, 4
      %v896 = vshll.u32 %v768, 4
      %v897 = vshll.u32 %v769, 4
      %v898 = vshll.u32 %v770, 4
      %v899 = vshll.u32 %v771, 4
      %v900 = vshra.s32 %v516, 1
      %v901 = vshra.s32 %v517, 1
      %v902 = vshra.s32 %v518, 1
      %v903 = vshra.s32 %v519, 1
      %v904 = vshra.s32 %v520, 1
      %v905 = vshra.s32 %v521, 1
      %v906 = vshra.s32 %v522, 1
      %v907 = vshra.s32 %v523, 1
      %v908 = vshra.s32 %v524, 1
      %v909 = vshra.s32 %v525, 1
      %v910 = vshra.s32 %v526, 1
      %v911 = vshra.s32 %v527, 1
      %v912 = vshra.s32 %v528, 1
      %v913 = vshra.s32 %v529, 1
      %v914 = vshra.s32 %v530, 1
      %v915 = vshra.s32 %v531, 1
      %v916 = vshra.s32 %v532, 1
      %v917 = vshra.s32 %v533, 1
      %v918 = vshra.s32 %v534, 1
      %v919 = vshra.s32 %v535, 1
      %v920 = vshra.s32 %v536, 1
      %v921 = vshra.s32 %v537, 1
      %v922 = vshra.s32 %v538, 1
      %v923 = vshra.s32 %v539, 1
      %v924 = vshra.s32 %v540, 1
      %v925 = vshra.s32 %v541, 1
      %v926 = vshra.s32 %v542, 1
      %v927 = vshra.s32 %v543, 1
      %v928 = vshra.s32 %v544, 1
      %v929 = vshra.s32 %v545, 1
      %v930 = vshra.s32 %v546, 1
      %v931 = vshra.s32 %v547, 1
      %v932 = vshra.s32 %v548, 1
      %v933 = vshra.s32 %v549, 1
      %v934 = vshra.s32 %v550, 1
      %v935 = vshra.s32 %v551, 1
      %v936 = vshra.s32 %v552, 1
      %v937 = vshra.s32 %v553, 1
      %v938 = vshra.s32 %v554, 1
      %v939 = vshra.s32 %v555, 1
      %v940 = vshra.s32 %v556, 1
      %v941 = vshra.s32 %v557, 1
      %v942 = vshra.s32 %v558, 1
      %v943 = vshra.s32 %v559, 1
      %v944 = vshra.s32 %v560, 1
      %v945 = vshra.s32 %v561, 1
      %v946 = vshra.s32 %v562, 1
      %v947 = vshra.s32 %v563, 1
      %v948 = vshra.s32 %v564, 1
      %v949 = vshra.s32 %v565, 1
      %v950 = vshra.s32 %v566, 1
      %v951 = vshra.s32 %v567, 1
      %v952 = vshra.s32 %v568, 1
      %v953 = vshra.s32 %v569, 1
      %v954 = vshra.s32 %v570, 1
      %v955 = vshra.s32 %v571, 1
      %v956 = vshra.s32 %v572, 1
      %v957 = vshra.s32 %v573, 1
      %v958 = vshra.s32 %v574, 1
      %v959 = vshra.s32 %v575, 1
      %v960 = vshra.s32 %v576, 1
      %v961 = vshra.s32 %v577, 1
      %v962 = vshra.s32 %v578, 1
      %v963 = vshra.s32 %v579, 1
      %v964 = vshra.s32 %v580, 1
      %v965 = vshra.s32 %v581, 1
      %v966 = vshra.s32 %v582, 1
      %v967 = vshra.s32 %v583, 1
      %v968 = vshra.s32 %v584, 1
      %v969 = vshra.s32 %v585, 1
      %v970 = vshra.s32 %v586, 1
      %v971 = vshra.s32 %v587, 1
      %v972 = vshra.s32 %v588, 1
      %v973 = vshra.s32 %v589, 1
      %v974 = vshra.s32 %v590, 1
      %v975 = vshra.s32 %v591, 1
      %v976 = vshra.s32 %v592, 1
      %v977 = vshra.s32 %v593, 1
      %v978 = vshra.s32 %v594, 1
      %v979 = vshra.s32 %v595, 1
      %v980 = vshra.s32 %v596, 1
      %v981 = vshra.s32 %v597, 1
      %v982 = vshra.s32 %v598, 1
      %v983 = vshra.s32 %v599, 1
      %v984 = vshra.s32 %v600, 1
      %v985 = vshra.s32 %v601, 1
      %v986 = vshra.s32 %v602, 1
      %v987 = vshra.s32 %v603, 1
      %v988 = vshra.s32 %v604, 1
      %v989 = vshra.s32 %v605, 1
      %v990 = vshra.s32 %v606, 1
      %v991 = vshra.s32 %v607, 1
      %v992 = vshra.s32 %v608, 1
      %v993 = vshra.s32 %v609, 1
      %v994 = vshra.s32 %v610, 1
      %v995 = vshra.s32 %v611, 1
      %v996 = vshra.s32 %v612, 1
      %v997 = vshra.s32 %v613, 1
      %v998 = vshra.s32 %v614, 1
      %v999 = vshra.s32 %v615, 1
      %v1000 = vshra.s32 %v616, 1
      %v1001 = vshra.s32 %v617, 1
      %v1002 = vshra.s32 %v618, 1
      %v1003 = vshra.s32 %v619, 1
      %v1004 = vshra.s32 %v620, 1
      %v1005 = vshra.s32 %v621, 1
      %v1006 = vshra.s32 %v622, 1
      %v1007 = vshra.s32 %v623, 1
      %v1008 = vshra.s32 %v624, 1
      %v1009 = vshra.s32 %v625, 1
      %v1010 = vshra.s32 %v626, 1
      %v1011 = vshra.s32 %v627, 1
      %v1012 = vshra.s32 %v628, 1
      %v1013 = vshra.s32 %v629, 1
      %v1014 = vshra.s32 %v630, 1
      %v1015 = vshra.s32 %v631, 1
      %v1016 = vshra.s32 %v632, 1
      %v1017 = vshra.s32 %v633, 1
      %v1018 = vshra.s32 %v634, 1
      %v1019 = vshra.s32 %v635, 1
      %v1020 = vshra.s32 %v636, 1
      %v1021 = vshra.s32 %v637, 1
      %v1022 = vshra.s32 %v638, 1
      %v1023 = vshra.s32 %v639, 1
      %v1024 = vshra.s32 %v640, 1
      %v1025 = vshra.s32 %v641, 1
      %v1026 = vshra.s32 %v642, 1
      %v1027 = vshra.s32 %v643, 1
      %v1028 = vadd.s32 %v772, %v900
      %v1029 = vadd.s32 %v773, %v901
      %v1030 = vadd.s32 %v774, %v902
      %v1031 = vadd.s32 %v775, %v903
      %v1032 = vadd.s32 %v776, %v904
      %v1033 = vadd.s32 %v777, %v905
      %v1034 = vadd.s32 %v778, %v906
      %v1035 = vadd.s32 %v779, %v907
      %v1036 = vadd.s32 %v780, %v908
      %v1037 = vadd.s32 %v781, %v909
      %v1038 = vadd.s32 %v782, %v910
      %v1039 = vadd.s32 %v783, %v911
      %v1040 = vadd.s32 %v784, %v912
      %v1041 = vadd.s32 %v785, %v913
      %v1042 = vadd.s32 %v786, %v914
      %v1043 = vadd.s32 %v787, %v915
      %v1044 = vadd.s32 %v788, %v916
      %v1045 = vadd.s32 %v789, %v917
      %v1046 = vadd.s32 %v790, %v918
      %v1047 = vadd.s32 %v791, %v919
      %v1048 = vadd.s32 %v792, %v920
      %v1049 = vadd.s32 %v793, %v921
      %v1050 = vadd.s32 %v794, %v922
      %v1051 = vadd.s32 %v795, %v923
      %v1052 = vadd.s32 %v796, %v924
      %v1053 = vadd.s32 %v797, %v925
      %v1054 = vadd.s32 %v798, %v926
      %v1055 = vadd.s32 %v799, %v927
      %v1056 = vadd.s32 %v800, %v928
      %v1057 = vadd.s32 %v801, %v929
      %v1058 = vadd.s32 %v802, %v930
      %v1059 = vadd.s32 %v803, %v931
      %v1060 = vadd.s32 %v804, %v932
      %v1061 = vadd.s32 %v805, %v933
      %v1062 = vadd.s32 %v806, %v934
      %v1063 = vadd.s32 %v807, %v935
      %v1064 = vadd.s32 %v808, %v936
      %v1065 = vadd.s32 %v809, %v937
      %v1066 = vadd.s32 %v810, %v938
      %v1067 = vadd.s32 %v811, %v939
      %v1068 = vadd.s32 %v812, %v940
      %v1069 = vadd.s32 %v813, %v941
      %v1070 = vadd.s32 %v814, %v942
      %v1071 = vadd.s32 %v815, %v943
      %v1072 = vadd.s32 %v816, %v944
      %v1073 = vadd.s32 %v817, %v945
      %v1074 = vadd.s32 %v818, %v946
      %v1075 = vadd.s32 %v819, %v947
      %v1076 = vadd.s32 %v820, %v948
      %v1077 = vadd.s32 %v821, %v949
      %v1078 = vadd.s32 %v822, %v950
      %v1079 = vadd.s32 %v823, %v951
      %v1080 = vadd.s32 %v824, %v952
      %v1081 = vadd.s32 %v825, %v953
      %v1082 = vadd.s32 %v826, %v954
      %v1083 = vadd.s32 %v827, %v955
      %v1084 = vadd.s32 %v828, %v956
      %v1085 = vadd.s32 %v829, %v957
      %v1086 = vadd.s32 %v830, %v958
      %v1087 = vadd.s32 %v831, %v959
      %v1088 = vadd.s32 %v832, %v960
      %v1089 = vadd.s32 %v833, %v961
      %v1090 = vadd.s32 %v834, %v962
      %v1091 = vadd.s32 %v835, %v963
      %v1092 = vadd.s32 %v836, %v964
      %v1093 = vadd.s32 %v837, %v965
      %v1094 = vadd.s32 %v838, %v966
      %v1095 = vadd.s32 %v839, %v967
      %v1096 = vadd.s32 %v840, %v968
      %v1097 = vadd.s32 %v841, %v969
      %v1098 = vadd.s32 %v842, %v970
      %v1099 = vadd.s32 %v843, %v971
      %v1100 = vadd.s32 %v844, %v972
      %v1101 = vadd.s32 %v845, %v973
      %v1102 = vadd.s32 %v846, %v974
      %v1103 = vadd.s32 %v847, %v975
      %v1104 = vadd.s32 %v848, %v976
      %v1105 = vadd.s32 %v849, %v977
      %v1106 = vadd.s32 %v850, %v978
      %v1107 = vadd.s32 %v851, %v979
      %v1108 = vadd.s32 %v852, %v980
      %v1109 = vadd.s32 %v853, %v981
      %v1110 = vadd.s32 %v854, %v982
      %v1111 = vadd.s32 %v855, %v983
      %v1112 = vadd.s32 %v856, %v984
      %v1113 = vadd.s32 %v857, %v985
      %v1114 = vadd.s32 %v858, %v986
      %v1115 = vadd.s32 %v859, %v987
      %v1116 = vadd.s32 %v860, %v988
      %v1117 = vadd.s32 %v861, %v989
      %v1118 = vadd.s32 %v862, %v990
      %v1119 = vadd.s32 %v863, %v991
      %v1120 = vadd.s32 %v864, %v992
      %v1121 = vadd.s32 %v865, %v993
      %v1122 = vadd.s32 %v866, %v994
      %v1123 = vadd.s32 %v867, %v995
      %v1124 = vadd.s32 %v868, %v996
      %v1125 = vadd.s32 %v869, %v997
      %v1126 = vadd.s32 %v870, %v998
      %v1127 = vadd.s32 %v871, %v999
      %v1128 = vadd.s32 %v872, %v1000
      %v1129 = vadd.s32 %v873, %v1001
      %v1130 = vadd.s32 %v874, %v1002
      %v1131 = vadd.s32 %v875, %v1003
      %v1132 = vadd.s32 %v876, %v1004
      %v1133 = vadd.s32 %v877, %v1005
      %v1134 = vadd.s32 %v878, %v1006
      %v1135 = vadd.s32 %v879, %v1007
      %v1136 = vadd.s32 %v880, %v1008
      %v1137 = vadd.s32 %v881, %v1009
      %v1138 = vadd.s32 %v882, %v1010
      %v1139 = vadd.s32 %v883, %v1011
      %v1140 = vadd.s32 %v884, %v1012
      %v1141 = vadd.s32 %v885, %v1013
      %v1142 = vadd.s32 %v886, %v1014
      %v1143 = vadd.s32 %v887, %v1015
      %v1144 = vadd.s32 %v888, %v1016
      %v1145 = vadd.s32 %v889, %v1017
      %v1146 = vadd.s32 %v890, %v1018
      %v1147 = vadd.s32 %v891, %v1019
      %v1148 = vadd.s32 %v892, %v1020
      %v1149 = vadd.s32 %v893, %v1021
      %v1150 = vadd.s32 %v894, %v1022
      %v1151 = vadd.s32 %v895, %v1023
      %v1152 = vadd.s32 %v896, %v1024
      %v1153 = vadd.s32 %v897, %v1025
      %v1154 = vadd.s32 %v898, %v1026
      %v1155 = vadd.s32 %v899, %v1027
      %vm1156 = vcmp.eq.s32.totalorder %v1028, %v386
      %vm1157 = vcmp.eq.s32.totalorder %v1028, %v387
      %vm1158 = vcmp.eq.s32.totalorder %v1029, %v386
      %vm1159 = vcmp.eq.s32.totalorder %v1029, %v387
      %vm1160 = vcmp.eq.s32.totalorder %v1030, %v386
      %vm1161 = vcmp.eq.s32.totalorder %v1030, %v387
      %vm1162 = vcmp.eq.s32.totalorder %v1031, %v386
      %vm1163 = vcmp.eq.s32.totalorder %v1031, %v387
      %vm1164 = vcmp.eq.s32.totalorder %v1032, %v386
      %vm1165 = vcmp.eq.s32.totalorder %v1032, %v387
      %vm1166 = vcmp.eq.s32.totalorder %v1033, %v386
      %vm1167 = vcmp.eq.s32.totalorder %v1033, %v387
      %vm1168 = vcmp.eq.s32.totalorder %v1034, %v386
      %vm1169 = vcmp.eq.s32.totalorder %v1034, %v387
      %vm1170 = vcmp.eq.s32.totalorder %v1035, %v386
      %vm1171 = vcmp.eq.s32.totalorder %v1035, %v387
      %vm1172 = vcmp.eq.s32.totalorder %v1036, %v386
      %vm1173 = vcmp.eq.s32.totalorder %v1036, %v387
      %vm1174 = vcmp.eq.s32.totalorder %v1037, %v386
      %vm1175 = vcmp.eq.s32.totalorder %v1037, %v387
      %vm1176 = vcmp.eq.s32.totalorder %v1038, %v386
      %vm1177 = vcmp.eq.s32.totalorder %v1038, %v387
      %vm1178 = vcmp.eq.s32.totalorder %v1039, %v386
      %vm1179 = vcmp.eq.s32.totalorder %v1039, %v387
      %vm1180 = vcmp.eq.s32.totalorder %v1040, %v386
      %vm1181 = vcmp.eq.s32.totalorder %v1040, %v387
      %vm1182 = vcmp.eq.s32.totalorder %v1041, %v386
      %vm1183 = vcmp.eq.s32.totalorder %v1041, %v387
      %vm1184 = vcmp.eq.s32.totalorder %v1042, %v386
      %vm1185 = vcmp.eq.s32.totalorder %v1042, %v387
      %vm1186 = vcmp.eq.s32.totalorder %v1043, %v386
      %vm1187 = vcmp.eq.s32.totalorder %v1043, %v387
      %vm1188 = vcmp.eq.s32.totalorder %v1044, %v386
      %vm1189 = vcmp.eq.s32.totalorder %v1044, %v387
      %vm1190 = vcmp.eq.s32.totalorder %v1045, %v386
      %vm1191 = vcmp.eq.s32.totalorder %v1045, %v387
      %vm1192 = vcmp.eq.s32.totalorder %v1046, %v386
      %vm1193 = vcmp.eq.s32.totalorder %v1046, %v387
      %vm1194 = vcmp.eq.s32.totalorder %v1047, %v386
      %vm1195 = vcmp.eq.s32.totalorder %v1047, %v387
      %vm1196 = vcmp.eq.s32.totalorder %v1048, %v386
      %vm1197 = vcmp.eq.s32.totalorder %v1048, %v387
      %vm1198 = vcmp.eq.s32.totalorder %v1049, %v386
      %vm1199 = vcmp.eq.s32.totalorder %v1049, %v387
      %vm1200 = vcmp.eq.s32.totalorder %v1050, %v386
      %vm1201 = vcmp.eq.s32.totalorder %v1050, %v387
      %vm1202 = vcmp.eq.s32.totalorder %v1051, %v386
      %vm1203 = vcmp.eq.s32.totalorder %v1051, %v387
      %vm1204 = vcmp.eq.s32.totalorder %v1052, %v386
      %vm1205 = vcmp.eq.s32.totalorder %v1052, %v387
      %vm1206 = vcmp.eq.s32.totalorder %v1053, %v386
      %vm1207 = vcmp.eq.s32.totalorder %v1053, %v387
      %vm1208 = vcmp.eq.s32.totalorder %v1054, %v386
      %vm1209 = vcmp.eq.s32.totalorder %v1054, %v387
      %vm1210 = vcmp.eq.s32.totalorder %v1055, %v386
      %vm1211 = vcmp.eq.s32.totalorder %v1055, %v387
      %vm1212 = vcmp.eq.s32.totalorder %v1056, %v386
      %vm1213 = vcmp.eq.s32.totalorder %v1056, %v387
      %vm1214 = vcmp.eq.s32.totalorder %v1057, %v386
      %vm1215 = vcmp.eq.s32.totalorder %v1057, %v387
      %vm1216 = vcmp.eq.s32.totalorder %v1058, %v386
      %vm1217 = vcmp.eq.s32.totalorder %v1058, %v387
      %vm1218 = vcmp.eq.s32.totalorder %v1059, %v386
      %vm1219 = vcmp.eq.s32.totalorder %v1059, %v387
      %vm1220 = vcmp.eq.s32.totalorder %v1060, %v386
      %vm1221 = vcmp.eq.s32.totalorder %v1060, %v387
      %vm1222 = vcmp.eq.s32.totalorder %v1061, %v386
      %vm1223 = vcmp.eq.s32.totalorder %v1061, %v387
      %vm1224 = vcmp.eq.s32.totalorder %v1062, %v386
      %vm1225 = vcmp.eq.s32.totalorder %v1062, %v387
      %vm1226 = vcmp.eq.s32.totalorder %v1063, %v386
      %vm1227 = vcmp.eq.s32.totalorder %v1063, %v387
      %vm1228 = vcmp.eq.s32.totalorder %v1064, %v386
      %vm1229 = vcmp.eq.s32.totalorder %v1064, %v387
      %vm1230 = vcmp.eq.s32.totalorder %v1065, %v386
      %vm1231 = vcmp.eq.s32.totalorder %v1065, %v387
      %vm1232 = vcmp.eq.s32.totalorder %v1066, %v386
      %vm1233 = vcmp.eq.s32.totalorder %v1066, %v387
      %vm1234 = vcmp.eq.s32.totalorder %v1067, %v386
      %vm1235 = vcmp.eq.s32.totalorder %v1067, %v387
      %vm1236 = vcmp.eq.s32.totalorder %v1068, %v386
      %vm1237 = vcmp.eq.s32.totalorder %v1068, %v387
      %vm1238 = vcmp.eq.s32.totalorder %v1069, %v386
      %vm1239 = vcmp.eq.s32.totalorder %v1069, %v387
      %vm1240 = vcmp.eq.s32.totalorder %v1070, %v386
      %vm1241 = vcmp.eq.s32.totalorder %v1070, %v387
      %vm1242 = vcmp.eq.s32.totalorder %v1071, %v386
      %vm1243 = vcmp.eq.s32.totalorder %v1071, %v387
      %vm1244 = vcmp.eq.s32.totalorder %v1072, %v386
      %vm1245 = vcmp.eq.s32.totalorder %v1072, %v387
      %vm1246 = vcmp.eq.s32.totalorder %v1073, %v386
      %vm1247 = vcmp.eq.s32.totalorder %v1073, %v387
      %vm1248 = vcmp.eq.s32.totalorder %v1074, %v386
      %vm1249 = vcmp.eq.s32.totalorder %v1074, %v387
      %vm1250 = vcmp.eq.s32.totalorder %v1075, %v386
      %vm1251 = vcmp.eq.s32.totalorder %v1075, %v387
      %vm1252 = vcmp.eq.s32.totalorder %v1076, %v386
      %vm1253 = vcmp.eq.s32.totalorder %v1076, %v387
      %vm1254 = vcmp.eq.s32.totalorder %v1077, %v386
      %vm1255 = vcmp.eq.s32.totalorder %v1077, %v387
      %vm1256 = vcmp.eq.s32.totalorder %v1078, %v386
      %vm1257 = vcmp.eq.s32.totalorder %v1078, %v387
      %vm1258 = vcmp.eq.s32.totalorder %v1079, %v386
      %vm1259 = vcmp.eq.s32.totalorder %v1079, %v387
      %vm1260 = vcmp.eq.s32.totalorder %v1080, %v386
      %vm1261 = vcmp.eq.s32.totalorder %v1080, %v387
      %vm1262 = vcmp.eq.s32.totalorder %v1081, %v386
      %vm1263 = vcmp.eq.s32.totalorder %v1081, %v387
      %vm1264 = vcmp.eq.s32.totalorder %v1082, %v386
      %vm1265 = vcmp.eq.s32.totalorder %v1082, %v387
      %vm1266 = vcmp.eq.s32.totalorder %v1083, %v386
      %vm1267 = vcmp.eq.s32.totalorder %v1083, %v387
      %vm1268 = vcmp.eq.s32.totalorder %v1084, %v386
      %vm1269 = vcmp.eq.s32.totalorder %v1084, %v387
      %vm1270 = vcmp.eq.s32.totalorder %v1085, %v386
      %vm1271 = vcmp.eq.s32.totalorder %v1085, %v387
      %vm1272 = vcmp.eq.s32.totalorder %v1086, %v386
      %vm1273 = vcmp.eq.s32.totalorder %v1086, %v387
      %vm1274 = vcmp.eq.s32.totalorder %v1087, %v386
      %vm1275 = vcmp.eq.s32.totalorder %v1087, %v387
      %vm1276 = vcmp.eq.s32.totalorder %v1088, %v386
      %vm1277 = vcmp.eq.s32.totalorder %v1088, %v387
      %vm1278 = vcmp.eq.s32.totalorder %v1089, %v386
      %vm1279 = vcmp.eq.s32.totalorder %v1089, %v387
      %vm1280 = vcmp.eq.s32.totalorder %v1090, %v386
      %vm1281 = vcmp.eq.s32.totalorder %v1090, %v387
      %vm1282 = vcmp.eq.s32.totalorder %v1091, %v386
      %vm1283 = vcmp.eq.s32.totalorder %v1091, %v387
      %vm1284 = vcmp.eq.s32.totalorder %v1092, %v386
      %vm1285 = vcmp.eq.s32.totalorder %v1092, %v387
      %vm1286 = vcmp.eq.s32.totalorder %v1093, %v386
      %vm1287 = vcmp.eq.s32.totalorder %v1093, %v387
      %vm1288 = vcmp.eq.s32.totalorder %v1094, %v386
      %vm1289 = vcmp.eq.s32.totalorder %v1094, %v387
      %vm1290 = vcmp.eq.s32.totalorder %v1095, %v386
      %vm1291 = vcmp.eq.s32.totalorder %v1095, %v387
      %vm1292 = vcmp.eq.s32.totalorder %v1096, %v386
      %vm1293 = vcmp.eq.s32.totalorder %v1096, %v387
      %vm1294 = vcmp.eq.s32.totalorder %v1097, %v386
      %vm1295 = vcmp.eq.s32.totalorder %v1097, %v387
      %vm1296 = vcmp.eq.s32.totalorder %v1098, %v386
      %vm1297 = vcmp.eq.s32.totalorder %v1098, %v387
      %vm1298 = vcmp.eq.s32.totalorder %v1099, %v386
      %vm1299 = vcmp.eq.s32.totalorder %v1099, %v387
      %vm1300 = vcmp.eq.s32.totalorder %v1100, %v386
      %vm1301 = vcmp.eq.s32.totalorder %v1100, %v387
      %vm1302 = vcmp.eq.s32.totalorder %v1101, %v386
      %vm1303 = vcmp.eq.s32.totalorder %v1101, %v387
      %vm1304 = vcmp.eq.s32.totalorder %v1102, %v386
      %vm1305 = vcmp.eq.s32.totalorder %v1102, %v387
      %vm1306 = vcmp.eq.s32.totalorder %v1103, %v386
      %vm1307 = vcmp.eq.s32.totalorder %v1103, %v387
      %vm1308 = vcmp.eq.s32.totalorder %v1104, %v386
      %vm1309 = vcmp.eq.s32.totalorder %v1104, %v387
      %vm1310 = vcmp.eq.s32.totalorder %v1105, %v386
      %vm1311 = vcmp.eq.s32.totalorder %v1105, %v387
      %vm1312 = vcmp.eq.s32.totalorder %v1106, %v386
      %vm1313 = vcmp.eq.s32.totalorder %v1106, %v387
      %vm1314 = vcmp.eq.s32.totalorder %v1107, %v386
      %vm1315 = vcmp.eq.s32.totalorder %v1107, %v387
      %vm1316 = vcmp.eq.s32.totalorder %v1108, %v386
      %vm1317 = vcmp.eq.s32.totalorder %v1108, %v387
      %vm1318 = vcmp.eq.s32.totalorder %v1109, %v386
      %vm1319 = vcmp.eq.s32.totalorder %v1109, %v387
      %vm1320 = vcmp.eq.s32.totalorder %v1110, %v386
      %vm1321 = vcmp.eq.s32.totalorder %v1110, %v387
      %vm1322 = vcmp.eq.s32.totalorder %v1111, %v386
      %vm1323 = vcmp.eq.s32.totalorder %v1111, %v387
      %vm1324 = vcmp.eq.s32.totalorder %v1112, %v386
      %vm1325 = vcmp.eq.s32.totalorder %v1112, %v387
      %vm1326 = vcmp.eq.s32.totalorder %v1113, %v386
      %vm1327 = vcmp.eq.s32.totalorder %v1113, %v387
      %vm1328 = vcmp.eq.s32.totalorder %v1114, %v386
      %vm1329 = vcmp.eq.s32.totalorder %v1114, %v387
      %vm1330 = vcmp.eq.s32.totalorder %v1115, %v386
      %vm1331 = vcmp.eq.s32.totalorder %v1115, %v387
      %vm1332 = vcmp.eq.s32.totalorder %v1116, %v386
      %vm1333 = vcmp.eq.s32.totalorder %v1116, %v387
      %vm1334 = vcmp.eq.s32.totalorder %v1117, %v386
      %vm1335 = vcmp.eq.s32.totalorder %v1117, %v387
      %vm1336 = vcmp.eq.s32.totalorder %v1118, %v386
      %vm1337 = vcmp.eq.s32.totalorder %v1118, %v387
      %vm1338 = vcmp.eq.s32.totalorder %v1119, %v386
      %vm1339 = vcmp.eq.s32.totalorder %v1119, %v387
      %vm1340 = vcmp.eq.s32.totalorder %v1120, %v386
      %vm1341 = vcmp.eq.s32.totalorder %v1120, %v387
      %vm1342 = vcmp.eq.s32.totalorder %v1121, %v386
      %vm1343 = vcmp.eq.s32.totalorder %v1121, %v387
      %vm1344 = vcmp.eq.s32.totalorder %v1122, %v386
      %vm1345 = vcmp.eq.s32.totalorder %v1122, %v387
      %vm1346 = vcmp.eq.s32.totalorder %v1123, %v386
      %vm1347 = vcmp.eq.s32.totalorder %v1123, %v387
      %vm1348 = vcmp.eq.s32.totalorder %v1124, %v386
      %vm1349 = vcmp.eq.s32.totalorder %v1124, %v387
      %vm1350 = vcmp.eq.s32.totalorder %v1125, %v386
      %vm1351 = vcmp.eq.s32.totalorder %v1125, %v387
      %vm1352 = vcmp.eq.s32.totalorder %v1126, %v386
      %vm1353 = vcmp.eq.s32.totalorder %v1126, %v387
      %vm1354 = vcmp.eq.s32.totalorder %v1127, %v386
      %vm1355 = vcmp.eq.s32.totalorder %v1127, %v387
      %vm1356 = vcmp.eq.s32.totalorder %v1128, %v386
      %vm1357 = vcmp.eq.s32.totalorder %v1128, %v387
      %vm1358 = vcmp.eq.s32.totalorder %v1129, %v386
      %vm1359 = vcmp.eq.s32.totalorder %v1129, %v387
      %vm1360 = vcmp.eq.s32.totalorder %v1130, %v386
      %vm1361 = vcmp.eq.s32.totalorder %v1130, %v387
      %vm1362 = vcmp.eq.s32.totalorder %v1131, %v386
      %vm1363 = vcmp.eq.s32.totalorder %v1131, %v387
      %vm1364 = vcmp.eq.s32.totalorder %v1132, %v386
      %vm1365 = vcmp.eq.s32.totalorder %v1132, %v387
      %vm1366 = vcmp.eq.s32.totalorder %v1133, %v386
      %vm1367 = vcmp.eq.s32.totalorder %v1133, %v387
      %vm1368 = vcmp.eq.s32.totalorder %v1134, %v386
      %vm1369 = vcmp.eq.s32.totalorder %v1134, %v387
      %vm1370 = vcmp.eq.s32.totalorder %v1135, %v386
      %vm1371 = vcmp.eq.s32.totalorder %v1135, %v387
      %vm1372 = vcmp.eq.s32.totalorder %v1136, %v386
      %vm1373 = vcmp.eq.s32.totalorder %v1136, %v387
      %vm1374 = vcmp.eq.s32.totalorder %v1137, %v386
      %vm1375 = vcmp.eq.s32.totalorder %v1137, %v387
      %vm1376 = vcmp.eq.s32.totalorder %v1138, %v386
      %vm1377 = vcmp.eq.s32.totalorder %v1138, %v387
      %vm1378 = vcmp.eq.s32.totalorder %v1139, %v386
      %vm1379 = vcmp.eq.s32.totalorder %v1139, %v387
      %vm1380 = vcmp.eq.s32.totalorder %v1140, %v386
      %vm1381 = vcmp.eq.s32.totalorder %v1140, %v387
      %vm1382 = vcmp.eq.s32.totalorder %v1141, %v386
      %vm1383 = vcmp.eq.s32.totalorder %v1141, %v387
      %vm1384 = vcmp.eq.s32.totalorder %v1142, %v386
      %vm1385 = vcmp.eq.s32.totalorder %v1142, %v387
      %vm1386 = vcmp.eq.s32.totalorder %v1143, %v386
      %vm1387 = vcmp.eq.s32.totalorder %v1143, %v387
      %vm1388 = vcmp.eq.s32.totalorder %v1144, %v386
      %vm1389 = vcmp.eq.s32.totalorder %v1144, %v387
      %vm1390 = vcmp.eq.s32.totalorder %v1145, %v386
      %vm1391 = vcmp.eq.s32.totalorder %v1145, %v387
      %vm1392 = vcmp.eq.s32.totalorder %v1146, %v386
      %vm1393 = vcmp.eq.s32.totalorder %v1146, %v387
      %vm1394 = vcmp.eq.s32.totalorder %v1147, %v386
      %vm1395 = vcmp.eq.s32.totalorder %v1147, %v387
      %vm1396 = vcmp.eq.s32.totalorder %v1148, %v386
      %vm1397 = vcmp.eq.s32.totalorder %v1148, %v387
      %vm1398 = vcmp.eq.s32.totalorder %v1149, %v386
      %vm1399 = vcmp.eq.s32.totalorder %v1149, %v387
      %vm1400 = vcmp.eq.s32.totalorder %v1150, %v386
      %vm1401 = vcmp.eq.s32.totalorder %v1150, %v387
      %vm1402 = vcmp.eq.s32.totalorder %v1151, %v386
      %vm1403 = vcmp.eq.s32.totalorder %v1151, %v387
      %vm1404 = vcmp.eq.s32.totalorder %v1152, %v386
      %vm1405 = vcmp.eq.s32.totalorder %v1152, %v387
      %vm1406 = vcmp.eq.s32.totalorder %v1153, %v386
      %vm1407 = vcmp.eq.s32.totalorder %v1153, %v387
      %vm1408 = vcmp.eq.s32.totalorder %v1154, %v386
      %vm1409 = vcmp.eq.s32.totalorder %v1154, %v387
      %vm1410 = vcmp.eq.s32.totalorder %v1155, %v386
      %vm1411 = vcmp.eq.s32.totalorder %v1155, %v387
      %v1412 = vsel %vm1156, 0.25, 0.0
      %v1413 = vsel %vm1157, 0.25, 0.0
      %v1414 = vsel %vm1158, 0.25, 0.0
      %v1415 = vsel %vm1159, 0.25, 0.0
      %v1416 = vsel %vm1160, 0.25, 0.0
      %v1417 = vsel %vm1161, 0.25, 0.0
      %v1418 = vsel %vm1162, 0.25, 0.0
      %v1419 = vsel %vm1163, 0.25, 0.0
      %v1420 = vsel %vm1164, 0.25, 0.0
      %v1421 = vsel %vm1165, 0.25, 0.0
      %v1422 = vsel %vm1166, 0.25, 0.0
      %v1423 = vsel %vm1167, 0.25, 0.0
      %v1424 = vsel %vm1168, 0.25, 0.0
      %v1425 = vsel %vm1169, 0.25, 0.0
      %v1426 = vsel %vm1170, 0.25, 0.0
      %v1427 = vsel %vm1171, 0.25, 0.0
      %v1428 = vsel %vm1172, 0.25, 0.0
      %v1429 = vsel %vm1173, 0.25, 0.0
      %v1430 = vsel %vm1174, 0.25, 0.0
      %v1431 = vsel %vm1175, 0.25, 0.0
      %v1432 = vsel %vm1176, 0.25, 0.0
      %v1433 = vsel %vm1177, 0.25, 0.0
      %v1434 = vsel %vm1178, 0.25, 0.0
      %v1435 = vsel %vm1179, 0.25, 0.0
      %v1436 = vsel %vm1180, 0.25, 0.0
      %v1437 = vsel %vm1181, 0.25, 0.0
      %v1438 = vsel %vm1182, 0.25, 0.0
      %v1439 = vsel %vm1183, 0.25, 0.0
      %v1440 = vsel %vm1184, 0.25, 0.0
      %v1441 = vsel %vm1185, 0.25, 0.0
      %v1442 = vsel %vm1186, 0.25, 0.0
      %v1443 = vsel %vm1187, 0.25, 0.0
      %v1444 = vsel %vm1188, 0.25, 0.0
      %v1445 = vsel %vm1189, 0.25, 0.0
      %v1446 = vsel %vm1190, 0.25, 0.0
      %v1447 = vsel %vm1191, 0.25, 0.0
      %v1448 = vsel %vm1192, 0.25, 0.0
      %v1449 = vsel %vm1193, 0.25, 0.0
      %v1450 = vsel %vm1194, 0.25, 0.0
      %v1451 = vsel %vm1195, 0.25, 0.0
      %v1452 = vsel %vm1196, 0.25, 0.0
      %v1453 = vsel %vm1197, 0.25, 0.0
      %v1454 = vsel %vm1198, 0.25, 0.0
      %v1455 = vsel %vm1199, 0.25, 0.0
      %v1456 = vsel %vm1200, 0.25, 0.0
      %v1457 = vsel %vm1201, 0.25, 0.0
      %v1458 = vsel %vm1202, 0.25, 0.0
      %v1459 = vsel %vm1203, 0.25, 0.0
      %v1460 = vsel %vm1204, 0.25, 0.0
      %v1461 = vsel %vm1205, 0.25, 0.0
      %v1462 = vsel %vm1206, 0.25, 0.0
      %v1463 = vsel %vm1207, 0.25, 0.0
      %v1464 = vsel %vm1208, 0.25, 0.0
      %v1465 = vsel %vm1209, 0.25, 0.0
      %v1466 = vsel %vm1210, 0.25, 0.0
      %v1467 = vsel %vm1211, 0.25, 0.0
      %v1468 = vsel %vm1212, 0.25, 0.0
      %v1469 = vsel %vm1213, 0.25, 0.0
      %v1470 = vsel %vm1214, 0.25, 0.0
      %v1471 = vsel %vm1215, 0.25, 0.0
      %v1472 = vsel %vm1216, 0.25, 0.0
      %v1473 = vsel %vm1217, 0.25, 0.0
      %v1474 = vsel %vm1218, 0.25, 0.0
      %v1475 = vsel %vm1219, 0.25, 0.0
      %v1476 = vsel %vm1220, 0.25, 0.0
      %v1477 = vsel %vm1221, 0.25, 0.0
      %v1478 = vsel %vm1222, 0.25, 0.0
      %v1479 = vsel %vm1223, 0.25, 0.0
      %v1480 = vsel %vm1224, 0.25, 0.0
      %v1481 = vsel %vm1225, 0.25, 0.0
      %v1482 = vsel %vm1226, 0.25, 0.0
      %v1483 = vsel %vm1227, 0.25, 0.0
      %v1484 = vsel %vm1228, 0.25, 0.0
      %v1485 = vsel %vm1229, 0.25, 0.0
      %v1486 = vsel %vm1230, 0.25, 0.0
      %v1487 = vsel %vm1231, 0.25, 0.0
      %v1488 = vsel %vm1232, 0.25, 0.0
      %v1489 = vsel %vm1233, 0.25, 0.0
      %v1490 = vsel %vm1234, 0.25, 0.0
      %v1491 = vsel %vm1235, 0.25, 0.0
      %v1492 = vsel %vm1236, 0.25, 0.0
      %v1493 = vsel %vm1237, 0.25, 0.0
      %v1494 = vsel %vm1238, 0.25, 0.0
      %v1495 = vsel %vm1239, 0.25, 0.0
      %v1496 = vsel %vm1240, 0.25, 0.0
      %v1497 = vsel %vm1241, 0.25, 0.0
      %v1498 = vsel %vm1242, 0.25, 0.0
      %v1499 = vsel %vm1243, 0.25, 0.0
      %v1500 = vsel %vm1244, 0.25, 0.0
      %v1501 = vsel %vm1245, 0.25, 0.0
      %v1502 = vsel %vm1246, 0.25, 0.0
      %v1503 = vsel %vm1247, 0.25, 0.0
      %v1504 = vsel %vm1248, 0.25, 0.0
      %v1505 = vsel %vm1249, 0.25, 0.0
      %v1506 = vsel %vm1250, 0.25, 0.0
      %v1507 = vsel %vm1251, 0.25, 0.0
      %v1508 = vsel %vm1252, 0.25, 0.0
      %v1509 = vsel %vm1253, 0.25, 0.0
      %v1510 = vsel %vm1254, 0.25, 0.0
      %v1511 = vsel %vm1255, 0.25, 0.0
      %v1512 = vsel %vm1256, 0.25, 0.0
      %v1513 = vsel %vm1257, 0.25, 0.0
      %v1514 = vsel %vm1258, 0.25, 0.0
      %v1515 = vsel %vm1259, 0.25, 0.0
      %v1516 = vsel %vm1260, 0.25, 0.0
      %v1517 = vsel %vm1261, 0.25, 0.0
      %v1518 = vsel %vm1262, 0.25, 0.0
      %v1519 = vsel %vm1263, 0.25, 0.0
      %v1520 = vsel %vm1264, 0.25, 0.0
      %v1521 = vsel %vm1265, 0.25, 0.0
      %v1522 = vsel %vm1266, 0.25, 0.0
      %v1523 = vsel %vm1267, 0.25, 0.0
      %v1524 = vsel %vm1268, 0.25, 0.0
      %v1525 = vsel %vm1269, 0.25, 0.0
      %v1526 = vsel %vm1270, 0.25, 0.0
      %v1527 = vsel %vm1271, 0.25, 0.0
      %v1528 = vsel %vm1272, 0.25, 0.0
      %v1529 = vsel %vm1273, 0.25, 0.0
      %v1530 = vsel %vm1274, 0.25, 0.0
      %v1531 = vsel %vm1275, 0.25, 0.0
      %v1532 = vsel %vm1276, 0.25, 0.0
      %v1533 = vsel %vm1277, 0.25, 0.0
      %v1534 = vsel %vm1278, 0.25, 0.0
      %v1535 = vsel %vm1279, 0.25, 0.0
      %v1536 = vsel %vm1280, 0.25, 0.0
      %v1537 = vsel %vm1281, 0.25, 0.0
      %v1538 = vsel %vm1282, 0.25, 0.0
      %v1539 = vsel %vm1283, 0.25, 0.0
      %v1540 = vsel %vm1284, 0.25, 0.0
      %v1541 = vsel %vm1285, 0.25, 0.0
      %v1542 = vsel %vm1286, 0.25, 0.0
      %v1543 = vsel %vm1287, 0.25, 0.0
      %v1544 = vsel %vm1288, 0.25, 0.0
      %v1545 = vsel %vm1289, 0.25, 0.0
      %v1546 = vsel %vm1290, 0.25, 0.0
      %v1547 = vsel %vm1291, 0.25, 0.0
      %v1548 = vsel %vm1292, 0.25, 0.0
      %v1549 = vsel %vm1293, 0.25, 0.0
      %v1550 = vsel %vm1294, 0.25, 0.0
      %v1551 = vsel %vm1295, 0.25, 0.0
      %v1552 = vsel %vm1296, 0.25, 0.0
      %v1553 = vsel %vm1297, 0.25, 0.0
      %v1554 = vsel %vm1298, 0.25, 0.0
      %v1555 = vsel %vm1299, 0.25, 0.0
      %v1556 = vsel %vm1300, 0.25, 0.0
      %v1557 = vsel %vm1301, 0.25, 0.0
      %v1558 = vsel %vm1302, 0.25, 0.0
      %v1559 = vsel %vm1303, 0.25, 0.0
      %v1560 = vsel %vm1304, 0.25, 0.0
      %v1561 = vsel %vm1305, 0.25, 0.0
      %v1562 = vsel %vm1306, 0.25, 0.0
      %v1563 = vsel %vm1307, 0.25, 0.0
      %v1564 = vsel %vm1308, 0.25, 0.0
      %v1565 = vsel %vm1309, 0.25, 0.0
      %v1566 = vsel %vm1310, 0.25, 0.0
      %v1567 = vsel %vm1311, 0.25, 0.0
      %v1568 = vsel %vm1312, 0.25, 0.0
      %v1569 = vsel %vm1313, 0.25, 0.0
      %v1570 = vsel %vm1314, 0.25, 0.0
      %v1571 = vsel %vm1315, 0.25, 0.0
      %v1572 = vsel %vm1316, 0.25, 0.0
      %v1573 = vsel %vm1317, 0.25, 0.0
      %v1574 = vsel %vm1318, 0.25, 0.0
      %v1575 = vsel %vm1319, 0.25, 0.0
      %v1576 = vsel %vm1320, 0.25, 0.0
      %v1577 = vsel %vm1321, 0.25, 0.0
      %v1578 = vsel %vm1322, 0.25, 0.0
      %v1579 = vsel %vm1323, 0.25, 0.0
      %v1580 = vsel %vm1324, 0.25, 0.0
      %v1581 = vsel %vm1325, 0.25, 0.0
      %v1582 = vsel %vm1326, 0.25, 0.0
      %v1583 = vsel %vm1327, 0.25, 0.0
      %v1584 = vsel %vm1328, 0.25, 0.0
      %v1585 = vsel %vm1329, 0.25, 0.0
      %v1586 = vsel %vm1330, 0.25, 0.0
      %v1587 = vsel %vm1331, 0.25, 0.0
      %v1588 = vsel %vm1332, 0.25, 0.0
      %v1589 = vsel %vm1333, 0.25, 0.0
      %v1590 = vsel %vm1334, 0.25, 0.0
      %v1591 = vsel %vm1335, 0.25, 0.0
      %v1592 = vsel %vm1336, 0.25, 0.0
      %v1593 = vsel %vm1337, 0.25, 0.0
      %v1594 = vsel %vm1338, 0.25, 0.0
      %v1595 = vsel %vm1339, 0.25, 0.0
      %v1596 = vsel %vm1340, 0.25, 0.0
      %v1597 = vsel %vm1341, 0.25, 0.0
      %v1598 = vsel %vm1342, 0.25, 0.0
      %v1599 = vsel %vm1343, 0.25, 0.0
      %v1600 = vsel %vm1344, 0.25, 0.0
      %v1601 = vsel %vm1345, 0.25, 0.0
      %v1602 = vsel %vm1346, 0.25, 0.0
      %v1603 = vsel %vm1347, 0.25, 0.0
      %v1604 = vsel %vm1348, 0.25, 0.0
      %v1605 = vsel %vm1349, 0.25, 0.0
      %v1606 = vsel %vm1350, 0.25, 0.0
      %v1607 = vsel %vm1351, 0.25, 0.0
      %v1608 = vsel %vm1352, 0.25, 0.0
      %v1609 = vsel %vm1353, 0.25, 0.0
      %v1610 = vsel %vm1354, 0.25, 0.0
      %v1611 = vsel %vm1355, 0.25, 0.0
      %v1612 = vsel %vm1356, 0.25, 0.0
      %v1613 = vsel %vm1357, 0.25, 0.0
      %v1614 = vsel %vm1358, 0.25, 0.0
      %v1615 = vsel %vm1359, 0.25, 0.0
      %v1616 = vsel %vm1360, 0.25, 0.0
      %v1617 = vsel %vm1361, 0.25, 0.0
      %v1618 = vsel %vm1362, 0.25, 0.0
      %v1619 = vsel %vm1363, 0.25, 0.0
      %v1620 = vsel %vm1364, 0.25, 0.0
      %v1621 = vsel %vm1365, 0.25, 0.0
      %v1622 = vsel %vm1366, 0.25, 0.0
      %v1623 = vsel %vm1367, 0.25, 0.0
      %v1624 = vsel %vm1368, 0.25, 0.0
      %v1625 = vsel %vm1369, 0.25, 0.0
      %v1626 = vsel %vm1370, 0.25, 0.0
      %v1627 = vsel %vm1371, 0.25, 0.0
      %v1628 = vsel %vm1372, 0.25, 0.0
      %v1629 = vsel %vm1373, 0.25, 0.0
      %v1630 = vsel %vm1374, 0.25, 0.0
      %v1631 = vsel %vm1375, 0.25, 0.0
      %v1632 = vsel %vm1376, 0.25, 0.0
      %v1633 = vsel %vm1377, 0.25, 0.0
      %v1634 = vsel %vm1378, 0.25, 0.0
      %v1635 = vsel %vm1379, 0.25, 0.0
      %v1636 = vsel %vm1380, 0.25, 0.0
      %v1637 = vsel %vm1381, 0.25, 0.0
      %v1638 = vsel %vm1382, 0.25, 0.0
      %v1639 = vsel %vm1383, 0.25, 0.0
      %v1640 = vsel %vm1384, 0.25, 0.0
      %v1641 = vsel %vm1385, 0.25, 0.0
      %v1642 = vsel %vm1386, 0.25, 0.0
      %v1643 = vsel %vm1387, 0.25, 0.0
      %v1644 = vsel %vm1388, 0.25, 0.0
      %v1645 = vsel %vm1389, 0.25, 0.0
      %v1646 = vsel %vm1390, 0.25, 0.0
      %v1647 = vsel %vm1391, 0.25, 0.0
      %v1648 = vsel %vm1392, 0.25, 0.0
      %v1649 = vsel %vm1393, 0.25, 0.0
      %v1650 = vsel %vm1394, 0.25, 0.0
      %v1651 = vsel %vm1395, 0.25, 0.0
      %v1652 = vsel %vm1396, 0.25, 0.0
      %v1653 = vsel %vm1397, 0.25, 0.0
      %v1654 = vsel %vm1398, 0.25, 0.0
      %v1655 = vsel %vm1399, 0.25, 0.0
      %v1656 = vsel %vm1400, 0.25, 0.0
      %v1657 = vsel %vm1401, 0.25, 0.0
      %v1658 = vsel %vm1402, 0.25, 0.0
      %v1659 = vsel %vm1403, 0.25, 0.0
      %v1660 = vsel %vm1404, 0.25, 0.0
      %v1661 = vsel %vm1405, 0.25, 0.0
      %v1662 = vsel %vm1406, 0.25, 0.0
      %v1663 = vsel %vm1407, 0.25, 0.0
      %v1664 = vsel %vm1408, 0.25, 0.0
      %v1665 = vsel %vm1409, 0.25, 0.0
      %v1666 = vsel %vm1410, 0.25, 0.0
      %v1667 = vsel %vm1411, 0.25, 0.0
      %v1672 = vcombine.high %v252, %v252
      %v1673 = vcombine.high %v253, %v253
      %v1674 = vcombine.high %v254, %v254
      %v1675 = vcombine.high %v255, %v255
      %1680 = vmatprep.subr.mxu0 %v1413
      %1681 = vmatpush1.msra.mxu0 %v1412
      %1682 = vmatprep.subr.mxu0 %v1415
      %1683 = vmatpush1.msra.mxu0 %v1414
      %1684 = vmatprep.subr.mxu0 %v1417
      %1685 = vmatpush1.msra.mxu0 %v1416
      %1686 = vmatprep.subr.mxu0 %v1419
      %1687 = vmatpush1.msra.mxu0 %v1418
      %1688 = vmatprep.subr.mxu0 %v1421
      %1689 = vmatpush1.msra.mxu0 %v1420
      %1690 = vmatprep.subr.mxu0 %v1423
      %1691 = vmatpush1.msra.mxu0 %v1422
      %1692 = vmatprep.subr.mxu0 %v1425
      %1693 = vmatpush1.msra.mxu0 %v1424
      %1694 = vmatprep.subr.mxu0 %v1427
      %1695 = vmatpush1.msra.mxu0 %v1426
      %1696 = vmatprep.subr.mxu0 %v1429
      %1697 = vmatpush1.msra.mxu0 %v1428
      %1698 = vmatprep.subr.mxu0 %v1431
      %1699 = vmatpush1.msra.mxu0 %v1430
      %1700 = vmatprep.subr.mxu0 %v1433
      %1701 = vmatpush1.msra.mxu0 %v1432
      %1702 = vmatprep.subr.mxu0 %v1435
      %1703 = vmatpush1.msra.mxu0 %v1434
      %1704 = vmatprep.subr.mxu0 %v1437
      %1705 = vmatpush1.msra.mxu0 %v1436
      %1706 = vmatprep.subr.mxu0 %v1439
      %1707 = vmatpush1.msra.mxu0 %v1438
      %1708 = vmatprep.subr.mxu0 %v1441
      %1709 = vmatpush1.msra.mxu0 %v1440
      %1710 = vmatprep.subr.mxu0 %v1443
      %1711 = vmatpush1.msra.mxu0 %v1442
      %1712 = vmatprep.subr.mxu0 %v1445
      %1713 = vmatpush1.msra.mxu0 %v1444
      %1714 = vmatprep.subr.mxu0 %v1447
      %1715 = vmatpush1.msra.mxu0 %v1446
      %1716 = vmatprep.subr.mxu0 %v1449
      %1717 = vmatpush1.msra.mxu0 %v1448
      %1718 = vmatprep.subr.mxu0 %v1451
      %1719 = vmatpush1.msra.mxu0 %v1450
      %1720 = vmatprep.subr.mxu0 %v1453
      %1721 = vmatpush1.msra.mxu0 %v1452
      %1722 = vmatprep.subr.mxu0 %v1455
      %1723 = vmatpush1.msra.mxu0 %v1454
      %1724 = vmatprep.subr.mxu0 %v1457
      %1725 = vmatpush1.msra.mxu0 %v1456
      %1726 = vmatprep.subr.mxu0 %v1459
      %1727 = vmatpush1.msra.mxu0 %v1458
      %1728 = vmatprep.subr.mxu0 %v1461
      %1729 = vmatpush1.msra.mxu0 %v1460
      %1730 = vmatprep.subr.mxu0 %v1463
      %1731 = vmatpush1.msra.mxu0 %v1462
      %1732 = vmatprep.subr.mxu0 %v1465
      %1733 = vmatpush1.msra.mxu0 %v1464
      %1734 = vmatprep.subr.mxu0 %v1467
      %1735 = vmatpush1.msra.mxu0 %v1466
      %1736 = vmatprep.subr.mxu0 %v1469
      %1737 = vmatpush1.msra.mxu0 %v1468
      %1738 = vmatprep.subr.mxu0 %v1471
      %1739 = vmatpush1.msra.mxu0 %v1470
      %1740 = vmatprep.subr.mxu0 %v1473
      %1741 = vmatpush1.msra.mxu0 %v1472
      %1742 = vmatprep.subr.mxu0 %v1475
      %1743 = vmatpush1.msra.mxu0 %v1474
      %1744 = vmatprep.mubr.f32.mxu0 %v1672
      %1745 = vmatmul.mubr.f32.gmra.mrb[0].mxu0 %v252
      %v1746 = vpop.f32.mrb[0].mxu0
      %v1747 = vadd.f32 0.0, %v1746
      %v1748 = vpop.f32.mrb[0].mxu0
      %v1749 = vadd.f32 0.0, %v1748
      %1750 = vdwg.mxu0
      %1751 = vmatprep.subr.mxu0 %v1477
      %1752 = vmatpush1.msra.mxu0 %v1476
      %1753 = vmatprep.subr.mxu0 %v1479
      %1754 = vmatpush1.msra.mxu0 %v1478
      %1755 = vmatprep.subr.mxu0 %v1481
      %1756 = vmatpush1.msra.mxu0 %v1480
      %1757 = vmatprep.subr.mxu0 %v1483
      %1758 = vmatpush1.msra.mxu0 %v1482
      %1759 = vmatprep.subr.mxu0 %v1485
      %1760 = vmatpush1.msra.mxu0 %v1484
      %1761 = vmatprep.subr.mxu0 %v1487
      %1762 = vmatpush1.msra.mxu0 %v1486
      %1763 = vmatprep.subr.mxu0 %v1489
      %1764 = vmatpush1.msra.mxu0 %v1488
      %1765 = vmatprep.subr.mxu0 %v1491
      %1766 = vmatpush1.msra.mxu0 %v1490
      %1767 = vmatprep.subr.mxu0 %v1493
      %1768 = vmatpush1.msra.mxu0 %v1492
      %1769 = vmatprep.subr.mxu0 %v1495
      %1770 = vmatpush1.msra.mxu0 %v1494
      %1771 = vmatprep.subr.mxu0 %v1497
      %1772 = vmatpush1.msra.mxu0 %v1496
      %1773 = vmatprep.subr.mxu0 %v1499
      %1774 = vmatpush1.msra.mxu0 %v1498
      %1775 = vmatprep.subr.mxu0 %v1501
      %1776 = vmatpush1.msra.mxu0 %v1500
      %1777 = vmatprep.subr.mxu0 %v1503
      %1778 = vmatpush1.msra.mxu0 %v1502
      %1779 = vmatprep.subr.mxu0 %v1505
      %1780 = vmatpush1.msra.mxu0 %v1504
      %1781 = vmatprep.subr.mxu0 %v1507
      %1782 = vmatpush1.msra.mxu0 %v1506
      %1783 = vmatprep.subr.mxu0 %v1509
      %1784 = vmatpush1.msra.mxu0 %v1508
      %1785 = vmatprep.subr.mxu0 %v1511
      %1786 = vmatpush1.msra.mxu0 %v1510
      %1787 = vmatprep.subr.mxu0 %v1513
      %1788 = vmatpush1.msra.mxu0 %v1512
      %1789 = vmatprep.subr.mxu0 %v1515
      %1790 = vmatpush1.msra.mxu0 %v1514
      %1791 = vmatprep.subr.mxu0 %v1517
      %1792 = vmatpush1.msra.mxu0 %v1516
      %1793 = vmatprep.subr.mxu0 %v1519
      %1794 = vmatpush1.msra.mxu0 %v1518
      %1795 = vmatprep.subr.mxu0 %v1521
      %1796 = vmatpush1.msra.mxu0 %v1520
      %1797 = vmatprep.subr.mxu0 %v1523
      %1798 = vmatpush1.msra.mxu0 %v1522
      %1799 = vmatprep.subr.mxu0 %v1525
      %1800 = vmatpush1.msra.mxu0 %v1524
      %1801 = vmatprep.subr.mxu0 %v1527
      %1802 = vmatpush1.msra.mxu0 %v1526
      %1803 = vmatprep.subr.mxu0 %v1529
      %1804 = vmatpush1.msra.mxu0 %v1528
      %1805 = vmatprep.subr.mxu0 %v1531
      %1806 = vmatpush1.msra.mxu0 %v1530
      %1807 = vmatprep.subr.mxu0 %v1533
      %1808 = vmatpush1.msra.mxu0 %v1532
      %1809 = vmatprep.subr.mxu0 %v1535
      %1810 = vmatpush1.msra.mxu0 %v1534
      %1811 = vmatprep.subr.mxu0 %v1537
      %1812 = vmatpush1.msra.mxu0 %v1536
      %1813 = vmatprep.subr.mxu0 %v1539
      %1814 = vmatpush1.msra.mxu0 %v1538
      %1815 = vmatprep.mubr.f32.mxu0 %v1673
      %1816 = vmatmul.mubr.f32.gmra.mrb[0].mxu0 %v253
      %v1817 = vpop.f32.mrb[0].mxu0
      %v1818 = vadd.f32 %v1747, %v1817
      %v1819 = vpop.f32.mrb[0].mxu0
      %v1820 = vadd.f32 %v1749, %v1819
      %1821 = vdwg.mxu0
      %1822 = vmatprep.subr.mxu0 %v1541
      %1823 = vmatpush1.msra.mxu0 %v1540
      %1824 = vmatprep.subr.mxu0 %v1543
      %1825 = vmatpush1.msra.mxu0 %v1542
      %1826 = vmatprep.subr.mxu0 %v1545
      %1827 = vmatpush1.msra.mxu0 %v1544
      %1828 = vmatprep.subr.mxu0 %v1547
      %1829 = vmatpush1.msra.mxu0 %v1546
      %1830 = vmatprep.subr.mxu0 %v1549
      %1831 = vmatpush1.msra.mxu0 %v1548
      %1832 = vmatprep.subr.mxu0 %v1551
      %1833 = vmatpush1.msra.mxu0 %v1550
      %1834 = vmatprep.subr.mxu0 %v1553
      %1835 = vmatpush1.msra.mxu0 %v1552
      %1836 = vmatprep.subr.mxu0 %v1555
      %1837 = vmatpush1.msra.mxu0 %v1554
      %1838 = vmatprep.subr.mxu0 %v1557
      %1839 = vmatpush1.msra.mxu0 %v1556
      %1840 = vmatprep.subr.mxu0 %v1559
      %1841 = vmatpush1.msra.mxu0 %v1558
      %1842 = vmatprep.subr.mxu0 %v1561
      %1843 = vmatpush1.msra.mxu0 %v1560
      %1844 = vmatprep.subr.mxu0 %v1563
      %1845 = vmatpush1.msra.mxu0 %v1562
      %1846 = vmatprep.subr.mxu0 %v1565
      %1847 = vmatpush1.msra.mxu0 %v1564
      %1848 = vmatprep.subr.mxu0 %v1567
      %1849 = vmatpush1.msra.mxu0 %v1566
      %1850 = vmatprep.subr.mxu0 %v1569
      %1851 = vmatpush1.msra.mxu0 %v1568
      %1852 = vmatprep.subr.mxu0 %v1571
      %1853 = vmatpush1.msra.mxu0 %v1570
      %1854 = vmatprep.subr.mxu0 %v1573
      %1855 = vmatpush1.msra.mxu0 %v1572
      %1856 = vmatprep.subr.mxu0 %v1575
      %1857 = vmatpush1.msra.mxu0 %v1574
      %1858 = vmatprep.subr.mxu0 %v1577
      %1859 = vmatpush1.msra.mxu0 %v1576
      %1860 = vmatprep.subr.mxu0 %v1579
      %1861 = vmatpush1.msra.mxu0 %v1578
      %1862 = vmatprep.subr.mxu0 %v1581
      %1863 = vmatpush1.msra.mxu0 %v1580
      %1864 = vmatprep.subr.mxu0 %v1583
      %1865 = vmatpush1.msra.mxu0 %v1582
      %1866 = vmatprep.subr.mxu0 %v1585
      %1867 = vmatpush1.msra.mxu0 %v1584
      %1868 = vmatprep.subr.mxu0 %v1587
      %1869 = vmatpush1.msra.mxu0 %v1586
      %1870 = vmatprep.subr.mxu0 %v1589
      %1871 = vmatpush1.msra.mxu0 %v1588
      %1872 = vmatprep.subr.mxu0 %v1591
      %1873 = vmatpush1.msra.mxu0 %v1590
      %1874 = vmatprep.subr.mxu0 %v1593
      %1875 = vmatpush1.msra.mxu0 %v1592
      %1876 = vmatprep.subr.mxu0 %v1595
      %1877 = vmatpush1.msra.mxu0 %v1594
      %1878 = vmatprep.subr.mxu0 %v1597
      %1879 = vmatpush1.msra.mxu0 %v1596
      %1880 = vmatprep.subr.mxu0 %v1599
      %1881 = vmatpush1.msra.mxu0 %v1598
      %1882 = vmatprep.subr.mxu0 %v1601
      %1883 = vmatpush1.msra.mxu0 %v1600
      %1884 = vmatprep.subr.mxu0 %v1603
      %1885 = vmatpush1.msra.mxu0 %v1602
      %1886 = vmatprep.mubr.f32.mxu0 %v1674
      %1887 = vmatmul.mubr.f32.gmra.mrb[0].mxu0 %v254
      %v1888 = vpop.f32.mrb[0].mxu0
      %v1889 = vadd.f32 %v1818, %v1888
      %v1890 = vpop.f32.mrb[0].mxu0
      %v1891 = vadd.f32 %v1820, %v1890
      %1892 = vdwg.mxu0
      %1893 = vmatprep.subr.mxu0 %v1605
      %1894 = vmatpush1.msra.mxu0 %v1604
      %1895 = vmatprep.subr.mxu0 %v1607
      %1896 = vmatpush1.msra.mxu0 %v1606
      %1897 = vmatprep.subr.mxu0 %v1609
      %1898 = vmatpush1.msra.mxu0 %v1608
      %1899 = vmatprep.subr.mxu0 %v1611
      %1900 = vmatpush1.msra.mxu0 %v1610
      %1901 = vmatprep.subr.mxu0 %v1613
      %1902 = vmatpush1.msra.mxu0 %v1612
      %1903 = vmatprep.subr.mxu0 %v1615
      %1904 = vmatpush1.msra.mxu0 %v1614
      %1905 = vmatprep.subr.mxu0 %v1617
      %1906 = vmatpush1.msra.mxu0 %v1616
      %1907 = vmatprep.subr.mxu0 %v1619
      %1908 = vmatpush1.msra.mxu0 %v1618
      %1909 = vmatprep.subr.mxu0 %v1621
      %1910 = vmatpush1.msra.mxu0 %v1620
      %1911 = vmatprep.subr.mxu0 %v1623
      %1912 = vmatpush1.msra.mxu0 %v1622
      %1913 = vmatprep.subr.mxu0 %v1625
      %1914 = vmatpush1.msra.mxu0 %v1624
      %1915 = vmatprep.subr.mxu0 %v1627
      %1916 = vmatpush1.msra.mxu0 %v1626
      %1917 = vmatprep.subr.mxu0 %v1629
      %1918 = vmatpush1.msra.mxu0 %v1628
      %1919 = vmatprep.subr.mxu0 %v1631
      %1920 = vmatpush1.msra.mxu0 %v1630
      %1921 = vmatprep.subr.mxu0 %v1633
      %1922 = vmatpush1.msra.mxu0 %v1632
      %1923 = vmatprep.subr.mxu0 %v1635
      %1924 = vmatpush1.msra.mxu0 %v1634
      %1925 = vmatprep.subr.mxu0 %v1637
      %1926 = vmatpush1.msra.mxu0 %v1636
      %1927 = vmatprep.subr.mxu0 %v1639
      %1928 = vmatpush1.msra.mxu0 %v1638
      %1929 = vmatprep.subr.mxu0 %v1641
      %1930 = vmatpush1.msra.mxu0 %v1640
      %1931 = vmatprep.subr.mxu0 %v1643
      %1932 = vmatpush1.msra.mxu0 %v1642
      %1933 = vmatprep.subr.mxu0 %v1645
      %1934 = vmatpush1.msra.mxu0 %v1644
      %1935 = vmatprep.subr.mxu0 %v1647
      %1936 = vmatpush1.msra.mxu0 %v1646
      %1937 = vmatprep.subr.mxu0 %v1649
      %1938 = vmatpush1.msra.mxu0 %v1648
      %1939 = vmatprep.subr.mxu0 %v1651
      %1940 = vmatpush1.msra.mxu0 %v1650
      %1941 = vmatprep.subr.mxu0 %v1653
      %1942 = vmatpush1.msra.mxu0 %v1652
      %1943 = vmatprep.subr.mxu0 %v1655
      %1944 = vmatpush1.msra.mxu0 %v1654
      %1945 = vmatprep.subr.mxu0 %v1657
      %1946 = vmatpush1.msra.mxu0 %v1656
      %1947 = vmatprep.subr.mxu0 %v1659
      %1948 = vmatpush1.msra.mxu0 %v1658
      %1949 = vmatprep.subr.mxu0 %v1661
      %1950 = vmatpush1.msra.mxu0 %v1660
      %1951 = vmatprep.subr.mxu0 %v1663
      %1952 = vmatpush1.msra.mxu0 %v1662
      %1953 = vmatprep.subr.mxu0 %v1665
      %1954 = vmatpush1.msra.mxu0 %v1664
      %1955 = vmatprep.subr.mxu0 %v1667
      %1956 = vmatpush1.msra.mxu0 %v1666
      %1957 = vmatprep.mubr.f32.mxu0 %v1675
      %1958 = vmatmul.mubr.f32.gmra.mrb[0].mxu0 %v255
      %v1959 = vpop.f32.mrb[0].mxu0
      %v1960 = vadd.f32 %v1889, %v1959
      %v1961 = vpop.f32.mrb[0].mxu0
      %v1962 = vadd.f32 %v1891, %v1961
      %1963 = vdwg.mxu0
      %v1964 = vadd.s32 %v386, 256
      %v1965 = vadd.s32 %v386, 384
      %v1966 = vadd.s32 %v386, 512
      %v1967 = vadd.s32 %v386, 640
      %v1968 = vadd.s32 %v386, 768
      %v1969 = vadd.s32 %v386, 896
      %v1970 = vshra.s32 %v386, 5
      %v1971 = vshra.s32 %v387, 5
      %v1972 = vshra.s32 %v1964, 5
      %v1973 = vshra.s32 %v1965, 5
      %v1974 = vshra.s32 %v1966, 5
      %v1975 = vshra.s32 %v1967, 5
      %v1976 = vshra.s32 %v1968, 5
      %v1977 = vshra.s32 %v1969, 5
      %v1978 = vand.u32 %v386, 31
      %v1979 = vand.u32 %v387, 31
      %v1980 = vand.u32 %v1964, 31
      %v1981 = vand.u32 %v1965, 31
      %v1982 = vand.u32 %v1966, 31
      %v1983 = vand.u32 %v1967, 31
      %v1984 = vand.u32 %v1968, 31
      %v1985 = vand.u32 %v1969, 31
      %v1986 = vshra.s32 %v1970, 1
      %v1987 = vshra.s32 %v1971, 1
      %v1988 = vshra.s32 %v1972, 1
      %v1989 = vshra.s32 %v1973, 1
      %v1990 = vshra.s32 %v1974, 1
      %v1991 = vshra.s32 %v1975, 1
      %v1992 = vshra.s32 %v1976, 1
      %v1993 = vshra.s32 %v1977, 1
      %v1994 = vshll.u32 %v1986, 4
      %v1995 = vshll.u32 %v1987, 4
      %v1996 = vshll.u32 %v1988, 4
      %v1997 = vshll.u32 %v1989, 4
      %v1998 = vshll.u32 %v1990, 4
      %v1999 = vshll.u32 %v1991, 4
      %v2000 = vshll.u32 %v1992, 4
      %v2001 = vshll.u32 %v1993, 4
      %v2002 = vshra.s32 %v1978, 1
      %v2003 = vshra.s32 %v1979, 1
      %v2004 = vshra.s32 %v1980, 1
      %v2005 = vshra.s32 %v1981, 1
      %v2006 = vshra.s32 %v1982, 1
      %v2007 = vshra.s32 %v1983, 1
      %v2008 = vshra.s32 %v1984, 1
      %v2009 = vshra.s32 %v1985, 1
      %v2010 = vadd.s32 %v1994, %v2002
      %v2011 = vadd.s32 %v1995, %v2003
      %v2012 = vadd.s32 %v1996, %v2004
      %v2013 = vadd.s32 %v1997, %v2005
      %v2014 = vadd.s32 %v1998, %v2006
      %v2015 = vadd.s32 %v1999, %v2007
      %v2016 = vadd.s32 %v2000, %v2008
      %v2017 = vadd.s32 %v2001, %v2009
      %vm2018 = vcmp.eq.s32.totalorder %v2010, %v257
      %vm2019 = vcmp.eq.s32.totalorder %v2011, %v257
      %vm2020 = vcmp.eq.s32.totalorder %v2012, %v257
      %vm2021 = vcmp.eq.s32.totalorder %v2013, %v257
      %vm2022 = vcmp.eq.s32.totalorder %v2014, %v257
      %vm2023 = vcmp.eq.s32.totalorder %v2015, %v257
      %vm2024 = vcmp.eq.s32.totalorder %v2016, %v257
      %vm2025 = vcmp.eq.s32.totalorder %v2017, %v257
      %vm2026 = vcmp.eq.s32.totalorder %v2010, %v258
      %vm2027 = vcmp.eq.s32.totalorder %v2011, %v258
      %vm2028 = vcmp.eq.s32.totalorder %v2012, %v258
      %vm2029 = vcmp.eq.s32.totalorder %v2013, %v258
      %vm2030 = vcmp.eq.s32.totalorder %v2014, %v258
      %vm2031 = vcmp.eq.s32.totalorder %v2015, %v258
      %vm2032 = vcmp.eq.s32.totalorder %v2016, %v258
      %vm2033 = vcmp.eq.s32.totalorder %v2017, %v258
      %vm2034 = vcmp.eq.s32.totalorder %v2010, %v259
      %vm2035 = vcmp.eq.s32.totalorder %v2011, %v259
      %vm2036 = vcmp.eq.s32.totalorder %v2012, %v259
      %vm2037 = vcmp.eq.s32.totalorder %v2013, %v259
      %vm2038 = vcmp.eq.s32.totalorder %v2014, %v259
      %vm2039 = vcmp.eq.s32.totalorder %v2015, %v259
      %vm2040 = vcmp.eq.s32.totalorder %v2016, %v259
      %vm2041 = vcmp.eq.s32.totalorder %v2017, %v259
      %vm2042 = vcmp.eq.s32.totalorder %v2010, %v260
      %vm2043 = vcmp.eq.s32.totalorder %v2011, %v260
      %vm2044 = vcmp.eq.s32.totalorder %v2012, %v260
      %vm2045 = vcmp.eq.s32.totalorder %v2013, %v260
      %vm2046 = vcmp.eq.s32.totalorder %v2014, %v260
      %vm2047 = vcmp.eq.s32.totalorder %v2015, %v260
      %vm2048 = vcmp.eq.s32.totalorder %v2016, %v260
      %vm2049 = vcmp.eq.s32.totalorder %v2017, %v260
      %vm2050 = vcmp.eq.s32.totalorder %v2010, %v261
      %vm2051 = vcmp.eq.s32.totalorder %v2011, %v261
      %vm2052 = vcmp.eq.s32.totalorder %v2012, %v261
      %vm2053 = vcmp.eq.s32.totalorder %v2013, %v261
      %vm2054 = vcmp.eq.s32.totalorder %v2014, %v261
      %vm2055 = vcmp.eq.s32.totalorder %v2015, %v261
      %vm2056 = vcmp.eq.s32.totalorder %v2016, %v261
      %vm2057 = vcmp.eq.s32.totalorder %v2017, %v261
      %vm2058 = vcmp.eq.s32.totalorder %v2010, %v262
      %vm2059 = vcmp.eq.s32.totalorder %v2011, %v262
      %vm2060 = vcmp.eq.s32.totalorder %v2012, %v262
      %vm2061 = vcmp.eq.s32.totalorder %v2013, %v262
      %vm2062 = vcmp.eq.s32.totalorder %v2014, %v262
      %vm2063 = vcmp.eq.s32.totalorder %v2015, %v262
      %vm2064 = vcmp.eq.s32.totalorder %v2016, %v262
      %vm2065 = vcmp.eq.s32.totalorder %v2017, %v262
      %vm2066 = vcmp.eq.s32.totalorder %v2010, %v263
      %vm2067 = vcmp.eq.s32.totalorder %v2011, %v263
      %vm2068 = vcmp.eq.s32.totalorder %v2012, %v263
      %vm2069 = vcmp.eq.s32.totalorder %v2013, %v263
      %vm2070 = vcmp.eq.s32.totalorder %v2014, %v263
      %vm2071 = vcmp.eq.s32.totalorder %v2015, %v263
      %vm2072 = vcmp.eq.s32.totalorder %v2016, %v263
      %vm2073 = vcmp.eq.s32.totalorder %v2017, %v263
      %vm2074 = vcmp.eq.s32.totalorder %v2010, %v264
      %vm2075 = vcmp.eq.s32.totalorder %v2011, %v264
      %vm2076 = vcmp.eq.s32.totalorder %v2012, %v264
      %vm2077 = vcmp.eq.s32.totalorder %v2013, %v264
      %vm2078 = vcmp.eq.s32.totalorder %v2014, %v264
      %vm2079 = vcmp.eq.s32.totalorder %v2015, %v264
      %vm2080 = vcmp.eq.s32.totalorder %v2016, %v264
      %vm2081 = vcmp.eq.s32.totalorder %v2017, %v264
      %vm2082 = vcmp.eq.s32.totalorder %v2010, %v265
      %vm2083 = vcmp.eq.s32.totalorder %v2011, %v265
      %vm2084 = vcmp.eq.s32.totalorder %v2012, %v265
      %vm2085 = vcmp.eq.s32.totalorder %v2013, %v265
      %vm2086 = vcmp.eq.s32.totalorder %v2014, %v265
      %vm2087 = vcmp.eq.s32.totalorder %v2015, %v265
      %vm2088 = vcmp.eq.s32.totalorder %v2016, %v265
      %vm2089 = vcmp.eq.s32.totalorder %v2017, %v265
      %vm2090 = vcmp.eq.s32.totalorder %v2010, %v266
      %vm2091 = vcmp.eq.s32.totalorder %v2011, %v266
      %vm2092 = vcmp.eq.s32.totalorder %v2012, %v266
      %vm2093 = vcmp.eq.s32.totalorder %v2013, %v266
      %vm2094 = vcmp.eq.s32.totalorder %v2014, %v266
      %vm2095 = vcmp.eq.s32.totalorder %v2015, %v266
      %vm2096 = vcmp.eq.s32.totalorder %v2016, %v266
      %vm2097 = vcmp.eq.s32.totalorder %v2017, %v266
      %vm2098 = vcmp.eq.s32.totalorder %v2010, %v267
      %vm2099 = vcmp.eq.s32.totalorder %v2011, %v267
      %vm2100 = vcmp.eq.s32.totalorder %v2012, %v267
      %vm2101 = vcmp.eq.s32.totalorder %v2013, %v267
      %vm2102 = vcmp.eq.s32.totalorder %v2014, %v267
      %vm2103 = vcmp.eq.s32.totalorder %v2015, %v267
      %vm2104 = vcmp.eq.s32.totalorder %v2016, %v267
      %vm2105 = vcmp.eq.s32.totalorder %v2017, %v267
      %vm2106 = vcmp.eq.s32.totalorder %v2010, %v268
      %vm2107 = vcmp.eq.s32.totalorder %v2011, %v268
      %vm2108 = vcmp.eq.s32.totalorder %v2012, %v268
      %vm2109 = vcmp.eq.s32.totalorder %v2013, %v268
      %vm2110 = vcmp.eq.s32.totalorder %v2014, %v268
      %vm2111 = vcmp.eq.s32.totalorder %v2015, %v268
      %vm2112 = vcmp.eq.s32.totalorder %v2016, %v268
      %vm2113 = vcmp.eq.s32.totalorder %v2017, %v268
      %vm2114 = vcmp.eq.s32.totalorder %v2010, %v269
      %vm2115 = vcmp.eq.s32.totalorder %v2011, %v269
      %vm2116 = vcmp.eq.s32.totalorder %v2012, %v269
      %vm2117 = vcmp.eq.s32.totalorder %v2013, %v269
      %vm2118 = vcmp.eq.s32.totalorder %v2014, %v269
      %vm2119 = vcmp.eq.s32.totalorder %v2015, %v269
      %vm2120 = vcmp.eq.s32.totalorder %v2016, %v269
      %vm2121 = vcmp.eq.s32.totalorder %v2017, %v269
      %vm2122 = vcmp.eq.s32.totalorder %v2010, %v270
      %vm2123 = vcmp.eq.s32.totalorder %v2011, %v270
      %vm2124 = vcmp.eq.s32.totalorder %v2012, %v270
      %vm2125 = vcmp.eq.s32.totalorder %v2013, %v270
      %vm2126 = vcmp.eq.s32.totalorder %v2014, %v270
      %vm2127 = vcmp.eq.s32.totalorder %v2015, %v270
      %vm2128 = vcmp.eq.s32.totalorder %v2016, %v270
      %vm2129 = vcmp.eq.s32.totalorder %v2017, %v270
      %vm2130 = vcmp.eq.s32.totalorder %v2010, %v271
      %vm2131 = vcmp.eq.s32.totalorder %v2011, %v271
      %vm2132 = vcmp.eq.s32.totalorder %v2012, %v271
      %vm2133 = vcmp.eq.s32.totalorder %v2013, %v271
      %vm2134 = vcmp.eq.s32.totalorder %v2014, %v271
      %vm2135 = vcmp.eq.s32.totalorder %v2015, %v271
      %vm2136 = vcmp.eq.s32.totalorder %v2016, %v271
      %vm2137 = vcmp.eq.s32.totalorder %v2017, %v271
      %vm2138 = vcmp.eq.s32.totalorder %v2010, %v272
      %vm2139 = vcmp.eq.s32.totalorder %v2011, %v272
      %vm2140 = vcmp.eq.s32.totalorder %v2012, %v272
      %vm2141 = vcmp.eq.s32.totalorder %v2013, %v272
      %vm2142 = vcmp.eq.s32.totalorder %v2014, %v272
      %vm2143 = vcmp.eq.s32.totalorder %v2015, %v272
      %vm2144 = vcmp.eq.s32.totalorder %v2016, %v272
      %vm2145 = vcmp.eq.s32.totalorder %v2017, %v272
      %vm2146 = vcmp.eq.s32.totalorder %v2010, %v273
      %vm2147 = vcmp.eq.s32.totalorder %v2011, %v273
      %vm2148 = vcmp.eq.s32.totalorder %v2012, %v273
      %vm2149 = vcmp.eq.s32.totalorder %v2013, %v273
      %vm2150 = vcmp.eq.s32.totalorder %v2014, %v273
      %vm2151 = vcmp.eq.s32.totalorder %v2015, %v273
      %vm2152 = vcmp.eq.s32.totalorder %v2016, %v273
      %vm2153 = vcmp.eq.s32.totalorder %v2017, %v273
      %vm2154 = vcmp.eq.s32.totalorder %v2010, %v274
      %vm2155 = vcmp.eq.s32.totalorder %v2011, %v274
      %vm2156 = vcmp.eq.s32.totalorder %v2012, %v274
      %vm2157 = vcmp.eq.s32.totalorder %v2013, %v274
      %vm2158 = vcmp.eq.s32.totalorder %v2014, %v274
      %vm2159 = vcmp.eq.s32.totalorder %v2015, %v274
      %vm2160 = vcmp.eq.s32.totalorder %v2016, %v274
      %vm2161 = vcmp.eq.s32.totalorder %v2017, %v274
      %vm2162 = vcmp.eq.s32.totalorder %v2010, %v275
      %vm2163 = vcmp.eq.s32.totalorder %v2011, %v275
      %vm2164 = vcmp.eq.s32.totalorder %v2012, %v275
      %vm2165 = vcmp.eq.s32.totalorder %v2013, %v275
      %vm2166 = vcmp.eq.s32.totalorder %v2014, %v275
      %vm2167 = vcmp.eq.s32.totalorder %v2015, %v275
      %vm2168 = vcmp.eq.s32.totalorder %v2016, %v275
      %vm2169 = vcmp.eq.s32.totalorder %v2017, %v275
      %vm2170 = vcmp.eq.s32.totalorder %v2010, %v276
      %vm2171 = vcmp.eq.s32.totalorder %v2011, %v276
      %vm2172 = vcmp.eq.s32.totalorder %v2012, %v276
      %vm2173 = vcmp.eq.s32.totalorder %v2013, %v276
      %vm2174 = vcmp.eq.s32.totalorder %v2014, %v276
      %vm2175 = vcmp.eq.s32.totalorder %v2015, %v276
      %vm2176 = vcmp.eq.s32.totalorder %v2016, %v276
      %vm2177 = vcmp.eq.s32.totalorder %v2017, %v276
      %vm2178 = vcmp.eq.s32.totalorder %v2010, %v277
      %vm2179 = vcmp.eq.s32.totalorder %v2011, %v277
      %vm2180 = vcmp.eq.s32.totalorder %v2012, %v277
      %vm2181 = vcmp.eq.s32.totalorder %v2013, %v277
      %vm2182 = vcmp.eq.s32.totalorder %v2014, %v277
      %vm2183 = vcmp.eq.s32.totalorder %v2015, %v277
      %vm2184 = vcmp.eq.s32.totalorder %v2016, %v277
      %vm2185 = vcmp.eq.s32.totalorder %v2017, %v277
      %vm2186 = vcmp.eq.s32.totalorder %v2010, %v278
      %vm2187 = vcmp.eq.s32.totalorder %v2011, %v278
      %vm2188 = vcmp.eq.s32.totalorder %v2012, %v278
      %vm2189 = vcmp.eq.s32.totalorder %v2013, %v278
      %vm2190 = vcmp.eq.s32.totalorder %v2014, %v278
      %vm2191 = vcmp.eq.s32.totalorder %v2015, %v278
      %vm2192 = vcmp.eq.s32.totalorder %v2016, %v278
      %vm2193 = vcmp.eq.s32.totalorder %v2017, %v278
      %vm2194 = vcmp.eq.s32.totalorder %v2010, %v279
      %vm2195 = vcmp.eq.s32.totalorder %v2011, %v279
      %vm2196 = vcmp.eq.s32.totalorder %v2012, %v279
      %vm2197 = vcmp.eq.s32.totalorder %v2013, %v279
      %vm2198 = vcmp.eq.s32.totalorder %v2014, %v279
      %vm2199 = vcmp.eq.s32.totalorder %v2015, %v279
      %vm2200 = vcmp.eq.s32.totalorder %v2016, %v279
      %vm2201 = vcmp.eq.s32.totalorder %v2017, %v279
      %vm2202 = vcmp.eq.s32.totalorder %v2010, %v280
      %vm2203 = vcmp.eq.s32.totalorder %v2011, %v280
      %vm2204 = vcmp.eq.s32.totalorder %v2012, %v280
      %vm2205 = vcmp.eq.s32.totalorder %v2013, %v280
      %vm2206 = vcmp.eq.s32.totalorder %v2014, %v280
      %vm2207 = vcmp.eq.s32.totalorder %v2015, %v280
      %vm2208 = vcmp.eq.s32.totalorder %v2016, %v280
      %vm2209 = vcmp.eq.s32.totalorder %v2017, %v280
      %vm2210 = vcmp.eq.s32.totalorder %v2010, %v281
      %vm2211 = vcmp.eq.s32.totalorder %v2011, %v281
      %vm2212 = vcmp.eq.s32.totalorder %v2012, %v281
      %vm2213 = vcmp.eq.s32.totalorder %v2013, %v281
      %vm2214 = vcmp.eq.s32.totalorder %v2014, %v281
      %vm2215 = vcmp.eq.s32.totalorder %v2015, %v281
      %vm2216 = vcmp.eq.s32.totalorder %v2016, %v281
      %vm2217 = vcmp.eq.s32.totalorder %v2017, %v281
      %vm2218 = vcmp.eq.s32.totalorder %v2010, %v282
      %vm2219 = vcmp.eq.s32.totalorder %v2011, %v282
      %vm2220 = vcmp.eq.s32.totalorder %v2012, %v282
      %vm2221 = vcmp.eq.s32.totalorder %v2013, %v282
      %vm2222 = vcmp.eq.s32.totalorder %v2014, %v282
      %vm2223 = vcmp.eq.s32.totalorder %v2015, %v282
      %vm2224 = vcmp.eq.s32.totalorder %v2016, %v282
      %vm2225 = vcmp.eq.s32.totalorder %v2017, %v282
      %vm2226 = vcmp.eq.s32.totalorder %v2010, %v283
      %vm2227 = vcmp.eq.s32.totalorder %v2011, %v283
      %vm2228 = vcmp.eq.s32.totalorder %v2012, %v283
      %vm2229 = vcmp.eq.s32.totalorder %v2013, %v283
      %vm2230 = vcmp.eq.s32.totalorder %v2014, %v283
      %vm2231 = vcmp.eq.s32.totalorder %v2015, %v283
      %vm2232 = vcmp.eq.s32.totalorder %v2016, %v283
      %vm2233 = vcmp.eq.s32.totalorder %v2017, %v283
      %vm2234 = vcmp.eq.s32.totalorder %v2010, %v284
      %vm2235 = vcmp.eq.s32.totalorder %v2011, %v284
      %vm2236 = vcmp.eq.s32.totalorder %v2012, %v284
      %vm2237 = vcmp.eq.s32.totalorder %v2013, %v284
      %vm2238 = vcmp.eq.s32.totalorder %v2014, %v284
      %vm2239 = vcmp.eq.s32.totalorder %v2015, %v284
      %vm2240 = vcmp.eq.s32.totalorder %v2016, %v284
      %vm2241 = vcmp.eq.s32.totalorder %v2017, %v284
      %vm2242 = vcmp.eq.s32.totalorder %v2010, %v285
      %vm2243 = vcmp.eq.s32.totalorder %v2011, %v285
      %vm2244 = vcmp.eq.s32.totalorder %v2012, %v285
      %vm2245 = vcmp.eq.s32.totalorder %v2013, %v285
      %vm2246 = vcmp.eq.s32.totalorder %v2014, %v285
      %vm2247 = vcmp.eq.s32.totalorder %v2015, %v285
      %vm2248 = vcmp.eq.s32.totalorder %v2016, %v285
      %vm2249 = vcmp.eq.s32.totalorder %v2017, %v285
      %vm2250 = vcmp.eq.s32.totalorder %v2010, %v286
      %vm2251 = vcmp.eq.s32.totalorder %v2011, %v286
      %vm2252 = vcmp.eq.s32.totalorder %v2012, %v286
      %vm2253 = vcmp.eq.s32.totalorder %v2013, %v286
      %vm2254 = vcmp.eq.s32.totalorder %v2014, %v286
      %vm2255 = vcmp.eq.s32.totalorder %v2015, %v286
      %vm2256 = vcmp.eq.s32.totalorder %v2016, %v286
      %vm2257 = vcmp.eq.s32.totalorder %v2017, %v286
      %vm2258 = vcmp.eq.s32.totalorder %v2010, %v287
      %vm2259 = vcmp.eq.s32.totalorder %v2011, %v287
      %vm2260 = vcmp.eq.s32.totalorder %v2012, %v287
      %vm2261 = vcmp.eq.s32.totalorder %v2013, %v287
      %vm2262 = vcmp.eq.s32.totalorder %v2014, %v287
      %vm2263 = vcmp.eq.s32.totalorder %v2015, %v287
      %vm2264 = vcmp.eq.s32.totalorder %v2016, %v287
      %vm2265 = vcmp.eq.s32.totalorder %v2017, %v287
      %vm2266 = vcmp.eq.s32.totalorder %v2010, %v288
      %vm2267 = vcmp.eq.s32.totalorder %v2011, %v288
      %vm2268 = vcmp.eq.s32.totalorder %v2012, %v288
      %vm2269 = vcmp.eq.s32.totalorder %v2013, %v288
      %vm2270 = vcmp.eq.s32.totalorder %v2014, %v288
      %vm2271 = vcmp.eq.s32.totalorder %v2015, %v288
      %vm2272 = vcmp.eq.s32.totalorder %v2016, %v288
      %vm2273 = vcmp.eq.s32.totalorder %v2017, %v288
      %v2274 = vsel %vm2018, 1.0, 0.0
      %v2275 = vsel %vm2019, 1.0, 0.0
      %v2276 = vsel %vm2020, 1.0, 0.0
      %v2277 = vsel %vm2021, 1.0, 0.0
      %v2278 = vsel %vm2022, 1.0, 0.0
      %v2279 = vsel %vm2023, 1.0, 0.0
      %v2280 = vsel %vm2024, 1.0, 0.0
      %v2281 = vsel %vm2025, 1.0, 0.0
      %v2282 = vsel %vm2026, 1.0, 0.0
      %v2283 = vsel %vm2027, 1.0, 0.0
      %v2284 = vsel %vm2028, 1.0, 0.0
      %v2285 = vsel %vm2029, 1.0, 0.0
      %v2286 = vsel %vm2030, 1.0, 0.0
      %v2287 = vsel %vm2031, 1.0, 0.0
      %v2288 = vsel %vm2032, 1.0, 0.0
      %v2289 = vsel %vm2033, 1.0, 0.0
      %v2290 = vsel %vm2034, 1.0, 0.0
      %v2291 = vsel %vm2035, 1.0, 0.0
      %v2292 = vsel %vm2036, 1.0, 0.0
      %v2293 = vsel %vm2037, 1.0, 0.0
      %v2294 = vsel %vm2038, 1.0, 0.0
      %v2295 = vsel %vm2039, 1.0, 0.0
      %v2296 = vsel %vm2040, 1.0, 0.0
      %v2297 = vsel %vm2041, 1.0, 0.0
      %v2298 = vsel %vm2042, 1.0, 0.0
      %v2299 = vsel %vm2043, 1.0, 0.0
      %v2300 = vsel %vm2044, 1.0, 0.0
      %v2301 = vsel %vm2045, 1.0, 0.0
      %v2302 = vsel %vm2046, 1.0, 0.0
      %v2303 = vsel %vm2047, 1.0, 0.0
      %v2304 = vsel %vm2048, 1.0, 0.0
      %v2305 = vsel %vm2049, 1.0, 0.0
      %v2306 = vsel %vm2050, 1.0, 0.0
      %v2307 = vsel %vm2051, 1.0, 0.0
      %v2308 = vsel %vm2052, 1.0, 0.0
      %v2309 = vsel %vm2053, 1.0, 0.0
      %v2310 = vsel %vm2054, 1.0, 0.0
      %v2311 = vsel %vm2055, 1.0, 0.0
      %v2312 = vsel %vm2056, 1.0, 0.0
      %v2313 = vsel %vm2057, 1.0, 0.0
      %v2314 = vsel %vm2058, 1.0, 0.0
      %v2315 = vsel %vm2059, 1.0, 0.0
      %v2316 = vsel %vm2060, 1.0, 0.0
      %v2317 = vsel %vm2061, 1.0, 0.0
      %v2318 = vsel %vm2062, 1.0, 0.0
      %v2319 = vsel %vm2063, 1.0, 0.0
      %v2320 = vsel %vm2064, 1.0, 0.0
      %v2321 = vsel %vm2065, 1.0, 0.0
      %v2322 = vsel %vm2066, 1.0, 0.0
      %v2323 = vsel %vm2067, 1.0, 0.0
      %v2324 = vsel %vm2068, 1.0, 0.0
      %v2325 = vsel %vm2069, 1.0, 0.0
      %v2326 = vsel %vm2070, 1.0, 0.0
      %v2327 = vsel %vm2071, 1.0, 0.0
      %v2328 = vsel %vm2072, 1.0, 0.0
      %v2329 = vsel %vm2073, 1.0, 0.0
      %v2330 = vsel %vm2074, 1.0, 0.0
      %v2331 = vsel %vm2075, 1.0, 0.0
      %v2332 = vsel %vm2076, 1.0, 0.0
      %v2333 = vsel %vm2077, 1.0, 0.0
      %v2334 = vsel %vm2078, 1.0, 0.0
      %v2335 = vsel %vm2079, 1.0, 0.0
      %v2336 = vsel %vm2080, 1.0, 0.0
      %v2337 = vsel %vm2081, 1.0, 0.0
      %v2338 = vsel %vm2082, 1.0, 0.0
      %v2339 = vsel %vm2083, 1.0, 0.0
      %v2340 = vsel %vm2084, 1.0, 0.0
      %v2341 = vsel %vm2085, 1.0, 0.0
      %v2342 = vsel %vm2086, 1.0, 0.0
      %v2343 = vsel %vm2087, 1.0, 0.0
      %v2344 = vsel %vm2088, 1.0, 0.0
      %v2345 = vsel %vm2089, 1.0, 0.0
      %v2346 = vsel %vm2090, 1.0, 0.0
      %v2347 = vsel %vm2091, 1.0, 0.0
      %v2348 = vsel %vm2092, 1.0, 0.0
      %v2349 = vsel %vm2093, 1.0, 0.0
      %v2350 = vsel %vm2094, 1.0, 0.0
      %v2351 = vsel %vm2095, 1.0, 0.0
      %v2352 = vsel %vm2096, 1.0, 0.0
      %v2353 = vsel %vm2097, 1.0, 0.0
      %v2354 = vsel %vm2098, 1.0, 0.0
      %v2355 = vsel %vm2099, 1.0, 0.0
      %v2356 = vsel %vm2100, 1.0, 0.0
      %v2357 = vsel %vm2101, 1.0, 0.0
      %v2358 = vsel %vm2102, 1.0, 0.0
      %v2359 = vsel %vm2103, 1.0, 0.0
      %v2360 = vsel %vm2104, 1.0, 0.0
      %v2361 = vsel %vm2105, 1.0, 0.0
      %v2362 = vsel %vm2106, 1.0, 0.0
      %v2363 = vsel %vm2107, 1.0, 0.0
      %v2364 = vsel %vm2108, 1.0, 0.0
      %v2365 = vsel %vm2109, 1.0, 0.0
      %v2366 = vsel %vm2110, 1.0, 0.0
      %v2367 = vsel %vm2111, 1.0, 0.0
      %v2368 = vsel %vm2112, 1.0, 0.0
      %v2369 = vsel %vm2113, 1.0, 0.0
      %v2370 = vsel %vm2114, 1.0, 0.0
      %v2371 = vsel %vm2115, 1.0, 0.0
      %v2372 = vsel %vm2116, 1.0, 0.0
      %v2373 = vsel %vm2117, 1.0, 0.0
      %v2374 = vsel %vm2118, 1.0, 0.0
      %v2375 = vsel %vm2119, 1.0, 0.0
      %v2376 = vsel %vm2120, 1.0, 0.0
      %v2377 = vsel %vm2121, 1.0, 0.0
      %v2378 = vsel %vm2122, 1.0, 0.0
      %v2379 = vsel %vm2123, 1.0, 0.0
      %v2380 = vsel %vm2124, 1.0, 0.0
      %v2381 = vsel %vm2125, 1.0, 0.0
      %v2382 = vsel %vm2126, 1.0, 0.0
      %v2383 = vsel %vm2127, 1.0, 0.0
      %v2384 = vsel %vm2128, 1.0, 0.0
      %v2385 = vsel %vm2129, 1.0, 0.0
      %v2386 = vsel %vm2130, 1.0, 0.0
      %v2387 = vsel %vm2131, 1.0, 0.0
      %v2388 = vsel %vm2132, 1.0, 0.0
      %v2389 = vsel %vm2133, 1.0, 0.0
      %v2390 = vsel %vm2134, 1.0, 0.0
      %v2391 = vsel %vm2135, 1.0, 0.0
      %v2392 = vsel %vm2136, 1.0, 0.0
      %v2393 = vsel %vm2137, 1.0, 0.0
      %v2394 = vsel %vm2138, 1.0, 0.0
      %v2395 = vsel %vm2139, 1.0, 0.0
      %v2396 = vsel %vm2140, 1.0, 0.0
      %v2397 = vsel %vm2141, 1.0, 0.0
      %v2398 = vsel %vm2142, 1.0, 0.0
      %v2399 = vsel %vm2143, 1.0, 0.0
      %v2400 = vsel %vm2144, 1.0, 0.0
      %v2401 = vsel %vm2145, 1.0, 0.0
      %v2402 = vsel %vm2146, 1.0, 0.0
      %v2403 = vsel %vm2147, 1.0, 0.0
      %v2404 = vsel %vm2148, 1.0, 0.0
      %v2405 = vsel %vm2149, 1.0, 0.0
      %v2406 = vsel %vm2150, 1.0, 0.0
      %v2407 = vsel %vm2151, 1.0, 0.0
      %v2408 = vsel %vm2152, 1.0, 0.0
      %v2409 = vsel %vm2153, 1.0, 0.0
      %v2410 = vsel %vm2154, 1.0, 0.0
      %v2411 = vsel %vm2155, 1.0, 0.0
      %v2412 = vsel %vm2156, 1.0, 0.0
      %v2413 = vsel %vm2157, 1.0, 0.0
      %v2414 = vsel %vm2158, 1.0, 0.0
      %v2415 = vsel %vm2159, 1.0, 0.0
      %v2416 = vsel %vm2160, 1.0, 0.0
      %v2417 = vsel %vm2161, 1.0, 0.0
      %v2418 = vsel %vm2162, 1.0, 0.0
      %v2419 = vsel %vm2163, 1.0, 0.0
      %v2420 = vsel %vm2164, 1.0, 0.0
      %v2421 = vsel %vm2165, 1.0, 0.0
      %v2422 = vsel %vm2166, 1.0, 0.0
      %v2423 = vsel %vm2167, 1.0, 0.0
      %v2424 = vsel %vm2168, 1.0, 0.0
      %v2425 = vsel %vm2169, 1.0, 0.0
      %v2426 = vsel %vm2170, 1.0, 0.0
      %v2427 = vsel %vm2171, 1.0, 0.0
      %v2428 = vsel %vm2172, 1.0, 0.0
      %v2429 = vsel %vm2173, 1.0, 0.0
      %v2430 = vsel %vm2174, 1.0, 0.0
      %v2431 = vsel %vm2175, 1.0, 0.0
      %v2432 = vsel %vm2176, 1.0, 0.0
      %v2433 = vsel %vm2177, 1.0, 0.0
      %v2434 = vsel %vm2178, 1.0, 0.0
      %v2435 = vsel %vm2179, 1.0, 0.0
      %v2436 = vsel %vm2180, 1.0, 0.0
      %v2437 = vsel %vm2181, 1.0, 0.0
      %v2438 = vsel %vm2182, 1.0, 0.0
      %v2439 = vsel %vm2183, 1.0, 0.0
      %v2440 = vsel %vm2184, 1.0, 0.0
      %v2441 = vsel %vm2185, 1.0, 0.0
      %v2442 = vsel %vm2186, 1.0, 0.0
      %v2443 = vsel %vm2187, 1.0, 0.0
      %v2444 = vsel %vm2188, 1.0, 0.0
      %v2445 = vsel %vm2189, 1.0, 0.0
      %v2446 = vsel %vm2190, 1.0, 0.0
      %v2447 = vsel %vm2191, 1.0, 0.0
      %v2448 = vsel %vm2192, 1.0, 0.0
      %v2449 = vsel %vm2193, 1.0, 0.0
      %v2450 = vsel %vm2194, 1.0, 0.0
      %v2451 = vsel %vm2195, 1.0, 0.0
      %v2452 = vsel %vm2196, 1.0, 0.0
      %v2453 = vsel %vm2197, 1.0, 0.0
      %v2454 = vsel %vm2198, 1.0, 0.0
      %v2455 = vsel %vm2199, 1.0, 0.0
      %v2456 = vsel %vm2200, 1.0, 0.0
      %v2457 = vsel %vm2201, 1.0, 0.0
      %v2458 = vsel %vm2202, 1.0, 0.0
      %v2459 = vsel %vm2203, 1.0, 0.0
      %v2460 = vsel %vm2204, 1.0, 0.0
      %v2461 = vsel %vm2205, 1.0, 0.0
      %v2462 = vsel %vm2206, 1.0, 0.0
      %v2463 = vsel %vm2207, 1.0, 0.0
      %v2464 = vsel %vm2208, 1.0, 0.0
      %v2465 = vsel %vm2209, 1.0, 0.0
      %v2466 = vsel %vm2210, 1.0, 0.0
      %v2467 = vsel %vm2211, 1.0, 0.0
      %v2468 = vsel %vm2212, 1.0, 0.0
      %v2469 = vsel %vm2213, 1.0, 0.0
      %v2470 = vsel %vm2214, 1.0, 0.0
      %v2471 = vsel %vm2215, 1.0, 0.0
      %v2472 = vsel %vm2216, 1.0, 0.0
      %v2473 = vsel %vm2217, 1.0, 0.0
      %v2474 = vsel %vm2218, 1.0, 0.0
      %v2475 = vsel %vm2219, 1.0, 0.0
      %v2476 = vsel %vm2220, 1.0, 0.0
      %v2477 = vsel %vm2221, 1.0, 0.0
      %v2478 = vsel %vm2222, 1.0, 0.0
      %v2479 = vsel %vm2223, 1.0, 0.0
      %v2480 = vsel %vm2224, 1.0, 0.0
      %v2481 = vsel %vm2225, 1.0, 0.0
      %v2482 = vsel %vm2226, 1.0, 0.0
      %v2483 = vsel %vm2227, 1.0, 0.0
      %v2484 = vsel %vm2228, 1.0, 0.0
      %v2485 = vsel %vm2229, 1.0, 0.0
      %v2486 = vsel %vm2230, 1.0, 0.0
      %v2487 = vsel %vm2231, 1.0, 0.0
      %v2488 = vsel %vm2232, 1.0, 0.0
      %v2489 = vsel %vm2233, 1.0, 0.0
      %v2490 = vsel %vm2234, 1.0, 0.0
      %v2491 = vsel %vm2235, 1.0, 0.0
      %v2492 = vsel %vm2236, 1.0, 0.0
      %v2493 = vsel %vm2237, 1.0, 0.0
      %v2494 = vsel %vm2238, 1.0, 0.0
      %v2495 = vsel %vm2239, 1.0, 0.0
      %v2496 = vsel %vm2240, 1.0, 0.0
      %v2497 = vsel %vm2241, 1.0, 0.0
      %v2498 = vsel %vm2242, 1.0, 0.0
      %v2499 = vsel %vm2243, 1.0, 0.0
      %v2500 = vsel %vm2244, 1.0, 0.0
      %v2501 = vsel %vm2245, 1.0, 0.0
      %v2502 = vsel %vm2246, 1.0, 0.0
      %v2503 = vsel %vm2247, 1.0, 0.0
      %v2504 = vsel %vm2248, 1.0, 0.0
      %v2505 = vsel %vm2249, 1.0, 0.0
      %v2506 = vsel %vm2250, 1.0, 0.0
      %v2507 = vsel %vm2251, 1.0, 0.0
      %v2508 = vsel %vm2252, 1.0, 0.0
      %v2509 = vsel %vm2253, 1.0, 0.0
      %v2510 = vsel %vm2254, 1.0, 0.0
      %v2511 = vsel %vm2255, 1.0, 0.0
      %v2512 = vsel %vm2256, 1.0, 0.0
      %v2513 = vsel %vm2257, 1.0, 0.0
      %v2514 = vsel %vm2258, 1.0, 0.0
      %v2515 = vsel %vm2259, 1.0, 0.0
      %v2516 = vsel %vm2260, 1.0, 0.0
      %v2517 = vsel %vm2261, 1.0, 0.0
      %v2518 = vsel %vm2262, 1.0, 0.0
      %v2519 = vsel %vm2263, 1.0, 0.0
      %v2520 = vsel %vm2264, 1.0, 0.0
      %v2521 = vsel %vm2265, 1.0, 0.0
      %v2522 = vsel %vm2266, 1.0, 0.0
      %v2523 = vsel %vm2267, 1.0, 0.0
      %v2524 = vsel %vm2268, 1.0, 0.0
      %v2525 = vsel %vm2269, 1.0, 0.0
      %v2526 = vsel %vm2270, 1.0, 0.0
      %v2527 = vsel %vm2271, 1.0, 0.0
      %v2528 = vsel %vm2272, 1.0, 0.0
      %v2529 = vsel %vm2273, 1.0, 0.0
      %2530 = vmatprep.subr.mxu0 %v2275
      %2531 = vmatpush1.msra.mxu0 %v2274
      %2532 = vmatprep.subr.mxu0 %v2283
      %2533 = vmatpush1.msra.mxu0 %v2282
      %2534 = vmatprep.subr.mxu0 %v2291
      %2535 = vmatpush1.msra.mxu0 %v2290
      %2536 = vmatprep.subr.mxu0 %v2299
      %2537 = vmatpush1.msra.mxu0 %v2298
      %2538 = vmatprep.subr.mxu0 %v2307
      %2539 = vmatpush1.msra.mxu0 %v2306
      %2540 = vmatprep.subr.mxu0 %v2315
      %2541 = vmatpush1.msra.mxu0 %v2314
      %2542 = vmatprep.subr.mxu0 %v2323
      %2543 = vmatpush1.msra.mxu0 %v2322
      %2544 = vmatprep.subr.mxu0 %v2331
      %2545 = vmatpush1.msra.mxu0 %v2330
      %2546 = vmatprep.subr.mxu0 %v2339
      %2547 = vmatpush1.msra.mxu0 %v2338
      %2548 = vmatprep.subr.mxu0 %v2347
      %2549 = vmatpush1.msra.mxu0 %v2346
      %2550 = vmatprep.subr.mxu0 %v2355
      %2551 = vmatpush1.msra.mxu0 %v2354
      %2552 = vmatprep.subr.mxu0 %v2363
      %2553 = vmatpush1.msra.mxu0 %v2362
      %2554 = vmatprep.subr.mxu0 %v2371
      %2555 = vmatpush1.msra.mxu0 %v2370
      %2556 = vmatprep.subr.mxu0 %v2379
      %2557 = vmatpush1.msra.mxu0 %v2378
      %2558 = vmatprep.subr.mxu0 %v2387
      %2559 = vmatpush1.msra.mxu0 %v2386
      %2560 = vmatprep.subr.mxu0 %v2395
      %2561 = vmatpush1.msra.mxu0 %v2394
      %2562 = vmatprep.subr.mxu0 %v2403
      %2563 = vmatpush1.msra.mxu0 %v2402
      %2564 = vmatprep.subr.mxu0 %v2411
      %2565 = vmatpush1.msra.mxu0 %v2410
      %2566 = vmatprep.subr.mxu0 %v2419
      %2567 = vmatpush1.msra.mxu0 %v2418
      %2568 = vmatprep.subr.mxu0 %v2427
      %2569 = vmatpush1.msra.mxu0 %v2426
      %2570 = vmatprep.subr.mxu0 %v2435
      %2571 = vmatpush1.msra.mxu0 %v2434
      %2572 = vmatprep.subr.mxu0 %v2443
      %2573 = vmatpush1.msra.mxu0 %v2442
      %2574 = vmatprep.subr.mxu0 %v2451
      %2575 = vmatpush1.msra.mxu0 %v2450
      %2576 = vmatprep.subr.mxu0 %v2459
      %2577 = vmatpush1.msra.mxu0 %v2458
      %2578 = vmatprep.subr.mxu0 %v2467
      %2579 = vmatpush1.msra.mxu0 %v2466
      %2580 = vmatprep.subr.mxu0 %v2475
      %2581 = vmatpush1.msra.mxu0 %v2474
      %2582 = vmatprep.subr.mxu0 %v2483
      %2583 = vmatpush1.msra.mxu0 %v2482
      %2584 = vmatprep.subr.mxu0 %v2491
      %2585 = vmatpush1.msra.mxu0 %v2490
      %2586 = vmatprep.subr.mxu0 %v2499
      %2587 = vmatpush1.msra.mxu0 %v2498
      %2588 = vmatprep.subr.mxu0 %v2507
      %2589 = vmatpush1.msra.mxu0 %v2506
      %2590 = vmatprep.subr.mxu0 %v2515
      %2591 = vmatpush1.msra.mxu0 %v2514
      %2592 = vmatprep.subr.mxu0 %v2523
      %2593 = vmatpush1.msra.mxu0 %v2522
      %2594 = vmatprep.mubr.f32.mxu0 %v1962
      %2595 = vmatmul.mubr.f32.gmra.mrb[0].mxu0 %v1960
      %v2596 = vpop.f32.mrb[0].mxu0
      %v2597 = vadd.f32 0.0, %v2596
      %v2598 = vpop.f32.mrb[0].mxu0
      %v2599 = vadd.f32 0.0, %v2598
      %2600 = vdwg.mxu0
      %2601 = vmatprep.subr.mxu0 %v2277
      %2602 = vmatpush1.msra.mxu0 %v2276
      %2603 = vmatprep.subr.mxu0 %v2285
      %2604 = vmatpush1.msra.mxu0 %v2284
      %2605 = vmatprep.subr.mxu0 %v2293
      %2606 = vmatpush1.msra.mxu0 %v2292
      %2607 = vmatprep.subr.mxu0 %v2301
      %2608 = vmatpush1.msra.mxu0 %v2300
      %2609 = vmatprep.subr.mxu0 %v2309
      %2610 = vmatpush1.msra.mxu0 %v2308
      %2611 = vmatprep.subr.mxu0 %v2317
      %2612 = vmatpush1.msra.mxu0 %v2316
      %2613 = vmatprep.subr.mxu0 %v2325
      %2614 = vmatpush1.msra.mxu0 %v2324
      %2615 = vmatprep.subr.mxu0 %v2333
      %2616 = vmatpush1.msra.mxu0 %v2332
      %2617 = vmatprep.subr.mxu0 %v2341
      %2618 = vmatpush1.msra.mxu0 %v2340
      %2619 = vmatprep.subr.mxu0 %v2349
      %2620 = vmatpush1.msra.mxu0 %v2348
      %2621 = vmatprep.subr.mxu0 %v2357
      %2622 = vmatpush1.msra.mxu0 %v2356
      %2623 = vmatprep.subr.mxu0 %v2365
      %2624 = vmatpush1.msra.mxu0 %v2364
      %2625 = vmatprep.subr.mxu0 %v2373
      %2626 = vmatpush1.msra.mxu0 %v2372
      %2627 = vmatprep.subr.mxu0 %v2381
      %2628 = vmatpush1.msra.mxu0 %v2380
      %2629 = vmatprep.subr.mxu0 %v2389
      %2630 = vmatpush1.msra.mxu0 %v2388
      %2631 = vmatprep.subr.mxu0 %v2397
      %2632 = vmatpush1.msra.mxu0 %v2396
      %2633 = vmatprep.subr.mxu0 %v2405
      %2634 = vmatpush1.msra.mxu0 %v2404
      %2635 = vmatprep.subr.mxu0 %v2413
      %2636 = vmatpush1.msra.mxu0 %v2412
      %2637 = vmatprep.subr.mxu0 %v2421
      %2638 = vmatpush1.msra.mxu0 %v2420
      %2639 = vmatprep.subr.mxu0 %v2429
      %2640 = vmatpush1.msra.mxu0 %v2428
      %2641 = vmatprep.subr.mxu0 %v2437
      %2642 = vmatpush1.msra.mxu0 %v2436
      %2643 = vmatprep.subr.mxu0 %v2445
      %2644 = vmatpush1.msra.mxu0 %v2444
      %2645 = vmatprep.subr.mxu0 %v2453
      %2646 = vmatpush1.msra.mxu0 %v2452
      %2647 = vmatprep.subr.mxu0 %v2461
      %2648 = vmatpush1.msra.mxu0 %v2460
      %2649 = vmatprep.subr.mxu0 %v2469
      %2650 = vmatpush1.msra.mxu0 %v2468
      %2651 = vmatprep.subr.mxu0 %v2477
      %2652 = vmatpush1.msra.mxu0 %v2476
      %2653 = vmatprep.subr.mxu0 %v2485
      %2654 = vmatpush1.msra.mxu0 %v2484
      %2655 = vmatprep.subr.mxu0 %v2493
      %2656 = vmatpush1.msra.mxu0 %v2492
      %2657 = vmatprep.subr.mxu0 %v2501
      %2658 = vmatpush1.msra.mxu0 %v2500
      %2659 = vmatprep.subr.mxu0 %v2509
      %2660 = vmatpush1.msra.mxu0 %v2508
      %2661 = vmatprep.subr.mxu0 %v2517
      %2662 = vmatpush1.msra.mxu0 %v2516
      %2663 = vmatprep.subr.mxu0 %v2525
      %2664 = vmatpush1.msra.mxu0 %v2524
      %2665 = vmatprep.mubr.f32.mxu0 %v1962
      %2666 = vmatmul.mubr.f32.gmra.mrb[0].mxu0 %v1960
      %v2667 = vpop.f32.mrb[0].mxu0
      %v2668 = vadd.f32 0.0, %v2667
      %v2669 = vpop.f32.mrb[0].mxu0
      %v2670 = vadd.f32 0.0, %v2669
      %2671 = vdwg.mxu0
      %2672 = vmatprep.subr.mxu0 %v2279
      %2673 = vmatpush1.msra.mxu0 %v2278
      %2674 = vmatprep.subr.mxu0 %v2287
      %2675 = vmatpush1.msra.mxu0 %v2286
      %2676 = vmatprep.subr.mxu0 %v2295
      %2677 = vmatpush1.msra.mxu0 %v2294
      %2678 = vmatprep.subr.mxu0 %v2303
      %2679 = vmatpush1.msra.mxu0 %v2302
      %2680 = vmatprep.subr.mxu0 %v2311
      %2681 = vmatpush1.msra.mxu0 %v2310
      %2682 = vmatprep.subr.mxu0 %v2319
      %2683 = vmatpush1.msra.mxu0 %v2318
      %2684 = vmatprep.subr.mxu0 %v2327
      %2685 = vmatpush1.msra.mxu0 %v2326
      %2686 = vmatprep.subr.mxu0 %v2335
      %2687 = vmatpush1.msra.mxu0 %v2334
      %2688 = vmatprep.subr.mxu0 %v2343
      %2689 = vmatpush1.msra.mxu0 %v2342
      %2690 = vmatprep.subr.mxu0 %v2351
      %2691 = vmatpush1.msra.mxu0 %v2350
      %2692 = vmatprep.subr.mxu0 %v2359
      %2693 = vmatpush1.msra.mxu0 %v2358
      %2694 = vmatprep.subr.mxu0 %v2367
      %2695 = vmatpush1.msra.mxu0 %v2366
      %2696 = vmatprep.subr.mxu0 %v2375
      %2697 = vmatpush1.msra.mxu0 %v2374
      %2698 = vmatprep.subr.mxu0 %v2383
      %2699 = vmatpush1.msra.mxu0 %v2382
      %2700 = vmatprep.subr.mxu0 %v2391
      %2701 = vmatpush1.msra.mxu0 %v2390
      %2702 = vmatprep.subr.mxu0 %v2399
      %2703 = vmatpush1.msra.mxu0 %v2398
      %2704 = vmatprep.subr.mxu0 %v2407
      %2705 = vmatpush1.msra.mxu0 %v2406
      %2706 = vmatprep.subr.mxu0 %v2415
      %2707 = vmatpush1.msra.mxu0 %v2414
      %2708 = vmatprep.subr.mxu0 %v2423
      %2709 = vmatpush1.msra.mxu0 %v2422
      %2710 = vmatprep.subr.mxu0 %v2431
      %2711 = vmatpush1.msra.mxu0 %v2430
      %2712 = vmatprep.subr.mxu0 %v2439
      %2713 = vmatpush1.msra.mxu0 %v2438
      %2714 = vmatprep.subr.mxu0 %v2447
      %2715 = vmatpush1.msra.mxu0 %v2446
      %2716 = vmatprep.subr.mxu0 %v2455
      %2717 = vmatpush1.msra.mxu0 %v2454
      %2718 = vmatprep.subr.mxu0 %v2463
      %2719 = vmatpush1.msra.mxu0 %v2462
      %2720 = vmatprep.subr.mxu0 %v2471
      %2721 = vmatpush1.msra.mxu0 %v2470
      %2722 = vmatprep.subr.mxu0 %v2479
      %2723 = vmatpush1.msra.mxu0 %v2478
      %2724 = vmatprep.subr.mxu0 %v2487
      %2725 = vmatpush1.msra.mxu0 %v2486
      %2726 = vmatprep.subr.mxu0 %v2495
      %2727 = vmatpush1.msra.mxu0 %v2494
      %2728 = vmatprep.subr.mxu0 %v2503
      %2729 = vmatpush1.msra.mxu0 %v2502
      %2730 = vmatprep.subr.mxu0 %v2511
      %2731 = vmatpush1.msra.mxu0 %v2510
      %2732 = vmatprep.subr.mxu0 %v2519
      %2733 = vmatpush1.msra.mxu0 %v2518
      %2734 = vmatprep.subr.mxu0 %v2527
      %2735 = vmatpush1.msra.mxu0 %v2526
      %2736 = vmatprep.mubr.f32.mxu0 %v1962
      %2737 = vmatmul.mubr.f32.gmra.mrb[0].mxu0 %v1960
      %v2738 = vpop.f32.mrb[0].mxu0
      %v2739 = vadd.f32 0.0, %v2738
      %v2740 = vpop.f32.mrb[0].mxu0
      %v2741 = vadd.f32 0.0, %v2740
      %2742 = vdwg.mxu0
      %2743 = vmatprep.subr.mxu0 %v2281
      %2744 = vmatpush1.msra.mxu0 %v2280
      %2745 = vmatprep.subr.mxu0 %v2289
      %2746 = vmatpush1.msra.mxu0 %v2288
      %2747 = vmatprep.subr.mxu0 %v2297
      %2748 = vmatpush1.msra.mxu0 %v2296
      %2749 = vmatprep.subr.mxu0 %v2305
      %2750 = vmatpush1.msra.mxu0 %v2304
      %2751 = vmatprep.subr.mxu0 %v2313
      %2752 = vmatpush1.msra.mxu0 %v2312
      %2753 = vmatprep.subr.mxu0 %v2321
      %2754 = vmatpush1.msra.mxu0 %v2320
      %2755 = vmatprep.subr.mxu0 %v2329
      %2756 = vmatpush1.msra.mxu0 %v2328
      %2757 = vmatprep.subr.mxu0 %v2337
      %2758 = vmatpush1.msra.mxu0 %v2336
      %2759 = vmatprep.subr.mxu0 %v2345
      %2760 = vmatpush1.msra.mxu0 %v2344
      %2761 = vmatprep.subr.mxu0 %v2353
      %2762 = vmatpush1.msra.mxu0 %v2352
      %2763 = vmatprep.subr.mxu0 %v2361
      %2764 = vmatpush1.msra.mxu0 %v2360
      %2765 = vmatprep.subr.mxu0 %v2369
      %2766 = vmatpush1.msra.mxu0 %v2368
      %2767 = vmatprep.subr.mxu0 %v2377
      %2768 = vmatpush1.msra.mxu0 %v2376
      %2769 = vmatprep.subr.mxu0 %v2385
      %2770 = vmatpush1.msra.mxu0 %v2384
      %2771 = vmatprep.subr.mxu0 %v2393
      %2772 = vmatpush1.msra.mxu0 %v2392
      %2773 = vmatprep.subr.mxu0 %v2401
      %2774 = vmatpush1.msra.mxu0 %v2400
      %2775 = vmatprep.subr.mxu0 %v2409
      %2776 = vmatpush1.msra.mxu0 %v2408
      %2777 = vmatprep.subr.mxu0 %v2417
      %2778 = vmatpush1.msra.mxu0 %v2416
      %2779 = vmatprep.subr.mxu0 %v2425
      %2780 = vmatpush1.msra.mxu0 %v2424
      %2781 = vmatprep.subr.mxu0 %v2433
      %2782 = vmatpush1.msra.mxu0 %v2432
      %2783 = vmatprep.subr.mxu0 %v2441
      %2784 = vmatpush1.msra.mxu0 %v2440
      %2785 = vmatprep.subr.mxu0 %v2449
      %2786 = vmatpush1.msra.mxu0 %v2448
      %2787 = vmatprep.subr.mxu0 %v2457
      %2788 = vmatpush1.msra.mxu0 %v2456
      %2789 = vmatprep.subr.mxu0 %v2465
      %2790 = vmatpush1.msra.mxu0 %v2464
      %2791 = vmatprep.subr.mxu0 %v2473
      %2792 = vmatpush1.msra.mxu0 %v2472
      %2793 = vmatprep.subr.mxu0 %v2481
      %2794 = vmatpush1.msra.mxu0 %v2480
      %2795 = vmatprep.subr.mxu0 %v2489
      %2796 = vmatpush1.msra.mxu0 %v2488
      %2797 = vmatprep.subr.mxu0 %v2497
      %2798 = vmatpush1.msra.mxu0 %v2496
      %2799 = vmatprep.subr.mxu0 %v2505
      %2800 = vmatpush1.msra.mxu0 %v2504
      %2801 = vmatprep.subr.mxu0 %v2513
      %2802 = vmatpush1.msra.mxu0 %v2512
      %2803 = vmatprep.subr.mxu0 %v2521
      %2804 = vmatpush1.msra.mxu0 %v2520
      %2805 = vmatprep.subr.mxu0 %v2529
      %2806 = vmatpush1.msra.mxu0 %v2528
      %2807 = vmatprep.mubr.f32.mxu0 %v1962
      %2808 = vmatmul.mubr.f32.gmra.mrb[0].mxu0 %v1960
      %v2809 = vpop.f32.mrb[0].mxu0
      %v2810 = vadd.f32 0.0, %v2809
      %v2811 = vpop.f32.mrb[0].mxu0
      %v2812 = vadd.f32 0.0, %v2811
      %2813 = vdwg.mxu0
      %v2822 = vcombine.low %v2597, %v2599
      %v2823 = vcombine.low %v2668, %v2670
      %v2824 = vcombine.low %v2739, %v2741
      %v2825 = vcombine.low %v2810, %v2812
      %v2830 = vsub.f32 %v252, %v2822
      %v2831 = vsub.f32 %v253, %v2823
      %v2832 = vsub.f32 %v254, %v2824
      %v2833 = vsub.f32 %v255, %v2825
      %v2834 = vshra.s32 %v257, 4
      %v2835 = vshra.s32 %v258, 4
      %v2836 = vshra.s32 %v259, 4
      %v2837 = vshra.s32 %v260, 4
      %v2838 = vshra.s32 %v261, 4
      %v2839 = vshra.s32 %v262, 4
      %v2840 = vshra.s32 %v263, 4
      %v2841 = vshra.s32 %v264, 4
      %v2842 = vshra.s32 %v265, 4
      %v2843 = vshra.s32 %v266, 4
      %v2844 = vshra.s32 %v267, 4
      %v2845 = vshra.s32 %v268, 4
      %v2846 = vshra.s32 %v269, 4
      %v2847 = vshra.s32 %v270, 4
      %v2848 = vshra.s32 %v271, 4
      %v2849 = vshra.s32 %v272, 4
      %v2850 = vshra.s32 %v273, 4
      %v2851 = vshra.s32 %v274, 4
      %v2852 = vshra.s32 %v275, 4
      %v2853 = vshra.s32 %v276, 4
      %v2854 = vshra.s32 %v277, 4
      %v2855 = vshra.s32 %v278, 4
      %v2856 = vshra.s32 %v279, 4
      %v2857 = vshra.s32 %v280, 4
      %v2858 = vshra.s32 %v281, 4
      %v2859 = vshra.s32 %v282, 4
      %v2860 = vshra.s32 %v283, 4
      %v2861 = vshra.s32 %v284, 4
      %v2862 = vshra.s32 %v285, 4
      %v2863 = vshra.s32 %v286, 4
      %v2864 = vshra.s32 %v287, 4
      %v2865 = vshra.s32 %v288, 4
      %v2866 = vand.u32 %v257, 15
      %v2867 = vand.u32 %v258, 15
      %v2868 = vand.u32 %v259, 15
      %v2869 = vand.u32 %v260, 15
      %v2870 = vand.u32 %v261, 15
      %v2871 = vand.u32 %v262, 15
      %v2872 = vand.u32 %v263, 15
      %v2873 = vand.u32 %v264, 15
      %v2874 = vand.u32 %v265, 15
      %v2875 = vand.u32 %v266, 15
      %v2876 = vand.u32 %v267, 15
      %v2877 = vand.u32 %v268, 15
      %v2878 = vand.u32 %v269, 15
      %v2879 = vand.u32 %v270, 15
      %v2880 = vand.u32 %v271, 15
      %v2881 = vand.u32 %v272, 15
      %v2882 = vand.u32 %v273, 15
      %v2883 = vand.u32 %v274, 15
      %v2884 = vand.u32 %v275, 15
      %v2885 = vand.u32 %v276, 15
      %v2886 = vand.u32 %v277, 15
      %v2887 = vand.u32 %v278, 15
      %v2888 = vand.u32 %v279, 15
      %v2889 = vand.u32 %v280, 15
      %v2890 = vand.u32 %v281, 15
      %v2891 = vand.u32 %v282, 15
      %v2892 = vand.u32 %v283, 15
      %v2893 = vand.u32 %v284, 15
      %v2894 = vand.u32 %v285, 15
      %v2895 = vand.u32 %v286, 15
      %v2896 = vand.u32 %v287, 15
      %v2897 = vand.u32 %v288, 15
      %v2898 = vshra.s32 %v2834, 1
      %v2899 = vshra.s32 %v2835, 1
      %v2900 = vshra.s32 %v2836, 1
      %v2901 = vshra.s32 %v2837, 1
      %v2902 = vshra.s32 %v2838, 1
      %v2903 = vshra.s32 %v2839, 1
      %v2904 = vshra.s32 %v2840, 1
      %v2905 = vshra.s32 %v2841, 1
      %v2906 = vshra.s32 %v2842, 1
      %v2907 = vshra.s32 %v2843, 1
      %v2908 = vshra.s32 %v2844, 1
      %v2909 = vshra.s32 %v2845, 1
      %v2910 = vshra.s32 %v2846, 1
      %v2911 = vshra.s32 %v2847, 1
      %v2912 = vshra.s32 %v2848, 1
      %v2913 = vshra.s32 %v2849, 1
      %v2914 = vshra.s32 %v2850, 1
      %v2915 = vshra.s32 %v2851, 1
      %v2916 = vshra.s32 %v2852, 1
      %v2917 = vshra.s32 %v2853, 1
      %v2918 = vshra.s32 %v2854, 1
      %v2919 = vshra.s32 %v2855, 1
      %v2920 = vshra.s32 %v2856, 1
      %v2921 = vshra.s32 %v2857, 1
      %v2922 = vshra.s32 %v2858, 1
      %v2923 = vshra.s32 %v2859, 1
      %v2924 = vshra.s32 %v2860, 1
      %v2925 = vshra.s32 %v2861, 1
      %v2926 = vshra.s32 %v2862, 1
      %v2927 = vshra.s32 %v2863, 1
      %v2928 = vshra.s32 %v2864, 1
      %v2929 = vshra.s32 %v2865, 1
      %v2930 = vshll.u32 %v2898, 3
      %v2931 = vshll.u32 %v2899, 3
      %v2932 = vshll.u32 %v2900, 3
      %v2933 = vshll.u32 %v2901, 3
      %v2934 = vshll.u32 %v2902, 3
      %v2935 = vshll.u32 %v2903, 3
      %v2936 = vshll.u32 %v2904, 3
      %v2937 = vshll.u32 %v2905, 3
      %v2938 = vshll.u32 %v2906, 3
      %v2939 = vshll.u32 %v2907, 3
      %v2940 = vshll.u32 %v2908, 3
      %v2941 = vshll.u32 %v2909, 3
      %v2942 = vshll.u32 %v2910, 3
      %v2943 = vshll.u32 %v2911, 3
      %v2944 = vshll.u32 %v2912, 3
      %v2945 = vshll.u32 %v2913, 3
      %v2946 = vshll.u32 %v2914, 3
      %v2947 = vshll.u32 %v2915, 3
      %v2948 = vshll.u32 %v2916, 3
      %v2949 = vshll.u32 %v2917, 3
      %v2950 = vshll.u32 %v2918, 3
      %v2951 = vshll.u32 %v2919, 3
      %v2952 = vshll.u32 %v2920, 3
      %v2953 = vshll.u32 %v2921, 3
      %v2954 = vshll.u32 %v2922, 3
      %v2955 = vshll.u32 %v2923, 3
      %v2956 = vshll.u32 %v2924, 3
      %v2957 = vshll.u32 %v2925, 3
      %v2958 = vshll.u32 %v2926, 3
      %v2959 = vshll.u32 %v2927, 3
      %v2960 = vshll.u32 %v2928, 3
      %v2961 = vshll.u32 %v2929, 3
      %v2962 = vshra.s32 %v2866, 1
      %v2963 = vshra.s32 %v2867, 1
      %v2964 = vshra.s32 %v2868, 1
      %v2965 = vshra.s32 %v2869, 1
      %v2966 = vshra.s32 %v2870, 1
      %v2967 = vshra.s32 %v2871, 1
      %v2968 = vshra.s32 %v2872, 1
      %v2969 = vshra.s32 %v2873, 1
      %v2970 = vshra.s32 %v2874, 1
      %v2971 = vshra.s32 %v2875, 1
      %v2972 = vshra.s32 %v2876, 1
      %v2973 = vshra.s32 %v2877, 1
      %v2974 = vshra.s32 %v2878, 1
      %v2975 = vshra.s32 %v2879, 1
      %v2976 = vshra.s32 %v2880, 1
      %v2977 = vshra.s32 %v2881, 1
      %v2978 = vshra.s32 %v2882, 1
      %v2979 = vshra.s32 %v2883, 1
      %v2980 = vshra.s32 %v2884, 1
      %v2981 = vshra.s32 %v2885, 1
      %v2982 = vshra.s32 %v2886, 1
      %v2983 = vshra.s32 %v2887, 1
      %v2984 = vshra.s32 %v2888, 1
      %v2985 = vshra.s32 %v2889, 1
      %v2986 = vshra.s32 %v2890, 1
      %v2987 = vshra.s32 %v2891, 1
      %v2988 = vshra.s32 %v2892, 1
      %v2989 = vshra.s32 %v2893, 1
      %v2990 = vshra.s32 %v2894, 1
      %v2991 = vshra.s32 %v2895, 1
      %v2992 = vshra.s32 %v2896, 1
      %v2993 = vshra.s32 %v2897, 1
      %v2994 = vadd.s32 %v2930, %v2962
      %v2995 = vadd.s32 %v2931, %v2963
      %v2996 = vadd.s32 %v2932, %v2964
      %v2997 = vadd.s32 %v2933, %v2965
      %v2998 = vadd.s32 %v2934, %v2966
      %v2999 = vadd.s32 %v2935, %v2967
      %v3000 = vadd.s32 %v2936, %v2968
      %v3001 = vadd.s32 %v2937, %v2969
      %v3002 = vadd.s32 %v2938, %v2970
      %v3003 = vadd.s32 %v2939, %v2971
      %v3004 = vadd.s32 %v2940, %v2972
      %v3005 = vadd.s32 %v2941, %v2973
      %v3006 = vadd.s32 %v2942, %v2974
      %v3007 = vadd.s32 %v2943, %v2975
      %v3008 = vadd.s32 %v2944, %v2976
      %v3009 = vadd.s32 %v2945, %v2977
      %v3010 = vadd.s32 %v2946, %v2978
      %v3011 = vadd.s32 %v2947, %v2979
      %v3012 = vadd.s32 %v2948, %v2980
      %v3013 = vadd.s32 %v2949, %v2981
      %v3014 = vadd.s32 %v2950, %v2982
      %v3015 = vadd.s32 %v2951, %v2983
      %v3016 = vadd.s32 %v2952, %v2984
      %v3017 = vadd.s32 %v2953, %v2985
      %v3018 = vadd.s32 %v2954, %v2986
      %v3019 = vadd.s32 %v2955, %v2987
      %v3020 = vadd.s32 %v2956, %v2988
      %v3021 = vadd.s32 %v2957, %v2989
      %v3022 = vadd.s32 %v2958, %v2990
      %v3023 = vadd.s32 %v2959, %v2991
      %v3024 = vadd.s32 %v2960, %v2992
      %v3025 = vadd.s32 %v2961, %v2993
      %vm3026 = vcmp.eq.s32.totalorder %v2994, %v386
      %vm3027 = vcmp.eq.s32.totalorder %v2995, %v386
      %vm3028 = vcmp.eq.s32.totalorder %v2996, %v386
      %vm3029 = vcmp.eq.s32.totalorder %v2997, %v386
      %vm3030 = vcmp.eq.s32.totalorder %v2998, %v386
      %vm3031 = vcmp.eq.s32.totalorder %v2999, %v386
      %vm3032 = vcmp.eq.s32.totalorder %v3000, %v386
      %vm3033 = vcmp.eq.s32.totalorder %v3001, %v386
      %vm3034 = vcmp.eq.s32.totalorder %v3002, %v386
      %vm3035 = vcmp.eq.s32.totalorder %v3003, %v386
      %vm3036 = vcmp.eq.s32.totalorder %v3004, %v386
      %vm3037 = vcmp.eq.s32.totalorder %v3005, %v386
      %vm3038 = vcmp.eq.s32.totalorder %v3006, %v386
      %vm3039 = vcmp.eq.s32.totalorder %v3007, %v386
      %vm3040 = vcmp.eq.s32.totalorder %v3008, %v386
      %vm3041 = vcmp.eq.s32.totalorder %v3009, %v386
      %vm3042 = vcmp.eq.s32.totalorder %v3010, %v386
      %vm3043 = vcmp.eq.s32.totalorder %v3011, %v386
      %vm3044 = vcmp.eq.s32.totalorder %v3012, %v386
      %vm3045 = vcmp.eq.s32.totalorder %v3013, %v386
      %vm3046 = vcmp.eq.s32.totalorder %v3014, %v386
      %vm3047 = vcmp.eq.s32.totalorder %v3015, %v386
      %vm3048 = vcmp.eq.s32.totalorder %v3016, %v386
      %vm3049 = vcmp.eq.s32.totalorder %v3017, %v386
      %vm3050 = vcmp.eq.s32.totalorder %v3018, %v386
      %vm3051 = vcmp.eq.s32.totalorder %v3019, %v386
      %vm3052 = vcmp.eq.s32.totalorder %v3020, %v386
      %vm3053 = vcmp.eq.s32.totalorder %v3021, %v386
      %vm3054 = vcmp.eq.s32.totalorder %v3022, %v386
      %vm3055 = vcmp.eq.s32.totalorder %v3023, %v386
      %vm3056 = vcmp.eq.s32.totalorder %v3024, %v386
      %vm3057 = vcmp.eq.s32.totalorder %v3025, %v386
      %v3058 = vsel %vm3026, 0.25, 0.0
      %v3059 = vsel %vm3027, 0.25, 0.0
      %v3060 = vsel %vm3028, 0.25, 0.0
      %v3061 = vsel %vm3029, 0.25, 0.0
      %v3062 = vsel %vm3030, 0.25, 0.0
      %v3063 = vsel %vm3031, 0.25, 0.0
      %v3064 = vsel %vm3032, 0.25, 0.0
      %v3065 = vsel %vm3033, 0.25, 0.0
      %v3066 = vsel %vm3034, 0.25, 0.0
      %v3067 = vsel %vm3035, 0.25, 0.0
      %v3068 = vsel %vm3036, 0.25, 0.0
      %v3069 = vsel %vm3037, 0.25, 0.0
      %v3070 = vsel %vm3038, 0.25, 0.0
      %v3071 = vsel %vm3039, 0.25, 0.0
      %v3072 = vsel %vm3040, 0.25, 0.0
      %v3073 = vsel %vm3041, 0.25, 0.0
      %v3074 = vsel %vm3042, 0.25, 0.0
      %v3075 = vsel %vm3043, 0.25, 0.0
      %v3076 = vsel %vm3044, 0.25, 0.0
      %v3077 = vsel %vm3045, 0.25, 0.0
      %v3078 = vsel %vm3046, 0.25, 0.0
      %v3079 = vsel %vm3047, 0.25, 0.0
      %v3080 = vsel %vm3048, 0.25, 0.0
      %v3081 = vsel %vm3049, 0.25, 0.0
      %v3082 = vsel %vm3050, 0.25, 0.0
      %v3083 = vsel %vm3051, 0.25, 0.0
      %v3084 = vsel %vm3052, 0.25, 0.0
      %v3085 = vsel %vm3053, 0.25, 0.0
      %v3086 = vsel %vm3054, 0.25, 0.0
      %v3087 = vsel %vm3055, 0.25, 0.0
      %v3088 = vsel %vm3056, 0.25, 0.0
      %v3089 = vsel %vm3057, 0.25, 0.0
      %3090 = vmatprep.subr.mxu0 0.0
      %3091 = vmatpush1.msra.mxu0 %v3058
      %3092 = vmatprep.subr.mxu0 0.0
      %3093 = vmatpush1.msra.mxu0 %v3059
      %3094 = vmatprep.subr.mxu0 0.0
      %3095 = vmatpush1.msra.mxu0 %v3060
      %3096 = vmatprep.subr.mxu0 0.0
      %3097 = vmatpush1.msra.mxu0 %v3061
      %3098 = vmatprep.subr.mxu0 0.0
      %3099 = vmatpush1.msra.mxu0 %v3062
      %3100 = vmatprep.subr.mxu0 0.0
      %3101 = vmatpush1.msra.mxu0 %v3063
      %3102 = vmatprep.subr.mxu0 0.0
      %3103 = vmatpush1.msra.mxu0 %v3064
      %3104 = vmatprep.subr.mxu0 0.0
      %3105 = vmatpush1.msra.mxu0 %v3065
      %3106 = vmatprep.subr.mxu0 0.0
      %3107 = vmatpush1.msra.mxu0 %v3066
      %3108 = vmatprep.subr.mxu0 0.0
      %3109 = vmatpush1.msra.mxu0 %v3067
      %3110 = vmatprep.subr.mxu0 0.0
      %3111 = vmatpush1.msra.mxu0 %v3068
      %3112 = vmatprep.subr.mxu0 0.0
      %3113 = vmatpush1.msra.mxu0 %v3069
      %3114 = vmatprep.subr.mxu0 0.0
      %3115 = vmatpush1.msra.mxu0 %v3070
      %3116 = vmatprep.subr.mxu0 0.0
      %3117 = vmatpush1.msra.mxu0 %v3071
      %3118 = vmatprep.subr.mxu0 0.0
      %3119 = vmatpush1.msra.mxu0 %v3072
      %3120 = vmatprep.subr.mxu0 0.0
      %3121 = vmatpush1.msra.mxu0 %v3073
      %3122 = vmatprep.subr.mxu0 0.0
      %3123 = vmatpush1.msra.mxu0 %v3074
      %3124 = vmatprep.subr.mxu0 0.0
      %3125 = vmatpush1.msra.mxu0 %v3075
      %3126 = vmatprep.subr.mxu0 0.0
      %3127 = vmatpush1.msra.mxu0 %v3076
      %3128 = vmatprep.subr.mxu0 0.0
      %3129 = vmatpush1.msra.mxu0 %v3077
      %3130 = vmatprep.subr.mxu0 0.0
      %3131 = vmatpush1.msra.mxu0 %v3078
      %3132 = vmatprep.subr.mxu0 0.0
      %3133 = vmatpush1.msra.mxu0 %v3079
      %3134 = vmatprep.subr.mxu0 0.0
      %3135 = vmatpush1.msra.mxu0 %v3080
      %3136 = vmatprep.subr.mxu0 0.0
      %3137 = vmatpush1.msra.mxu0 %v3081
      %3138 = vmatprep.subr.mxu0 0.0
      %3139 = vmatpush1.msra.mxu0 %v3082
      %3140 = vmatprep.subr.mxu0 0.0
      %3141 = vmatpush1.msra.mxu0 %v3083
      %3142 = vmatprep.subr.mxu0 0.0
      %3143 = vmatpush1.msra.mxu0 %v3084
      %3144 = vmatprep.subr.mxu0 0.0
      %3145 = vmatpush1.msra.mxu0 %v3085
      %3146 = vmatprep.subr.mxu0 0.0
      %3147 = vmatpush1.msra.mxu0 %v3086
      %3148 = vmatprep.subr.mxu0 0.0
      %3149 = vmatpush1.msra.mxu0 %v3087
      %3150 = vmatprep.subr.mxu0 0.0
      %3151 = vmatpush1.msra.mxu0 %v3088
      %3152 = vmatprep.subr.mxu0 0.0
      %3153 = vmatpush1.msra.mxu0 %v3089
      %3154 = vmatprep.mubr.f32.mxu0 %v1962
      %3155 = vmatmul.mubr.f32.gmra.mrb[0].mxu0 %v1960
      %v3156 = vpop.f32.mrb[0].mxu0
      %v3157 = vadd.f32 0.0, %v3156
      %v3158 = vpop.f32.mrb[0].mxu0
      %3159 = vdwg.mxu0
      %v3160 = vshra.s32 %v386, 4
      %v3161 = vshra.s32 %v387, 4
      %v3162 = vand.u32 %v386, 15
      %v3163 = vand.u32 %v387, 15
      %v3164 = vshra.s32 %v3160, 1
      %v3165 = vshra.s32 %v3161, 1
      %v3166 = vshll.u32 %v3164, 3
      %v3167 = vshll.u32 %v3165, 3
      %v3168 = vshra.s32 %v3162, 1
      %v3169 = vshra.s32 %v3163, 1
      %v3170 = vadd.s32 %v3166, %v3168
      %v3171 = vadd.s32 %v3167, %v3169
      %vm3172 = vcmp.eq.s32.totalorder %v3170, %v257
      %vm3173 = vcmp.eq.s32.totalorder %v3171, %v257
      %vm3174 = vcmp.eq.s32.totalorder %v3170, %v258
      %vm3175 = vcmp.eq.s32.totalorder %v3171, %v258
      %vm3176 = vcmp.eq.s32.totalorder %v3170, %v259
      %vm3177 = vcmp.eq.s32.totalorder %v3171, %v259
      %vm3178 = vcmp.eq.s32.totalorder %v3170, %v260
      %vm3179 = vcmp.eq.s32.totalorder %v3171, %v260
      %vm3180 = vcmp.eq.s32.totalorder %v3170, %v261
      %vm3181 = vcmp.eq.s32.totalorder %v3171, %v261
      %vm3182 = vcmp.eq.s32.totalorder %v3170, %v262
      %vm3183 = vcmp.eq.s32.totalorder %v3171, %v262
      %vm3184 = vcmp.eq.s32.totalorder %v3170, %v263
      %vm3185 = vcmp.eq.s32.totalorder %v3171, %v263
      %vm3186 = vcmp.eq.s32.totalorder %v3170, %v264
      %vm3187 = vcmp.eq.s32.totalorder %v3171, %v264
      %v3188 = vsel %vm3172, 1.0, 0.0
      %v3189 = vsel %vm3173, 1.0, 0.0
      %v3190 = vsel %vm3174, 1.0, 0.0
      %v3191 = vsel %vm3175, 1.0, 0.0
      %v3192 = vsel %vm3176, 1.0, 0.0
      %v3193 = vsel %vm3177, 1.0, 0.0
      %v3194 = vsel %vm3178, 1.0, 0.0
      %v3195 = vsel %vm3179, 1.0, 0.0
      %v3196 = vsel %vm3180, 1.0, 0.0
      %v3197 = vsel %vm3181, 1.0, 0.0
      %v3198 = vsel %vm3182, 1.0, 0.0
      %v3199 = vsel %vm3183, 1.0, 0.0
      %v3200 = vsel %vm3184, 1.0, 0.0
      %v3201 = vsel %vm3185, 1.0, 0.0
      %v3202 = vsel %vm3186, 1.0, 0.0
      %v3203 = vsel %vm3187, 1.0, 0.0
      %vm3204 = vcmask 523264
      %v3206 = vsel %vm3204, %v3157, 0
      %3208 = vmatprep.subr.mxu0 %v3189
      %3209 = vmatpush1.msra.mxu0 %v3188
      %3210 = vmatprep.subr.mxu0 %v3191
      %3211 = vmatpush1.msra.mxu0 %v3190
      %3212 = vmatprep.subr.mxu0 %v3193
      %3213 = vmatpush1.msra.mxu0 %v3192
      %3214 = vmatprep.subr.mxu0 %v3195
      %3215 = vmatpush1.msra.mxu0 %v3194
      %3216 = vmatprep.subr.mxu0 %v3197
      %3217 = vmatpush1.msra.mxu0 %v3196
      %3218 = vmatprep.subr.mxu0 %v3199
      %3219 = vmatpush1.msra.mxu0 %v3198
      %3220 = vmatprep.subr.mxu0 %v3201
      %3221 = vmatpush1.msra.mxu0 %v3200
      %3222 = vmatprep.subr.mxu0 %v3203
      %3223 = vmatpush1.msra.mxu0 %v3202
      %3224 = vmatprep.subr.mxu0 0.0
      %3225 = vmatpush1.msra.mxu0 0.0
      %3226 = vmatprep.subr.mxu0 0.0
      %3227 = vmatpush1.msra.mxu0 0.0
      %3228 = vmatprep.subr.mxu0 0.0
      %3229 = vmatpush1.msra.mxu0 0.0
      %3230 = vmatprep.subr.mxu0 0.0
      %3231 = vmatpush1.msra.mxu0 0.0
      %3232 = vmatprep.subr.mxu0 0.0
      %3233 = vmatpush1.msra.mxu0 0.0
      %3234 = vmatprep.subr.mxu0 0.0
      %3235 = vmatpush1.msra.mxu0 0.0
      %3236 = vmatprep.subr.mxu0 0.0
      %3237 = vmatpush1.msra.mxu0 0.0
      %3238 = vmatprep.subr.mxu0 0.0
      %3239 = vmatpush1.msra.mxu0 0.0
      %3240 = vmatprep.subr.mxu0 0.0
      %3241 = vmatpush1.msra.mxu0 0.0
      %3242 = vmatprep.subr.mxu0 0.0
      %3243 = vmatpush1.msra.mxu0 0.0
      %3244 = vmatprep.subr.mxu0 0.0
      %3245 = vmatpush1.msra.mxu0 0.0
      %3246 = vmatprep.subr.mxu0 0.0
      %3247 = vmatpush1.msra.mxu0 0.0
      %3248 = vmatprep.subr.mxu0 0.0
      %3249 = vmatpush1.msra.mxu0 0.0
      %3250 = vmatprep.subr.mxu0 0.0
      %3251 = vmatpush1.msra.mxu0 0.0
      %3252 = vmatprep.subr.mxu0 0.0
      %3253 = vmatpush1.msra.mxu0 0.0
      %3254 = vmatprep.subr.mxu0 0.0
      %3255 = vmatpush1.msra.mxu0 0.0
      %3256 = vmatprep.subr.mxu0 0.0
      %3257 = vmatpush1.msra.mxu0 0.0
      %3258 = vmatprep.subr.mxu0 0.0
      %3259 = vmatpush1.msra.mxu0 0.0
      %3260 = vmatprep.subr.mxu0 0.0
      %3261 = vmatpush1.msra.mxu0 0.0
      %3262 = vmatprep.subr.mxu0 0.0
      %3263 = vmatpush1.msra.mxu0 0.0
      %3264 = vmatprep.subr.mxu0 0.0
      %3265 = vmatpush1.msra.mxu0 0.0
      %3266 = vmatprep.subr.mxu0 0.0
      %3267 = vmatpush1.msra.mxu0 0.0
      %3268 = vmatprep.subr.mxu0 0.0
      %3269 = vmatpush1.msra.mxu0 0.0
      %3270 = vmatprep.subr.mxu0 0.0
      %3271 = vmatpush1.msra.mxu0 0.0
      %3272 = vmatprep.mubr.f32.mxu0 0.0
      %3273 = vmatmul.mubr.f32.gmra.mrb[0].mxu0 %v3206
      %v3274 = vpop.f32.mrb[0].mxu0
      %v3275 = vadd.f32 0.0, %v3274
      %v3276 = vpop.f32.mrb[0].mxu0
      %v3277 = vadd.f32 0.0, %v3276
      %3278 = vdwg.mxu0
      %v3279 = vsub.f32 %v1960, %v3275
      %v3280 = vsub.f32 %v1962, %v3277
      %v3281 = vshra.s32 %v257, 3
      %v3282 = vshra.s32 %v258, 3
      %v3283 = vshra.s32 %v259, 3
      %v3284 = vshra.s32 %v260, 3
      %v3285 = vshra.s32 %v261, 3
      %v3286 = vshra.s32 %v262, 3
      %v3287 = vshra.s32 %v263, 3
      %v3288 = vshra.s32 %v264, 3
      %v3289 = vand.u32 %v257, 7
      %v3290 = vand.u32 %v258, 7
      %v3291 = vand.u32 %v259, 7
      %v3292 = vand.u32 %v260, 7
      %v3293 = vand.u32 %v261, 7
      %v3294 = vand.u32 %v262, 7
      %v3295 = vand.u32 %v263, 7
      %v3296 = vand.u32 %v264, 7
      %v3297 = vshra.s32 %v3281, 1
      %v3298 = vshra.s32 %v3282, 1
      %v3299 = vshra.s32 %v3283, 1
      %v3300 = vshra.s32 %v3284, 1
      %v3301 = vshra.s32 %v3285, 1
      %v3302 = vshra.s32 %v3286, 1
      %v3303 = vshra.s32 %v3287, 1
      %v3304 = vshra.s32 %v3288, 1
      %v3305 = vshll.u32 %v3297, 2
      %v3306 = vshll.u32 %v3298, 2
      %v3307 = vshll.u32 %v3299, 2
      %v3308 = vshll.u32 %v3300, 2
      %v3309 = vshll.u32 %v3301, 2
      %v3310 = vshll.u32 %v3302, 2
      %v3311 = vshll.u32 %v3303, 2
      %v3312 = vshll.u32 %v3304, 2
      %v3313 = vshra.s32 %v3289, 1
      %v3314 = vshra.s32 %v3290, 1
      %v3315 = vshra.s32 %v3291, 1
      %v3316 = vshra.s32 %v3292, 1
      %v3317 = vshra.s32 %v3293, 1
      %v3318 = vshra.s32 %v3294, 1
      %v3319 = vshra.s32 %v3295, 1
      %v3320 = vshra.s32 %v3296, 1
      %v3321 = vadd.s32 %v3305, %v3313
      %v3322 = vadd.s32 %v3306, %v3314
      %v3323 = vadd.s32 %v3307, %v3315
      %v3324 = vadd.s32 %v3308, %v3316
      %v3325 = vadd.s32 %v3309, %v3317
      %v3326 = vadd.s32 %v3310, %v3318
      %v3327 = vadd.s32 %v3311, %v3319
      %v3328 = vadd.s32 %v3312, %v3320
      %vm3329 = vcmp.eq.s32.totalorder %v3321, %v386
      %vm3330 = vcmp.eq.s32.totalorder %v3322, %v386
      %vm3331 = vcmp.eq.s32.totalorder %v3323, %v386
      %vm3332 = vcmp.eq.s32.totalorder %v3324, %v386
      %vm3333 = vcmp.eq.s32.totalorder %v3325, %v386
      %vm3334 = vcmp.eq.s32.totalorder %v3326, %v386
      %vm3335 = vcmp.eq.s32.totalorder %v3327, %v386
      %vm3336 = vcmp.eq.s32.totalorder %v3328, %v386
      %v3337 = vsel %vm3329, 0.25, 0.0
      %v3338 = vsel %vm3330, 0.25, 0.0
      %v3339 = vsel %vm3331, 0.25, 0.0
      %v3340 = vsel %vm3332, 0.25, 0.0
      %v3341 = vsel %vm3333, 0.25, 0.0
      %v3342 = vsel %vm3334, 0.25, 0.0
      %v3343 = vsel %vm3335, 0.25, 0.0
      %v3344 = vsel %vm3336, 0.25, 0.0
      %3345 = vmatprep.subr.mxu0 0.0
      %3346 = vmatpush1.msra.mxu0 %v3337
      %3347 = vmatprep.subr.mxu0 0.0
      %3348 = vmatpush1.msra.mxu0 %v3338
      %3349 = vmatprep.subr.mxu0 0.0
      %3350 = vmatpush1.msra.mxu0 %v3339
      %3351 = vmatprep.subr.mxu0 0.0
      %3352 = vmatpush1.msra.mxu0 %v3340
      %3353 = vmatprep.subr.mxu0 0.0
      %3354 = vmatpush1.msra.mxu0 %v3341
      %3355 = vmatprep.subr.mxu0 0.0
      %3356 = vmatpush1.msra.mxu0 %v3342
      %3357 = vmatprep.subr.mxu0 0.0
      %3358 = vmatpush1.msra.mxu0 %v3343
      %3359 = vmatprep.subr.mxu0 0.0
      %3360 = vmatpush1.msra.mxu0 %v3344
      %3361 = vmatprep.subr.mxu0 0.0
      %3362 = vmatpush1.msra.mxu0 0.0
      %3363 = vmatprep.subr.mxu0 0.0
      %3364 = vmatpush1.msra.mxu0 0.0
      %3365 = vmatprep.subr.mxu0 0.0
      %3366 = vmatpush1.msra.mxu0 0.0
      %3367 = vmatprep.subr.mxu0 0.0
      %3368 = vmatpush1.msra.mxu0 0.0
      %3369 = vmatprep.subr.mxu0 0.0
      %3370 = vmatpush1.msra.mxu0 0.0
      %3371 = vmatprep.subr.mxu0 0.0
      %3372 = vmatpush1.msra.mxu0 0.0
      %3373 = vmatprep.subr.mxu0 0.0
      %3374 = vmatpush1.msra.mxu0 0.0
      %3375 = vmatprep.subr.mxu0 0.0
      %3376 = vmatpush1.msra.mxu0 0.0
      %3377 = vmatprep.subr.mxu0 0.0
      %3378 = vmatpush1.msra.mxu0 0.0
      %3379 = vmatprep.subr.mxu0 0.0
      %3380 = vmatpush1.msra.mxu0 0.0
      %3381 = vmatprep.subr.mxu0 0.0
      %3382 = vmatpush1.msra.mxu0 0.0
      %3383 = vmatprep.subr.mxu0 0.0
      %3384 = vmatpush1.msra.mxu0 0.0
      %3385 = vmatprep.subr.mxu0 0.0
      %3386 = vmatpush1.msra.mxu0 0.0
      %3387 = vmatprep.subr.mxu0 0.0
      %3388 = vmatpush1.msra.mxu0 0.0
      %3389 = vmatprep.subr.mxu0 0.0
      %3390 = vmatpush1.msra.mxu0 0.0
      %3391 = vmatprep.subr.mxu0 0.0
      %3392 = vmatpush1.msra.mxu0 0.0
      %3393 = vmatprep.subr.mxu0 0.0
      %3394 = vmatpush1.msra.mxu0 0.0
      %3395 = vmatprep.subr.mxu0 0.0
      %3396 = vmatpush1.msra.mxu0 0.0
      %3397 = vmatprep.subr.mxu0 0.0
      %3398 = vmatpush1.msra.mxu0 0.0
      %3399 = vmatprep.subr.mxu0 0.0
      %3400 = vmatpush1.msra.mxu0 0.0
      %3401 = vmatprep.subr.mxu0 0.0
      %3402 = vmatpush1.msra.mxu0 0.0
      %3403 = vmatprep.subr.mxu0 0.0
      %3404 = vmatpush1.msra.mxu0 0.0
      %3405 = vmatprep.subr.mxu0 0.0
      %3406 = vmatpush1.msra.mxu0 0.0
      %3407 = vmatprep.subr.mxu0 0.0
      %3408 = vmatpush1.msra.mxu0 0.0
      %3409 = vmatprep.mubr.f32.mxu0 0.0
      %3410 = vmatmul.mubr.f32.gmra.mrb[0].mxu0 %v3206
      %v3411 = vpop.f32.mrb[0].mxu0
      %v3412 = vadd.f32 0.0, %v3411
      %v3413 = vpop.f32.mrb[0].mxu0
      %3414 = vdwg.mxu0
      %v3415 = vshra.s32 %v386, 3
      %v3416 = vand.u32 %v386, 7
      %v3417 = vshra.s32 %v3415, 1
      %v3418 = vshll.u32 %v3417, 2
      %v3419 = vshra.s32 %v3416, 1
      %v3420 = vadd.s32 %v3418, %v3419
      %vm3421 = vcmp.eq.s32.totalorder %v3420, %v257
      %vm3422 = vcmp.eq.s32.totalorder %v3420, %v258
      %v3423 = vsel %vm3421, 1.0, 0.0
      %v3424 = vsel %vm3422, 1.0, 0.0
      %vm3425 = vcmask 130048
      %v3427 = vsel %vm3425, %v3412, 0
      %3429 = vmatprep.subr.mxu0 0.0
      %3430 = vmatpush1.msra.mxu0 %v3423
      %3431 = vmatprep.subr.mxu0 0.0
      %3432 = vmatpush1.msra.mxu0 %v3424
      %3433 = vmatprep.subr.mxu0 0.0
      %3434 = vmatpush1.msra.mxu0 0.0
      %3435 = vmatprep.subr.mxu0 0.0
      %3436 = vmatpush1.msra.mxu0 0.0
      %3437 = vmatprep.subr.mxu0 0.0
      %3438 = vmatpush1.msra.mxu0 0.0
      %3439 = vmatprep.subr.mxu0 0.0
      %3440 = vmatpush1.msra.mxu0 0.0
      %3441 = vmatprep.subr.mxu0 0.0
      %3442 = vmatpush1.msra.mxu0 0.0
      %3443 = vmatprep.subr.mxu0 0.0
      %3444 = vmatpush1.msra.mxu0 0.0
      %3445 = vmatprep.subr.mxu0 0.0
      %3446 = vmatpush1.msra.mxu0 0.0
      %3447 = vmatprep.subr.mxu0 0.0
      %3448 = vmatpush1.msra.mxu0 0.0
      %3449 = vmatprep.subr.mxu0 0.0
      %3450 = vmatpush1.msra.mxu0 0.0
      %3451 = vmatprep.subr.mxu0 0.0
      %3452 = vmatpush1.msra.mxu0 0.0
      %3453 = vmatprep.subr.mxu0 0.0
      %3454 = vmatpush1.msra.mxu0 0.0
      %3455 = vmatprep.subr.mxu0 0.0
      %3456 = vmatpush1.msra.mxu0 0.0
      %3457 = vmatprep.subr.mxu0 0.0
      %3458 = vmatpush1.msra.mxu0 0.0
      %3459 = vmatprep.subr.mxu0 0.0
      %3460 = vmatpush1.msra.mxu0 0.0
      %3461 = vmatprep.subr.mxu0 0.0
      %3462 = vmatpush1.msra.mxu0 0.0
      %3463 = vmatprep.subr.mxu0 0.0
      %3464 = vmatpush1.msra.mxu0 0.0
      %3465 = vmatprep.subr.mxu0 0.0
      %3466 = vmatpush1.msra.mxu0 0.0
      %3467 = vmatprep.subr.mxu0 0.0
      %3468 = vmatpush1.msra.mxu0 0.0
      %3469 = vmatprep.subr.mxu0 0.0
      %3470 = vmatpush1.msra.mxu0 0.0
      %3471 = vmatprep.subr.mxu0 0.0
      %3472 = vmatpush1.msra.mxu0 0.0
      %3473 = vmatprep.subr.mxu0 0.0
      %3474 = vmatpush1.msra.mxu0 0.0
      %3475 = vmatprep.subr.mxu0 0.0
      %3476 = vmatpush1.msra.mxu0 0.0
      %3477 = vmatprep.subr.mxu0 0.0
      %3478 = vmatpush1.msra.mxu0 0.0
      %3479 = vmatprep.subr.mxu0 0.0
      %3480 = vmatpush1.msra.mxu0 0.0
      %3481 = vmatprep.subr.mxu0 0.0
      %3482 = vmatpush1.msra.mxu0 0.0
      %3483 = vmatprep.subr.mxu0 0.0
      %3484 = vmatpush1.msra.mxu0 0.0
      %3485 = vmatprep.subr.mxu0 0.0
      %3486 = vmatpush1.msra.mxu0 0.0
      %3487 = vmatprep.subr.mxu0 0.0
      %3488 = vmatpush1.msra.mxu0 0.0
      %3489 = vmatprep.subr.mxu0 0.0
      %3490 = vmatpush1.msra.mxu0 0.0
      %3491 = vmatprep.subr.mxu0 0.0
      %3492 = vmatpush1.msra.mxu0 0.0
      %3493 = vmatprep.mubr.f32.mxu0 0.0
      %3494 = vmatmul.mubr.f32.gmra.mrb[0].mxu0 %v3427
      %v3495 = vpop.f32.mrb[0].mxu0
      %v3496 = vadd.f32 0.0, %v3495
      %v3497 = vpop.f32.mrb[0].mxu0
      %3498 = vdwg.mxu0
      %v3499 = vsub.f32 %v3157, %v3496
      %v3500 = vshra.s32 %v257, 2
      %v3501 = vshra.s32 %v258, 2
      %v3502 = vand.u32 %v257, 3
      %v3503 = vand.u32 %v258, 3
      %v3504 = vshra.s32 %v3500, 1
      %v3505 = vshra.s32 %v3501, 1
      %v3506 = vshll.u32 %v3504, 1
      %v3507 = vshll.u32 %v3505, 1
      %v3508 = vshra.s32 %v3502, 1
      %v3509 = vshra.s32 %v3503, 1
      %v3510 = vadd.s32 %v3506, %v3508
      %v3511 = vadd.s32 %v3507, %v3509
      %vm3512 = vcmp.eq.s32.totalorder %v3510, %v386
      %vm3513 = vcmp.eq.s32.totalorder %v3511, %v386
      %v3514 = vsel %vm3512, 0.25, 0.0
      %v3515 = vsel %vm3513, 0.25, 0.0
      %3516 = vmatprep.subr.mxu0 0.0
      %3517 = vmatpush1.msra.mxu0 %v3514
      %3518 = vmatprep.subr.mxu0 0.0
      %3519 = vmatpush1.msra.mxu0 %v3515
      %3520 = vmatprep.subr.mxu0 0.0
      %3521 = vmatpush1.msra.mxu0 0.0
      %3522 = vmatprep.subr.mxu0 0.0
      %3523 = vmatpush1.msra.mxu0 0.0
      %3524 = vmatprep.subr.mxu0 0.0
      %3525 = vmatpush1.msra.mxu0 0.0
      %3526 = vmatprep.subr.mxu0 0.0
      %3527 = vmatpush1.msra.mxu0 0.0
      %3528 = vmatprep.subr.mxu0 0.0
      %3529 = vmatpush1.msra.mxu0 0.0
      %3530 = vmatprep.subr.mxu0 0.0
      %3531 = vmatpush1.msra.mxu0 0.0
      %3532 = vmatprep.subr.mxu0 0.0
      %3533 = vmatpush1.msra.mxu0 0.0
      %3534 = vmatprep.subr.mxu0 0.0
      %3535 = vmatpush1.msra.mxu0 0.0
      %3536 = vmatprep.subr.mxu0 0.0
      %3537 = vmatpush1.msra.mxu0 0.0
      %3538 = vmatprep.subr.mxu0 0.0
      %3539 = vmatpush1.msra.mxu0 0.0
      %3540 = vmatprep.subr.mxu0 0.0
      %3541 = vmatpush1.msra.mxu0 0.0
      %3542 = vmatprep.subr.mxu0 0.0
      %3543 = vmatpush1.msra.mxu0 0.0
      %3544 = vmatprep.subr.mxu0 0.0
      %3545 = vmatpush1.msra.mxu0 0.0
      %3546 = vmatprep.subr.mxu0 0.0
      %3547 = vmatpush1.msra.mxu0 0.0
      %3548 = vmatprep.subr.mxu0 0.0
      %3549 = vmatpush1.msra.mxu0 0.0
      %3550 = vmatprep.subr.mxu0 0.0
      %3551 = vmatpush1.msra.mxu0 0.0
      %3552 = vmatprep.subr.mxu0 0.0
      %3553 = vmatpush1.msra.mxu0 0.0
      %3554 = vmatprep.subr.mxu0 0.0
      %3555 = vmatpush1.msra.mxu0 0.0
      %3556 = vmatprep.subr.mxu0 0.0
      %3557 = vmatpush1.msra.mxu0 0.0
      %3558 = vmatprep.subr.mxu0 0.0
      %3559 = vmatpush1.msra.mxu0 0.0
      %3560 = vmatprep.subr.mxu0 0.0
      %3561 = vmatpush1.msra.mxu0 0.0
      %3562 = vmatprep.subr.mxu0 0.0
      %3563 = vmatpush1.msra.mxu0 0.0
      %3564 = vmatprep.subr.mxu0 0.0
      %3565 = vmatpush1.msra.mxu0 0.0
      %3566 = vmatprep.subr.mxu0 0.0
      %3567 = vmatpush1.msra.mxu0 0.0
      %3568 = vmatprep.subr.mxu0 0.0
      %3569 = vmatpush1.msra.mxu0 0.0
      %3570 = vmatprep.subr.mxu0 0.0
      %3571 = vmatpush1.msra.mxu0 0.0
      %3572 = vmatprep.subr.mxu0 0.0
      %3573 = vmatpush1.msra.mxu0 0.0
      %3574 = vmatprep.subr.mxu0 0.0
      %3575 = vmatpush1.msra.mxu0 0.0
      %3576 = vmatprep.subr.mxu0 0.0
      %3577 = vmatpush1.msra.mxu0 0.0
      %3578 = vmatprep.subr.mxu0 0.0
      %3579 = vmatpush1.msra.mxu0 0.0
      %3580 = vmatprep.mubr.f32.mxu0 0.0
      %3581 = vmatmul.mubr.f32.gmra.mrb[0].mxu0 %v3427
      %v3582 = vpop.f32.mrb[0].mxu0
      %v3583 = vadd.f32 0.0, %v3582
      %v3584 = vpop.f32.mrb[0].mxu0
      %3585 = vdwg.mxu0
      %v3586 = vshra.s32 %v386, 2
      %v3587 = vand.u32 %v386, 3
      %v3588 = vshra.s32 %v3586, 1
      %v3589 = vshll.u32 %v3588, 1
      %v3590 = vshra.s32 %v3587, 1
      %v3591 = vadd.s32 %v3589, %v3590
      %vm3592 = vcmp.eq.s32.totalorder %v3591, %v257
      %v3593 = vsel %vm3592, 1.0, 0.0
      %vm3594 = vcmask 31744
      %v3596 = vsel %vm3594, %v3583, 0
      %vm3598 = vcmask 1043456
      %v3600 = vsel %vm3598, %v3593, 0
      %3602 = vmatprep.subr.mxu0 0.0
      %3603 = vmatpush1.msra.mxu0 %v3600
      %3604 = vmatprep.subr.mxu0 0.0
      %3605 = vmatpush1.msra.mxu0 0.0
      %3606 = vmatprep.subr.mxu0 0.0
      %3607 = vmatpush1.msra.mxu0 0.0
      %3608 = vmatprep.subr.mxu0 0.0
      %3609 = vmatpush1.msra.mxu0 0.0
      %3610 = vmatprep.subr.mxu0 0.0
      %3611 = vmatpush1.msra.mxu0 0.0
      %3612 = vmatprep.subr.mxu0 0.0
      %3613 = vmatpush1.msra.mxu0 0.0
      %3614 = vmatprep.subr.mxu0 0.0
      %3615 = vmatpush1.msra.mxu0 0.0
      %3616 = vmatprep.subr.mxu0 0.0
      %3617 = vmatpush1.msra.mxu0 0.0
      %3618 = vmatprep.subr.mxu0 0.0
      %3619 = vmatpush1.msra.mxu0 0.0
      %3620 = vmatprep.subr.mxu0 0.0
      %3621 = vmatpush1.msra.mxu0 0.0
      %3622 = vmatprep.subr.mxu0 0.0
      %3623 = vmatpush1.msra.mxu0 0.0
      %3624 = vmatprep.subr.mxu0 0.0
      %3625 = vmatpush1.msra.mxu0 0.0
      %3626 = vmatprep.subr.mxu0 0.0
      %3627 = vmatpush1.msra.mxu0 0.0
      %3628 = vmatprep.subr.mxu0 0.0
      %3629 = vmatpush1.msra.mxu0 0.0
      %3630 = vmatprep.subr.mxu0 0.0
      %3631 = vmatpush1.msra.mxu0 0.0
      %3632 = vmatprep.subr.mxu0 0.0
      %3633 = vmatpush1.msra.mxu0 0.0
      %3634 = vmatprep.subr.mxu0 0.0
      %3635 = vmatpush1.msra.mxu0 0.0
      %3636 = vmatprep.subr.mxu0 0.0
      %3637 = vmatpush1.msra.mxu0 0.0
      %3638 = vmatprep.subr.mxu0 0.0
      %3639 = vmatpush1.msra.mxu0 0.0
      %3640 = vmatprep.subr.mxu0 0.0
      %3641 = vmatpush1.msra.mxu0 0.0
      %3642 = vmatprep.subr.mxu0 0.0
      %3643 = vmatpush1.msra.mxu0 0.0
      %3644 = vmatprep.subr.mxu0 0.0
      %3645 = vmatpush1.msra.mxu0 0.0
      %3646 = vmatprep.subr.mxu0 0.0
      %3647 = vmatpush1.msra.mxu0 0.0
      %3648 = vmatprep.subr.mxu0 0.0
      %3649 = vmatpush1.msra.mxu0 0.0
      %3650 = vmatprep.subr.mxu0 0.0
      %3651 = vmatpush1.msra.mxu0 0.0
      %3652 = vmatprep.subr.mxu0 0.0
      %3653 = vmatpush1.msra.mxu0 0.0
      %3654 = vmatprep.subr.mxu0 0.0
      %3655 = vmatpush1.msra.mxu0 0.0
      %3656 = vmatprep.subr.mxu0 0.0
      %3657 = vmatpush1.msra.mxu0 0.0
      %3658 = vmatprep.subr.mxu0 0.0
      %3659 = vmatpush1.msra.mxu0 0.0
      %3660 = vmatprep.subr.mxu0 0.0
      %3661 = vmatpush1.msra.mxu0 0.0
      %3662 = vmatprep.subr.mxu0 0.0
      %3663 = vmatpush1.msra.mxu0 0.0
      %3664 = vmatprep.subr.mxu0 0.0
      %3665 = vmatpush1.msra.mxu0 0.0
      %3666 = vmatprep.mubr.f32.mxu0 0.0
      %3667 = vmatmul.mubr.f32.gmra.mrb[0].mxu0 %v3596
      %v3668 = vpop.f32.mrb[0].mxu0
      %v3669 = vadd.f32 0.0, %v3668
      %v3670 = vpop.f32.mrb[0].mxu0
      %3671 = vdwg.mxu0
      %v3672 = vsub.f32 %v3412, %v3669
      %v3673 = vld [vmem:[%s1] sm:$0xff]
      %v3674 = vld [vmem:[%s3] sm:$0xff]
      %3676 = vset.pattern.permute.xlu0 0
      %3677 = vperm.xlu0 %3676, %v3674
      %v3678 = vpop.permute.xlu0 %3677
      %vm3680 = vcmask 23552
      %v3682 = vsel %vm3680, %v3673, 0
      %vm3684 = vcmask 1042432
      %v3685 = vsel %vm3684, %v3583, 0
      %3687 = vmatprep.subr.mxu0 0.0
      %3688 = vmatpush1.msra.mxu0 %v3685
      %3689 = vmatprep.subr.mxu0 0.0
      %3690 = vmatpush1.msra.mxu0 0.0
      %3691 = vmatprep.subr.mxu0 0.0
      %3692 = vmatpush1.msra.mxu0 0.0
      %3693 = vmatprep.subr.mxu0 0.0
      %3694 = vmatpush1.msra.mxu0 0.0
      %3695 = vmatprep.subr.mxu0 0.0
      %3696 = vmatpush1.msra.mxu0 0.0
      %3697 = vmatprep.subr.mxu0 0.0
      %3698 = vmatpush1.msra.mxu0 0.0
      %3699 = vmatprep.subr.mxu0 0.0
      %3700 = vmatpush1.msra.mxu0 0.0
      %3701 = vmatprep.subr.mxu0 0.0
      %3702 = vmatpush1.msra.mxu0 0.0
      %3703 = vmatprep.subr.mxu0 0.0
      %3704 = vmatpush1.msra.mxu0 0.0
      %3705 = vmatprep.subr.mxu0 0.0
      %3706 = vmatpush1.msra.mxu0 0.0
      %3707 = vmatprep.subr.mxu0 0.0
      %3708 = vmatpush1.msra.mxu0 0.0
      %3709 = vmatprep.subr.mxu0 0.0
      %3710 = vmatpush1.msra.mxu0 0.0
      %3711 = vmatprep.subr.mxu0 0.0
      %3712 = vmatpush1.msra.mxu0 0.0
      %3713 = vmatprep.subr.mxu0 0.0
      %3714 = vmatpush1.msra.mxu0 0.0
      %3715 = vmatprep.subr.mxu0 0.0
      %3716 = vmatpush1.msra.mxu0 0.0
      %3717 = vmatprep.subr.mxu0 0.0
      %3718 = vmatpush1.msra.mxu0 0.0
      %3719 = vmatprep.subr.mxu0 0.0
      %3720 = vmatpush1.msra.mxu0 0.0
      %3721 = vmatprep.subr.mxu0 0.0
      %3722 = vmatpush1.msra.mxu0 0.0
      %3723 = vmatprep.subr.mxu0 0.0
      %3724 = vmatpush1.msra.mxu0 0.0
      %3725 = vmatprep.subr.mxu0 0.0
      %3726 = vmatpush1.msra.mxu0 0.0
      %3727 = vmatprep.subr.mxu0 0.0
      %3728 = vmatpush1.msra.mxu0 0.0
      %3729 = vmatprep.subr.mxu0 0.0
      %3730 = vmatpush1.msra.mxu0 0.0
      %3731 = vmatprep.subr.mxu0 0.0
      %3732 = vmatpush1.msra.mxu0 0.0
      %3733 = vmatprep.subr.mxu0 0.0
      %3734 = vmatpush1.msra.mxu0 0.0
      %3735 = vmatprep.subr.mxu0 0.0
      %3736 = vmatpush1.msra.mxu0 0.0
      %3737 = vmatprep.subr.mxu0 0.0
      %3738 = vmatpush1.msra.mxu0 0.0
      %3739 = vmatprep.subr.mxu0 0.0
      %3740 = vmatpush1.msra.mxu0 0.0
      %3741 = vmatprep.subr.mxu0 0.0
      %3742 = vmatpush1.msra.mxu0 0.0
      %3743 = vmatprep.subr.mxu0 0.0
      %3744 = vmatpush1.msra.mxu0 0.0
      %3745 = vmatprep.subr.mxu0 0.0
      %3746 = vmatpush1.msra.mxu0 0.0
      %3747 = vmatprep.subr.mxu0 0.0
      %3748 = vmatpush1.msra.mxu0 0.0
      %3749 = vmatprep.subr.mxu0 0.0
      %3750 = vmatpush1.msra.mxu0 0.0
      %3751 = vmatprep.mubr.f32.mxu0 0.0
      %3752 = vmatmul.mubr.f32.gmra.mrb[0].mxu0 %v3682
      %v3753 = vpop.f32.mrb[0].mxu0
      %v3754 = vadd.f32 %v3678, %v3753
      %v3755 = vpop.f32.mrb[0].mxu0
      %3756 = vdwg.mxu0
      %v3757 = vmax.f32 %v3754, 0.0
      %3758 = vst [vmem:[#allocation2] sm:$0xff] 0.0
      %3759 = vst [vmem:[#allocation2 + $0x8] sm:$0xff] 0.0
      %3760 = vst [vmem:[#allocation2 + $0x10] sm:$0xff] 0.0
      %3761 = vst [vmem:[#allocation2 + $0x18] sm:$0xff] 0.0
      %3762 = vst [vmem:[#allocation2 + $0x20] sm:$0xff] 0.0
      %3763 = vst [vmem:[#allocation2 + $0x28] sm:$0xff] 0.0
      %3764 = vst [vmem:[#allocation2 + $0x30] sm:$0xff] 0.0
      %3765 = vst [vmem:[#allocation2 + $0x38] sm:$0xff] 0.0
      %3766 = vst [vmem:[#allocation2 + $0x40] sm:$0xff] 0.0
      %3767 = vst [vmem:[#allocation2 + $0x48] sm:$0xff] 0.0
      %3768 = vst.msk [vmem:[#allocation2 + $0x8] sm:$0xff] %vm3594, %v3757
      %v3769 = vand.u32 %v386, 1
      %vm3770 = vcmp.gt.s32.totalorder %v3769, 0
      %vm3771 = vcmp.lt.s32.totalorder %v3769, 1
      %s3772 = scalar_lea.vmem %s4, 32
      %v3773 = vld [vmem:[%s3772] sm:$0xff]
      %3775 = vset.pattern.permute.xlu0 0
      %3776 = vperm.xlu0 %3775, %v3773
      %v3777 = vpop.permute.xlu0 %3776
      %v3779 = vmul.f32 %v3757, %v3777
      %v3780 = vld [vmem:[#allocation2] sm:$0xff]
      %v3781 = vld [vmem:[#allocation2 + $0x8] sm:$0xff]
      %v3782 = vsel %vm3770, 1, 0
      %vm3783 = vcmp.eq.s32.totalorder %v3782, 1
      %3786 = vrot.lane.b32.xlu0 %v3780, 3
      %v3787 = vpop.permute.xlu0 %3786
      %3788 = vrot.lane.b32.xlu0 %v3781, 3
      %v3789 = vpop.permute.xlu0 %3788
      %v3790 = vsel %vm3680, %v3787, %v3789
      %v3792 = vsel %vm3783, %v3790, 0.0
      %v3793 = vld [vmem:[%s4] sm:$0xff]
      %3795 = vset.pattern.permute.xlu0 0
      %3796 = vperm.xlu0 %3795, %v3793
      %v3797 = vpop.permute.xlu0 %3796
      %v3799 = vmul.f32 %v3792, %v3797
      %v3800 = vadd.f32 %v3779, %v3799
      %s3801 = scalar_lea.vmem %s4, 8
      %v3802 = vld [vmem:[%s3801] sm:$0xff]
      %3804 = vset.pattern.permute.xlu0 0
      %3805 = vperm.xlu0 %3804, %v3802
      %v3806 = vpop.permute.xlu0 %3805
      %v3808 = vmul.f32 %v3780, %v3806
      %v3809 = vmul.f32 %v3781, %v3806
      %3812 = vrot.lane.b32.xlu0 %v3808, 2
      %v3813 = vpop.permute.xlu0 %3812
      %3814 = vrot.lane.b32.xlu0 %v3809, 2
      %v3815 = vpop.permute.xlu0 %3814
      %vm3816 = vcmask 15360
      %v3817 = vsel %vm3816, %v3813, %v3815
      %v3819 = vadd.f32 %v3800, %v3817
      %v3820 = vsel %vm3771, 1, 0
      %vm3821 = vcmp.eq.s32.totalorder %v3820, 1
      %3822 = vrot.lane.b32.xlu0 %v3780, 1
      %v3823 = vpop.permute.xlu0 %3822
      %3824 = vrot.lane.b32.xlu0 %v3781, 1
      %v3825 = vpop.permute.xlu0 %3824
      %vm3826 = vcmask 7168
      %v3827 = vsel %vm3826, %v3823, %v3825
      %v3829 = vsel %vm3821, %v3827, 0.0
      %s3830 = scalar_lea.vmem %s4, 16
      %v3831 = vld [vmem:[%s3830] sm:$0xff]
      %3833 = vset.pattern.permute.xlu0 0
      %3834 = vperm.xlu0 %3833, %v3831
      %v3835 = vpop.permute.xlu0 %3834
      %v3837 = vmul.f32 %v3829, %v3835
      %v3838 = vadd.f32 %v3819, %v3837
      %v3839 = vsel %vm3783, %v3827, 0.0
      %s3840 = scalar_lea.vmem %s4, 24
      %v3841 = vld [vmem:[%s3840] sm:$0xff]
      %3843 = vset.pattern.permute.xlu0 0
      %3844 = vperm.xlu0 %3843, %v3841
      %v3845 = vpop.permute.xlu0 %3844
      %v3847 = vmul.f32 %v3839, %v3845
      %v3848 = vadd.f32 %v3838, %v3847
      %3849 = vrot.lane.b32.xlu0 %v3781, 127
      %v3850 = vpop.permute.xlu0 %3849
      %v3852 = vsel %vm3821, %v3850, 0.0
      %s3853 = scalar_lea.vmem %s4, 40
      %v3854 = vld [vmem:[%s3853] sm:$0xff]
      %3856 = vset.pattern.permute.xlu0 0
      %3857 = vperm.xlu0 %3856, %v3854
      %v3858 = vpop.permute.xlu0 %3857
      %v3860 = vmul.f32 %v3852, %v3858
      %v3861 = vadd.f32 %v3848, %v3860
      %v3862 = vsel %vm3783, %v3850, 0.0
      %s3863 = scalar_lea.vmem %s4, 48
      %v3864 = vld [vmem:[%s3863] sm:$0xff]
      %3866 = vset.pattern.permute.xlu0 0
      %3867 = vperm.xlu0 %3866, %v3864
      %v3868 = vpop.permute.xlu0 %3867
      %v3870 = vmul.f32 %v3862, %v3868
      %v3871 = vadd.f32 %v3861, %v3870
      %s3872 = scalar_lea.vmem %s4, 56
      %v3873 = vld [vmem:[%s3872] sm:$0xff]
      %3875 = vset.pattern.permute.xlu0 0
      %3876 = vperm.xlu0 %3875, %v3873
      %v3877 = vpop.permute.xlu0 %3876
      %v3879 = vmul.f32 %v3781, %v3877
      %3881 = vrot.lane.b32.xlu0 %v3879, 126
      %v3882 = vpop.permute.xlu0 %3881
      %v3884 = vadd.f32 %v3871, %v3882
      %3885 = vrot.lane.b32.xlu0 %v3781, 125
      %v3886 = vpop.permute.xlu0 %3885
      %v3888 = vsel %vm3821, %v3886, 0.0
      %s3889 = scalar_lea.vmem %s4, 64
      %v3890 = vld [vmem:[%s3889] sm:$0xff]
      %3892 = vset.pattern.permute.xlu0 0
      %3893 = vperm.xlu0 %3892, %v3890
      %v3894 = vpop.permute.xlu0 %3893
      %v3896 = vmul.f32 %v3888, %v3894
      %v3897 = vadd.f32 %v3884, %v3896
      %v3898 = vld [vmem:[%s5] sm:$0xff]
      %3900 = vset.pattern.permute.xlu0 0
      %3901 = vperm.xlu0 %3900, %v3898
      %v3902 = vpop.permute.xlu0 %3901
      %v3904 = vadd.f32 %v3897, %v3902
      %v3905 = vmax.f32 %v3904, 0.0
      %s3906 = scalar_lea.vmem %s1, 8
      %v3907 = vld [vmem:[%s3906] sm:$0xff]
      %s3908 = scalar_lea.vmem %s2, 8
      %v3909 = vld [vmem:[%s3908] sm:$0xff]
      %vm3910 = vcmask 64512
      %v3912 = vsel %vm3910, %v3909, 0
      %3914 = vmatprep.subr.mxu0 0.0
      %3915 = vmatpush1.msra.mxu0 %v3905
      %3916 = vmatprep.subr.mxu0 0.0
      %3917 = vmatpush1.msra.mxu0 0.0
      %3918 = vmatprep.subr.mxu0 0.0
      %3919 = vmatpush1.msra.mxu0 0.0
      %3920 = vmatprep.subr.mxu0 0.0
      %3921 = vmatpush1.msra.mxu0 0.0
      %3922 = vmatprep.subr.mxu0 0.0
      %3923 = vmatpush1.msra.mxu0 0.0
      %3924 = vmatprep.subr.mxu0 0.0
      %3925 = vmatpush1.msra.mxu0 0.0
      %3926 = vmatprep.subr.mxu0 0.0
      %3927 = vmatpush1.msra.mxu0 0.0
      %3928 = vmatprep.subr.mxu0 0.0
      %3929 = vmatpush1.msra.mxu0 0.0
      %3930 = vmatprep.subr.mxu0 0.0
      %3931 = vmatpush1.msra.mxu0 0.0
      %3932 = vmatprep.subr.mxu0 0.0
      %3933 = vmatpush1.msra.mxu0 0.0
      %3934 = vmatprep.subr.mxu0 0.0
      %3935 = vmatpush1.msra.mxu0 0.0
      %3936 = vmatprep.subr.mxu0 0.0
      %3937 = vmatpush1.msra.mxu0 0.0
      %3938 = vmatprep.subr.mxu0 0.0
      %3939 = vmatpush1.msra.mxu0 0.0
      %3940 = vmatprep.subr.mxu0 0.0
      %3941 = vmatpush1.msra.mxu0 0.0
      %3942 = vmatprep.subr.mxu0 0.0
      %3943 = vmatpush1.msra.mxu0 0.0
      %3944 = vmatprep.subr.mxu0 0.0
      %3945 = vmatpush1.msra.mxu0 0.0
      %3946 = vmatprep.subr.mxu0 0.0
      %3947 = vmatpush1.msra.mxu0 0.0
      %3948 = vmatprep.subr.mxu0 0.0
      %3949 = vmatpush1.msra.mxu0 0.0
      %3950 = vmatprep.subr.mxu0 0.0
      %3951 = vmatpush1.msra.mxu0 0.0
      %3952 = vmatprep.subr.mxu0 0.0
      %3953 = vmatpush1.msra.mxu0 0.0
      %3954 = vmatprep.subr.mxu0 0.0
      %3955 = vmatpush1.msra.mxu0 0.0
      %3956 = vmatprep.subr.mxu0 0.0
      %3957 = vmatpush1.msra.mxu0 0.0
      %3958 = vmatprep.subr.mxu0 0.0
      %3959 = vmatpush1.msra.mxu0 0.0
      %3960 = vmatprep.subr.mxu0 0.0
      %3961 = vmatpush1.msra.mxu0 0.0
      %3962 = vmatprep.subr.mxu0 0.0
      %3963 = vmatpush1.msra.mxu0 0.0
      %3964 = vmatprep.subr.mxu0 0.0
      %3965 = vmatpush1.msra.mxu0 0.0
      %3966 = vmatprep.subr.mxu0 0.0
      %3967 = vmatpush1.msra.mxu0 0.0
      %3968 = vmatprep.subr.mxu0 0.0
      %3969 = vmatpush1.msra.mxu0 0.0
      %3970 = vmatprep.subr.mxu0 0.0
      %3971 = vmatpush1.msra.mxu0 0.0
      %3972 = vmatprep.subr.mxu0 0.0
      %3973 = vmatpush1.msra.mxu0 0.0
      %3974 = vmatprep.subr.mxu0 0.0
      %3975 = vmatpush1.msra.mxu0 0.0
      %3976 = vmatprep.subr.mxu0 0.0
      %3977 = vmatpush1.msra.mxu0 0.0
      %3978 = vmatprep.mubr.f32.mxu0 0.0
      %3979 = vmatmul.mubr.f32.gmra.mrb[0].mxu0 %v3912
      %v3980 = vpop.f32.mrb[0].mxu0
      %v3981 = vadd.f32 0.0, %v3980
      %v3982 = vpop.f32.mrb[0].mxu0
      %3983 = vdwg.mxu0
      %v3985 = vsel %vm3594, %v3981, 0
      %3987 = vmatprep.subr.mxu0 0.0
      %3988 = vmatpush1.msra.mxu0 %v3600
      %3989 = vmatprep.subr.mxu0 0.0
      %3990 = vmatpush1.msra.mxu0 0.0
      %3991 = vmatprep.subr.mxu0 0.0
      %3992 = vmatpush1.msra.mxu0 0.0
      %3993 = vmatprep.subr.mxu0 0.0
      %3994 = vmatpush1.msra.mxu0 0.0
      %3995 = vmatprep.subr.mxu0 0.0
      %3996 = vmatpush1.msra.mxu0 0.0
      %3997 = vmatprep.subr.mxu0 0.0
      %3998 = vmatpush1.msra.mxu0 0.0
      %3999 = vmatprep.subr.mxu0 0.0
      %4000 = vmatpush1.msra.mxu0 0.0
      %4001 = vmatprep.subr.mxu0 0.0
      %4002 = vmatpush1.msra.mxu0 0.0
      %4003 = vmatprep.subr.mxu0 0.0
      %4004 = vmatpush1.msra.mxu0 0.0
      %4005 = vmatprep.subr.mxu0 0.0
      %4006 = vmatpush1.msra.mxu0 0.0
      %4007 = vmatprep.subr.mxu0 0.0
      %4008 = vmatpush1.msra.mxu0 0.0
      %4009 = vmatprep.subr.mxu0 0.0
      %4010 = vmatpush1.msra.mxu0 0.0
      %4011 = vmatprep.subr.mxu0 0.0
      %4012 = vmatpush1.msra.mxu0 0.0
      %4013 = vmatprep.subr.mxu0 0.0
      %4014 = vmatpush1.msra.mxu0 0.0
      %4015 = vmatprep.subr.mxu0 0.0
      %4016 = vmatpush1.msra.mxu0 0.0
      %4017 = vmatprep.subr.mxu0 0.0
      %4018 = vmatpush1.msra.mxu0 0.0
      %4019 = vmatprep.subr.mxu0 0.0
      %4020 = vmatpush1.msra.mxu0 0.0
      %4021 = vmatprep.subr.mxu0 0.0
      %4022 = vmatpush1.msra.mxu0 0.0
      %4023 = vmatprep.subr.mxu0 0.0
      %4024 = vmatpush1.msra.mxu0 0.0
      %4025 = vmatprep.subr.mxu0 0.0
      %4026 = vmatpush1.msra.mxu0 0.0
      %4027 = vmatprep.subr.mxu0 0.0
      %4028 = vmatpush1.msra.mxu0 0.0
      %4029 = vmatprep.subr.mxu0 0.0
      %4030 = vmatpush1.msra.mxu0 0.0
      %4031 = vmatprep.subr.mxu0 0.0
      %4032 = vmatpush1.msra.mxu0 0.0
      %4033 = vmatprep.subr.mxu0 0.0
      %4034 = vmatpush1.msra.mxu0 0.0
      %4035 = vmatprep.subr.mxu0 0.0
      %4036 = vmatpush1.msra.mxu0 0.0
      %4037 = vmatprep.subr.mxu0 0.0
      %4038 = vmatpush1.msra.mxu0 0.0
      %4039 = vmatprep.subr.mxu0 0.0
      %4040 = vmatpush1.msra.mxu0 0.0
      %4041 = vmatprep.subr.mxu0 0.0
      %4042 = vmatpush1.msra.mxu0 0.0
      %4043 = vmatprep.subr.mxu0 0.0
      %4044 = vmatpush1.msra.mxu0 0.0
      %4045 = vmatprep.subr.mxu0 0.0
      %4046 = vmatpush1.msra.mxu0 0.0
      %4047 = vmatprep.subr.mxu0 0.0
      %4048 = vmatpush1.msra.mxu0 0.0
      %4049 = vmatprep.subr.mxu0 0.0
      %4050 = vmatpush1.msra.mxu0 0.0
      %4051 = vmatprep.mubr.f32.mxu0 0.0
      %4052 = vmatmul.mubr.f32.gmra.mrb[0].mxu0 %v3985
      %v4053 = vpop.f32.mrb[0].mxu0
      %v4054 = vadd.f32 0.0, %v4053
      %v4055 = vpop.f32.mrb[0].mxu0
      %4056 = vdwg.mxu0
      %v4058 = vsel %vm3680, %v3907, 0
      %v4061 = vsel %vm3684, %v3672, 0
      %4063 = vmatprep.subr.mxu0 0.0
      %4064 = vmatpush1.msra.mxu0 %v4061
      %4065 = vmatprep.subr.mxu0 0.0
      %4066 = vmatpush1.msra.mxu0 0.0
      %4067 = vmatprep.subr.mxu0 0.0
      %4068 = vmatpush1.msra.mxu0 0.0
      %4069 = vmatprep.subr.mxu0 0.0
      %4070 = vmatpush1.msra.mxu0 0.0
      %4071 = vmatprep.subr.mxu0 0.0
      %4072 = vmatpush1.msra.mxu0 0.0
      %4073 = vmatprep.subr.mxu0 0.0
      %4074 = vmatpush1.msra.mxu0 0.0
      %4075 = vmatprep.subr.mxu0 0.0
      %4076 = vmatpush1.msra.mxu0 0.0
      %4077 = vmatprep.subr.mxu0 0.0
      %4078 = vmatpush1.msra.mxu0 0.0
      %4079 = vmatprep.subr.mxu0 0.0
      %4080 = vmatpush1.msra.mxu0 0.0
      %4081 = vmatprep.subr.mxu0 0.0
      %4082 = vmatpush1.msra.mxu0 0.0
      %4083 = vmatprep.subr.mxu0 0.0
      %4084 = vmatpush1.msra.mxu0 0.0
      %4085 = vmatprep.subr.mxu0 0.0
      %4086 = vmatpush1.msra.mxu0 0.0
      %4087 = vmatprep.subr.mxu0 0.0
      %4088 = vmatpush1.msra.mxu0 0.0
      %4089 = vmatprep.subr.mxu0 0.0
      %4090 = vmatpush1.msra.mxu0 0.0
      %4091 = vmatprep.subr.mxu0 0.0
      %4092 = vmatpush1.msra.mxu0 0.0
      %4093 = vmatprep.subr.mxu0 0.0
      %4094 = vmatpush1.msra.mxu0 0.0
      %4095 = vmatprep.subr.mxu0 0.0
      %4096 = vmatpush1.msra.mxu0 0.0
      %4097 = vmatprep.subr.mxu0 0.0
      %4098 = vmatpush1.msra.mxu0 0.0
      %4099 = vmatprep.subr.mxu0 0.0
      %4100 = vmatpush1.msra.mxu0 0.0
      %4101 = vmatprep.subr.mxu0 0.0
      %4102 = vmatpush1.msra.mxu0 0.0
      %4103 = vmatprep.subr.mxu0 0.0
      %4104 = vmatpush1.msra.mxu0 0.0
      %4105 = vmatprep.subr.mxu0 0.0
      %4106 = vmatpush1.msra.mxu0 0.0
      %4107 = vmatprep.subr.mxu0 0.0
      %4108 = vmatpush1.msra.mxu0 0.0
      %4109 = vmatprep.subr.mxu0 0.0
      %4110 = vmatpush1.msra.mxu0 0.0
      %4111 = vmatprep.subr.mxu0 0.0
      %4112 = vmatpush1.msra.mxu0 0.0
      %4113 = vmatprep.subr.mxu0 0.0
      %4114 = vmatpush1.msra.mxu0 0.0
      %4115 = vmatprep.subr.mxu0 0.0
      %4116 = vmatpush1.msra.mxu0 0.0
      %4117 = vmatprep.subr.mxu0 0.0
      %4118 = vmatpush1.msra.mxu0 0.0
      %4119 = vmatprep.subr.mxu0 0.0
      %4120 = vmatpush1.msra.mxu0 0.0
      %4121 = vmatprep.subr.mxu0 0.0
      %4122 = vmatpush1.msra.mxu0 0.0
      %4123 = vmatprep.subr.mxu0 0.0
      %4124 = vmatpush1.msra.mxu0 0.0
      %4125 = vmatprep.subr.mxu0 0.0
      %4126 = vmatpush1.msra.mxu0 0.0
      %4127 = vmatprep.mubr.f32.mxu0 0.0
      %4128 = vmatmul.mubr.f32.gmra.mrb[0].mxu0 %v4058
      %v4129 = vpop.f32.mrb[0].mxu0
      %v4130 = vadd.f32 %v4054, %v4129
      %v4131 = vpop.f32.mrb[0].mxu0
      %4132 = vdwg.mxu0
      %s4133 = scalar_lea.vmem %s3, 8
      %v4134 = vld [vmem:[%s4133] sm:$0xff]
      %4136 = vset.pattern.permute.xlu0 0
      %4137 = vperm.xlu0 %4136, %v4134
      %v4138 = vpop.permute.xlu0 %4137
      %v4140 = vadd.f32 %v4130, %v4138
      %v4141 = vmax.f32 %v4140, 0.0
      %4142 = vst [vmem:[#allocation2] sm:$0xff] 0.0
      %4143 = vst [vmem:[#allocation2 + $0x8] sm:$0xff] 0.0
      %4144 = vst [vmem:[#allocation2 + $0x10] sm:$0xff] 0.0
      %4145 = vst [vmem:[#allocation2 + $0x18] sm:$0xff] 0.0
      %4146 = vst [vmem:[#allocation2 + $0x20] sm:$0xff] 0.0
      %4147 = vst [vmem:[#allocation2 + $0x28] sm:$0xff] 0.0
      %4148 = vst [vmem:[#allocation2 + $0x30] sm:$0xff] 0.0
      %4149 = vst [vmem:[#allocation2 + $0x38] sm:$0xff] 0.0
      %4150 = vst [vmem:[#allocation2 + $0x40] sm:$0xff] 0.0
      %4151 = vst [vmem:[#allocation2 + $0x48] sm:$0xff] 0.0
      %4152 = vst.msk [vmem:[#allocation2 + $0x8] sm:$0xff] %vm3425, %v4141
      %vm4153 = vcmp.gt.s32.totalorder %v3587, 0
      %vm4154 = vcmp.lt.s32.totalorder %v3587, 3
      %s4155 = scalar_lea.vmem %s4, 104
      %v4156 = vld [vmem:[%s4155] sm:$0xff]
      %4158 = vset.pattern.permute.xlu0 0
      %4159 = vperm.xlu0 %4158, %v4156
      %v4160 = vpop.permute.xlu0 %4159
      %v4162 = vmul.f32 %v4141, %v4160
      %v4163 = vld [vmem:[#allocation2] sm:$0xff]
      %v4164 = vld [vmem:[#allocation2 + $0x8] sm:$0xff]
      %v4165 = vsel %vm4153, 1, 0
      %vm4166 = vcmp.eq.s32.totalorder %v4165, 1
      %4169 = vrot.lane.b32.xlu0 %v4163, 5
      %v4170 = vpop.permute.xlu0 %4169
      %4171 = vrot.lane.b32.xlu0 %v4164, 5
      %v4172 = vpop.permute.xlu0 %4171
      %vm4173 = vcmask 39936
      %v4174 = vsel %vm4173, %v4170, %v4172
      %v4176 = vsel %vm4166, %v4174, 0.0
      %s4177 = scalar_lea.vmem %s4, 72
      %v4178 = vld [vmem:[%s4177] sm:$0xff]
      %4180 = vset.pattern.permute.xlu0 0
      %4181 = vperm.xlu0 %4180, %v4178
      %v4182 = vpop.permute.xlu0 %4181
      %v4184 = vmul.f32 %v4176, %v4182
      %v4185 = vadd.f32 %v4162, %v4184
      %s4186 = scalar_lea.vmem %s4, 80
      %v4187 = vld [vmem:[%s4186] sm:$0xff]
      %4189 = vset.pattern.permute.xlu0 0
      %4190 = vperm.xlu0 %4189, %v4187
      %v4191 = vpop.permute.xlu0 %4190
      %v4193 = vmul.f32 %v4163, %v4191
      %v4194 = vmul.f32 %v4164, %v4191
      %4197 = vrot.lane.b32.xlu0 %v4193, 4
      %v4198 = vpop.permute.xlu0 %4197
      %4199 = vrot.lane.b32.xlu0 %v4194, 4
      %v4200 = vpop.permute.xlu0 %4199
      %v4201 = vsel %vm3594, %v4198, %v4200
      %v4203 = vadd.f32 %v4185, %v4201
      %v4204 = vsel %vm4154, 1, 0
      %vm4205 = vcmp.eq.s32.totalorder %v4204, 1
      %4206 = vrot.lane.b32.xlu0 %v4163, 3
      %v4207 = vpop.permute.xlu0 %4206
      %4208 = vrot.lane.b32.xlu0 %v4164, 3
      %v4209 = vpop.permute.xlu0 %4208
      %v4210 = vsel %vm3680, %v4207, %v4209
      %v4212 = vsel %vm4205, %v4210, 0.0
      %s4213 = scalar_lea.vmem %s4, 88
      %v4214 = vld [vmem:[%s4213] sm:$0xff]
      %4216 = vset.pattern.permute.xlu0 0
      %4217 = vperm.xlu0 %4216, %v4214
      %v4218 = vpop.permute.xlu0 %4217
      %v4220 = vmul.f32 %v4212, %v4218
      %v4221 = vadd.f32 %v4203, %v4220
      %4222 = vrot.lane.b32.xlu0 %v4163, 1
      %v4223 = vpop.permute.xlu0 %4222
      %4224 = vrot.lane.b32.xlu0 %v4164, 1
      %v4225 = vpop.permute.xlu0 %4224
      %v4226 = vsel %vm3826, %v4223, %v4225
      %v4228 = vsel %vm4166, %v4226, 0.0
      %s4229 = scalar_lea.vmem %s4, 96
      %v4230 = vld [vmem:[%s4229] sm:$0xff]
      %4232 = vset.pattern.permute.xlu0 0
      %4233 = vperm.xlu0 %4232, %v4230
      %v4234 = vpop.permute.xlu0 %4233
      %v4236 = vmul.f32 %v4228, %v4234
      %v4237 = vadd.f32 %v4221, %v4236
      %4238 = vrot.lane.b32.xlu0 %v4164, 127
      %v4239 = vpop.permute.xlu0 %4238
      %v4241 = vsel %vm4205, %v4239, 0.0
      %s4242 = scalar_lea.vmem %s4, 112
      %v4243 = vld [vmem:[%s4242] sm:$0xff]
      %4245 = vset.pattern.permute.xlu0 0
      %4246 = vperm.xlu0 %4245, %v4243
      %v4247 = vpop.permute.xlu0 %4246
      %v4249 = vmul.f32 %v4241, %v4247
      %v4250 = vadd.f32 %v4237, %v4249
      %4251 = vrot.lane.b32.xlu0 %v4164, 125
      %v4252 = vpop.permute.xlu0 %4251
      %v4254 = vsel %vm4166, %v4252, 0.0
      %s4255 = scalar_lea.vmem %s4, 120
      %v4256 = vld [vmem:[%s4255] sm:$0xff]
      %4258 = vset.pattern.permute.xlu0 0
      %4259 = vperm.xlu0 %4258, %v4256
      %v4260 = vpop.permute.xlu0 %4259
      %v4262 = vmul.f32 %v4254, %v4260
      %v4263 = vadd.f32 %v4250, %v4262
      %s4264 = scalar_lea.vmem %s4, 128
      %v4265 = vld [vmem:[%s4264] sm:$0xff]
      %4267 = vset.pattern.permute.xlu0 0
      %4268 = vperm.xlu0 %4267, %v4265
      %v4269 = vpop.permute.xlu0 %4268
      %v4271 = vmul.f32 %v4164, %v4269
      %4273 = vrot.lane.b32.xlu0 %v4271, 124
      %v4274 = vpop.permute.xlu0 %4273
      %v4276 = vadd.f32 %v4263, %v4274
      %4277 = vrot.lane.b32.xlu0 %v4164, 123
      %v4278 = vpop.permute.xlu0 %4277
      %v4280 = vsel %vm4205, %v4278, 0.0
      %s4281 = scalar_lea.vmem %s4, 136
      %v4282 = vld [vmem:[%s4281] sm:$0xff]
      %4284 = vset.pattern.permute.xlu0 0
      %4285 = vperm.xlu0 %4284, %v4282
      %v4286 = vpop.permute.xlu0 %4285
      %v4288 = vmul.f32 %v4280, %v4286
      %v4289 = vadd.f32 %v4276, %v4288
      %s4290 = scalar_lea.vmem %s5, 8
      %v4291 = vld [vmem:[%s4290] sm:$0xff]
      %4293 = vset.pattern.permute.xlu0 0
      %4294 = vperm.xlu0 %4293, %v4291
      %v4295 = vpop.permute.xlu0 %4294
      %v4297 = vadd.f32 %v4289, %v4295
      %v4298 = vmax.f32 %v4297, 0.0
      %s4299 = scalar_lea.vmem %s1, 16
      %v4300 = vld [vmem:[%s4299] sm:$0xff]
      %s4301 = scalar_lea.vmem %s2, 16
      %v4302 = vld [vmem:[%s4301] sm:$0xff]
      %v4304 = vsel %vm3910, %v4302, 0
      %4306 = vmatprep.subr.mxu0 0.0
      %4307 = vmatpush1.msra.mxu0 %v4298
      %4308 = vmatprep.subr.mxu0 0.0
      %4309 = vmatpush1.msra.mxu0 0.0
      %4310 = vmatprep.subr.mxu0 0.0
      %4311 = vmatpush1.msra.mxu0 0.0
      %4312 = vmatprep.subr.mxu0 0.0
      %4313 = vmatpush1.msra.mxu0 0.0
      %4314 = vmatprep.subr.mxu0 0.0
      %4315 = vmatpush1.msra.mxu0 0.0
      %4316 = vmatprep.subr.mxu0 0.0
      %4317 = vmatpush1.msra.mxu0 0.0
      %4318 = vmatprep.subr.mxu0 0.0
      %4319 = vmatpush1.msra.mxu0 0.0
      %4320 = vmatprep.subr.mxu0 0.0
      %4321 = vmatpush1.msra.mxu0 0.0
      %4322 = vmatprep.subr.mxu0 0.0
      %4323 = vmatpush1.msra.mxu0 0.0
      %4324 = vmatprep.subr.mxu0 0.0
      %4325 = vmatpush1.msra.mxu0 0.0
      %4326 = vmatprep.subr.mxu0 0.0
      %4327 = vmatpush1.msra.mxu0 0.0
      %4328 = vmatprep.subr.mxu0 0.0
      %4329 = vmatpush1.msra.mxu0 0.0
      %4330 = vmatprep.subr.mxu0 0.0
      %4331 = vmatpush1.msra.mxu0 0.0
      %4332 = vmatprep.subr.mxu0 0.0
      %4333 = vmatpush1.msra.mxu0 0.0
      %4334 = vmatprep.subr.mxu0 0.0
      %4335 = vmatpush1.msra.mxu0 0.0
      %4336 = vmatprep.subr.mxu0 0.0
      %4337 = vmatpush1.msra.mxu0 0.0
      %4338 = vmatprep.subr.mxu0 0.0
      %4339 = vmatpush1.msra.mxu0 0.0
      %4340 = vmatprep.subr.mxu0 0.0
      %4341 = vmatpush1.msra.mxu0 0.0
      %4342 = vmatprep.subr.mxu0 0.0
      %4343 = vmatpush1.msra.mxu0 0.0
      %4344 = vmatprep.subr.mxu0 0.0
      %4345 = vmatpush1.msra.mxu0 0.0
      %4346 = vmatprep.subr.mxu0 0.0
      %4347 = vmatpush1.msra.mxu0 0.0
      %4348 = vmatprep.subr.mxu0 0.0
      %4349 = vmatpush1.msra.mxu0 0.0
      %4350 = vmatprep.subr.mxu0 0.0
      %4351 = vmatpush1.msra.mxu0 0.0
      %4352 = vmatprep.subr.mxu0 0.0
      %4353 = vmatpush1.msra.mxu0 0.0
      %4354 = vmatprep.subr.mxu0 0.0
      %4355 = vmatpush1.msra.mxu0 0.0
      %4356 = vmatprep.subr.mxu0 0.0
      %4357 = vmatpush1.msra.mxu0 0.0
      %4358 = vmatprep.subr.mxu0 0.0
      %4359 = vmatpush1.msra.mxu0 0.0
      %4360 = vmatprep.subr.mxu0 0.0
      %4361 = vmatpush1.msra.mxu0 0.0
      %4362 = vmatprep.subr.mxu0 0.0
      %4363 = vmatpush1.msra.mxu0 0.0
      %4364 = vmatprep.subr.mxu0 0.0
      %4365 = vmatpush1.msra.mxu0 0.0
      %4366 = vmatprep.subr.mxu0 0.0
      %4367 = vmatpush1.msra.mxu0 0.0
      %4368 = vmatprep.subr.mxu0 0.0
      %4369 = vmatpush1.msra.mxu0 0.0
      %4370 = vmatprep.mubr.f32.mxu0 0.0
      %4371 = vmatmul.mubr.f32.gmra.mrb[0].mxu0 %v4304
      %v4372 = vpop.f32.mrb[0].mxu0
      %v4373 = vadd.f32 0.0, %v4372
      %v4374 = vpop.f32.mrb[0].mxu0
      %4375 = vdwg.mxu0
      %v4377 = vsel %vm3425, %v4373, 0
      %4379 = vmatprep.subr.mxu0 0.0
      %4380 = vmatpush1.msra.mxu0 %v3423
      %4381 = vmatprep.subr.mxu0 0.0
      %4382 = vmatpush1.msra.mxu0 %v3424
      %4383 = vmatprep.subr.mxu0 0.0
      %4384 = vmatpush1.msra.mxu0 0.0
      %4385 = vmatprep.subr.mxu0 0.0
      %4386 = vmatpush1.msra.mxu0 0.0
      %4387 = vmatprep.subr.mxu0 0.0
      %4388 = vmatpush1.msra.mxu0 0.0
      %4389 = vmatprep.subr.mxu0 0.0
      %4390 = vmatpush1.msra.mxu0 0.0
      %4391 = vmatprep.subr.mxu0 0.0
      %4392 = vmatpush1.msra.mxu0 0.0
      %4393 = vmatprep.subr.mxu0 0.0
      %4394 = vmatpush1.msra.mxu0 0.0
      %4395 = vmatprep.subr.mxu0 0.0
      %4396 = vmatpush1.msra.mxu0 0.0
      %4397 = vmatprep.subr.mxu0 0.0
      %4398 = vmatpush1.msra.mxu0 0.0
      %4399 = vmatprep.subr.mxu0 0.0
      %4400 = vmatpush1.msra.mxu0 0.0
      %4401 = vmatprep.subr.mxu0 0.0
      %4402 = vmatpush1.msra.mxu0 0.0
      %4403 = vmatprep.subr.mxu0 0.0
      %4404 = vmatpush1.msra.mxu0 0.0
      %4405 = vmatprep.subr.mxu0 0.0
      %4406 = vmatpush1.msra.mxu0 0.0
      %4407 = vmatprep.subr.mxu0 0.0
      %4408 = vmatpush1.msra.mxu0 0.0
      %4409 = vmatprep.subr.mxu0 0.0
      %4410 = vmatpush1.msra.mxu0 0.0
      %4411 = vmatprep.subr.mxu0 0.0
      %4412 = vmatpush1.msra.mxu0 0.0
      %4413 = vmatprep.subr.mxu0 0.0
      %4414 = vmatpush1.msra.mxu0 0.0
      %4415 = vmatprep.subr.mxu0 0.0
      %4416 = vmatpush1.msra.mxu0 0.0
      %4417 = vmatprep.subr.mxu0 0.0
      %4418 = vmatpush1.msra.mxu0 0.0
      %4419 = vmatprep.subr.mxu0 0.0
      %4420 = vmatpush1.msra.mxu0 0.0
      %4421 = vmatprep.subr.mxu0 0.0
      %4422 = vmatpush1.msra.mxu0 0.0
      %4423 = vmatprep.subr.mxu0 0.0
      %4424 = vmatpush1.msra.mxu0 0.0
      %4425 = vmatprep.subr.mxu0 0.0
      %4426 = vmatpush1.msra.mxu0 0.0
      %4427 = vmatprep.subr.mxu0 0.0
      %4428 = vmatpush1.msra.mxu0 0.0
      %4429 = vmatprep.subr.mxu0 0.0
      %4430 = vmatpush1.msra.mxu0 0.0
      %4431 = vmatprep.subr.mxu0 0.0
      %4432 = vmatpush1.msra.mxu0 0.0
      %4433 = vmatprep.subr.mxu0 0.0
      %4434 = vmatpush1.msra.mxu0 0.0
      %4435 = vmatprep.subr.mxu0 0.0
      %4436 = vmatpush1.msra.mxu0 0.0
      %4437 = vmatprep.subr.mxu0 0.0
      %4438 = vmatpush1.msra.mxu0 0.0
      %4439 = vmatprep.subr.mxu0 0.0
      %4440 = vmatpush1.msra.mxu0 0.0
      %4441 = vmatprep.subr.mxu0 0.0
      %4442 = vmatpush1.msra.mxu0 0.0
      %4443 = vmatprep.mubr.f32.mxu0 0.0
      %4444 = vmatmul.mubr.f32.gmra.mrb[0].mxu0 %v4377
      %v4445 = vpop.f32.mrb[0].mxu0
      %v4446 = vadd.f32 0.0, %v4445
      %v4447 = vpop.f32.mrb[0].mxu0
      %4448 = vdwg.mxu0
      %v4450 = vsel %vm3680, %v4300, 0
      %v4453 = vsel %vm3684, %v3499, 0
      %4455 = vmatprep.subr.mxu0 0.0
      %4456 = vmatpush1.msra.mxu0 %v4453
      %4457 = vmatprep.subr.mxu0 0.0
      %4458 = vmatpush1.msra.mxu0 0.0
      %4459 = vmatprep.subr.mxu0 0.0
      %4460 = vmatpush1.msra.mxu0 0.0
      %4461 = vmatprep.subr.mxu0 0.0
      %4462 = vmatpush1.msra.mxu0 0.0
      %4463 = vmatprep.subr.mxu0 0.0
      %4464 = vmatpush1.msra.mxu0 0.0
      %4465 = vmatprep.subr.mxu0 0.0
      %4466 = vmatpush1.msra.mxu0 0.0
      %4467 = vmatprep.subr.mxu0 0.0
      %4468 = vmatpush1.msra.mxu0 0.0
      %4469 = vmatprep.subr.mxu0 0.0
      %4470 = vmatpush1.msra.mxu0 0.0
      %4471 = vmatprep.subr.mxu0 0.0
      %4472 = vmatpush1.msra.mxu0 0.0
      %4473 = vmatprep.subr.mxu0 0.0
      %4474 = vmatpush1.msra.mxu0 0.0
      %4475 = vmatprep.subr.mxu0 0.0
      %4476 = vmatpush1.msra.mxu0 0.0
      %4477 = vmatprep.subr.mxu0 0.0
      %4478 = vmatpush1.msra.mxu0 0.0
      %4479 = vmatprep.subr.mxu0 0.0
      %4480 = vmatpush1.msra.mxu0 0.0
      %4481 = vmatprep.subr.mxu0 0.0
      %4482 = vmatpush1.msra.mxu0 0.0
      %4483 = vmatprep.subr.mxu0 0.0
      %4484 = vmatpush1.msra.mxu0 0.0
      %4485 = vmatprep.subr.mxu0 0.0
      %4486 = vmatpush1.msra.mxu0 0.0
      %4487 = vmatprep.subr.mxu0 0.0
      %4488 = vmatpush1.msra.mxu0 0.0
      %4489 = vmatprep.subr.mxu0 0.0
      %4490 = vmatpush1.msra.mxu0 0.0
      %4491 = vmatprep.subr.mxu0 0.0
      %4492 = vmatpush1.msra.mxu0 0.0
      %4493 = vmatprep.subr.mxu0 0.0
      %4494 = vmatpush1.msra.mxu0 0.0
      %4495 = vmatprep.subr.mxu0 0.0
      %4496 = vmatpush1.msra.mxu0 0.0
      %4497 = vmatprep.subr.mxu0 0.0
      %4498 = vmatpush1.msra.mxu0 0.0
      %4499 = vmatprep.subr.mxu0 0.0
      %4500 = vmatpush1.msra.mxu0 0.0
      %4501 = vmatprep.subr.mxu0 0.0
      %4502 = vmatpush1.msra.mxu0 0.0
      %4503 = vmatprep.subr.mxu0 0.0
      %4504 = vmatpush1.msra.mxu0 0.0
      %4505 = vmatprep.subr.mxu0 0.0
      %4506 = vmatpush1.msra.mxu0 0.0
      %4507 = vmatprep.subr.mxu0 0.0
      %4508 = vmatpush1.msra.mxu0 0.0
      %4509 = vmatprep.subr.mxu0 0.0
      %4510 = vmatpush1.msra.mxu0 0.0
      %4511 = vmatprep.subr.mxu0 0.0
      %4512 = vmatpush1.msra.mxu0 0.0
      %4513 = vmatprep.subr.mxu0 0.0
      %4514 = vmatpush1.msra.mxu0 0.0
      %4515 = vmatprep.subr.mxu0 0.0
      %4516 = vmatpush1.msra.mxu0 0.0
      %4517 = vmatprep.subr.mxu0 0.0
      %4518 = vmatpush1.msra.mxu0 0.0
      %4519 = vmatprep.mubr.f32.mxu0 0.0
      %4520 = vmatmul.mubr.f32.gmra.mrb[0].mxu0 %v4450
      %v4521 = vpop.f32.mrb[0].mxu0
      %v4522 = vadd.f32 %v4446, %v4521
      %v4523 = vpop.f32.mrb[0].mxu0
      %4524 = vdwg.mxu0
      %s4525 = scalar_lea.vmem %s3, 16
      %v4526 = vld [vmem:[%s4525] sm:$0xff]
      %4528 = vset.pattern.permute.xlu0 0
      %4529 = vperm.xlu0 %4528, %v4526
      %v4530 = vpop.permute.xlu0 %4529
      %v4532 = vadd.f32 %v4522, %v4530
      %v4533 = vmax.f32 %v4532, 0.0
      %4534 = vst [vmem:[#allocation2] sm:$0xff] 0.0
      %4535 = vst [vmem:[#allocation2 + $0x8] sm:$0xff] 0.0
      %4536 = vst [vmem:[#allocation2 + $0x10] sm:$0xff] 0.0
      %4537 = vst [vmem:[#allocation2 + $0x18] sm:$0xff] 0.0
      %4538 = vst [vmem:[#allocation2 + $0x20] sm:$0xff] 0.0
      %4539 = vst [vmem:[#allocation2 + $0x28] sm:$0xff] 0.0
      %4540 = vst [vmem:[#allocation2 + $0x30] sm:$0xff] 0.0
      %4541 = vst [vmem:[#allocation2 + $0x38] sm:$0xff] 0.0
      %4542 = vst [vmem:[#allocation2 + $0x40] sm:$0xff] 0.0
      %4543 = vst [vmem:[#allocation2 + $0x48] sm:$0xff] 0.0
      %4544 = vst.msk [vmem:[#allocation2 + $0x8] sm:$0xff] %vm3204, %v4533
      %vm4545 = vcmp.gt.s32.totalorder %v3416, 0
      %vm4546 = vcmp.lt.s32.totalorder %v3416, 7
      %s4547 = scalar_lea.vmem %s4, 176
      %v4548 = vld [vmem:[%s4547] sm:$0xff]
      %4550 = vset.pattern.permute.xlu0 0
      %4551 = vperm.xlu0 %4550, %v4548
      %v4552 = vpop.permute.xlu0 %4551
      %v4554 = vmul.f32 %v4533, %v4552
      %v4555 = vld [vmem:[#allocation2] sm:$0xff]
      %v4556 = vld [vmem:[#allocation2 + $0x8] sm:$0xff]
      %v4557 = vsel %vm4545, 1, 0
      %vm4558 = vcmp.eq.s32.totalorder %v4557, 1
      %4561 = vrot.lane.b32.xlu0 %v4555, 9
      %v4562 = vpop.permute.xlu0 %4561
      %4563 = vrot.lane.b32.xlu0 %v4556, 9
      %v4564 = vpop.permute.xlu0 %4563
      %vm4565 = vcmask 72704
      %v4566 = vsel %vm4565, %v4562, %v4564
      %v4568 = vsel %vm4558, %v4566, 0.0
      %s4569 = scalar_lea.vmem %s4, 144
      %v4570 = vld [vmem:[%s4569] sm:$0xff]
      %4572 = vset.pattern.permute.xlu0 0
      %4573 = vperm.xlu0 %4572, %v4570
      %v4574 = vpop.permute.xlu0 %4573
      %v4576 = vmul.f32 %v4568, %v4574
      %v4577 = vadd.f32 %v4554, %v4576
      %s4578 = scalar_lea.vmem %s4, 152
      %v4579 = vld [vmem:[%s4578] sm:$0xff]
      %4581 = vset.pattern.permute.xlu0 0
      %4582 = vperm.xlu0 %4581, %v4579
      %v4583 = vpop.permute.xlu0 %4582
      %v4585 = vmul.f32 %v4555, %v4583
      %v4586 = vmul.f32 %v4556, %v4583
      %4589 = vrot.lane.b32.xlu0 %v4585, 8
      %v4590 = vpop.permute.xlu0 %4589
      %4591 = vrot.lane.b32.xlu0 %v4586, 8
      %v4592 = vpop.permute.xlu0 %4591
      %v4593 = vsel %vm3910, %v4590, %v4592
      %v4595 = vadd.f32 %v4577, %v4593
      %v4596 = vsel %vm4546, 1, 0
      %vm4597 = vcmp.eq.s32.totalorder %v4596, 1
      %4598 = vrot.lane.b32.xlu0 %v4555, 7
      %v4599 = vpop.permute.xlu0 %4598
      %4600 = vrot.lane.b32.xlu0 %v4556, 7
      %v4601 = vpop.permute.xlu0 %4600
      %vm4602 = vcmask 56320
      %v4603 = vsel %vm4602, %v4599, %v4601
      %v4605 = vsel %vm4597, %v4603, 0.0
      %s4606 = scalar_lea.vmem %s4, 160
      %v4607 = vld [vmem:[%s4606] sm:$0xff]
      %4609 = vset.pattern.permute.xlu0 0
      %4610 = vperm.xlu0 %4609, %v4607
      %v4611 = vpop.permute.xlu0 %4610
      %v4613 = vmul.f32 %v4605, %v4611
      %v4614 = vadd.f32 %v4595, %v4613
      %4615 = vrot.lane.b32.xlu0 %v4555, 1
      %v4616 = vpop.permute.xlu0 %4615
      %4617 = vrot.lane.b32.xlu0 %v4556, 1
      %v4618 = vpop.permute.xlu0 %4617
      %v4619 = vsel %vm3826, %v4616, %v4618
      %v4621 = vsel %vm4558, %v4619, 0.0
      %s4622 = scalar_lea.vmem %s4, 168
      %v4623 = vld [vmem:[%s4622] sm:$0xff]
      %4625 = vset.pattern.permute.xlu0 0
      %4626 = vperm.xlu0 %4625, %v4623
      %v4627 = vpop.permute.xlu0 %4626
      %v4629 = vmul.f32 %v4621, %v4627
      %v4630 = vadd.f32 %v4614, %v4629
      %4631 = vrot.lane.b32.xlu0 %v4556, 127
      %v4632 = vpop.permute.xlu0 %4631
      %v4634 = vsel %vm4597, %v4632, 0.0
      %s4635 = scalar_lea.vmem %s4, 184
      %v4636 = vld [vmem:[%s4635] sm:$0xff]
      %4638 = vset.pattern.permute.xlu0 0
      %4639 = vperm.xlu0 %4638, %v4636
      %v4640 = vpop.permute.xlu0 %4639
      %v4642 = vmul.f32 %v4634, %v4640
      %v4643 = vadd.f32 %v4630, %v4642
      %4644 = vrot.lane.b32.xlu0 %v4556, 121
      %v4645 = vpop.permute.xlu0 %4644
      %v4647 = vsel %vm4558, %v4645, 0.0
      %s4648 = scalar_lea.vmem %s4, 192
      %v4649 = vld [vmem:[%s4648] sm:$0xff]
      %4651 = vset.pattern.permute.xlu0 0
      %4652 = vperm.xlu0 %4651, %v4649
      %v4653 = vpop.permute.xlu0 %4652
      %v4655 = vmul.f32 %v4647, %v4653
      %v4656 = vadd.f32 %v4643, %v4655
      %s4657 = scalar_lea.vmem %s4, 200
      %v4658 = vld [vmem:[%s4657] sm:$0xff]
      %4660 = vset.pattern.permute.xlu0 0
      %4661 = vperm.xlu0 %4660, %v4658
      %v4662 = vpop.permute.xlu0 %4661
      %v4664 = vmul.f32 %v4556, %v4662
      %4666 = vrot.lane.b32.xlu0 %v4664, 120
      %v4667 = vpop.permute.xlu0 %4666
      %v4669 = vadd.f32 %v4656, %v4667
      %4670 = vrot.lane.b32.xlu0 %v4556, 119
      %v4671 = vpop.permute.xlu0 %4670
      %v4673 = vsel %vm4597, %v4671, 0.0
      %s4674 = scalar_lea.vmem %s4, 208
      %v4675 = vld [vmem:[%s4674] sm:$0xff]
      %4677 = vset.pattern.permute.xlu0 0
      %4678 = vperm.xlu0 %4677, %v4675
      %v4679 = vpop.permute.xlu0 %4678
      %v4681 = vmul.f32 %v4673, %v4679
      %v4682 = vadd.f32 %v4669, %v4681
      %s4683 = scalar_lea.vmem %s5, 16
      %v4684 = vld [vmem:[%s4683] sm:$0xff]
      %4686 = vset.pattern.permute.xlu0 0
      %4687 = vperm.xlu0 %4686, %v4684
      %v4688 = vpop.permute.xlu0 %4687
      %v4690 = vadd.f32 %v4682, %v4688
      %v4691 = vmax.f32 %v4690, 0.0
      %s4692 = scalar_lea.vmem %s1, 24
      %v4693 = vld [vmem:[%s4692] sm:$0xff]
      %s4694 = scalar_lea.vmem %s2, 24
      %v4695 = vld [vmem:[%s4694] sm:$0xff]
      %v4697 = vsel %vm3910, %v4695, 0
      %4699 = vmatprep.subr.mxu0 0.0
      %4700 = vmatpush1.msra.mxu0 %v4691
      %4701 = vmatprep.subr.mxu0 0.0
      %4702 = vmatpush1.msra.mxu0 0.0
      %4703 = vmatprep.subr.mxu0 0.0
      %4704 = vmatpush1.msra.mxu0 0.0
      %4705 = vmatprep.subr.mxu0 0.0
      %4706 = vmatpush1.msra.mxu0 0.0
      %4707 = vmatprep.subr.mxu0 0.0
      %4708 = vmatpush1.msra.mxu0 0.0
      %4709 = vmatprep.subr.mxu0 0.0
      %4710 = vmatpush1.msra.mxu0 0.0
      %4711 = vmatprep.subr.mxu0 0.0
      %4712 = vmatpush1.msra.mxu0 0.0
      %4713 = vmatprep.subr.mxu0 0.0
      %4714 = vmatpush1.msra.mxu0 0.0
      %4715 = vmatprep.subr.mxu0 0.0
      %4716 = vmatpush1.msra.mxu0 0.0
      %4717 = vmatprep.subr.mxu0 0.0
      %4718 = vmatpush1.msra.mxu0 0.0
      %4719 = vmatprep.subr.mxu0 0.0
      %4720 = vmatpush1.msra.mxu0 0.0
      %4721 = vmatprep.subr.mxu0 0.0
      %4722 = vmatpush1.msra.mxu0 0.0
      %4723 = vmatprep.subr.mxu0 0.0
      %4724 = vmatpush1.msra.mxu0 0.0
      %4725 = vmatprep.subr.mxu0 0.0
      %4726 = vmatpush1.msra.mxu0 0.0
      %4727 = vmatprep.subr.mxu0 0.0
      %4728 = vmatpush1.msra.mxu0 0.0
      %4729 = vmatprep.subr.mxu0 0.0
      %4730 = vmatpush1.msra.mxu0 0.0
      %4731 = vmatprep.subr.mxu0 0.0
      %4732 = vmatpush1.msra.mxu0 0.0
      %4733 = vmatprep.subr.mxu0 0.0
      %4734 = vmatpush1.msra.mxu0 0.0
      %4735 = vmatprep.subr.mxu0 0.0
      %4736 = vmatpush1.msra.mxu0 0.0
      %4737 = vmatprep.subr.mxu0 0.0
      %4738 = vmatpush1.msra.mxu0 0.0
      %4739 = vmatprep.subr.mxu0 0.0
      %4740 = vmatpush1.msra.mxu0 0.0
      %4741 = vmatprep.subr.mxu0 0.0
      %4742 = vmatpush1.msra.mxu0 0.0
      %4743 = vmatprep.subr.mxu0 0.0
      %4744 = vmatpush1.msra.mxu0 0.0
      %4745 = vmatprep.subr.mxu0 0.0
      %4746 = vmatpush1.msra.mxu0 0.0
      %4747 = vmatprep.subr.mxu0 0.0
      %4748 = vmatpush1.msra.mxu0 0.0
      %4749 = vmatprep.subr.mxu0 0.0
      %4750 = vmatpush1.msra.mxu0 0.0
      %4751 = vmatprep.subr.mxu0 0.0
      %4752 = vmatpush1.msra.mxu0 0.0
      %4753 = vmatprep.subr.mxu0 0.0
      %4754 = vmatpush1.msra.mxu0 0.0
      %4755 = vmatprep.subr.mxu0 0.0
      %4756 = vmatpush1.msra.mxu0 0.0
      %4757 = vmatprep.subr.mxu0 0.0
      %4758 = vmatpush1.msra.mxu0 0.0
      %4759 = vmatprep.subr.mxu0 0.0
      %4760 = vmatpush1.msra.mxu0 0.0
      %4761 = vmatprep.subr.mxu0 0.0
      %4762 = vmatpush1.msra.mxu0 0.0
      %4763 = vmatprep.mubr.f32.mxu0 0.0
      %4764 = vmatmul.mubr.f32.gmra.mrb[0].mxu0 %v4697
      %v4765 = vpop.f32.mrb[0].mxu0
      %v4766 = vadd.f32 0.0, %v4765
      %v4767 = vpop.f32.mrb[0].mxu0
      %4768 = vdwg.mxu0
      %v4770 = vsel %vm3204, %v4766, 0
      %4772 = vmatprep.subr.mxu0 %v3189
      %4773 = vmatpush1.msra.mxu0 %v3188
      %4774 = vmatprep.subr.mxu0 %v3191
      %4775 = vmatpush1.msra.mxu0 %v3190
      %4776 = vmatprep.subr.mxu0 %v3193
      %4777 = vmatpush1.msra.mxu0 %v3192
      %4778 = vmatprep.subr.mxu0 %v3195
      %4779 = vmatpush1.msra.mxu0 %v3194
      %4780 = vmatprep.subr.mxu0 %v3197
      %4781 = vmatpush1.msra.mxu0 %v3196
      %4782 = vmatprep.subr.mxu0 %v3199
      %4783 = vmatpush1.msra.mxu0 %v3198
      %4784 = vmatprep.subr.mxu0 %v3201
      %4785 = vmatpush1.msra.mxu0 %v3200
      %4786 = vmatprep.subr.mxu0 %v3203
      %4787 = vmatpush1.msra.mxu0 %v3202
      %4788 = vmatprep.subr.mxu0 0.0
      %4789 = vmatpush1.msra.mxu0 0.0
      %4790 = vmatprep.subr.mxu0 0.0
      %4791 = vmatpush1.msra.mxu0 0.0
      %4792 = vmatprep.subr.mxu0 0.0
      %4793 = vmatpush1.msra.mxu0 0.0
      %4794 = vmatprep.subr.mxu0 0.0
      %4795 = vmatpush1.msra.mxu0 0.0
      %4796 = vmatprep.subr.mxu0 0.0
      %4797 = vmatpush1.msra.mxu0 0.0
      %4798 = vmatprep.subr.mxu0 0.0
      %4799 = vmatpush1.msra.mxu0 0.0
      %4800 = vmatprep.subr.mxu0 0.0
      %4801 = vmatpush1.msra.mxu0 0.0
      %4802 = vmatprep.subr.mxu0 0.0
      %4803 = vmatpush1.msra.mxu0 0.0
      %4804 = vmatprep.subr.mxu0 0.0
      %4805 = vmatpush1.msra.mxu0 0.0
      %4806 = vmatprep.subr.mxu0 0.0
      %4807 = vmatpush1.msra.mxu0 0.0
      %4808 = vmatprep.subr.mxu0 0.0
      %4809 = vmatpush1.msra.mxu0 0.0
      %4810 = vmatprep.subr.mxu0 0.0
      %4811 = vmatpush1.msra.mxu0 0.0
      %4812 = vmatprep.subr.mxu0 0.0
      %4813 = vmatpush1.msra.mxu0 0.0
      %4814 = vmatprep.subr.mxu0 0.0
      %4815 = vmatpush1.msra.mxu0 0.0
      %4816 = vmatprep.subr.mxu0 0.0
      %4817 = vmatpush1.msra.mxu0 0.0
      %4818 = vmatprep.subr.mxu0 0.0
      %4819 = vmatpush1.msra.mxu0 0.0
      %4820 = vmatprep.subr.mxu0 0.0
      %4821 = vmatpush1.msra.mxu0 0.0
      %4822 = vmatprep.subr.mxu0 0.0
      %4823 = vmatpush1.msra.mxu0 0.0
      %4824 = vmatprep.subr.mxu0 0.0
      %4825 = vmatpush1.msra.mxu0 0.0
      %4826 = vmatprep.subr.mxu0 0.0
      %4827 = vmatpush1.msra.mxu0 0.0
      %4828 = vmatprep.subr.mxu0 0.0
      %4829 = vmatpush1.msra.mxu0 0.0
      %4830 = vmatprep.subr.mxu0 0.0
      %4831 = vmatpush1.msra.mxu0 0.0
      %4832 = vmatprep.subr.mxu0 0.0
      %4833 = vmatpush1.msra.mxu0 0.0
      %4834 = vmatprep.subr.mxu0 0.0
      %4835 = vmatpush1.msra.mxu0 0.0
      %4836 = vmatprep.mubr.f32.mxu0 0.0
      %4837 = vmatmul.mubr.f32.gmra.mrb[0].mxu0 %v4770
      %v4838 = vpop.f32.mrb[0].mxu0
      %v4839 = vadd.f32 0.0, %v4838
      %v4840 = vpop.f32.mrb[0].mxu0
      %v4841 = vadd.f32 0.0, %v4840
      %4842 = vdwg.mxu0
      %v4844 = vsel %vm3680, %v4693, 0
      %v4847 = vsel %vm3684, %v3279, 0
      %v4850 = vsel %vm3684, %v3280, 0
      %4852 = vmatprep.subr.mxu0 %v4850
      %4853 = vmatpush1.msra.mxu0 %v4847
      %4854 = vmatprep.subr.mxu0 0.0
      %4855 = vmatpush1.msra.mxu0 0.0
      %4856 = vmatprep.subr.mxu0 0.0
      %4857 = vmatpush1.msra.mxu0 0.0
      %4858 = vmatprep.subr.mxu0 0.0
      %4859 = vmatpush1.msra.mxu0 0.0
      %4860 = vmatprep.subr.mxu0 0.0
      %4861 = vmatpush1.msra.mxu0 0.0
      %4862 = vmatprep.subr.mxu0 0.0
      %4863 = vmatpush1.msra.mxu0 0.0
      %4864 = vmatprep.subr.mxu0 0.0
      %4865 = vmatpush1.msra.mxu0 0.0
      %4866 = vmatprep.subr.mxu0 0.0
      %4867 = vmatpush1.msra.mxu0 0.0
      %4868 = vmatprep.subr.mxu0 0.0
      %4869 = vmatpush1.msra.mxu0 0.0
      %4870 = vmatprep.subr.mxu0 0.0
      %4871 = vmatpush1.msra.mxu0 0.0
      %4872 = vmatprep.subr.mxu0 0.0
      %4873 = vmatpush1.msra.mxu0 0.0
      %4874 = vmatprep.subr.mxu0 0.0
      %4875 = vmatpush1.msra.mxu0 0.0
      %4876 = vmatprep.subr.mxu0 0.0
      %4877 = vmatpush1.msra.mxu0 0.0
      %4878 = vmatprep.subr.mxu0 0.0
      %4879 = vmatpush1.msra.mxu0 0.0
      %4880 = vmatprep.subr.mxu0 0.0
      %4881 = vmatpush1.msra.mxu0 0.0
      %4882 = vmatprep.subr.mxu0 0.0
      %4883 = vmatpush1.msra.mxu0 0.0
      %4884 = vmatprep.subr.mxu0 0.0
      %4885 = vmatpush1.msra.mxu0 0.0
      %4886 = vmatprep.subr.mxu0 0.0
      %4887 = vmatpush1.msra.mxu0 0.0
      %4888 = vmatprep.subr.mxu0 0.0
      %4889 = vmatpush1.msra.mxu0 0.0
      %4890 = vmatprep.subr.mxu0 0.0
      %4891 = vmatpush1.msra.mxu0 0.0
      %4892 = vmatprep.subr.mxu0 0.0
      %4893 = vmatpush1.msra.mxu0 0.0
      %4894 = vmatprep.subr.mxu0 0.0
      %4895 = vmatpush1.msra.mxu0 0.0
      %4896 = vmatprep.subr.mxu0 0.0
      %4897 = vmatpush1.msra.mxu0 0.0
      %4898 = vmatprep.subr.mxu0 0.0
      %4899 = vmatpush1.msra.mxu0 0.0
      %4900 = vmatprep.subr.mxu0 0.0
      %4901 = vmatpush1.msra.mxu0 0.0
      %4902 = vmatprep.subr.mxu0 0.0
      %4903 = vmatpush1.msra.mxu0 0.0
      %4904 = vmatprep.subr.mxu0 0.0
      %4905 = vmatpush1.msra.mxu0 0.0
      %4906 = vmatprep.subr.mxu0 0.0
      %4907 = vmatpush1.msra.mxu0 0.0
      %4908 = vmatprep.subr.mxu0 0.0
      %4909 = vmatpush1.msra.mxu0 0.0
      %4910 = vmatprep.subr.mxu0 0.0
      %4911 = vmatpush1.msra.mxu0 0.0
      %4912 = vmatprep.subr.mxu0 0.0
      %4913 = vmatpush1.msra.mxu0 0.0
      %4914 = vmatprep.subr.mxu0 0.0
      %4915 = vmatpush1.msra.mxu0 0.0
      %4916 = vmatprep.mubr.f32.mxu0 0.0
      %4917 = vmatmul.mubr.f32.gmra.mrb[0].mxu0 %v4844
      %v4918 = vpop.f32.mrb[0].mxu0
      %v4919 = vadd.f32 %v4839, %v4918
      %v4920 = vpop.f32.mrb[0].mxu0
      %v4921 = vadd.f32 %v4841, %v4920
      %4922 = vdwg.mxu0
      %s4923 = scalar_lea.vmem %s3, 24
      %v4924 = vld [vmem:[%s4923] sm:$0xff]
      %4926 = vset.pattern.permute.xlu0 0
      %4927 = vperm.xlu0 %4926, %v4924
      %v4928 = vpop.permute.xlu0 %4927
      %v4930 = vadd.f32 %v4919, %v4928
      %v4931 = vadd.f32 %v4921, %v4928
      %v4932 = vmax.f32 %v4930, 0.0
      %v4933 = vmax.f32 %v4931, 0.0
      %4934 = vst [vmem:[#allocation2] sm:$0xff] 0.0
      %4935 = vst [vmem:[#allocation2 + $0x8] sm:$0xff] 0.0
      %4936 = vst [vmem:[#allocation2 + $0x10] sm:$0xff] 0.0
      %4937 = vst [vmem:[#allocation2 + $0x18] sm:$0xff] 0.0
      %4938 = vst [vmem:[#allocation2 + $0x20] sm:$0xff] 0.0
      %4939 = vst [vmem:[#allocation2 + $0x28] sm:$0xff] 0.0
      %4940 = vst [vmem:[#allocation2 + $0x30] sm:$0xff] 0.0
      %4941 = vst [vmem:[#allocation2 + $0x38] sm:$0xff] 0.0
      %4942 = vst [vmem:[#allocation2 + $0x40] sm:$0xff] 0.0
      %4943 = vst [vmem:[#allocation2 + $0x48] sm:$0xff] 0.0
      %4944 = vst [vmem:[#allocation2 + $0x8] sm:$0xff] %v4932
      %4945 = vst [vmem:[#allocation2 + $0x10] sm:$0xff] %v4933
      %vm4946 = vcmp.gt.s32.totalorder %v3162, 0
      %vm4947 = vcmp.gt.s32.totalorder %v3163, 0
      %vm4948 = vcmp.lt.s32.totalorder %v3162, 15
      %vm4949 = vcmp.lt.s32.totalorder %v3163, 15
      %s4950 = scalar_lea.vmem %s4, 248
      %v4951 = vld [vmem:[%s4950] sm:$0xff]
      %4953 = vset.pattern.permute.xlu0 0
      %4954 = vperm.xlu0 %4953, %v4951
      %v4955 = vpop.permute.xlu0 %4954
      %v4957 = vmul.f32 %v4932, %v4955
      %v4958 = vmul.f32 %v4933, %v4955
      %v4959 = vld [vmem:[#allocation2] sm:$0xff]
      %v4960 = vld [vmem:[#allocation2 + $0x8] sm:$0xff]
      %v4961 = vld [vmem:[#allocation2 + $0x10] sm:$0xff]
      %v4962 = vsel %vm4946, 1, 0
      %v4963 = vsel %vm4947, 1, 0
      %vm4964 = vcmp.eq.s32.totalorder %v4962, 1
      %vm4965 = vcmp.eq.s32.totalorder %v4963, 1
      %4969 = vrot.lane.b32.xlu0 %v4959, 17
      %v4970 = vpop.permute.xlu0 %4969
      %4971 = vrot.lane.b32.xlu0 %v4960, 17
      %v4972 = vpop.permute.xlu0 %4971
      %4973 = vrot.lane.b32.xlu0 %v4961, 17
      %v4974 = vpop.permute.xlu0 %4973
      %vm4975 = vcmask 138240
      %v4976 = vsel %vm4975, %v4970, %v4972
      %v4977 = vsel %vm4975, %v4972, %v4974
      %v4980 = vsel %vm4964, %v4976, 0.0
      %v4981 = vsel %vm4965, %v4977, 0.0
      %s4982 = scalar_lea.vmem %s4, 216
      %v4983 = vld [vmem:[%s4982] sm:$0xff]
      %4985 = vset.pattern.permute.xlu0 0
      %4986 = vperm.xlu0 %4985, %v4983
      %v4987 = vpop.permute.xlu0 %4986
      %v4989 = vmul.f32 %v4980, %v4987
      %v4990 = vmul.f32 %v4981, %v4987
      %v4991 = vadd.f32 %v4957, %v4989
      %v4992 = vadd.f32 %v4958, %v4990
      %s4993 = scalar_lea.vmem %s4, 224
      %v4994 = vld [vmem:[%s4993] sm:$0xff]
      %4996 = vset.pattern.permute.xlu0 0
      %4997 = vperm.xlu0 %4996, %v4994
      %v4998 = vpop.permute.xlu0 %4997
      %v5000 = vmul.f32 %v4959, %v4998
      %v5001 = vmul.f32 %v4960, %v4998
      %v5002 = vmul.f32 %v4961, %v4998
      %5006 = vrot.lane.b32.xlu0 %v5000, 16
      %v5007 = vpop.permute.xlu0 %5006
      %5008 = vrot.lane.b32.xlu0 %v5001, 16
      %v5009 = vpop.permute.xlu0 %5008
      %5010 = vrot.lane.b32.xlu0 %v5002, 16
      %v5011 = vpop.permute.xlu0 %5010
      %v5012 = vsel %vm3425, %v5007, %v5009
      %v5013 = vsel %vm3425, %v5009, %v5011
      %v5016 = vadd.f32 %v4991, %v5012
      %v5017 = vadd.f32 %v4992, %v5013
      %v5018 = vsel %vm4948, 1, 0
      %v5019 = vsel %vm4949, 1, 0
      %vm5020 = vcmp.eq.s32.totalorder %v5018, 1
      %vm5021 = vcmp.eq.s32.totalorder %v5019, 1
      %5022 = vrot.lane.b32.xlu0 %v4959, 15
      %v5023 = vpop.permute.xlu0 %5022
      %5024 = vrot.lane.b32.xlu0 %v4960, 15
      %v5025 = vpop.permute.xlu0 %5024
      %5026 = vrot.lane.b32.xlu0 %v4961, 15
      %v5027 = vpop.permute.xlu0 %5026
      %vm5028 = vcmask 121856
      %v5029 = vsel %vm5028, %v5023, %v5025
      %v5030 = vsel %vm5028, %v5025, %v5027
      %v5033 = vsel %vm5020, %v5029, 0.0
      %v5034 = vsel %vm5021, %v5030, 0.0
      %s5035 = scalar_lea.vmem %s4, 232
      %v5036 = vld [vmem:[%s5035] sm:$0xff]
      %5038 = vset.pattern.permute.xlu0 0
      %5039 = vperm.xlu0 %5038, %v5036
      %v5040 = vpop.permute.xlu0 %5039
      %v5042 = vmul.f32 %v5033, %v5040
      %v5043 = vmul.f32 %v5034, %v5040
      %v5044 = vadd.f32 %v5016, %v5042
      %v5045 = vadd.f32 %v5017, %v5043
      %5046 = vrot.lane.b32.xlu0 %v4959, 1
      %v5047 = vpop.permute.xlu0 %5046
      %5048 = vrot.lane.b32.xlu0 %v4960, 1
      %v5049 = vpop.permute.xlu0 %5048
      %5050 = vrot.lane.b32.xlu0 %v4961, 1
      %v5051 = vpop.permute.xlu0 %5050
      %v5052 = vsel %vm3826, %v5047, %v5049
      %v5053 = vsel %vm3826, %v5049, %v5051
      %v5056 = vsel %vm4964, %v5052, 0.0
      %v5057 = vsel %vm4965, %v5053, 0.0
      %s5058 = scalar_lea.vmem %s4, 240
      %v5059 = vld [vmem:[%s5058] sm:$0xff]
      %5061 = vset.pattern.permute.xlu0 0
      %5062 = vperm.xlu0 %5061, %v5059
      %v5063 = vpop.permute.xlu0 %5062
      %v5065 = vmul.f32 %v5056, %v5063
      %v5066 = vmul.f32 %v5057, %v5063
      %v5067 = vadd.f32 %v5044, %v5065
      %v5068 = vadd.f32 %v5045, %v5066
      %v5069 = vld [vmem:[#allocation2 + $0x8] sm:$0xff]
      %v5070 = vld [vmem:[#allocation2 + $0x10] sm:$0xff]
      %v5071 = vld [vmem:[#allocation2 + $0x18] sm:$0xff]
      %5075 = vrot.lane.b32.xlu0 %v5069, 127
      %v5076 = vpop.permute.xlu0 %5075
      %5077 = vrot.lane.b32.xlu0 %v5070, 127
      %v5078 = vpop.permute.xlu0 %5077
      %5079 = vrot.lane.b32.xlu0 %v5071, 127
      %v5080 = vpop.permute.xlu0 %5079
      %vm5081 = vcmask 1039360
      %v5082 = vsel %vm5081, %v5076, %v5078
      %v5083 = vsel %vm5081, %v5078, %v5080
      %v5086 = vsel %vm5020, %v5082, 0.0
      %v5087 = vsel %vm5021, %v5083, 0.0
      %s5088 = scalar_lea.vmem %s4, 256
      %v5089 = vld [vmem:[%s5088] sm:$0xff]
      %5091 = vset.pattern.permute.xlu0 0
      %5092 = vperm.xlu0 %5091, %v5089
      %v5093 = vpop.permute.xlu0 %5092
      %v5095 = vmul.f32 %v5086, %v5093
      %v5096 = vmul.f32 %v5087, %v5093
      %v5097 = vadd.f32 %v5067, %v5095
      %v5098 = vadd.f32 %v5068, %v5096
      %5099 = vrot.lane.b32.xlu0 %v5069, 113
      %v5100 = vpop.permute.xlu0 %5099
      %5101 = vrot.lane.b32.xlu0 %v5070, 113
      %v5102 = vpop.permute.xlu0 %5101
      %5103 = vrot.lane.b32.xlu0 %v5071, 113
      %v5104 = vpop.permute.xlu0 %5103
      %vm5105 = vcmask 924672
      %v5106 = vsel %vm5105, %v5100, %v5102
      %v5107 = vsel %vm5105, %v5102, %v5104
      %v5110 = vsel %vm4964, %v5106, 0.0
      %v5111 = vsel %vm4965, %v5107, 0.0
      %s5112 = scalar_lea.vmem %s4, 264
      %v5113 = vld [vmem:[%s5112] sm:$0xff]
      %5115 = vset.pattern.permute.xlu0 0
      %5116 = vperm.xlu0 %5115, %v5113
      %v5117 = vpop.permute.xlu0 %5116
      %v5119 = vmul.f32 %v5110, %v5117
      %v5120 = vmul.f32 %v5111, %v5117
      %v5121 = vadd.f32 %v5097, %v5119
      %v5122 = vadd.f32 %v5098, %v5120
      %s5123 = scalar_lea.vmem %s4, 272
      %v5124 = vld [vmem:[%s5123] sm:$0xff]
      %5126 = vset.pattern.permute.xlu0 0
      %5127 = vperm.xlu0 %5126, %v5124
      %v5128 = vpop.permute.xlu0 %5127
      %v5130 = vmul.f32 %v5069, %v5128
      %v5131 = vmul.f32 %v5070, %v5128
      %v5132 = vmul.f32 %v5071, %v5128
      %5136 = vrot.lane.b32.xlu0 %v5130, 112
      %v5137 = vpop.permute.xlu0 %5136
      %5138 = vrot.lane.b32.xlu0 %v5131, 112
      %v5139 = vpop.permute.xlu0 %5138
      %5140 = vrot.lane.b32.xlu0 %v5132, 112
      %v5141 = vpop.permute.xlu0 %5140
      %vm5142 = vcmask 916480
      %v5143 = vsel %vm5142, %v5137, %v5139
      %v5144 = vsel %vm5142, %v5139, %v5141
      %v5147 = vadd.f32 %v5121, %v5143
      %v5148 = vadd.f32 %v5122, %v5144
      %5149 = vrot.lane.b32.xlu0 %v5069, 111
      %v5150 = vpop.permute.xlu0 %5149
      %5151 = vrot.lane.b32.xlu0 %v5070, 111
      %v5152 = vpop.permute.xlu0 %5151
      %5153 = vrot.lane.b32.xlu0 %v5071, 111
      %v5154 = vpop.permute.xlu0 %5153
      %vm5155 = vcmask 908288
      %v5156 = vsel %vm5155, %v5150, %v5152
      %v5157 = vsel %vm5155, %v5152, %v5154
      %v5160 = vsel %vm5020, %v5156, 0.0
      %v5161 = vsel %vm5021, %v5157, 0.0
      %s5162 = scalar_lea.vmem %s4, 280
      %v5163 = vld [vmem:[%s5162] sm:$0xff]
      %5165 = vset.pattern.permute.xlu0 0
      %5166 = vperm.xlu0 %5165, %v5163
      %v5167 = vpop.permute.xlu0 %5166
      %v5169 = vmul.f32 %v5160, %v5167
      %v5170 = vmul.f32 %v5161, %v5167
      %v5171 = vadd.f32 %v5147, %v5169
      %v5172 = vadd.f32 %v5148, %v5170
      %s5173 = scalar_lea.vmem %s5, 24
      %v5174 = vld [vmem:[%s5173] sm:$0xff]
      %5176 = vset.pattern.permute.xlu0 0
      %5177 = vperm.xlu0 %5176, %v5174
      %v5178 = vpop.permute.xlu0 %5177
      %v5180 = vadd.f32 %v5171, %v5178
      %v5181 = vadd.f32 %v5172, %v5178
      %v5182 = vmax.f32 %v5180, 0.0
      %v5183 = vmax.f32 %v5181, 0.0
      %s5184 = scalar_lea.vmem %s1, 32
      %v5185 = vld [vmem:[%s5184] sm:$0xff]
      %s5186 = scalar_lea.vmem %s2, 32
      %v5187 = vld [vmem:[%s5186] sm:$0xff]
      %v5189 = vsel %vm3910, %v5187, 0
      %5191 = vmatprep.subr.mxu0 %v5183
      %5192 = vmatpush1.msra.mxu0 %v5182
      %5193 = vmatprep.subr.mxu0 0.0
      %5194 = vmatpush1.msra.mxu0 0.0
      %5195 = vmatprep.subr.mxu0 0.0
      %5196 = vmatpush1.msra.mxu0 0.0
      %5197 = vmatprep.subr.mxu0 0.0
      %5198 = vmatpush1.msra.mxu0 0.0
      %5199 = vmatprep.subr.mxu0 0.0
      %5200 = vmatpush1.msra.mxu0 0.0
      %5201 = vmatprep.subr.mxu0 0.0
      %5202 = vmatpush1.msra.mxu0 0.0
      %5203 = vmatprep.subr.mxu0 0.0
      %5204 = vmatpush1.msra.mxu0 0.0
      %5205 = vmatprep.subr.mxu0 0.0
      %5206 = vmatpush1.msra.mxu0 0.0
      %5207 = vmatprep.subr.mxu0 0.0
      %5208 = vmatpush1.msra.mxu0 0.0
      %5209 = vmatprep.subr.mxu0 0.0
      %5210 = vmatpush1.msra.mxu0 0.0
      %5211 = vmatprep.subr.mxu0 0.0
      %5212 = vmatpush1.msra.mxu0 0.0
      %5213 = vmatprep.subr.mxu0 0.0
      %5214 = vmatpush1.msra.mxu0 0.0
      %5215 = vmatprep.subr.mxu0 0.0
      %5216 = vmatpush1.msra.mxu0 0.0
      %5217 = vmatprep.subr.mxu0 0.0
      %5218 = vmatpush1.msra.mxu0 0.0
      %5219 = vmatprep.subr.mxu0 0.0
      %5220 = vmatpush1.msra.mxu0 0.0
      %5221 = vmatprep.subr.mxu0 0.0
      %5222 = vmatpush1.msra.mxu0 0.0
      %5223 = vmatprep.subr.mxu0 0.0
      %5224 = vmatpush1.msra.mxu0 0.0
      %5225 = vmatprep.subr.mxu0 0.0
      %5226 = vmatpush1.msra.mxu0 0.0
      %5227 = vmatprep.subr.mxu0 0.0
      %5228 = vmatpush1.msra.mxu0 0.0
      %5229 = vmatprep.subr.mxu0 0.0
      %5230 = vmatpush1.msra.mxu0 0.0
      %5231 = vmatprep.subr.mxu0 0.0
      %5232 = vmatpush1.msra.mxu0 0.0
      %5233 = vmatprep.subr.mxu0 0.0
      %5234 = vmatpush1.msra.mxu0 0.0
      %5235 = vmatprep.subr.mxu0 0.0
      %5236 = vmatpush1.msra.mxu0 0.0
      %5237 = vmatprep.subr.mxu0 0.0
      %5238 = vmatpush1.msra.mxu0 0.0
      %5239 = vmatprep.subr.mxu0 0.0
      %5240 = vmatpush1.msra.mxu0 0.0
      %5241 = vmatprep.subr.mxu0 0.0
      %5242 = vmatpush1.msra.mxu0 0.0
      %5243 = vmatprep.subr.mxu0 0.0
      %5244 = vmatpush1.msra.mxu0 0.0
      %5245 = vmatprep.subr.mxu0 0.0
      %5246 = vmatpush1.msra.mxu0 0.0
      %5247 = vmatprep.subr.mxu0 0.0
      %5248 = vmatpush1.msra.mxu0 0.0
      %5249 = vmatprep.subr.mxu0 0.0
      %5250 = vmatpush1.msra.mxu0 0.0
      %5251 = vmatprep.subr.mxu0 0.0
      %5252 = vmatpush1.msra.mxu0 0.0
      %5253 = vmatprep.subr.mxu0 0.0
      %5254 = vmatpush1.msra.mxu0 0.0
      %5255 = vmatprep.mubr.f32.mxu0 0.0
      %5256 = vmatmul.mubr.f32.gmra.mrb[0].mxu0 %v5189
      %v5257 = vpop.f32.mrb[0].mxu0
      %v5258 = vadd.f32 0.0, %v5257
      %v5259 = vpop.f32.mrb[0].mxu0
      %v5260 = vadd.f32 0.0, %v5259
      %5261 = vdwg.mxu0
      %5262 = vmatprep.subr.mxu0 %v2275
      %5263 = vmatpush1.msra.mxu0 %v2274
      %5264 = vmatprep.subr.mxu0 %v2283
      %5265 = vmatpush1.msra.mxu0 %v2282
      %5266 = vmatprep.subr.mxu0 %v2291
      %5267 = vmatpush1.msra.mxu0 %v2290
      %5268 = vmatprep.subr.mxu0 %v2299
      %5269 = vmatpush1.msra.mxu0 %v2298
      %5270 = vmatprep.subr.mxu0 %v2307
      %5271 = vmatpush1.msra.mxu0 %v2306
      %5272 = vmatprep.subr.mxu0 %v2315
      %5273 = vmatpush1.msra.mxu0 %v2314
      %5274 = vmatprep.subr.mxu0 %v2323
      %5275 = vmatpush1.msra.mxu0 %v2322
      %5276 = vmatprep.subr.mxu0 %v2331
      %5277 = vmatpush1.msra.mxu0 %v2330
      %5278 = vmatprep.subr.mxu0 %v2339
      %5279 = vmatpush1.msra.mxu0 %v2338
      %5280 = vmatprep.subr.mxu0 %v2347
      %5281 = vmatpush1.msra.mxu0 %v2346
      %5282 = vmatprep.subr.mxu0 %v2355
      %5283 = vmatpush1.msra.mxu0 %v2354
      %5284 = vmatprep.subr.mxu0 %v2363
      %5285 = vmatpush1.msra.mxu0 %v2362
      %5286 = vmatprep.subr.mxu0 %v2371
      %5287 = vmatpush1.msra.mxu0 %v2370
      %5288 = vmatprep.subr.mxu0 %v2379
      %5289 = vmatpush1.msra.mxu0 %v2378
      %5290 = vmatprep.subr.mxu0 %v2387
      %5291 = vmatpush1.msra.mxu0 %v2386
      %5292 = vmatprep.subr.mxu0 %v2395
      %5293 = vmatpush1.msra.mxu0 %v2394
      %5294 = vmatprep.subr.mxu0 %v2403
      %5295 = vmatpush1.msra.mxu0 %v2402
      %5296 = vmatprep.subr.mxu0 %v2411
      %5297 = vmatpush1.msra.mxu0 %v2410
      %5298 = vmatprep.subr.mxu0 %v2419
      %5299 = vmatpush1.msra.mxu0 %v2418
      %5300 = vmatprep.subr.mxu0 %v2427
      %5301 = vmatpush1.msra.mxu0 %v2426
      %5302 = vmatprep.subr.mxu0 %v2435
      %5303 = vmatpush1.msra.mxu0 %v2434
      %5304 = vmatprep.subr.mxu0 %v2443
      %5305 = vmatpush1.msra.mxu0 %v2442
      %5306 = vmatprep.subr.mxu0 %v2451
      %5307 = vmatpush1.msra.mxu0 %v2450
      %5308 = vmatprep.subr.mxu0 %v2459
      %5309 = vmatpush1.msra.mxu0 %v2458
      %5310 = vmatprep.subr.mxu0 %v2467
      %5311 = vmatpush1.msra.mxu0 %v2466
      %5312 = vmatprep.subr.mxu0 %v2475
      %5313 = vmatpush1.msra.mxu0 %v2474
      %5314 = vmatprep.subr.mxu0 %v2483
      %5315 = vmatpush1.msra.mxu0 %v2482
      %5316 = vmatprep.subr.mxu0 %v2491
      %5317 = vmatpush1.msra.mxu0 %v2490
      %5318 = vmatprep.subr.mxu0 %v2499
      %5319 = vmatpush1.msra.mxu0 %v2498
      %5320 = vmatprep.subr.mxu0 %v2507
      %5321 = vmatpush1.msra.mxu0 %v2506
      %5322 = vmatprep.subr.mxu0 %v2515
      %5323 = vmatpush1.msra.mxu0 %v2514
      %5324 = vmatprep.subr.mxu0 %v2523
      %5325 = vmatpush1.msra.mxu0 %v2522
      %5326 = vmatprep.mubr.f32.mxu0 %v5260
      %5327 = vmatmul.mubr.f32.gmra.mrb[0].mxu0 %v5258
      %v5328 = vpop.f32.mrb[0].mxu0
      %v5329 = vadd.f32 0.0, %v5328
      %v5330 = vpop.f32.mrb[0].mxu0
      %v5331 = vadd.f32 0.0, %v5330
      %5332 = vdwg.mxu0
      %5333 = vmatprep.subr.mxu0 %v2277
      %5334 = vmatpush1.msra.mxu0 %v2276
      %5335 = vmatprep.subr.mxu0 %v2285
      %5336 = vmatpush1.msra.mxu0 %v2284
      %5337 = vmatprep.subr.mxu0 %v2293
      %5338 = vmatpush1.msra.mxu0 %v2292
      %5339 = vmatprep.subr.mxu0 %v2301
      %5340 = vmatpush1.msra.mxu0 %v2300
      %5341 = vmatprep.subr.mxu0 %v2309
      %5342 = vmatpush1.msra.mxu0 %v2308
      %5343 = vmatprep.subr.mxu0 %v2317
      %5344 = vmatpush1.msra.mxu0 %v2316
      %5345 = vmatprep.subr.mxu0 %v2325
      %5346 = vmatpush1.msra.mxu0 %v2324
      %5347 = vmatprep.subr.mxu0 %v2333
      %5348 = vmatpush1.msra.mxu0 %v2332
      %5349 = vmatprep.subr.mxu0 %v2341
      %5350 = vmatpush1.msra.mxu0 %v2340
      %5351 = vmatprep.subr.mxu0 %v2349
      %5352 = vmatpush1.msra.mxu0 %v2348
      %5353 = vmatprep.subr.mxu0 %v2357
      %5354 = vmatpush1.msra.mxu0 %v2356
      %5355 = vmatprep.subr.mxu0 %v2365
      %5356 = vmatpush1.msra.mxu0 %v2364
      %5357 = vmatprep.subr.mxu0 %v2373
      %5358 = vmatpush1.msra.mxu0 %v2372
      %5359 = vmatprep.subr.mxu0 %v2381
      %5360 = vmatpush1.msra.mxu0 %v2380
      %5361 = vmatprep.subr.mxu0 %v2389
      %5362 = vmatpush1.msra.mxu0 %v2388
      %5363 = vmatprep.subr.mxu0 %v2397
      %5364 = vmatpush1.msra.mxu0 %v2396
      %5365 = vmatprep.subr.mxu0 %v2405
      %5366 = vmatpush1.msra.mxu0 %v2404
      %5367 = vmatprep.subr.mxu0 %v2413
      %5368 = vmatpush1.msra.mxu0 %v2412
      %5369 = vmatprep.subr.mxu0 %v2421
      %5370 = vmatpush1.msra.mxu0 %v2420
      %5371 = vmatprep.subr.mxu0 %v2429
      %5372 = vmatpush1.msra.mxu0 %v2428
      %5373 = vmatprep.subr.mxu0 %v2437
      %5374 = vmatpush1.msra.mxu0 %v2436
      %5375 = vmatprep.subr.mxu0 %v2445
      %5376 = vmatpush1.msra.mxu0 %v2444
      %5377 = vmatprep.subr.mxu0 %v2453
      %5378 = vmatpush1.msra.mxu0 %v2452
      %5379 = vmatprep.subr.mxu0 %v2461
      %5380 = vmatpush1.msra.mxu0 %v2460
      %5381 = vmatprep.subr.mxu0 %v2469
      %5382 = vmatpush1.msra.mxu0 %v2468
      %5383 = vmatprep.subr.mxu0 %v2477
      %5384 = vmatpush1.msra.mxu0 %v2476
      %5385 = vmatprep.subr.mxu0 %v2485
      %5386 = vmatpush1.msra.mxu0 %v2484
      %5387 = vmatprep.subr.mxu0 %v2493
      %5388 = vmatpush1.msra.mxu0 %v2492
      %5389 = vmatprep.subr.mxu0 %v2501
      %5390 = vmatpush1.msra.mxu0 %v2500
      %5391 = vmatprep.subr.mxu0 %v2509
      %5392 = vmatpush1.msra.mxu0 %v2508
      %5393 = vmatprep.subr.mxu0 %v2517
      %5394 = vmatpush1.msra.mxu0 %v2516
      %5395 = vmatprep.subr.mxu0 %v2525
      %5396 = vmatpush1.msra.mxu0 %v2524
      %5397 = vmatprep.mubr.f32.mxu0 %v5260
      %5398 = vmatmul.mubr.f32.gmra.mrb[0].mxu0 %v5258
      %v5399 = vpop.f32.mrb[0].mxu0
      %v5400 = vadd.f32 0.0, %v5399
      %v5401 = vpop.f32.mrb[0].mxu0
      %v5402 = vadd.f32 0.0, %v5401
      %5403 = vdwg.mxu0
      %5404 = vmatprep.subr.mxu0 %v2279
      %5405 = vmatpush1.msra.mxu0 %v2278
      %5406 = vmatprep.subr.mxu0 %v2287
      %5407 = vmatpush1.msra.mxu0 %v2286
      %5408 = vmatprep.subr.mxu0 %v2295
      %5409 = vmatpush1.msra.mxu0 %v2294
      %5410 = vmatprep.subr.mxu0 %v2303
      %5411 = vmatpush1.msra.mxu0 %v2302
      %5412 = vmatprep.subr.mxu0 %v2311
      %5413 = vmatpush1.msra.mxu0 %v2310
      %5414 = vmatprep.subr.mxu0 %v2319
      %5415 = vmatpush1.msra.mxu0 %v2318
      %5416 = vmatprep.subr.mxu0 %v2327
      %5417 = vmatpush1.msra.mxu0 %v2326
      %5418 = vmatprep.subr.mxu0 %v2335
      %5419 = vmatpush1.msra.mxu0 %v2334
      %5420 = vmatprep.subr.mxu0 %v2343
      %5421 = vmatpush1.msra.mxu0 %v2342
      %5422 = vmatprep.subr.mxu0 %v2351
      %5423 = vmatpush1.msra.mxu0 %v2350
      %5424 = vmatprep.subr.mxu0 %v2359
      %5425 = vmatpush1.msra.mxu0 %v2358
      %5426 = vmatprep.subr.mxu0 %v2367
      %5427 = vmatpush1.msra.mxu0 %v2366
      %5428 = vmatprep.subr.mxu0 %v2375
      %5429 = vmatpush1.msra.mxu0 %v2374
      %5430 = vmatprep.subr.mxu0 %v2383
      %5431 = vmatpush1.msra.mxu0 %v2382
      %5432 = vmatprep.subr.mxu0 %v2391
      %5433 = vmatpush1.msra.mxu0 %v2390
      %5434 = vmatprep.subr.mxu0 %v2399
      %5435 = vmatpush1.msra.mxu0 %v2398
      %5436 = vmatprep.subr.mxu0 %v2407
      %5437 = vmatpush1.msra.mxu0 %v2406
      %5438 = vmatprep.subr.mxu0 %v2415
      %5439 = vmatpush1.msra.mxu0 %v2414
      %5440 = vmatprep.subr.mxu0 %v2423
      %5441 = vmatpush1.msra.mxu0 %v2422
      %5442 = vmatprep.subr.mxu0 %v2431
      %5443 = vmatpush1.msra.mxu0 %v2430
      %5444 = vmatprep.subr.mxu0 %v2439
      %5445 = vmatpush1.msra.mxu0 %v2438
      %5446 = vmatprep.subr.mxu0 %v2447
      %5447 = vmatpush1.msra.mxu0 %v2446
      %5448 = vmatprep.subr.mxu0 %v2455
      %5449 = vmatpush1.msra.mxu0 %v2454
      %5450 = vmatprep.subr.mxu0 %v2463
      %5451 = vmatpush1.msra.mxu0 %v2462
      %5452 = vmatprep.subr.mxu0 %v2471
      %5453 = vmatpush1.msra.mxu0 %v2470
      %5454 = vmatprep.subr.mxu0 %v2479
      %5455 = vmatpush1.msra.mxu0 %v2478
      %5456 = vmatprep.subr.mxu0 %v2487
      %5457 = vmatpush1.msra.mxu0 %v2486
      %5458 = vmatprep.subr.mxu0 %v2495
      %5459 = vmatpush1.msra.mxu0 %v2494
      %5460 = vmatprep.subr.mxu0 %v2503
      %5461 = vmatpush1.msra.mxu0 %v2502
      %5462 = vmatprep.subr.mxu0 %v2511
      %5463 = vmatpush1.msra.mxu0 %v2510
      %5464 = vmatprep.subr.mxu0 %v2519
      %5465 = vmatpush1.msra.mxu0 %v2518
      %5466 = vmatprep.subr.mxu0 %v2527
      %5467 = vmatpush1.msra.mxu0 %v2526
      %5468 = vmatprep.mubr.f32.mxu0 %v5260
      %5469 = vmatmul.mubr.f32.gmra.mrb[0].mxu0 %v5258
      %v5470 = vpop.f32.mrb[0].mxu0
      %v5471 = vadd.f32 0.0, %v5470
      %v5472 = vpop.f32.mrb[0].mxu0
      %v5473 = vadd.f32 0.0, %v5472
      %5474 = vdwg.mxu0
      %5475 = vmatprep.subr.mxu0 %v2281
      %5476 = vmatpush1.msra.mxu0 %v2280
      %5477 = vmatprep.subr.mxu0 %v2289
      %5478 = vmatpush1.msra.mxu0 %v2288
      %5479 = vmatprep.subr.mxu0 %v2297
      %5480 = vmatpush1.msra.mxu0 %v2296
      %5481 = vmatprep.subr.mxu0 %v2305
      %5482 = vmatpush1.msra.mxu0 %v2304
      %5483 = vmatprep.subr.mxu0 %v2313
      %5484 = vmatpush1.msra.mxu0 %v2312
      %5485 = vmatprep.subr.mxu0 %v2321
      %5486 = vmatpush1.msra.mxu0 %v2320
      %5487 = vmatprep.subr.mxu0 %v2329
      %5488 = vmatpush1.msra.mxu0 %v2328
      %5489 = vmatprep.subr.mxu0 %v2337
      %5490 = vmatpush1.msra.mxu0 %v2336
      %5491 = vmatprep.subr.mxu0 %v2345
      %5492 = vmatpush1.msra.mxu0 %v2344
      %5493 = vmatprep.subr.mxu0 %v2353
      %5494 = vmatpush1.msra.mxu0 %v2352
      %5495 = vmatprep.subr.mxu0 %v2361
      %5496 = vmatpush1.msra.mxu0 %v2360
      %5497 = vmatprep.subr.mxu0 %v2369
      %5498 = vmatpush1.msra.mxu0 %v2368
      %5499 = vmatprep.subr.mxu0 %v2377
      %5500 = vmatpush1.msra.mxu0 %v2376
      %5501 = vmatprep.subr.mxu0 %v2385
      %5502 = vmatpush1.msra.mxu0 %v2384
      %5503 = vmatprep.subr.mxu0 %v2393
      %5504 = vmatpush1.msra.mxu0 %v2392
      %5505 = vmatprep.subr.mxu0 %v2401
      %5506 = vmatpush1.msra.mxu0 %v2400
      %5507 = vmatprep.subr.mxu0 %v2409
      %5508 = vmatpush1.msra.mxu0 %v2408
      %5509 = vmatprep.subr.mxu0 %v2417
      %5510 = vmatpush1.msra.mxu0 %v2416
      %5511 = vmatprep.subr.mxu0 %v2425
      %5512 = vmatpush1.msra.mxu0 %v2424
      %5513 = vmatprep.subr.mxu0 %v2433
      %5514 = vmatpush1.msra.mxu0 %v2432
      %5515 = vmatprep.subr.mxu0 %v2441
      %5516 = vmatpush1.msra.mxu0 %v2440
      %5517 = vmatprep.subr.mxu0 %v2449
      %5518 = vmatpush1.msra.mxu0 %v2448
      %5519 = vmatprep.subr.mxu0 %v2457
      %5520 = vmatpush1.msra.mxu0 %v2456
      %5521 = vmatprep.subr.mxu0 %v2465
      %5522 = vmatpush1.msra.mxu0 %v2464
      %5523 = vmatprep.subr.mxu0 %v2473
      %5524 = vmatpush1.msra.mxu0 %v2472
      %5525 = vmatprep.subr.mxu0 %v2481
      %5526 = vmatpush1.msra.mxu0 %v2480
      %5527 = vmatprep.subr.mxu0 %v2489
      %5528 = vmatpush1.msra.mxu0 %v2488
      %5529 = vmatprep.subr.mxu0 %v2497
      %5530 = vmatpush1.msra.mxu0 %v2496
      %5531 = vmatprep.subr.mxu0 %v2505
      %5532 = vmatpush1.msra.mxu0 %v2504
      %5533 = vmatprep.subr.mxu0 %v2513
      %5534 = vmatpush1.msra.mxu0 %v2512
      %5535 = vmatprep.subr.mxu0 %v2521
      %5536 = vmatpush1.msra.mxu0 %v2520
      %5537 = vmatprep.subr.mxu0 %v2529
      %5538 = vmatpush1.msra.mxu0 %v2528
      %5539 = vmatprep.mubr.f32.mxu0 %v5260
      %5540 = vmatmul.mubr.f32.gmra.mrb[0].mxu0 %v5258
      %v5541 = vpop.f32.mrb[0].mxu0
      %v5542 = vadd.f32 0.0, %v5541
      %v5543 = vpop.f32.mrb[0].mxu0
      %v5544 = vadd.f32 0.0, %v5543
      %5545 = vdwg.mxu0
      %v5550 = vcombine.high %v2830, %v2830
      %v5551 = vcombine.high %v2831, %v2831
      %v5552 = vcombine.high %v2832, %v2832
      %v5553 = vcombine.high %v2833, %v2833
      %v5555 = vsel %vm3680, %v5185, 0
      %v5557 = vsel %vm3684, %v2830, 0
      %v5559 = vsel %vm3684, %v5550, 0
      %v5561 = vsel %vm3684, %v2831, 0
      %v5563 = vsel %vm3684, %v5551, 0
      %v5565 = vsel %vm3684, %v2832, 0
      %v5567 = vsel %vm3684, %v5552, 0
      %v5569 = vsel %vm3684, %v2833, 0
      %v5571 = vsel %vm3684, %v5553, 0
      %5573 = vmatprep.subr.mxu0 %v5559
      %5574 = vmatpush1.msra.mxu0 %v5557
      %5575 = vmatprep.subr.mxu0 0.0
      %5576 = vmatpush1.msra.mxu0 0.0
      %5577 = vmatprep.subr.mxu0 0.0
      %5578 = vmatpush1.msra.mxu0 0.0
      %5579 = vmatprep.subr.mxu0 0.0
      %5580 = vmatpush1.msra.mxu0 0.0
      %5581 = vmatprep.subr.mxu0 0.0
      %5582 = vmatpush1.msra.mxu0 0.0
      %5583 = vmatprep.subr.mxu0 0.0
      %5584 = vmatpush1.msra.mxu0 0.0
      %5585 = vmatprep.subr.mxu0 0.0
      %5586 = vmatpush1.msra.mxu0 0.0
      %5587 = vmatprep.subr.mxu0 0.0
      %5588 = vmatpush1.msra.mxu0 0.0
      %5589 = vmatprep.subr.mxu0 0.0
      %5590 = vmatpush1.msra.mxu0 0.0
      %5591 = vmatprep.subr.mxu0 0.0
      %5592 = vmatpush1.msra.mxu0 0.0
      %5593 = vmatprep.subr.mxu0 0.0
      %5594 = vmatpush1.msra.mxu0 0.0
      %5595 = vmatprep.subr.mxu0 0.0
      %5596 = vmatpush1.msra.mxu0 0.0
      %5597 = vmatprep.subr.mxu0 0.0
      %5598 = vmatpush1.msra.mxu0 0.0
      %5599 = vmatprep.subr.mxu0 0.0
      %5600 = vmatpush1.msra.mxu0 0.0
      %5601 = vmatprep.subr.mxu0 0.0
      %5602 = vmatpush1.msra.mxu0 0.0
      %5603 = vmatprep.subr.mxu0 0.0
      %5604 = vmatpush1.msra.mxu0 0.0
      %5605 = vmatprep.subr.mxu0 0.0
      %5606 = vmatpush1.msra.mxu0 0.0
      %5607 = vmatprep.subr.mxu0 0.0
      %5608 = vmatpush1.msra.mxu0 0.0
      %5609 = vmatprep.subr.mxu0 0.0
      %5610 = vmatpush1.msra.mxu0 0.0
      %5611 = vmatprep.subr.mxu0 0.0
      %5612 = vmatpush1.msra.mxu0 0.0
      %5613 = vmatprep.subr.mxu0 0.0
      %5614 = vmatpush1.msra.mxu0 0.0
      %5615 = vmatprep.subr.mxu0 0.0
      %5616 = vmatpush1.msra.mxu0 0.0
      %5617 = vmatprep.subr.mxu0 0.0
      %5618 = vmatpush1.msra.mxu0 0.0
      %5619 = vmatprep.subr.mxu0 0.0
      %5620 = vmatpush1.msra.mxu0 0.0
      %5621 = vmatprep.subr.mxu0 0.0
      %5622 = vmatpush1.msra.mxu0 0.0
      %5623 = vmatprep.subr.mxu0 0.0
      %5624 = vmatpush1.msra.mxu0 0.0
      %5625 = vmatprep.subr.mxu0 0.0
      %5626 = vmatpush1.msra.mxu0 0.0
      %5627 = vmatprep.subr.mxu0 0.0
      %5628 = vmatpush1.msra.mxu0 0.0
      %5629 = vmatprep.subr.mxu0 0.0
      %5630 = vmatpush1.msra.mxu0 0.0
      %5631 = vmatprep.subr.mxu0 0.0
      %5632 = vmatpush1.msra.mxu0 0.0
      %5633 = vmatprep.subr.mxu0 0.0
      %5634 = vmatpush1.msra.mxu0 0.0
      %5635 = vmatprep.subr.mxu0 0.0
      %5636 = vmatpush1.msra.mxu0 0.0
      %5637 = vmatprep.mubr.f32.mxu0 0.0
      %5638 = vmatmul.mubr.f32.gmra.mrb[0].mxu0 %v5555
      %v5639 = vpop.f32.mrb[0].mxu0
      %v5640 = vadd.f32 %v5329, %v5639
      %v5641 = vpop.f32.mrb[0].mxu0
      %v5642 = vadd.f32 %v5331, %v5641
      %5643 = vdwg.mxu0
      %5644 = vmatprep.subr.mxu0 %v5563
      %5645 = vmatpush1.msra.mxu0 %v5561
      %5646 = vmatprep.subr.mxu0 0.0
      %5647 = vmatpush1.msra.mxu0 0.0
      %5648 = vmatprep.subr.mxu0 0.0
      %5649 = vmatpush1.msra.mxu0 0.0
      %5650 = vmatprep.subr.mxu0 0.0
      %5651 = vmatpush1.msra.mxu0 0.0
      %5652 = vmatprep.subr.mxu0 0.0
      %5653 = vmatpush1.msra.mxu0 0.0
      %5654 = vmatprep.subr.mxu0 0.0
      %5655 = vmatpush1.msra.mxu0 0.0
      %5656 = vmatprep.subr.mxu0 0.0
      %5657 = vmatpush1.msra.mxu0 0.0
      %5658 = vmatprep.subr.mxu0 0.0
      %5659 = vmatpush1.msra.mxu0 0.0
      %5660 = vmatprep.subr.mxu0 0.0
      %5661 = vmatpush1.msra.mxu0 0.0
      %5662 = vmatprep.subr.mxu0 0.0
      %5663 = vmatpush1.msra.mxu0 0.0
      %5664 = vmatprep.subr.mxu0 0.0
      %5665 = vmatpush1.msra.mxu0 0.0
      %5666 = vmatprep.subr.mxu0 0.0
      %5667 = vmatpush1.msra.mxu0 0.0
      %5668 = vmatprep.subr.mxu0 0.0
      %5669 = vmatpush1.msra.mxu0 0.0
      %5670 = vmatprep.subr.mxu0 0.0
      %5671 = vmatpush1.msra.mxu0 0.0
      %5672 = vmatprep.subr.mxu0 0.0
      %5673 = vmatpush1.msra.mxu0 0.0
      %5674 = vmatprep.subr.mxu0 0.0
      %5675 = vmatpush1.msra.mxu0 0.0
      %5676 = vmatprep.subr.mxu0 0.0
      %5677 = vmatpush1.msra.mxu0 0.0
      %5678 = vmatprep.subr.mxu0 0.0
      %5679 = vmatpush1.msra.mxu0 0.0
      %5680 = vmatprep.subr.mxu0 0.0
      %5681 = vmatpush1.msra.mxu0 0.0
      %5682 = vmatprep.subr.mxu0 0.0
      %5683 = vmatpush1.msra.mxu0 0.0
      %5684 = vmatprep.subr.mxu0 0.0
      %5685 = vmatpush1.msra.mxu0 0.0
      %5686 = vmatprep.subr.mxu0 0.0
      %5687 = vmatpush1.msra.mxu0 0.0
      %5688 = vmatprep.subr.mxu0 0.0
      %5689 = vmatpush1.msra.mxu0 0.0
      %5690 = vmatprep.subr.mxu0 0.0
      %5691 = vmatpush1.msra.mxu0 0.0
      %5692 = vmatprep.subr.mxu0 0.0
      %5693 = vmatpush1.msra.mxu0 0.0
      %5694 = vmatprep.subr.mxu0 0.0
      %5695 = vmatpush1.msra.mxu0 0.0
      %5696 = vmatprep.subr.mxu0 0.0
      %5697 = vmatpush1.msra.mxu0 0.0
      %5698 = vmatprep.subr.mxu0 0.0
      %5699 = vmatpush1.msra.mxu0 0.0
      %5700 = vmatprep.subr.mxu0 0.0
      %5701 = vmatpush1.msra.mxu0 0.0
      %5702 = vmatprep.subr.mxu0 0.0
      %5703 = vmatpush1.msra.mxu0 0.0
      %5704 = vmatprep.subr.mxu0 0.0
      %5705 = vmatpush1.msra.mxu0 0.0
      %5706 = vmatprep.subr.mxu0 0.0
      %5707 = vmatpush1.msra.mxu0 0.0
      %5708 = vmatprep.mubr.f32.mxu0 0.0
      %5709 = vmatmul.mubr.f32.gmra.mrb[0].mxu0 %v5555
      %v5710 = vpop.f32.mrb[0].mxu0
      %v5711 = vadd.f32 %v5400, %v5710
      %v5712 = vpop.f32.mrb[0].mxu0
      %v5713 = vadd.f32 %v5402, %v5712
      %5714 = vdwg.mxu0
      %5715 = vmatprep.subr.mxu0 %v5567
      %5716 = vmatpush1.msra.mxu0 %v5565
      %5717 = vmatprep.subr.mxu0 0.0
      %5718 = vmatpush1.msra.mxu0 0.0
      %5719 = vmatprep.subr.mxu0 0.0
      %5720 = vmatpush1.msra.mxu0 0.0
      %5721 = vmatprep.subr.mxu0 0.0
      %5722 = vmatpush1.msra.mxu0 0.0
      %5723 = vmatprep.subr.mxu0 0.0
      %5724 = vmatpush1.msra.mxu0 0.0
      %5725 = vmatprep.subr.mxu0 0.0
      %5726 = vmatpush1.msra.mxu0 0.0
      %5727 = vmatprep.subr.mxu0 0.0
      %5728 = vmatpush1.msra.mxu0 0.0
      %5729 = vmatprep.subr.mxu0 0.0
      %5730 = vmatpush1.msra.mxu0 0.0
      %5731 = vmatprep.subr.mxu0 0.0
      %5732 = vmatpush1.msra.mxu0 0.0
      %5733 = vmatprep.subr.mxu0 0.0
      %5734 = vmatpush1.msra.mxu0 0.0
      %5735 = vmatprep.subr.mxu0 0.0
      %5736 = vmatpush1.msra.mxu0 0.0
      %5737 = vmatprep.subr.mxu0 0.0
      %5738 = vmatpush1.msra.mxu0 0.0
      %5739 = vmatprep.subr.mxu0 0.0
      %5740 = vmatpush1.msra.mxu0 0.0
      %5741 = vmatprep.subr.mxu0 0.0
      %5742 = vmatpush1.msra.mxu0 0.0
      %5743 = vmatprep.subr.mxu0 0.0
      %5744 = vmatpush1.msra.mxu0 0.0
      %5745 = vmatprep.subr.mxu0 0.0
      %5746 = vmatpush1.msra.mxu0 0.0
      %5747 = vmatprep.subr.mxu0 0.0
      %5748 = vmatpush1.msra.mxu0 0.0
      %5749 = vmatprep.subr.mxu0 0.0
      %5750 = vmatpush1.msra.mxu0 0.0
      %5751 = vmatprep.subr.mxu0 0.0
      %5752 = vmatpush1.msra.mxu0 0.0
      %5753 = vmatprep.subr.mxu0 0.0
      %5754 = vmatpush1.msra.mxu0 0.0
      %5755 = vmatprep.subr.mxu0 0.0
      %5756 = vmatpush1.msra.mxu0 0.0
      %5757 = vmatprep.subr.mxu0 0.0
      %5758 = vmatpush1.msra.mxu0 0.0
      %5759 = vmatprep.subr.mxu0 0.0
      %5760 = vmatpush1.msra.mxu0 0.0
      %5761 = vmatprep.subr.mxu0 0.0
      %5762 = vmatpush1.msra.mxu0 0.0
      %5763 = vmatprep.subr.mxu0 0.0
      %5764 = vmatpush1.msra.mxu0 0.0
      %5765 = vmatprep.subr.mxu0 0.0
      %5766 = vmatpush1.msra.mxu0 0.0
      %5767 = vmatprep.subr.mxu0 0.0
      %5768 = vmatpush1.msra.mxu0 0.0
      %5769 = vmatprep.subr.mxu0 0.0
      %5770 = vmatpush1.msra.mxu0 0.0
      %5771 = vmatprep.subr.mxu0 0.0
      %5772 = vmatpush1.msra.mxu0 0.0
      %5773 = vmatprep.subr.mxu0 0.0
      %5774 = vmatpush1.msra.mxu0 0.0
      %5775 = vmatprep.subr.mxu0 0.0
      %5776 = vmatpush1.msra.mxu0 0.0
      %5777 = vmatprep.subr.mxu0 0.0
      %5778 = vmatpush1.msra.mxu0 0.0
      %5779 = vmatprep.mubr.f32.mxu0 0.0
      %5780 = vmatmul.mubr.f32.gmra.mrb[0].mxu0 %v5555
      %v5781 = vpop.f32.mrb[0].mxu0
      %v5782 = vadd.f32 %v5471, %v5781
      %v5783 = vpop.f32.mrb[0].mxu0
      %v5784 = vadd.f32 %v5473, %v5783
      %5785 = vdwg.mxu0
      %5786 = vmatprep.subr.mxu0 %v5571
      %5787 = vmatpush1.msra.mxu0 %v5569
      %5788 = vmatprep.subr.mxu0 0.0
      %5789 = vmatpush1.msra.mxu0 0.0
      %5790 = vmatprep.subr.mxu0 0.0
      %5791 = vmatpush1.msra.mxu0 0.0
      %5792 = vmatprep.subr.mxu0 0.0
      %5793 = vmatpush1.msra.mxu0 0.0
      %5794 = vmatprep.subr.mxu0 0.0
      %5795 = vmatpush1.msra.mxu0 0.0
      %5796 = vmatprep.subr.mxu0 0.0
      %5797 = vmatpush1.msra.mxu0 0.0
      %5798 = vmatprep.subr.mxu0 0.0
      %5799 = vmatpush1.msra.mxu0 0.0
      %5800 = vmatprep.subr.mxu0 0.0
      %5801 = vmatpush1.msra.mxu0 0.0
      %5802 = vmatprep.subr.mxu0 0.0
      %5803 = vmatpush1.msra.mxu0 0.0
      %5804 = vmatprep.subr.mxu0 0.0
      %5805 = vmatpush1.msra.mxu0 0.0
      %5806 = vmatprep.subr.mxu0 0.0
      %5807 = vmatpush1.msra.mxu0 0.0
      %5808 = vmatprep.subr.mxu0 0.0
      %5809 = vmatpush1.msra.mxu0 0.0
      %5810 = vmatprep.subr.mxu0 0.0
      %5811 = vmatpush1.msra.mxu0 0.0
      %5812 = vmatprep.subr.mxu0 0.0
      %5813 = vmatpush1.msra.mxu0 0.0
      %5814 = vmatprep.subr.mxu0 0.0
      %5815 = vmatpush1.msra.mxu0 0.0
      %5816 = vmatprep.subr.mxu0 0.0
      %5817 = vmatpush1.msra.mxu0 0.0
      %5818 = vmatprep.subr.mxu0 0.0
      %5819 = vmatpush1.msra.mxu0 0.0
      %5820 = vmatprep.subr.mxu0 0.0
      %5821 = vmatpush1.msra.mxu0 0.0
      %5822 = vmatprep.subr.mxu0 0.0
      %5823 = vmatpush1.msra.mxu0 0.0
      %5824 = vmatprep.subr.mxu0 0.0
      %5825 = vmatpush1.msra.mxu0 0.0
      %5826 = vmatprep.subr.mxu0 0.0
      %5827 = vmatpush1.msra.mxu0 0.0
      %5828 = vmatprep.subr.mxu0 0.0
      %5829 = vmatpush1.msra.mxu0 0.0
      %5830 = vmatprep.subr.mxu0 0.0
      %5831 = vmatpush1.msra.mxu0 0.0
      %5832 = vmatprep.subr.mxu0 0.0
      %5833 = vmatpush1.msra.mxu0 0.0
      %5834 = vmatprep.subr.mxu0 0.0
      %5835 = vmatpush1.msra.mxu0 0.0
      %5836 = vmatprep.subr.mxu0 0.0
      %5837 = vmatpush1.msra.mxu0 0.0
      %5838 = vmatprep.subr.mxu0 0.0
      %5839 = vmatpush1.msra.mxu0 0.0
      %5840 = vmatprep.subr.mxu0 0.0
      %5841 = vmatpush1.msra.mxu0 0.0
      %5842 = vmatprep.subr.mxu0 0.0
      %5843 = vmatpush1.msra.mxu0 0.0
      %5844 = vmatprep.subr.mxu0 0.0
      %5845 = vmatpush1.msra.mxu0 0.0
      %5846 = vmatprep.subr.mxu0 0.0
      %5847 = vmatpush1.msra.mxu0 0.0
      %5848 = vmatprep.subr.mxu0 0.0
      %5849 = vmatpush1.msra.mxu0 0.0
      %5850 = vmatprep.mubr.f32.mxu0 0.0
      %5851 = vmatmul.mubr.f32.gmra.mrb[0].mxu0 %v5555
      %v5852 = vpop.f32.mrb[0].mxu0
      %v5853 = vadd.f32 %v5542, %v5852
      %v5854 = vpop.f32.mrb[0].mxu0
      %v5855 = vadd.f32 %v5544, %v5854
      %5856 = vdwg.mxu0
      %s5857 = scalar_lea.vmem %s3, 32
      %v5858 = vld [vmem:[%s5857] sm:$0xff]
      %5860 = vset.pattern.permute.xlu0 0
      %5861 = vperm.xlu0 %5860, %v5858
      %v5862 = vpop.permute.xlu0 %5861
      %v5864 = vadd.f32 %v5640, %v5862
      %v5865 = vadd.f32 %v5642, %v5862
      %v5866 = vadd.f32 %v5711, %v5862
      %v5867 = vadd.f32 %v5713, %v5862
      %v5868 = vadd.f32 %v5782, %v5862
      %v5869 = vadd.f32 %v5784, %v5862
      %v5870 = vadd.f32 %v5853, %v5862
      %v5871 = vadd.f32 %v5855, %v5862
      %v5872 = vmax.f32 %v5864, 0.0
      %v5873 = vmax.f32 %v5865, 0.0
      %v5874 = vmax.f32 %v5866, 0.0
      %v5875 = vmax.f32 %v5867, 0.0
      %v5876 = vmax.f32 %v5868, 0.0
      %v5877 = vmax.f32 %v5869, 0.0
      %v5878 = vmax.f32 %v5870, 0.0
      %v5879 = vmax.f32 %v5871, 0.0
      %5880 = vst [vmem:[#allocation2] sm:$0xff] 0.0
      %5881 = vst [vmem:[#allocation2 + $0x8] sm:$0xff] 0.0
      %5882 = vst [vmem:[#allocation2 + $0x10] sm:$0xff] 0.0
      %5883 = vst [vmem:[#allocation2 + $0x18] sm:$0xff] 0.0
      %5884 = vst [vmem:[#allocation2 + $0x20] sm:$0xff] 0.0
      %5885 = vst [vmem:[#allocation2 + $0x28] sm:$0xff] 0.0
      %5886 = vst [vmem:[#allocation2 + $0x30] sm:$0xff] 0.0
      %5887 = vst [vmem:[#allocation2 + $0x38] sm:$0xff] 0.0
      %5888 = vst [vmem:[#allocation2 + $0x40] sm:$0xff] 0.0
      %5889 = vst [vmem:[#allocation2 + $0x48] sm:$0xff] 0.0
      %5890 = vst [vmem:[#allocation2 + $0x8] sm:$0xff] %v5872
      %5891 = vst [vmem:[#allocation2 + $0x10] sm:$0xff] %v5873
      %5892 = vst [vmem:[#allocation2 + $0x18] sm:$0xff] %v5874
      %5893 = vst [vmem:[#allocation2 + $0x20] sm:$0xff] %v5875
      %5894 = vst [vmem:[#allocation2 + $0x28] sm:$0xff] %v5876
      %5895 = vst [vmem:[#allocation2 + $0x30] sm:$0xff] %v5877
      %5896 = vst [vmem:[#allocation2 + $0x38] sm:$0xff] %v5878
      %5897 = vst [vmem:[#allocation2 + $0x40] sm:$0xff] %v5879
      %vm5898 = vcmp.gt.s32.totalorder %v1978, 0
      %vm5899 = vcmp.gt.s32.totalorder %v1979, 0
      %vm5900 = vcmp.gt.s32.totalorder %v1980, 0
      %vm5901 = vcmp.gt.s32.totalorder %v1981, 0
      %vm5902 = vcmp.gt.s32.totalorder %v1982, 0
      %vm5903 = vcmp.gt.s32.totalorder %v1983, 0
      %vm5904 = vcmp.gt.s32.totalorder %v1984, 0
      %vm5905 = vcmp.gt.s32.totalorder %v1985, 0
      %vm5906 = vcmp.lt.s32.totalorder %v1978, 31
      %vm5907 = vcmp.lt.s32.totalorder %v1979, 31
      %vm5908 = vcmp.lt.s32.totalorder %v1980, 31
      %vm5909 = vcmp.lt.s32.totalorder %v1981, 31
      %vm5910 = vcmp.lt.s32.totalorder %v1982, 31
      %vm5911 = vcmp.lt.s32.totalorder %v1983, 31
      %vm5912 = vcmp.lt.s32.totalorder %v1984, 31
      %vm5913 = vcmp.lt.s32.totalorder %v1985, 31
      %s5914 = scalar_lea.vmem %s4, 320
      %v5915 = vld [vmem:[%s5914] sm:$0xff]
      %5917 = vset.pattern.permute.xlu0 0
      %5918 = vperm.xlu0 %5917, %v5915
      %v5919 = vpop.permute.xlu0 %5918
      %v5921 = vmul.f32 %v5872, %v5919
      %v5922 = vmul.f32 %v5873, %v5919
      %v5923 = vmul.f32 %v5874, %v5919
      %v5924 = vmul.f32 %v5875, %v5919
      %v5925 = vmul.f32 %v5876, %v5919
      %v5926 = vmul.f32 %v5877, %v5919
      %v5927 = vmul.f32 %v5878, %v5919
      %v5928 = vmul.f32 %v5879, %v5919
      %v5929 = vld [vmem:[#allocation2] sm:$0xff]
      %v5930 = vld [vmem:[#allocation2 + $0x8] sm:$0xff]
      %v5931 = vld [vmem:[#allocation2 + $0x10] sm:$0xff]
      %v5932 = vld [vmem:[#allocation2 + $0x18] sm:$0xff]
      %v5933 = vld [vmem:[#allocation2 + $0x20] sm:$0xff]
      %v5934 = vld [vmem:[#allocation2 + $0x28] sm:$0xff]
      %v5935 = vld [vmem:[#allocation2 + $0x30] sm:$0xff]
      %v5936 = vld [vmem:[#allocation2 + $0x38] sm:$0xff]
      %v5937 = vld [vmem:[#allocation2 + $0x40] sm:$0xff]
      %v5938 = vsel %vm5898, 1, 0
      %v5939 = vsel %vm5899, 1, 0
      %v5940 = vsel %vm5900, 1, 0
      %v5941 = vsel %vm5901, 1, 0
      %v5942 = vsel %vm5902, 1, 0
      %v5943 = vsel %vm5903, 1, 0
      %v5944 = vsel %vm5904, 1, 0
      %v5945 = vsel %vm5905, 1, 0
      %vm5946 = vcmp.eq.s32.totalorder %v5938, 1
      %vm5947 = vcmp.eq.s32.totalorder %v5939, 1
      %vm5948 = vcmp.eq.s32.totalorder %v5940, 1
      %vm5949 = vcmp.eq.s32.totalorder %v5941, 1
      %vm5950 = vcmp.eq.s32.totalorder %v5942, 1
      %vm5951 = vcmp.eq.s32.totalorder %v5943, 1
      %vm5952 = vcmp.eq.s32.totalorder %v5944, 1
      %vm5953 = vcmp.eq.s32.totalorder %v5945, 1
      %5963 = vrot.lane.b32.xlu0 %v5929, 33
      %v5964 = vpop.permute.xlu0 %5963
      %5965 = vrot.lane.b32.xlu0 %v5930, 33
      %v5966 = vpop.permute.xlu0 %5965
      %5967 = vrot.lane.b32.xlu0 %v5931, 33
      %v5968 = vpop.permute.xlu0 %5967
      %5969 = vrot.lane.b32.xlu0 %v5932, 33
      %v5970 = vpop.permute.xlu0 %5969
      %5971 = vrot.lane.b32.xlu0 %v5933, 33
      %v5972 = vpop.permute.xlu0 %5971
      %5973 = vrot.lane.b32.xlu0 %v5934, 33
      %v5974 = vpop.permute.xlu0 %5973
      %5975 = vrot.lane.b32.xlu0 %v5935, 33
      %v5976 = vpop.permute.xlu0 %5975
      %5977 = vrot.lane.b32.xlu0 %v5936, 33
      %v5978 = vpop.permute.xlu0 %5977
      %5979 = vrot.lane.b32.xlu0 %v5937, 33
      %v5980 = vpop.permute.xlu0 %5979
      %vm5981 = vcmask 269312
      %v5982 = vsel %vm5981, %v5964, %v5966
      %v5983 = vsel %vm5981, %v5966, %v5968
      %v5984 = vsel %vm5981, %v5968, %v5970
      %v5985 = vsel %vm5981, %v5970, %v5972
      %v5986 = vsel %vm5981, %v5972, %v5974
      %v5987 = vsel %vm5981, %v5974, %v5976
      %v5988 = vsel %vm5981, %v5976, %v5978
      %v5989 = vsel %vm5981, %v5978, %v5980
      %v5998 = vsel %vm5946, %v5982, 0.0
      %v5999 = vsel %vm5947, %v5983, 0.0
      %v6000 = vsel %vm5948, %v5984, 0.0
      %v6001 = vsel %vm5949, %v5985, 0.0
      %v6002 = vsel %vm5950, %v5986, 0.0
      %v6003 = vsel %vm5951, %v5987, 0.0
      %v6004 = vsel %vm5952, %v5988, 0.0
      %v6005 = vsel %vm5953, %v5989, 0.0
      %s6006 = scalar_lea.vmem %s4, 288
      %v6007 = vld [vmem:[%s6006] sm:$0xff]
      %6009 = vset.pattern.permute.xlu0 0
      %6010 = vperm.xlu0 %6009, %v6007
      %v6011 = vpop.permute.xlu0 %6010
      %v6013 = vmul.f32 %v5998, %v6011
      %v6014 = vmul.f32 %v5999, %v6011
      %v6015 = vmul.f32 %v6000, %v6011
      %v6016 = vmul.f32 %v6001, %v6011
      %v6017 = vmul.f32 %v6002, %v6011
      %v6018 = vmul.f32 %v6003, %v6011
      %v6019 = vmul.f32 %v6004, %v6011
      %v6020 = vmul.f32 %v6005, %v6011
      %v6021 = vadd.f32 %v5921, %v6013
      %v6022 = vadd.f32 %v5922, %v6014
      %v6023 = vadd.f32 %v5923, %v6015
      %v6024 = vadd.f32 %v5924, %v6016
      %v6025 = vadd.f32 %v5925, %v6017
      %v6026 = vadd.f32 %v5926, %v6018
      %v6027 = vadd.f32 %v5927, %v6019
      %v6028 = vadd.f32 %v5928, %v6020
      %s6029 = scalar_lea.vmem %s4, 296
      %v6030 = vld [vmem:[%s6029] sm:$0xff]
      %6032 = vset.pattern.permute.xlu0 0
      %6033 = vperm.xlu0 %6032, %v6030
      %v6034 = vpop.permute.xlu0 %6033
      %v6036 = vmul.f32 %v5929, %v6034
      %v6037 = vmul.f32 %v5930, %v6034
      %v6038 = vmul.f32 %v5931, %v6034
      %v6039 = vmul.f32 %v5932, %v6034
      %v6040 = vmul.f32 %v5933, %v6034
      %v6041 = vmul.f32 %v5934, %v6034
      %v6042 = vmul.f32 %v5935, %v6034
      %v6043 = vmul.f32 %v5936, %v6034
      %v6044 = vmul.f32 %v5937, %v6034
      %6054 = vrot.lane.b32.xlu0 %v6036, 32
      %v6055 = vpop.permute.xlu0 %6054
      %6056 = vrot.lane.b32.xlu0 %v6037, 32
      %v6057 = vpop.permute.xlu0 %6056
      %6058 = vrot.lane.b32.xlu0 %v6038, 32
      %v6059 = vpop.permute.xlu0 %6058
      %6060 = vrot.lane.b32.xlu0 %v6039, 32
      %v6061 = vpop.permute.xlu0 %6060
      %6062 = vrot.lane.b32.xlu0 %v6040, 32
      %v6063 = vpop.permute.xlu0 %6062
      %6064 = vrot.lane.b32.xlu0 %v6041, 32
      %v6065 = vpop.permute.xlu0 %6064
      %6066 = vrot.lane.b32.xlu0 %v6042, 32
      %v6067 = vpop.permute.xlu0 %6066
      %6068 = vrot.lane.b32.xlu0 %v6043, 32
      %v6069 = vpop.permute.xlu0 %6068
      %6070 = vrot.lane.b32.xlu0 %v6044, 32
      %v6071 = vpop.permute.xlu0 %6070
      %vm6072 = vcmask 261120
      %v6073 = vsel %vm6072, %v6055, %v6057
      %v6074 = vsel %vm6072, %v6057, %v6059
      %v6075 = vsel %vm6072, %v6059, %v6061
      %v6076 = vsel %vm6072, %v6061, %v6063
      %v6077 = vsel %vm6072, %v6063, %v6065
      %v6078 = vsel %vm6072, %v6065, %v6067
      %v6079 = vsel %vm6072, %v6067, %v6069
      %v6080 = vsel %vm6072, %v6069, %v6071
      %v6089 = vadd.f32 %v6021, %v6073
      %v6090 = vadd.f32 %v6022, %v6074
      %v6091 = vadd.f32 %v6023, %v6075
      %v6092 = vadd.f32 %v6024, %v6076
      %v6093 = vadd.f32 %v6025, %v6077
      %v6094 = vadd.f32 %v6026, %v6078
      %v6095 = vadd.f32 %v6027, %v6079
      %v6096 = vadd.f32 %v6028, %v6080
      %v6097 = vsel %vm5906, 1, 0
      %v6098 = vsel %vm5907, 1, 0
      %v6099 = vsel %vm5908, 1, 0
      %v6100 = vsel %vm5909, 1, 0
      %v6101 = vsel %vm5910, 1, 0
      %v6102 = vsel %vm5911, 1, 0
      %v6103 = vsel %vm5912, 1, 0
      %v6104 = vsel %vm5913, 1, 0
      %vm6105 = vcmp.eq.s32.totalorder %v6097, 1
      %vm6106 = vcmp.eq.s32.totalorder %v6098, 1
      %vm6107 = vcmp.eq.s32.totalorder %v6099, 1
      %vm6108 = vcmp.eq.s32.totalorder %v6100, 1
      %vm6109 = vcmp.eq.s32.totalorder %v6101, 1
      %vm6110 = vcmp.eq.s32.totalorder %v6102, 1
      %vm6111 = vcmp.eq.s32.totalorder %v6103, 1
      %vm6112 = vcmp.eq.s32.totalorder %v6104, 1
      %6113 = vrot.lane.b32.xlu0 %v5929, 31
      %v6114 = vpop.permute.xlu0 %6113
      %6115 = vrot.lane.b32.xlu0 %v5930, 31
      %v6116 = vpop.permute.xlu0 %6115
      %6117 = vrot.lane.b32.xlu0 %v5931, 31
      %v6118 = vpop.permute.xlu0 %6117
      %6119 = vrot.lane.b32.xlu0 %v5932, 31
      %v6120 = vpop.permute.xlu0 %6119
      %6121 = vrot.lane.b32.xlu0 %v5933, 31
      %v6122 = vpop.permute.xlu0 %6121
      %6123 = vrot.lane.b32.xlu0 %v5934, 31
      %v6124 = vpop.permute.xlu0 %6123
      %6125 = vrot.lane.b32.xlu0 %v5935, 31
      %v6126 = vpop.permute.xlu0 %6125
      %6127 = vrot.lane.b32.xlu0 %v5936, 31
      %v6128 = vpop.permute.xlu0 %6127
      %6129 = vrot.lane.b32.xlu0 %v5937, 31
      %v6130 = vpop.permute.xlu0 %6129
      %vm6131 = vcmask 252928
      %v6132 = vsel %vm6131, %v6114, %v6116
      %v6133 = vsel %vm6131, %v6116, %v6118
      %v6134 = vsel %vm6131, %v6118, %v6120
      %v6135 = vsel %vm6131, %v6120, %v6122
      %v6136 = vsel %vm6131, %v6122, %v6124
      %v6137 = vsel %vm6131, %v6124, %v6126
      %v6138 = vsel %vm6131, %v6126, %v6128
      %v6139 = vsel %vm6131, %v6128, %v6130
      %v6148 = vsel %vm6105, %v6132, 0.0
      %v6149 = vsel %vm6106, %v6133, 0.0
      %v6150 = vsel %vm6107, %v6134, 0.0
      %v6151 = vsel %vm6108, %v6135, 0.0
      %v6152 = vsel %vm6109, %v6136, 0.0
      %v6153 = vsel %vm6110, %v6137, 0.0
      %v6154 = vsel %vm6111, %v6138, 0.0
      %v6155 = vsel %vm6112, %v6139, 0.0
      %s6156 = scalar_lea.vmem %s4, 304
      %v6157 = vld [vmem:[%s6156] sm:$0xff]
      %6159 = vset.pattern.permute.xlu0 0
      %6160 = vperm.xlu0 %6159, %v6157
      %v6161 = vpop.permute.xlu0 %6160
      %v6163 = vmul.f32 %v6148, %v6161
      %v6164 = vmul.f32 %v6149, %v6161
      %v6165 = vmul.f32 %v6150, %v6161
      %v6166 = vmul.f32 %v6151, %v6161
      %v6167 = vmul.f32 %v6152, %v6161
      %v6168 = vmul.f32 %v6153, %v6161
      %v6169 = vmul.f32 %v6154, %v6161
      %v6170 = vmul.f32 %v6155, %v6161
      %v6171 = vadd.f32 %v6089, %v6163
      %v6172 = vadd.f32 %v6090, %v6164
      %v6173 = vadd.f32 %v6091, %v6165
      %v6174 = vadd.f32 %v6092, %v6166
      %v6175 = vadd.f32 %v6093, %v6167
      %v6176 = vadd.f32 %v6094, %v6168
      %v6177 = vadd.f32 %v6095, %v6169
      %v6178 = vadd.f32 %v6096, %v6170
      %6179 = vrot.lane.b32.xlu0 %v5929, 1
      %v6180 = vpop.permute.xlu0 %6179
      %6181 = vrot.lane.b32.xlu0 %v5930, 1
      %v6182 = vpop.permute.xlu0 %6181
      %6183 = vrot.lane.b32.xlu0 %v5931, 1
      %v6184 = vpop.permute.xlu0 %6183
      %6185 = vrot.lane.b32.xlu0 %v5932, 1
      %v6186 = vpop.permute.xlu0 %6185
      %6187 = vrot.lane.b32.xlu0 %v5933, 1
      %v6188 = vpop.permute.xlu0 %6187
      %6189 = vrot.lane.b32.xlu0 %v5934, 1
      %v6190 = vpop.permute.xlu0 %6189
      %6191 = vrot.lane.b32.xlu0 %v5935, 1
      %v6192 = vpop.permute.xlu0 %6191
      %6193 = vrot.lane.b32.xlu0 %v5936, 1
      %v6194 = vpop.permute.xlu0 %6193
      %6195 = vrot.lane.b32.xlu0 %v5937, 1
      %v6196 = vpop.permute.xlu0 %6195
      %v6197 = vsel %vm3826, %v6180, %v6182
      %v6198 = vsel %vm3826, %v6182, %v6184
      %v6199 = vsel %vm3826, %v6184, %v6186
      %v6200 = vsel %vm3826, %v6186, %v6188
      %v6201 = vsel %vm3826, %v6188, %v6190
      %v6202 = vsel %vm3826, %v6190, %v6192
      %v6203 = vsel %vm3826, %v6192, %v6194
      %v6204 = vsel %vm3826, %v6194, %v6196
      %v6213 = vsel %vm5946, %v6197, 0.0
      %v6214 = vsel %vm5947, %v6198, 0.0
      %v6215 = vsel %vm5948, %v6199, 0.0
      %v6216 = vsel %vm5949, %v6200, 0.0
      %v6217 = vsel %vm5950, %v6201, 0.0
      %v6218 = vsel %vm5951, %v6202, 0.0
      %v6219 = vsel %vm5952, %v6203, 0.0
      %v6220 = vsel %vm5953, %v6204, 0.0
      %s6221 = scalar_lea.vmem %s4, 312
      %v6222 = vld [vmem:[%s6221] sm:$0xff]
      %6224 = vset.pattern.permute.xlu0 0
      %6225 = vperm.xlu0 %6224, %v6222
      %v6226 = vpop.permute.xlu0 %6225
      %v6228 = vmul.f32 %v6213, %v6226
      %v6229 = vmul.f32 %v6214, %v6226
      %v6230 = vmul.f32 %v6215, %v6226
      %v6231 = vmul.f32 %v6216, %v6226
      %v6232 = vmul.f32 %v6217, %v6226
      %v6233 = vmul.f32 %v6218, %v6226
      %v6234 = vmul.f32 %v6219, %v6226
      %v6235 = vmul.f32 %v6220, %v6226
      %v6236 = vadd.f32 %v6171, %v6228
      %v6237 = vadd.f32 %v6172, %v6229
      %v6238 = vadd.f32 %v6173, %v6230
      %v6239 = vadd.f32 %v6174, %v6231
      %v6240 = vadd.f32 %v6175, %v6232
      %v6241 = vadd.f32 %v6176, %v6233
      %v6242 = vadd.f32 %v6177, %v6234
      %v6243 = vadd.f32 %v6178, %v6235
      %v6244 = vld [vmem:[#allocation2 + $0x8] sm:$0xff]
      %v6245 = vld [vmem:[#allocation2 + $0x10] sm:$0xff]
      %v6246 = vld [vmem:[#allocation2 + $0x18] sm:$0xff]
      %v6247 = vld [vmem:[#allocation2 + $0x20] sm:$0xff]
      %v6248 = vld [vmem:[#allocation2 + $0x28] sm:$0xff]
      %v6249 = vld [vmem:[#allocation2 + $0x30] sm:$0xff]
      %v6250 = vld [vmem:[#allocation2 + $0x38] sm:$0xff]
      %v6251 = vld [vmem:[#allocation2 + $0x40] sm:$0xff]
      %v6252 = vld [vmem:[#allocation2 + $0x48] sm:$0xff]
      %6262 = vrot.lane.b32.xlu0 %v6244, 127
      %v6263 = vpop.permute.xlu0 %6262
      %6264 = vrot.lane.b32.xlu0 %v6245, 127
      %v6265 = vpop.permute.xlu0 %6264
      %6266 = vrot.lane.b32.xlu0 %v6246, 127
      %v6267 = vpop.permute.xlu0 %6266
      %6268 = vrot.lane.b32.xlu0 %v6247, 127
      %v6269 = vpop.permute.xlu0 %6268
      %6270 = vrot.lane.b32.xlu0 %v6248, 127
      %v6271 = vpop.permute.xlu0 %6270
      %6272 = vrot.lane.b32.xlu0 %v6249, 127
      %v6273 = vpop.permute.xlu0 %6272
      %6274 = vrot.lane.b32.xlu0 %v6250, 127
      %v6275 = vpop.permute.xlu0 %6274
      %6276 = vrot.lane.b32.xlu0 %v6251, 127
      %v6277 = vpop.permute.xlu0 %6276
      %6278 = vrot.lane.b32.xlu0 %v6252, 127
      %v6279 = vpop.permute.xlu0 %6278
      %v6280 = vsel %vm5081, %v6263, %v6265
      %v6281 = vsel %vm5081, %v6265, %v6267
      %v6282 = vsel %vm5081, %v6267, %v6269
      %v6283 = vsel %vm5081, %v6269, %v6271
      %v6284 = vsel %vm5081, %v6271, %v6273
      %v6285 = vsel %vm5081, %v6273, %v6275
      %v6286 = vsel %vm5081, %v6275, %v6277
      %v6287 = vsel %vm5081, %v6277, %v6279
      %v6296 = vsel %vm6105, %v6280, 0.0
      %v6297 = vsel %vm6106, %v6281, 0.0
      %v6298 = vsel %vm6107, %v6282, 0.0
      %v6299 = vsel %vm6108, %v6283, 0.0
      %v6300 = vsel %vm6109, %v6284, 0.0
      %v6301 = vsel %vm6110, %v6285, 0.0
      %v6302 = vsel %vm6111, %v6286, 0.0
      %v6303 = vsel %vm6112, %v6287, 0.0
      %s6304 = scalar_lea.vmem %s4, 328
      %v6305 = vld [vmem:[%s6304] sm:$0xff]
      %6307 = vset.pattern.permute.xlu0 0
      %6308 = vperm.xlu0 %6307, %v6305
      %v6309 = vpop.permute.xlu0 %6308
      %v6311 = vmul.f32 %v6296, %v6309
      %v6312 = vmul.f32 %v6297, %v6309
      %v6313 = vmul.f32 %v6298, %v6309
      %v6314 = vmul.f32 %v6299, %v6309
      %v6315 = vmul.f32 %v6300, %v6309
      %v6316 = vmul.f32 %v6301, %v6309
      %v6317 = vmul.f32 %v6302, %v6309
      %v6318 = vmul.f32 %v6303, %v6309
      %v6319 = vadd.f32 %v6236, %v6311
      %v6320 = vadd.f32 %v6237, %v6312
      %v6321 = vadd.f32 %v6238, %v6313
      %v6322 = vadd.f32 %v6239, %v6314
      %v6323 = vadd.f32 %v6240, %v6315
      %v6324 = vadd.f32 %v6241, %v6316
      %v6325 = vadd.f32 %v6242, %v6317
      %v6326 = vadd.f32 %v6243, %v6318
      %6327 = vrot.lane.b32.xlu0 %v6244, 97
      %v6328 = vpop.permute.xlu0 %6327
      %6329 = vrot.lane.b32.xlu0 %v6245, 97
      %v6330 = vpop.permute.xlu0 %6329
      %6331 = vrot.lane.b32.xlu0 %v6246, 97
      %v6332 = vpop.permute.xlu0 %6331
      %6333 = vrot.lane.b32.xlu0 %v6247, 97
      %v6334 = vpop.permute.xlu0 %6333
      %6335 = vrot.lane.b32.xlu0 %v6248, 97
      %v6336 = vpop.permute.xlu0 %6335
      %6337 = vrot.lane.b32.xlu0 %v6249, 97
      %v6338 = vpop.permute.xlu0 %6337
      %6339 = vrot.lane.b32.xlu0 %v6250, 97
      %v6340 = vpop.permute.xlu0 %6339
      %6341 = vrot.lane.b32.xlu0 %v6251, 97
      %v6342 = vpop.permute.xlu0 %6341
      %6343 = vrot.lane.b32.xlu0 %v6252, 97
      %v6344 = vpop.permute.xlu0 %6343
      %vm6345 = vcmask 793600
      %v6346 = vsel %vm6345, %v6328, %v6330
      %v6347 = vsel %vm6345, %v6330, %v6332
      %v6348 = vsel %vm6345, %v6332, %v6334
      %v6349 = vsel %vm6345, %v6334, %v6336
      %v6350 = vsel %vm6345, %v6336, %v6338
      %v6351 = vsel %vm6345, %v6338, %v6340
      %v6352 = vsel %vm6345, %v6340, %v6342
      %v6353 = vsel %vm6345, %v6342, %v6344
      %v6362 = vsel %vm5946, %v6346, 0.0
      %v6363 = vsel %vm5947, %v6347, 0.0
      %v6364 = vsel %vm5948, %v6348, 0.0
      %v6365 = vsel %vm5949, %v6349, 0.0
      %v6366 = vsel %vm5950, %v6350, 0.0
      %v6367 = vsel %vm5951, %v6351, 0.0
      %v6368 = vsel %vm5952, %v6352, 0.0
      %v6369 = vsel %vm5953, %v6353, 0.0
      %s6370 = scalar_lea.vmem %s4, 336
      %v6371 = vld [vmem:[%s6370] sm:$0xff]
      %6373 = vset.pattern.permute.xlu0 0
      %6374 = vperm.xlu0 %6373, %v6371
      %v6375 = vpop.permute.xlu0 %6374
      %v6377 = vmul.f32 %v6362, %v6375
      %v6378 = vmul.f32 %v6363, %v6375
      %v6379 = vmul.f32 %v6364, %v6375
      %v6380 = vmul.f32 %v6365, %v6375
      %v6381 = vmul.f32 %v6366, %v6375
      %v6382 = vmul.f32 %v6367, %v6375
      %v6383 = vmul.f32 %v6368, %v6375
      %v6384 = vmul.f32 %v6369, %v6375
      %v6385 = vadd.f32 %v6319, %v6377
      %v6386 = vadd.f32 %v6320, %v6378
      %v6387 = vadd.f32 %v6321, %v6379
      %v6388 = vadd.f32 %v6322, %v6380
      %v6389 = vadd.f32 %v6323, %v6381
      %v6390 = vadd.f32 %v6324, %v6382
      %v6391 = vadd.f32 %v6325, %v6383
      %v6392 = vadd.f32 %v6326, %v6384
      %s6393 = scalar_lea.vmem %s4, 344
      %v6394 = vld [vmem:[%s6393] sm:$0xff]
      %6396 = vset.pattern.permute.xlu0 0
      %6397 = vperm.xlu0 %6396, %v6394
      %v6398 = vpop.permute.xlu0 %6397
      %v6400 = vmul.f32 %v6244, %v6398
      %v6401 = vmul.f32 %v6245, %v6398
      %v6402 = vmul.f32 %v6246, %v6398
      %v6403 = vmul.f32 %v6247, %v6398
      %v6404 = vmul.f32 %v6248, %v6398
      %v6405 = vmul.f32 %v6249, %v6398
      %v6406 = vmul.f32 %v6250, %v6398
      %v6407 = vmul.f32 %v6251, %v6398
      %v6408 = vmul.f32 %v6252, %v6398
      %6418 = vrot.lane.b32.xlu0 %v6400, 96
      %v6419 = vpop.permute.xlu0 %6418
      %6420 = vrot.lane.b32.xlu0 %v6401, 96
      %v6421 = vpop.permute.xlu0 %6420
      %6422 = vrot.lane.b32.xlu0 %v6402, 96
      %v6423 = vpop.permute.xlu0 %6422
      %6424 = vrot.lane.b32.xlu0 %v6403, 96
      %v6425 = vpop.permute.xlu0 %6424
      %6426 = vrot.lane.b32.xlu0 %v6404, 96
      %v6427 = vpop.permute.xlu0 %6426
      %6428 = vrot.lane.b32.xlu0 %v6405, 96
      %v6429 = vpop.permute.xlu0 %6428
      %6430 = vrot.lane.b32.xlu0 %v6406, 96
      %v6431 = vpop.permute.xlu0 %6430
      %6432 = vrot.lane.b32.xlu0 %v6407, 96
      %v6433 = vpop.permute.xlu0 %6432
      %6434 = vrot.lane.b32.xlu0 %v6408, 96
      %v6435 = vpop.permute.xlu0 %6434
      %vm6436 = vcmask 785408
      %v6437 = vsel %vm6436, %v6419, %v6421
      %v6438 = vsel %vm6436, %v6421, %v6423
      %v6439 = vsel %vm6436, %v6423, %v6425
      %v6440 = vsel %vm6436, %v6425, %v6427
      %v6441 = vsel %vm6436, %v6427, %v6429
      %v6442 = vsel %vm6436, %v6429, %v6431
      %v6443 = vsel %vm6436, %v6431, %v6433
      %v6444 = vsel %vm6436, %v6433, %v6435
      %v6453 = vadd.f32 %v6385, %v6437
      %v6454 = vadd.f32 %v6386, %v6438
      %v6455 = vadd.f32 %v6387, %v6439
      %v6456 = vadd.f32 %v6388, %v6440
      %v6457 = vadd.f32 %v6389, %v6441
      %v6458 = vadd.f32 %v6390, %v6442
      %v6459 = vadd.f32 %v6391, %v6443
      %v6460 = vadd.f32 %v6392, %v6444
      %6461 = vrot.lane.b32.xlu0 %v6244, 95
      %v6462 = vpop.permute.xlu0 %6461
      %6463 = vrot.lane.b32.xlu0 %v6245, 95
      %v6464 = vpop.permute.xlu0 %6463
      %6465 = vrot.lane.b32.xlu0 %v6246, 95
      %v6466 = vpop.permute.xlu0 %6465
      %6467 = vrot.lane.b32.xlu0 %v6247, 95
      %v6468 = vpop.permute.xlu0 %6467
      %6469 = vrot.lane.b32.xlu0 %v6248, 95
      %v6470 = vpop.permute.xlu0 %6469
      %6471 = vrot.lane.b32.xlu0 %v6249, 95
      %v6472 = vpop.permute.xlu0 %6471
      %6473 = vrot.lane.b32.xlu0 %v6250, 95
      %v6474 = vpop.permute.xlu0 %6473
      %6475 = vrot.lane.b32.xlu0 %v6251, 95
      %v6476 = vpop.permute.xlu0 %6475
      %6477 = vrot.lane.b32.xlu0 %v6252, 95
      %v6478 = vpop.permute.xlu0 %6477
      %vm6479 = vcmask 777216
      %v6480 = vsel %vm6479, %v6462, %v6464
      %v6481 = vsel %vm6479, %v6464, %v6466
      %v6482 = vsel %vm6479, %v6466, %v6468
      %v6483 = vsel %vm6479, %v6468, %v6470
      %v6484 = vsel %vm6479, %v6470, %v6472
      %v6485 = vsel %vm6479, %v6472, %v6474
      %v6486 = vsel %vm6479, %v6474, %v6476
      %v6487 = vsel %vm6479, %v6476, %v6478
      %v6496 = vsel %vm6105, %v6480, 0.0
      %v6497 = vsel %vm6106, %v6481, 0.0
      %v6498 = vsel %vm6107, %v6482, 0.0
      %v6499 = vsel %vm6108, %v6483, 0.0
      %v6500 = vsel %vm6109, %v6484, 0.0
      %v6501 = vsel %vm6110, %v6485, 0.0
      %v6502 = vsel %vm6111, %v6486, 0.0
      %v6503 = vsel %vm6112, %v6487, 0.0
      %s6504 = scalar_lea.vmem %s4, 352
      %v6505 = vld [vmem:[%s6504] sm:$0xff]
      %6507 = vset.pattern.permute.xlu0 0
      %6508 = vperm.xlu0 %6507, %v6505
      %v6509 = vpop.permute.xlu0 %6508
      %v6511 = vmul.f32 %v6496, %v6509
      %v6512 = vmul.f32 %v6497, %v6509
      %v6513 = vmul.f32 %v6498, %v6509
      %v6514 = vmul.f32 %v6499, %v6509
      %v6515 = vmul.f32 %v6500, %v6509
      %v6516 = vmul.f32 %v6501, %v6509
      %v6517 = vmul.f32 %v6502, %v6509
      %v6518 = vmul.f32 %v6503, %v6509
      %v6519 = vadd.f32 %v6453, %v6511
      %v6520 = vadd.f32 %v6454, %v6512
      %v6521 = vadd.f32 %v6455, %v6513
      %v6522 = vadd.f32 %v6456, %v6514
      %v6523 = vadd.f32 %v6457, %v6515
      %v6524 = vadd.f32 %v6458, %v6516
      %v6525 = vadd.f32 %v6459, %v6517
      %v6526 = vadd.f32 %v6460, %v6518
      %s6527 = scalar_lea.vmem %s5, 32
      %v6528 = vld [vmem:[%s6527] sm:$0xff]
      %6530 = vset.pattern.permute.xlu0 0
      %6531 = vperm.xlu0 %6530, %v6528
      %v6532 = vpop.permute.xlu0 %6531
      %v6534 = vadd.f32 %v6519, %v6532
      %v6535 = vadd.f32 %v6520, %v6532
      %v6536 = vadd.f32 %v6521, %v6532
      %v6537 = vadd.f32 %v6522, %v6532
      %v6538 = vadd.f32 %v6523, %v6532
      %v6539 = vadd.f32 %v6524, %v6532
      %v6540 = vadd.f32 %v6525, %v6532
      %v6541 = vadd.f32 %v6526, %v6532
      %v6542 = vmax.f32 %v6534, 0.0
      %v6543 = vmax.f32 %v6535, 0.0
      %v6544 = vmax.f32 %v6536, 0.0
      %v6545 = vmax.f32 %v6537, 0.0
      %v6546 = vmax.f32 %v6538, 0.0
      %v6547 = vmax.f32 %v6539, 0.0
      %v6548 = vmax.f32 %v6540, 0.0
      %v6549 = vmax.f32 %v6541, 0.0
      %6550 = vst [vmem:[%s251] sm:$0xff] %v6542
      %6551 = vst [vmem:[%s251 + $0x8] sm:$0xff] %v6543
      %6552 = vst [vmem:[%s251 + $0x10] sm:$0xff] %v6544
      %6553 = vst [vmem:[%s251 + $0x18] sm:$0xff] %v6545
      %6554 = vst [vmem:[%s251 + $0x20] sm:$0xff] %v6546
      %6555 = vst [vmem:[%s251 + $0x28] sm:$0xff] %v6547
      %6556 = vst [vmem:[%s251 + $0x30] sm:$0xff] %v6548
      %6557 = vst [vmem:[%s251 + $0x38] sm:$0xff] %v6549
      %p6558 = scmp.lt.s32.totalorder %s17, 1
      %s6559 = scalar_select %p6558, %s17, 1
      %s6560 = smul.addr %s6559, 8
      %s6561 = smul.addr %s6560, 8
      %s6562 = scalar_lea.vmem %s6, %s6561
      // Predicated region
      $region45: #{dunet_forward.1} parent=43 // pred_check
        %p6563 = pneg %p166
      $region46: #{dunet_forward.1} parent=43 // pred_check_branch
        %6565 = sbr.rel (%p6563) target = $region48
      $region47: #{dunet_forward.1} parent=43 // pred_region
        _
      $region48: #{dunet_forward.1} parent=43 // pred_fallthru
        _
    $region44: #{dunet_forward.1} parent=5 // pred_fallthru
      _
    %p6566 = scmp.le.s32.totalorder 2, %s12
    // Predicated region
    $region49: #{dunet_forward.1} parent=5 // pred_check
      %p6567 = pneg %p6566
    $region50: #{dunet_forward.1} parent=5 // pred_check_branch
      %6569 = sbr.rel (%p6567) target = $region52
    $region51: #{dunet_forward.1} parent=5 // pred_region
      %s6570 = ssub.s32 %s12, 2
      // Predicated region
      $region53: #{dunet_forward.1} parent=51 // pred_check
        %p6571 = pneg %p172
      $region54: #{dunet_forward.1} parent=51 // pred_check_branch
        %6573 = sbr.rel (%p6571) target = $region56
      $region55: #{dunet_forward.1} parent=51 // pred_region
        %p6574 = scmp.lt.s32.totalorder %s18, 1
        %s6575 = scalar_select %p6574, %s18, 1
        %s6576 = smul.addr %s6575, 8
        %s6577 = smul.addr %s6576, 8
        %s6578 = scalar_lea.vmem %s6, %s6577
      $region56: #{dunet_forward.1} parent=51 // pred_fallthru
        _
    $region52: #{dunet_forward.1} parent=5 // pred_fallthru
      _
  $region6: #{dunet_forward.1} parent=0 // loop_footer
    %s16 = sadd.s32 1, %s12
  $region7: #{dunet_forward.1} parent=0 // loop_footer_branch
    %11 = sbr.rel target = $region3
  $region8: #{dunet_forward.1} parent=0 // loop_exit
    _

</llo_original>
